<compile_context>
chip_gen: v6e
topology: v6e:2x2x1
jax: 0.10.0
libtpu: 0.0.40
codegen_flags: <defaults>
</compile_context>

<pallas_src>
import functools

import jax
import jax.numpy as jnp
from jax import lax
from jax.experimental import pallas as pl
from jax.experimental.pallas import tpu as pltpu

LANES = 128


def _round_up(x, m):
    return (x + m - 1) // m * m


# ============================================================================
# Pallas kernel: the whole VAE forward for ONE image per grid step.
# Layouts: every activation lives on a 4x4 cell grid, padded to 6x6 and
# flattened to 36 rows; the "ext" buffers have 7 extra zero rows on each end
# so a 3x3/stride-1 conv is 9 contiguous 36-row slices at offsets 6*ky+kx.
# ============================================================================
def _vae_kernel(x_ref, eps_ref, mask_ref, colsel_ref, rtile_ref, rtilet_ref,
                we1, be1, we2, be2, we3, be3,
                wh, bh, wdfc, bdfc,
                wd1, bd1, wd2, bd2, wd3, bd3,
                mu_ref, lv_ref, dec_ref,
                buf_e1, buf_e2, buf_d0, buf_d1, buf_d2,
                *, lpad):
    mask = mask_ref[...]          # [36, 1]  f32, 1 on interior (non-padding) rows
    colsel = colsel_ref[...]      # [36, feat] f32, (row, flat-feature) selector

    def conv3x3(load, w_ref, b_ref, act):
        acc = None
        for ky in range(3):
            for kx in range(3):
                xt = load(ky * 6 + kx)                       # [36, Cin] bf16
                t = jnp.dot(xt, w_ref[ky * 3 + kx],
                            preferred_element_type=jnp.float32)
                acc = t if acc is None else acc + t
        y = acc + b_ref[...]
        if act == "relu":
            y = jnp.maximum(y, 0.0)
        else:                                                # "sigmoid"
            y = jax.nn.sigmoid(y)
        return y * mask           # zero border rows == zero padding of next layer

    def store_ext(buf, y):
        buf[...] = jnp.zeros(buf.shape, buf.dtype)
        buf[pl.ds(7, 36), :] = y.astype(buf.dtype)

    def ext_load(buf):
        return lambda s: buf[pl.ds(s, 36), :]

    # ----------------------------- encoder -----------------------------
    y = conv3x3(lambda s: x_ref[0, pl.ds(s, 36), :], we1, be1, "relu")
    store_ext(buf_e1, y)
    y = conv3x3(ext_load(buf_e1), we2, be2, "relu")
    store_ext(buf_e2, y)
    y3 = conv3x3(ext_load(buf_e2), we3, be3, "relu")          # [36, 4*hc] f32

    # -------------- fc_mu + fc_logvar + reparameterize + decoder fc --------------
    y3b = y3.astype(jnp.bfloat16)
    rep = jnp.dot(y3b, rtile_ref[...], preferred_element_type=jnp.float32)  # [36, feat]
    sel = (rep * colsel).astype(jnp.bfloat16)
    contrib = jnp.dot(sel, wh[...], preferred_element_type=jnp.float32)     # [36, 2*lpad]
    heads = jnp.sum(contrib, axis=0, keepdims=True) + bh[...]               # [1, 2*lpad]
    mu = heads[:, :lpad]
    lv = heads[:, lpad:]
    mu_ref[0] = mu
    lv_ref[0] = lv
    z = mu + eps_ref[0] * jnp.exp(0.5 * lv)                                 # [1, lpad]
    d_vec = jnp.dot(z.astype(jnp.bfloat16), wdfc[...],
                    preferred_element_type=jnp.float32) + bdfc[...]         # [1, feat]
    d_sel = (d_vec * colsel).astype(jnp.bfloat16)                           # [36, feat]
    d0 = jnp.dot(d_sel, rtilet_ref[...], preferred_element_type=jnp.float32)  # [36, 4*hc]
    store_ext(buf_d0, d0)

    # ----------------------------- decoder -----------------------------
    y = conv3x3(ext_load(buf_d0), wd1, bd1, "relu")
    store_ext(buf_d1, y)
    y = conv3x3(ext_load(buf_d1), wd2, bd2, "relu")
    store_ext(buf_d2, y)
    y = conv3x3(ext_load(buf_d2), wd3, bd3, "sigmoid")                      # [36, 64*ic]
    dec_ref[0] = y


# ============================================================================
# Parameter init (PyTorch layouts) and one-time packing into kernel layouts.
# ============================================================================
def init_params_torch_layout(key, latent_dim, image_channels, hc):
    ks = jax.random.split(key, 18)
    n = lambda k, shape, s=0.05: (s * jax.random.normal(k, shape)).astype(jnp.float32)
    feat = hc * 4 * 4 * 4
    return {
        "e1_w": n(ks[0], (hc, image_channels, 4, 4)),   "e1_b": n(ks[1], (hc,)),
        "e2_w": n(ks[2], (hc * 2, hc, 4, 4)),           "e2_b": n(ks[3], (hc * 2,)),
        "e3_w": n(ks[4], (hc * 4, hc * 2, 4, 4)),       "e3_b": n(ks[5], (hc * 4,)),
        "mu_w": n(ks[6], (latent_dim, feat)),           "mu_b": n(ks[7], (latent_dim,)),
        "lv_w": n(ks[8], (latent_dim, feat)),           "lv_b": n(ks[9], (latent_dim,)),
        "dfc_w": n(ks[10], (feat, latent_dim)),         "dfc_b": n(ks[11], (feat,)),
        "d1_w": n(ks[12], (hc * 4, hc * 2, 4, 4)),      "d1_b": n(ks[13], (hc * 2,)),
        "d2_w": n(ks[14], (hc * 2, hc, 4, 4)),          "d2_b": n(ks[15], (hc,)),
        "d3_w": n(ks[16], (hc, image_channels, 4, 4)),  "d3_b": n(ks[17], (image_channels,)),
    }


def pack_params(raw, latent_dim, image_channels, hc):
    """Repack torch-layout params into the fused kernel's layouts.

    Each original (transposed) conv is converted, by exact impulse-response
    extraction, into an equivalent 3x3/stride-1 conv over a 4x4 cell grid with
    space-to-depth packed channels (packed channel = (py*bs + px)*C + c).
    """
    ic = image_channels
    lpad = _round_up(latent_dim, LANES)
    cc = 4 * hc                        # channels of the 4x4 bottleneck feature map
    feat = 16 * cc                     # = hc*4*4*4, torch flatten size
    f32, bf16 = jnp.float32, jnp.bfloat16
    hi = lax.Precision.HIGHEST

    def conv_apply(w):                 # Conv2d k4 s2 p1 (NCHW / OIHW)
        return lambda t: lax.conv_general_dilated(
            t, w, (2, 2), [(1, 1), (1, 1)],
            dimension_numbers=("NCHW", "OIHW", "NCHW"), precision=hi)

    def convT_apply(w):                # ConvTranspose2d k4 s2 p1 (torch weight [Cin,Cout,4,4])
        wf = jnp.flip(w, (2, 3)).transpose(1, 0, 2, 3)
        return lambda t: lax.conv_general_dilated(
            t, wf, (1, 1), [(2, 2), (2, 2)], lhs_dilation=(2, 2),
            dimension_numbers=("NCHW", "OIHW", "NCHW"), precision=hi)

    def eff_weight(apply_fn, bs_in, c_in, bs_out, c_out):
        cin_eff = bs_in * bs_in * c_in
        cout_eff = bs_out * bs_out * c_out
        basis = jnp.eye(cin_eff, dtype=f32).reshape(cin_eff, bs_in, bs_in, c_in)
        probe = jnp.zeros((cin_eff, 3 * bs_in, 3 * bs_in, c_in), f32)
        probe = probe.at[:, bs_in:2 * bs_in, bs_in:2 * bs_in, :].set(basis)
        out = apply_fn(probe.transpose(0, 3, 1, 2))            # [cin_eff, c_out, 3bs_out, 3bs_out]
        out = out.transpose(0, 2, 3, 1)
        out = out.reshape(cin_eff, 3, bs_out, 3, bs_out, c_out)
        out = out.transpose(0, 1, 3, 2, 4, 5).reshape(cin_eff, 3, 3, cout_eff)
        w = out[:, ::-1, ::-1, :].transpose(1, 2, 0, 3)        # [3, 3, cin_eff, cout_eff]
        return w.reshape(9, cin_eff, cout_eff).astype(bf16)

    def eff_bias(b, bs_out):
        return jnp.tile(b, bs_out * bs_out).reshape(1, -1).astype(f32)

    p = {}
    p["we1"] = eff_weight(conv_apply(raw["e1_w"]), 8, ic, 4, hc)
    p["be1"] = eff_bias(raw["e1_b"], 4)
    p["we2"] = eff_weight(conv_apply(raw["e2_w"]), 4, hc, 2, 2 * hc)
    p["be2"] = eff_bias(raw["e2_b"], 2)
    p["we3"] = eff_weight(conv_apply(raw["e3_w"]), 2, 2 * hc, 1, 4 * hc)
    p["be3"] = eff_bias(raw["e3_b"], 1)
    p["wd1"] = eff_weight(convT_apply(raw["d1_w"]), 1, 4 * hc, 2, 2 * hc)
    p["bd1"] = eff_bias(raw["d1_b"], 2)
    p["wd2"] = eff_weight(convT_apply(raw["d2_w"]), 2, 2 * hc, 4, hc)
    p["bd2"] = eff_bias(raw["d2_b"], 4)
    p["wd3"] = eff_weight(convT_apply(raw["d3_w"]), 4, hc, 8, ic)
    p["bd3"] = eff_bias(raw["d3_b"], 8)

    # fc heads (fused mu/logvar) + decoder fc: permute torch's (C,H,W) flatten
    # order to our (cell, channel) order;  ours k = cell*cc + c  <->  torch c*16 + cell.
    k = jnp.arange(feat)
    perm = (k % cc) * 16 + (k // cc)
    wh = jnp.zeros((feat, 2 * lpad), f32)
    wh = wh.at[:, :latent_dim].set(raw["mu_w"][:, perm].T)
    wh = wh.at[:, lpad:lpad + latent_dim].set(raw["lv_w"][:, perm].T)
    bh = jnp.zeros((1, 2 * lpad), f32)
    bh = bh.at[0, :latent_dim].set(raw["mu_b"])
    bh = bh.at[0, lpad:lpad + latent_dim].set(raw["lv_b"])
    p["wh"], p["bh"] = wh.astype(bf16), bh

    wdfc = jnp.zeros((lpad, feat), f32)
    wdfc = wdfc.at[:latent_dim, :].set(raw["dfc_w"][perm, :].T)
    p["wdfc"] = wdfc.astype(bf16)
    p["bdfc"] = raw["dfc_b"][perm].reshape(1, feat).astype(f32)

    # layout constants consumed by the kernel
    rr = jnp.arange(36)
    ipad, jpad = rr // 6, rr % 6
    interior = (ipad >= 1) & (ipad <= 4) & (jpad >= 1) & (jpad <= 4)
    p["mask"] = interior.astype(f32).reshape(36, 1)
    cell = (ipad - 1) * 4 + (jpad - 1)
    kk = jnp.arange(feat)
    p["colsel"] = (interior[:, None] & (kk[None, :] // cc == cell[:, None])).astype(f32)
    rt = (kk[None, :] % cc == jnp.arange(cc)[:, None])         # [cc, feat]
    p["rtile"] = rt.astype(bf16)
    p["rtile_t"] = rt.T.astype(bf16)
    return p


# ============================================================================
# Forward wrapper: one pallas_call, boundary pack/unpack only.
# ============================================================================
def build_vae_forward(latent_dim, image_channels, hc):
    ic = image_channels
    lpad = _round_up(latent_dim, LANES)
    cc = 4 * hc
    cin0 = 64 * ic
    kernel = functools.partial(_vae_kernel, lpad=lpad)

    def forward(p, x, eps):
        B = x.shape[0]
        # pack input: NCHW -> NHWC (bf16 once) -> 4x4 cells of 8x8xC -> padded flat rows
        xh = x.transpose(0, 2, 3, 1).astype(jnp.bfloat16)
        xp = xh.reshape(B, 4, 8, 4, 8, ic).transpose(0, 1, 3, 2, 4, 5).reshape(B, 4, 4, cin0)
        xp = jnp.pad(xp, ((0, 0), (1, 1), (1, 1), (0, 0))).reshape(B, 36, cin0)
        x_ext = jnp.pad(xp, ((0, 0), (7, 7), (0, 0)))          # [B, 50, cin0]
        eps_p = jnp.pad(eps, ((0, 0), (0, lpad - latent_dim))).astype(jnp.float32)
        eps_p = eps_p.reshape(B, 1, lpad)

        def full(a):
            return pl.BlockSpec(a.shape, lambda b: (0,) * a.ndim)

        ins = (x_ext, eps_p, p["mask"], p["colsel"], p["rtile"], p["rtile_t"],
               p["we1"], p["be1"], p["we2"], p["be2"], p["we3"], p["be3"],
               p["wh"], p["bh"], p["wdfc"], p["bdfc"],
               p["wd1"], p["bd1"], p["wd2"], p["bd2"], p["wd3"], p["bd3"])
        in_specs = [pl.BlockSpec((1, 50, cin0), lambda b: (b, 0, 0)),
                    pl.BlockSpec((1, 1, lpad), lambda b: (b, 0, 0))]
        in_specs += [full(a) for a in ins[2:]]

        out_shape = (jax.ShapeDtypeStruct((B, 1, lpad), jnp.float32),
                     jax.ShapeDtypeStruct((B, 1, lpad), jnp.float32),
                     jax.ShapeDtypeStruct((B, 36, cin0), jnp.float32))
        out_specs = (pl.BlockSpec((1, 1, lpad), lambda b: (b, 0, 0)),
                     pl.BlockSpec((1, 1, lpad), lambda b: (b, 0, 0)),
                     pl.BlockSpec((1, 36, cin0), lambda b: (b, 0, 0)))
        scratch = [pltpu.VMEM((50, 16 * hc), jnp.bfloat16),
                   pltpu.VMEM((50, 8 * hc), jnp.bfloat16),
                   pltpu.VMEM((50, 4 * hc), jnp.bfloat16),
                   pltpu.VMEM((50, 8 * hc), jnp.bfloat16),
                   pltpu.VMEM((50, 16 * hc), jnp.bfloat16)]

        mu3, lv3, dec = pl.pallas_call(
            kernel,
            out_shape=out_shape,
            grid=(B,),
            in_specs=in_specs,
            out_specs=out_specs,
            scratch_shapes=scratch,
            compiler_params=pltpu.CompilerParams(
                dimension_semantics=("parallel",),
                vmem_limit_bytes=32 * 1024 * 1024),
        )(*ins)

        mu = mu3[:, 0, :latent_dim]
        logvar = lv3[:, 0, :latent_dim]
        # unpack decoder output: padded cells -> 32x32 NHWC -> NCHW (once)
        y = dec.reshape(B, 6, 6, 8, 8, ic)[:, 1:5, 1:5]
        y = y.transpose(0, 1, 3, 2, 4, 5).reshape(B, 32, 32, ic).transpose(0, 3, 1, 2)
        return y, mu, logvar

    return forward


# ============================================================================
# Pure-JAX f32 reference of the PyTorch module (for the correctness check).
# ============================================================================
def reference_forward(raw, x, eps, hc):
    hi = lax.Precision.HIGHEST
    dn = ("NCHW", "OIHW", "NCHW")

    def conv(t, w, b):
        y = lax.conv_general_dilated(t, w, (2, 2), [(1, 1), (1, 1)],
                                     dimension_numbers=dn, precision=hi)
        return y + b[None, :, None, None]

    def convT(t, w, b):
        wf = jnp.flip(w, (2, 3)).transpose(1, 0, 2, 3)
        y = lax.conv_general_dilated(t, wf, (1, 1), [(2, 2), (2, 2)],
                                     lhs_dilation=(2, 2), dimension_numbers=dn, precision=hi)
        return y + b[None, :, None, None]

    h = jax.nn.relu(conv(x, raw["e1_w"], raw["e1_b"]))
    h = jax.nn.relu(conv(h, raw["e2_w"], raw["e2_b"]))
    h = jax.nn.relu(conv(h, raw["e3_w"], raw["e3_b"]))
    hf = h.reshape(x.shape[0], -1)
    mu = hf @ raw["mu_w"].T + raw["mu_b"]
    logvar = hf @ raw["lv_w"].T + raw["lv_b"]
    z = mu + eps * jnp.exp(0.5 * logvar)
    d = (z @ raw["dfc_w"].T + raw["dfc_b"]).reshape(x.shape[0], 4 * hc, 4, 4)
    d = jax.nn.relu(convT(d, raw["d1_w"], raw["d1_b"]))
    d = jax.nn.relu(convT(d, raw["d2_w"], raw["d2_b"]))
    d = jax.nn.sigmoid(convT(d, raw["d3_w"], raw["d3_b"]))
    return d, mu, logvar


if __name__ == "__main__":
    key = jax.random.PRNGKey(0)
    latent_dim, image_channels, hidden_channel = 16, 3, 8
    B = 2
    # architecture requires 32x32 input (three stride-2 convs -> 4x4 feature map)
    x = jax.random.normal(jax.random.fold_in(key, 1), (B, image_channels, 32, 32), jnp.float32)
    eps = jax.random.normal(jax.random.fold_in(key, 2), (B, latent_dim), jnp.float32)

    raw = init_params_torch_layout(jax.random.fold_in(key, 3),
                                   latent_dim, image_channels, hidden_channel)
    params = pack_params(raw, latent_dim, image_channels, hidden_channel)
    fwd = jax.jit(build_vae_forward(latent_dim, image_channels, hidden_channel))

    recon, mu, logvar = fwd(params, x, eps)
    jax.block_until_ready((recon, mu, logvar))

    assert recon.shape == (B, image_channels, 32, 32), recon.shape
    assert mu.shape == (B, latent_dim) and logvar.shape == (B, latent_dim)
    assert bool(jnp.all(jnp.isfinite(recon))) and bool(jnp.all(jnp.isfinite(mu)))
    assert bool(jnp.all((recon >= 0.0) & (recon <= 1.0)))

    # equivalence against a pure-JAX f32 reference of the PyTorch module
    recon_r, mu_r, lv_r = reference_forward(raw, x, eps, hidden_channel)
    err = (float(jnp.max(jnp.abs(recon - recon_r))),
           float(jnp.max(jnp.abs(mu - mu_r))),
           float(jnp.max(jnp.abs(logvar - lv_r))))
    assert bool(jnp.allclose(mu, mu_r, atol=2e-2, rtol=2e-2)), err
    assert bool(jnp.allclose(logvar, lv_r, atol=2e-2, rtol=2e-2)), err
    assert bool(jnp.allclose(recon, recon_r, atol=2e-2, rtol=2e-2)), err

    print("KERNEL_OK")
</pallas_src>

<mosaic_0001>
module attributes {stable_mosaic.version = 11 : i64} {
  func.func @_vae_kernel(%arg0: i32, %arg1: memref<1x50x192xbf16, #tpu.memory_space<vmem>>, %arg2: memref<1x1x128xf32, #tpu.memory_space<vmem>>, %arg3: memref<36x1xf32, #tpu.memory_space<vmem>>, %arg4: memref<36x512xf32, #tpu.memory_space<vmem>>, %arg5: memref<32x512xbf16, #tpu.memory_space<vmem>>, %arg6: memref<512x32xbf16, #tpu.memory_space<vmem>>, %arg7: memref<9x192x128xbf16, #tpu.memory_space<vmem>>, %arg8: memref<1x128xf32, #tpu.memory_space<vmem>>, %arg9: memref<9x128x64xbf16, #tpu.memory_space<vmem>>, %arg10: memref<1x64xf32, #tpu.memory_space<vmem>>, %arg11: memref<9x64x32xbf16, #tpu.memory_space<vmem>>, %arg12: memref<1x32xf32, #tpu.memory_space<vmem>>, %arg13: memref<512x256xbf16, #tpu.memory_space<vmem>>, %arg14: memref<1x256xf32, #tpu.memory_space<vmem>>, %arg15: memref<128x512xbf16, #tpu.memory_space<vmem>>, %arg16: memref<1x512xf32, #tpu.memory_space<vmem>>, %arg17: memref<9x32x64xbf16, #tpu.memory_space<vmem>>, %arg18: memref<1x64xf32, #tpu.memory_space<vmem>>, %arg19: memref<9x64x128xbf16, #tpu.memory_space<vmem>>, %arg20: memref<1x128xf32, #tpu.memory_space<vmem>>, %arg21: memref<9x128x192xbf16, #tpu.memory_space<vmem>>, %arg22: memref<1x192xf32, #tpu.memory_space<vmem>>, %arg23: memref<1x1x128xf32, #tpu.memory_space<vmem>>, %arg24: memref<1x1x128xf32, #tpu.memory_space<vmem>>, %arg25: memref<1x36x192xf32, #tpu.memory_space<vmem>>, %arg26: memref<50x128xbf16, #tpu.memory_space<vmem>>, %arg27: memref<50x64xbf16, #tpu.memory_space<vmem>>, %arg28: memref<50x32xbf16, #tpu.memory_space<vmem>>, %arg29: memref<50x64xbf16, #tpu.memory_space<vmem>>, %arg30: memref<50x128xbf16, #tpu.memory_space<vmem>>) attributes {dimension_semantics = [#tpu.dimension_semantics<parallel>], iteration_bounds = array<i64: 2>, scalar_prefetch = 0 : i64, scratch_operands = 5 : i64, tpu.core_type = #tpu.core_type<tc>, window_params = [{transform_indices = @transform_0, window_bounds = array<i64: 1, 50, 192>}, {transform_indices = @transform_1, window_bounds = array<i64: 1, 1, 128>}, {pipeline_mode = #tpu.pipeline_mode<synchronous>, transform_indices = @transform_2, window_bounds = array<i64: 36, 1>}, {pipeline_mode = #tpu.pipeline_mode<synchronous>, transform_indices = @transform_3, window_bounds = array<i64: 36, 512>}, {pipeline_mode = #tpu.pipeline_mode<synchronous>, transform_indices = @transform_4, window_bounds = array<i64: 32, 512>}, {pipeline_mode = #tpu.pipeline_mode<synchronous>, transform_indices = @transform_5, window_bounds = array<i64: 512, 32>}, {pipeline_mode = #tpu.pipeline_mode<synchronous>, transform_indices = @transform_6, window_bounds = array<i64: 9, 192, 128>}, {pipeline_mode = #tpu.pipeline_mode<synchronous>, transform_indices = @transform_7, window_bounds = array<i64: 1, 128>}, {pipeline_mode = #tpu.pipeline_mode<synchronous>, transform_indices = @transform_8, window_bounds = array<i64: 9, 128, 64>}, {pipeline_mode = #tpu.pipeline_mode<synchronous>, transform_indices = @transform_9, window_bounds = array<i64: 1, 64>}, {pipeline_mode = #tpu.pipeline_mode<synchronous>, transform_indices = @transform_10, window_bounds = array<i64: 9, 64, 32>}, {pipeline_mode = #tpu.pipeline_mode<synchronous>, transform_indices = @transform_11, window_bounds = array<i64: 1, 32>}, {pipeline_mode = #tpu.pipeline_mode<synchronous>, transform_indices = @transform_12, window_bounds = array<i64: 512, 256>}, {pipeline_mode = #tpu.pipeline_mode<synchronous>, transform_indices = @transform_13, window_bounds = array<i64: 1, 256>}, {pipeline_mode = #tpu.pipeline_mode<synchronous>, transform_indices = @transform_14, window_bounds = array<i64: 128, 512>}, {pipeline_mode = #tpu.pipeline_mode<synchronous>, transform_indices = @transform_15, window_bounds = array<i64: 1, 512>}, {pipeline_mode = #tpu.pipeline_mode<synchronous>, transform_indices = @transform_16, window_bounds = array<i64: 9, 32, 64>}, {pipeline_mode = #tpu.pipeline_mode<synchronous>, transform_indices = @transform_17, window_bounds = array<i64: 1, 64>}, {pipeline_mode = #tpu.pipeline_mode<synchronous>, transform_indices = @transform_18, window_bounds = array<i64: 9, 64, 128>}, {pipeline_mode = #tpu.pipeline_mode<synchronous>, transform_indices = @transform_19, window_bounds = array<i64: 1, 128>}, {pipeline_mode = #tpu.pipeline_mode<synchronous>, transform_indices = @transform_20, window_bounds = array<i64: 9, 128, 192>}, {pipeline_mode = #tpu.pipeline_mode<synchronous>, transform_indices = @transform_21, window_bounds = array<i64: 1, 192>}, {transform_indices = @transform_22, window_bounds = array<i64: 1, 1, 128>}, {transform_indices = @transform_23, window_bounds = array<i64: 1, 1, 128>}, {transform_indices = @transform_24, window_bounds = array<i64: 1, 36, 192>}]} {
    %c0 = arith.constant 0 : index
    %c0_0 = arith.constant 0 : index
    %0 = vector.load %arg3[%c0, %c0_0] : memref<36x1xf32, #tpu.memory_space<vmem>>, vector<36x1xf32>
    %c0_1 = arith.constant 0 : index
    %c0_2 = arith.constant 0 : index
    %1 = vector.load %arg4[%c0_1, %c0_2] : memref<36x512xf32, #tpu.memory_space<vmem>>, vector<36x512xf32>
    %c0_3 = arith.constant 0 : index
    %c0_4 = arith.constant 0 : index
    %c0_5 = arith.constant 0 : index
    %2 = vector.load %arg1[%c0_3, %c0_4, %c0_5] : memref<1x50x192xbf16, #tpu.memory_space<vmem>>, vector<1x36x192xbf16>
    %3 = vector.shape_cast %2 : vector<1x36x192xbf16> to vector<36x192xbf16>
    %c0_6 = arith.constant 0 : index
    %c0_7 = arith.constant 0 : index
    %c0_8 = arith.constant 0 : index
    %4 = vector.load %arg7[%c0_6, %c0_7, %c0_8] : memref<9x192x128xbf16, #tpu.memory_space<vmem>>, vector<1x192x128xbf16>
    %5 = vector.shape_cast %4 : vector<1x192x128xbf16> to vector<192x128xbf16>
    %cst = arith.constant dense<0.000000e+00> : vector<36x128xf32>
    %6 = tpu.matmul %3, %5, %cst {dimension_numbers = #tpu.dot_dimension_numbers<[1], [0], [0], [1], [0, 0, 1, 1], [], []>} : vector<36x192xbf16>, vector<192x128xbf16>, vector<36x128xf32> -> vector<36x128xf32>
    %c0_9 = arith.constant 0 : index
    %c1 = arith.constant 1 : index
    %c0_10 = arith.constant 0 : index
    %7 = vector.load %arg1[%c0_9, %c1, %c0_10] : memref<1x50x192xbf16, #tpu.memory_space<vmem>>, vector<1x36x192xbf16>
    %8 = vector.shape_cast %7 : vector<1x36x192xbf16> to vector<36x192xbf16>
    %c1_11 = arith.constant 1 : index
    %c0_12 = arith.constant 0 : index
    %c0_13 = arith.constant 0 : index
    %9 = vector.load %arg7[%c1_11, %c0_12, %c0_13] : memref<9x192x128xbf16, #tpu.memory_space<vmem>>, vector<1x192x128xbf16>
    %10 = vector.shape_cast %9 : vector<1x192x128xbf16> to vector<192x128xbf16>
    %cst_14 = arith.constant dense<0.000000e+00> : vector<36x128xf32>
    %11 = tpu.matmul %8, %10, %cst_14 {dimension_numbers = #tpu.dot_dimension_numbers<[1], [0], [0], [1], [0, 0, 1, 1], [], []>} : vector<36x192xbf16>, vector<192x128xbf16>, vector<36x128xf32> -> vector<36x128xf32>
    %12 = arith.addf %6, %11 : vector<36x128xf32>
    %c0_15 = arith.constant 0 : index
    %c2 = arith.constant 2 : index
    %c0_16 = arith.constant 0 : index
    %13 = vector.load %arg1[%c0_15, %c2, %c0_16] : memref<1x50x192xbf16, #tpu.memory_space<vmem>>, vector<1x36x192xbf16>
    %14 = vector.shape_cast %13 : vector<1x36x192xbf16> to vector<36x192xbf16>
    %c2_17 = arith.constant 2 : index
    %c0_18 = arith.constant 0 : index
    %c0_19 = arith.constant 0 : index
    %15 = vector.load %arg7[%c2_17, %c0_18, %c0_19] : memref<9x192x128xbf16, #tpu.memory_space<vmem>>, vector<1x192x128xbf16>
    %16 = vector.shape_cast %15 : vector<1x192x128xbf16> to vector<192x128xbf16>
    %cst_20 = arith.constant dense<0.000000e+00> : vector<36x128xf32>
    %17 = tpu.matmul %14, %16, %cst_20 {dimension_numbers = #tpu.dot_dimension_numbers<[1], [0], [0], [1], [0, 0, 1, 1], [], []>} : vector<36x192xbf16>, vector<192x128xbf16>, vector<36x128xf32> -> vector<36x128xf32>
    %18 = arith.addf %12, %17 : vector<36x128xf32>
    %c0_21 = arith.constant 0 : index
    %c6 = arith.constant 6 : index
    %c0_22 = arith.constant 0 : index
    %19 = vector.load %arg1[%c0_21, %c6, %c0_22] : memref<1x50x192xbf16, #tpu.memory_space<vmem>>, vector<1x36x192xbf16>
    %20 = vector.shape_cast %19 : vector<1x36x192xbf16> to vector<36x192xbf16>
    %c3 = arith.constant 3 : index
    %c0_23 = arith.constant 0 : index
    %c0_24 = arith.constant 0 : index
    %21 = vector.load %arg7[%c3, %c0_23, %c0_24] : memref<9x192x128xbf16, #tpu.memory_space<vmem>>, vector<1x192x128xbf16>
    %22 = vector.shape_cast %21 : vector<1x192x128xbf16> to vector<192x128xbf16>
    %cst_25 = arith.constant dense<0.000000e+00> : vector<36x128xf32>
    %23 = tpu.matmul %20, %22, %cst_25 {dimension_numbers = #tpu.dot_dimension_numbers<[1], [0], [0], [1], [0, 0, 1, 1], [], []>} : vector<36x192xbf16>, vector<192x128xbf16>, vector<36x128xf32> -> vector<36x128xf32>
    %24 = arith.addf %18, %23 : vector<36x128xf32>
    %c0_26 = arith.constant 0 : index
    %c7 = arith.constant 7 : index
    %c0_27 = arith.constant 0 : index
    %25 = vector.load %arg1[%c0_26, %c7, %c0_27] : memref<1x50x192xbf16, #tpu.memory_space<vmem>>, vector<1x36x192xbf16>
    %26 = vector.shape_cast %25 : vector<1x36x192xbf16> to vector<36x192xbf16>
    %c4 = arith.constant 4 : index
    %c0_28 = arith.constant 0 : index
    %c0_29 = arith.constant 0 : index
    %27 = vector.load %arg7[%c4, %c0_28, %c0_29] : memref<9x192x128xbf16, #tpu.memory_space<vmem>>, vector<1x192x128xbf16>
    %28 = vector.shape_cast %27 : vector<1x192x128xbf16> to vector<192x128xbf16>
    %cst_30 = arith.constant dense<0.000000e+00> : vector<36x128xf32>
    %29 = tpu.matmul %26, %28, %cst_30 {dimension_numbers = #tpu.dot_dimension_numbers<[1], [0], [0], [1], [0, 0, 1, 1], [], []>} : vector<36x192xbf16>, vector<192x128xbf16>, vector<36x128xf32> -> vector<36x128xf32>
    %30 = arith.addf %24, %29 : vector<36x128xf32>
    %c0_31 = arith.constant 0 : index
    %c8 = arith.constant 8 : index
    %c0_32 = arith.constant 0 : index
    %31 = vector.load %arg1[%c0_31, %c8, %c0_32] : memref<1x50x192xbf16, #tpu.memory_space<vmem>>, vector<1x36x192xbf16>
    %32 = vector.shape_cast %31 : vector<1x36x192xbf16> to vector<36x192xbf16>
    %c5 = arith.constant 5 : index
    %c0_33 = arith.constant 0 : index
    %c0_34 = arith.constant 0 : index
    %33 = vector.load %arg7[%c5, %c0_33, %c0_34] : memref<9x192x128xbf16, #tpu.memory_space<vmem>>, vector<1x192x128xbf16>
    %34 = vector.shape_cast %33 : vector<1x192x128xbf16> to vector<192x128xbf16>
    %cst_35 = arith.constant dense<0.000000e+00> : vector<36x128xf32>
    %35 = tpu.matmul %32, %34, %cst_35 {dimension_numbers = #tpu.dot_dimension_numbers<[1], [0], [0], [1], [0, 0, 1, 1], [], []>} : vector<36x192xbf16>, vector<192x128xbf16>, vector<36x128xf32> -> vector<36x128xf32>
    %36 = arith.addf %30, %35 : vector<36x128xf32>
    %c0_36 = arith.constant 0 : index
    %c12 = arith.constant 12 : index
    %c0_37 = arith.constant 0 : index
    %37 = vector.load %arg1[%c0_36, %c12, %c0_37] : memref<1x50x192xbf16, #tpu.memory_space<vmem>>, vector<1x36x192xbf16>
    %38 = vector.shape_cast %37 : vector<1x36x192xbf16> to vector<36x192xbf16>
    %c6_38 = arith.constant 6 : index
    %c0_39 = arith.constant 0 : index
    %c0_40 = arith.constant 0 : index
    %39 = vector.load %arg7[%c6_38, %c0_39, %c0_40] : memref<9x192x128xbf16, #tpu.memory_space<vmem>>, vector<1x192x128xbf16>
    %40 = vector.shape_cast %39 : vector<1x192x128xbf16> to vector<192x128xbf16>
    %cst_41 = arith.constant dense<0.000000e+00> : vector<36x128xf32>
    %41 = tpu.matmul %38, %40, %cst_41 {dimension_numbers = #tpu.dot_dimension_numbers<[1], [0], [0], [1], [0, 0, 1, 1], [], []>} : vector<36x192xbf16>, vector<192x128xbf16>, vector<36x128xf32> -> vector<36x128xf32>
    %42 = arith.addf %36, %41 : vector<36x128xf32>
    %c0_42 = arith.constant 0 : index
    %c13 = arith.constant 13 : index
    %c0_43 = arith.constant 0 : index
    %43 = vector.load %arg1[%c0_42, %c13, %c0_43] : memref<1x50x192xbf16, #tpu.memory_space<vmem>>, vector<1x36x192xbf16>
    %44 = vector.shape_cast %43 : vector<1x36x192xbf16> to vector<36x192xbf16>
    %c7_44 = arith.constant 7 : index
    %c0_45 = arith.constant 0 : index
    %c0_46 = arith.constant 0 : index
    %45 = vector.load %arg7[%c7_44, %c0_45, %c0_46] : memref<9x192x128xbf16, #tpu.memory_space<vmem>>, vector<1x192x128xbf16>
    %46 = vector.shape_cast %45 : vector<1x192x128xbf16> to vector<192x128xbf16>
    %cst_47 = arith.constant dense<0.000000e+00> : vector<36x128xf32>
    %47 = tpu.matmul %44, %46, %cst_47 {dimension_numbers = #tpu.dot_dimension_numbers<[1], [0], [0], [1], [0, 0, 1, 1], [], []>} : vector<36x192xbf16>, vector<192x128xbf16>, vector<36x128xf32> -> vector<36x128xf32>
    %48 = arith.addf %42, %47 : vector<36x128xf32>
    %c0_48 = arith.constant 0 : index
    %c14 = arith.constant 14 : index
    %c0_49 = arith.constant 0 : index
    %49 = vector.load %arg1[%c0_48, %c14, %c0_49] : memref<1x50x192xbf16, #tpu.memory_space<vmem>>, vector<1x36x192xbf16>
    %50 = vector.shape_cast %49 : vector<1x36x192xbf16> to vector<36x192xbf16>
    %c8_50 = arith.constant 8 : index
    %c0_51 = arith.constant 0 : index
    %c0_52 = arith.constant 0 : index
    %51 = vector.load %arg7[%c8_50, %c0_51, %c0_52] : memref<9x192x128xbf16, #tpu.memory_space<vmem>>, vector<1x192x128xbf16>
    %52 = vector.shape_cast %51 : vector<1x192x128xbf16> to vector<192x128xbf16>
    %cst_53 = arith.constant dense<0.000000e+00> : vector<36x128xf32>
    %53 = tpu.matmul %50, %52, %cst_53 {dimension_numbers = #tpu.dot_dimension_numbers<[1], [0], [0], [1], [0, 0, 1, 1], [], []>} : vector<36x192xbf16>, vector<192x128xbf16>, vector<36x128xf32> -> vector<36x128xf32>
    %54 = arith.addf %48, %53 : vector<36x128xf32>
    %c0_54 = arith.constant 0 : index
    %c0_55 = arith.constant 0 : index
    %55 = vector.load %arg8[%c0_54, %c0_55] : memref<1x128xf32, #tpu.memory_space<vmem>>, vector<1x128xf32>
    %56 = vector.broadcast %55 : vector<1x128xf32> to vector<36x128xf32>
    %57 = arith.addf %54, %56 : vector<36x128xf32>
    %cst_56 = arith.constant 0.000000e+00 : f32
    %58 = vector.broadcast %cst_56 : f32 to vector<36x128xf32>
    %59 = arith.maximumf %57, %58 : vector<36x128xf32>
    %60 = vector.broadcast %0 : vector<36x1xf32> to vector<36x128xf32>
    %61 = arith.mulf %59, %60 : vector<36x128xf32>
    %cst_57 = arith.constant 0.000000e+00 : bf16
    %62 = vector.broadcast %cst_57 : bf16 to vector<50x128xbf16>
    %c0_58 = arith.constant 0 : index
    %c0_59 = arith.constant 0 : index
    %63 = vector.load %arg26[%c0_58, %c0_59] : memref<50x128xbf16, #tpu.memory_space<vmem>>, vector<50x128xbf16>
    tpu.vector_store %arg26[%c0_58, %c0_59], %62 {strides = array<i32>} : memref<50x128xbf16, #tpu.memory_space<vmem>>, vector<50x128xbf16>,
    %64 = arith.truncf %61 : vector<36x128xf32> to vector<36x128xbf16>
    %c7_60 = arith.constant 7 : index
    %c0_61 = arith.constant 0 : index
    %65 = vector.load %arg26[%c7_60, %c0_61] : memref<50x128xbf16, #tpu.memory_space<vmem>>, vector<36x128xbf16>
    tpu.vector_store %arg26[%c7_60, %c0_61], %64 {strides = array<i32>} : memref<50x128xbf16, #tpu.memory_space<vmem>>, vector<36x128xbf16>,
    %c0_62 = arith.constant 0 : index
    %c0_63 = arith.constant 0 : index
    %66 = vector.load %arg26[%c0_62, %c0_63] : memref<50x128xbf16, #tpu.memory_space<vmem>>, vector<36x128xbf16>
    %c0_64 = arith.constant 0 : index
    %c0_65 = arith.constant 0 : index
    %c0_66 = arith.constant 0 : index
    %67 = vector.load %arg9[%c0_64, %c0_65, %c0_66] : memref<9x128x64xbf16, #tpu.memory_space<vmem>>, vector<1x128x64xbf16>
    %68 = vector.shape_cast %67 : vector<1x128x64xbf16> to vector<128x64xbf16>
    %cst_67 = arith.constant dense<0.000000e+00> : vector<36x64xf32>
    %69 = tpu.matmul %66, %68, %cst_67 {dimension_numbers = #tpu.dot_dimension_numbers<[1], [0], [0], [1], [0, 0, 1, 1], [], []>} : vector<36x128xbf16>, vector<128x64xbf16>, vector<36x64xf32> -> vector<36x64xf32>
    %c1_68 = arith.constant 1 : index
    %c0_69 = arith.constant 0 : index
    %70 = vector.load %arg26[%c1_68, %c0_69] : memref<50x128xbf16, #tpu.memory_space<vmem>>, vector<36x128xbf16>
    %c1_70 = arith.constant 1 : index
    %c0_71 = arith.constant 0 : index
    %c0_72 = arith.constant 0 : index
    %71 = vector.load %arg9[%c1_70, %c0_71, %c0_72] : memref<9x128x64xbf16, #tpu.memory_space<vmem>>, vector<1x128x64xbf16>
    %72 = vector.shape_cast %71 : vector<1x128x64xbf16> to vector<128x64xbf16>
    %cst_73 = arith.constant dense<0.000000e+00> : vector<36x64xf32>
    %73 = tpu.matmul %70, %72, %cst_73 {dimension_numbers = #tpu.dot_dimension_numbers<[1], [0], [0], [1], [0, 0, 1, 1], [], []>} : vector<36x128xbf16>, vector<128x64xbf16>, vector<36x64xf32> -> vector<36x64xf32>
    %74 = arith.addf %69, %73 : vector<36x64xf32>
    %c2_74 = arith.constant 2 : index
    %c0_75 = arith.constant 0 : index
    %75 = vector.load %arg26[%c2_74, %c0_75] : memref<50x128xbf16, #tpu.memory_space<vmem>>, vector<36x128xbf16>
    %c2_76 = arith.constant 2 : index
    %c0_77 = arith.constant 0 : index
    %c0_78 = arith.constant 0 : index
    %76 = vector.load %arg9[%c2_76, %c0_77, %c0_78] : memref<9x128x64xbf16, #tpu.memory_space<vmem>>, vector<1x128x64xbf16>
    %77 = vector.shape_cast %76 : vector<1x128x64xbf16> to vector<128x64xbf16>
    %cst_79 = arith.constant dense<0.000000e+00> : vector<36x64xf32>
    %78 = tpu.matmul %75, %77, %cst_79 {dimension_numbers = #tpu.dot_dimension_numbers<[1], [0], [0], [1], [0, 0, 1, 1], [], []>} : vector<36x128xbf16>, vector<128x64xbf16>, vector<36x64xf32> -> vector<36x64xf32>
    %79 = arith.addf %74, %78 : vector<36x64xf32>
    %c6_80 = arith.constant 6 : index
    %c0_81 = arith.constant 0 : index
    %80 = vector.load %arg26[%c6_80, %c0_81] : memref<50x128xbf16, #tpu.memory_space<vmem>>, vector<36x128xbf16>
    %c3_82 = arith.constant 3 : index
    %c0_83 = arith.constant 0 : index
    %c0_84 = arith.constant 0 : index
    %81 = vector.load %arg9[%c3_82, %c0_83, %c0_84] : memref<9x128x64xbf16, #tpu.memory_space<vmem>>, vector<1x128x64xbf16>
    %82 = vector.shape_cast %81 : vector<1x128x64xbf16> to vector<128x64xbf16>
    %cst_85 = arith.constant dense<0.000000e+00> : vector<36x64xf32>
    %83 = tpu.matmul %80, %82, %cst_85 {dimension_numbers = #tpu.dot_dimension_numbers<[1], [0], [0], [1], [0, 0, 1, 1], [], []>} : vector<36x128xbf16>, vector<128x64xbf16>, vector<36x64xf32> -> vector<36x64xf32>
    %84 = arith.addf %79, %83 : vector<36x64xf32>
    %c7_86 = arith.constant 7 : index
    %c0_87 = arith.constant 0 : index
    %85 = vector.load %arg26[%c7_86, %c0_87] : memref<50x128xbf16, #tpu.memory_space<vmem>>, vector<36x128xbf16>
    %c4_88 = arith.constant 4 : index
    %c0_89 = arith.constant 0 : index
    %c0_90 = arith.constant 0 : index
    %86 = vector.load %arg9[%c4_88, %c0_89, %c0_90] : memref<9x128x64xbf16, #tpu.memory_space<vmem>>, vector<1x128x64xbf16>
    %87 = vector.shape_cast %86 : vector<1x128x64xbf16> to vector<128x64xbf16>
    %cst_91 = arith.constant dense<0.000000e+00> : vector<36x64xf32>
    %88 = tpu.matmul %85, %87, %cst_91 {dimension_numbers = #tpu.dot_dimension_numbers<[1], [0], [0], [1], [0, 0, 1, 1], [], []>} : vector<36x128xbf16>, vector<128x64xbf16>, vector<36x64xf32> -> vector<36x64xf32>
    %89 = arith.addf %84, %88 : vector<36x64xf32>
    %c8_92 = arith.constant 8 : index
    %c0_93 = arith.constant 0 : index
    %90 = vector.load %arg26[%c8_92, %c0_93] : memref<50x128xbf16, #tpu.memory_space<vmem>>, vector<36x128xbf16>
    %c5_94 = arith.constant 5 : index
    %c0_95 = arith.constant 0 : index
    %c0_96 = arith.constant 0 : index
    %91 = vector.load %arg9[%c5_94, %c0_95, %c0_96] : memref<9x128x64xbf16, #tpu.memory_space<vmem>>, vector<1x128x64xbf16>
    %92 = vector.shape_cast %91 : vector<1x128x64xbf16> to vector<128x64xbf16>
    %cst_97 = arith.constant dense<0.000000e+00> : vector<36x64xf32>
    %93 = tpu.matmul %90, %92, %cst_97 {dimension_numbers = #tpu.dot_dimension_numbers<[1], [0], [0], [1], [0, 0, 1, 1], [], []>} : vector<36x128xbf16>, vector<128x64xbf16>, vector<36x64xf32> -> vector<36x64xf32>
    %94 = arith.addf %89, %93 : vector<36x64xf32>
    %c12_98 = arith.constant 12 : index
    %c0_99 = arith.constant 0 : index
    %95 = vector.load %arg26[%c12_98, %c0_99] : memref<50x128xbf16, #tpu.memory_space<vmem>>, vector<36x128xbf16>
    %c6_100 = arith.constant 6 : index
    %c0_101 = arith.constant 0 : index
    %c0_102 = arith.constant 0 : index
    %96 = vector.load %arg9[%c6_100, %c0_101, %c0_102] : memref<9x128x64xbf16, #tpu.memory_space<vmem>>, vector<1x128x64xbf16>
    %97 = vector.shape_cast %96 : vector<1x128x64xbf16> to vector<128x64xbf16>
    %cst_103 = arith.constant dense<0.000000e+00> : vector<36x64xf32>
    %98 = tpu.matmul %95, %97, %cst_103 {dimension_numbers = #tpu.dot_dimension_numbers<[1], [0], [0], [1], [0, 0, 1, 1], [], []>} : vector<36x128xbf16>, vector<128x64xbf16>, vector<36x64xf32> -> vector<36x64xf32>
    %99 = arith.addf %94, %98 : vector<36x64xf32>
    %c13_104 = arith.constant 13 : index
    %c0_105 = arith.constant 0 : index
    %100 = vector.load %arg26[%c13_104, %c0_105] : memref<50x128xbf16, #tpu.memory_space<vmem>>, vector<36x128xbf16>
    %c7_106 = arith.constant 7 : index
    %c0_107 = arith.constant 0 : index
    %c0_108 = arith.constant 0 : index
    %101 = vector.load %arg9[%c7_106, %c0_107, %c0_108] : memref<9x128x64xbf16, #tpu.memory_space<vmem>>, vector<1x128x64xbf16>
    %102 = vector.shape_cast %101 : vector<1x128x64xbf16> to vector<128x64xbf16>
    %cst_109 = arith.constant dense<0.000000e+00> : vector<36x64xf32>
    %103 = tpu.matmul %100, %102, %cst_109 {dimension_numbers = #tpu.dot_dimension_numbers<[1], [0], [0], [1], [0, 0, 1, 1], [], []>} : vector<36x128xbf16>, vector<128x64xbf16>, vector<36x64xf32> -> vector<36x64xf32>
    %104 = arith.addf %99, %103 : vector<36x64xf32>
    %c14_110 = arith.constant 14 : index
    %c0_111 = arith.constant 0 : index
    %105 = vector.load %arg26[%c14_110, %c0_111] : memref<50x128xbf16, #tpu.memory_space<vmem>>, vector<36x128xbf16>
    %c8_112 = arith.constant 8 : index
    %c0_113 = arith.constant 0 : index
    %c0_114 = arith.constant 0 : index
    %106 = vector.load %arg9[%c8_112, %c0_113, %c0_114] : memref<9x128x64xbf16, #tpu.memory_space<vmem>>, vector<1x128x64xbf16>
    %107 = vector.shape_cast %106 : vector<1x128x64xbf16> to vector<128x64xbf16>
    %cst_115 = arith.constant dense<0.000000e+00> : vector<36x64xf32>
    %108 = tpu.matmul %105, %107, %cst_115 {dimension_numbers = #tpu.dot_dimension_numbers<[1], [0], [0], [1], [0, 0, 1, 1], [], []>} : vector<36x128xbf16>, vector<128x64xbf16>, vector<36x64xf32> -> vector<36x64xf32>
    %109 = arith.addf %104, %108 : vector<36x64xf32>
    %c0_116 = arith.constant 0 : index
    %c0_117 = arith.constant 0 : index
    %110 = vector.load %arg10[%c0_116, %c0_117] : memref<1x64xf32, #tpu.memory_space<vmem>>, vector<1x64xf32>
    %111 = vector.broadcast %110 : vector<1x64xf32> to vector<36x64xf32>
    %112 = arith.addf %109, %111 : vector<36x64xf32>
    %cst_118 = arith.constant 0.000000e+00 : f32
    %113 = vector.broadcast %cst_118 : f32 to vector<36x64xf32>
    %114 = arith.maximumf %112, %113 : vector<36x64xf32>
    %115 = vector.broadcast %0 : vector<36x1xf32> to vector<36x64xf32>
    %116 = arith.mulf %114, %115 : vector<36x64xf32>
    %cst_119 = arith.constant 0.000000e+00 : bf16
    %117 = vector.broadcast %cst_119 : bf16 to vector<50x64xbf16>
    %c0_120 = arith.constant 0 : index
    %c0_121 = arith.constant 0 : index
    %118 = vector.load %arg27[%c0_120, %c0_121] : memref<50x64xbf16, #tpu.memory_space<vmem>>, vector<50x64xbf16>
    tpu.vector_store %arg27[%c0_120, %c0_121], %117 {strides = array<i32>} : memref<50x64xbf16, #tpu.memory_space<vmem>>, vector<50x64xbf16>,
    %119 = arith.truncf %116 : vector<36x64xf32> to vector<36x64xbf16>
    %c7_122 = arith.constant 7 : index
    %c0_123 = arith.constant 0 : index
    %120 = vector.load %arg27[%c7_122, %c0_123] : memref<50x64xbf16, #tpu.memory_space<vmem>>, vector<36x64xbf16>
    tpu.vector_store %arg27[%c7_122, %c0_123], %119 {strides = array<i32>} : memref<50x64xbf16, #tpu.memory_space<vmem>>, vector<36x64xbf16>,
    %c0_124 = arith.constant 0 : index
    %c0_125 = arith.constant 0 : index
    %121 = vector.load %arg27[%c0_124, %c0_125] : memref<50x64xbf16, #tpu.memory_space<vmem>>, vector<36x64xbf16>
    %c0_126 = arith.constant 0 : index
    %c0_127 = arith.constant 0 : index
    %c0_128 = arith.constant 0 : index
    %122 = vector.load %arg11[%c0_126, %c0_127, %c0_128] : memref<9x64x32xbf16, #tpu.memory_space<vmem>>, vector<1x64x32xbf16>
    %123 = vector.shape_cast %122 : vector<1x64x32xbf16> to vector<64x32xbf16>
    %cst_129 = arith.constant dense<0.000000e+00> : vector<36x32xf32>
    %124 = tpu.matmul %121, %123, %cst_129 {dimension_numbers = #tpu.dot_dimension_numbers<[1], [0], [0], [1], [0, 0, 1, 1], [], []>} : vector<36x64xbf16>, vector<64x32xbf16>, vector<36x32xf32> -> vector<36x32xf32>
    %c1_130 = arith.constant 1 : index
    %c0_131 = arith.constant 0 : index
    %125 = vector.load %arg27[%c1_130, %c0_131] : memref<50x64xbf16, #tpu.memory_space<vmem>>, vector<36x64xbf16>
    %c1_132 = arith.constant 1 : index
    %c0_133 = arith.constant 0 : index
    %c0_134 = arith.constant 0 : index
    %126 = vector.load %arg11[%c1_132, %c0_133, %c0_134] : memref<9x64x32xbf16, #tpu.memory_space<vmem>>, vector<1x64x32xbf16>
    %127 = vector.shape_cast %126 : vector<1x64x32xbf16> to vector<64x32xbf16>
    %cst_135 = arith.constant dense<0.000000e+00> : vector<36x32xf32>
    %128 = tpu.matmul %125, %127, %cst_135 {dimension_numbers = #tpu.dot_dimension_numbers<[1], [0], [0], [1], [0, 0, 1, 1], [], []>} : vector<36x64xbf16>, vector<64x32xbf16>, vector<36x32xf32> -> vector<36x32xf32>
    %129 = arith.addf %124, %128 : vector<36x32xf32>
    %c2_136 = arith.constant 2 : index
    %c0_137 = arith.constant 0 : index
    %130 = vector.load %arg27[%c2_136, %c0_137] : memref<50x64xbf16, #tpu.memory_space<vmem>>, vector<36x64xbf16>
    %c2_138 = arith.constant 2 : index
    %c0_139 = arith.constant 0 : index
    %c0_140 = arith.constant 0 : index
    %131 = vector.load %arg11[%c2_138, %c0_139, %c0_140] : memref<9x64x32xbf16, #tpu.memory_space<vmem>>, vector<1x64x32xbf16>
    %132 = vector.shape_cast %131 : vector<1x64x32xbf16> to vector<64x32xbf16>
    %cst_141 = arith.constant dense<0.000000e+00> : vector<36x32xf32>
    %133 = tpu.matmul %130, %132, %cst_141 {dimension_numbers = #tpu.dot_dimension_numbers<[1], [0], [0], [1], [0, 0, 1, 1], [], []>} : vector<36x64xbf16>, vector<64x32xbf16>, vector<36x32xf32> -> vector<36x32xf32>
    %134 = arith.addf %129, %133 : vector<36x32xf32>
    %c6_142 = arith.constant 6 : index
    %c0_143 = arith.constant 0 : index
    %135 = vector.load %arg27[%c6_142, %c0_143] : memref<50x64xbf16, #tpu.memory_space<vmem>>, vector<36x64xbf16>
    %c3_144 = arith.constant 3 : index
    %c0_145 = arith.constant 0 : index
    %c0_146 = arith.constant 0 : index
    %136 = vector.load %arg11[%c3_144, %c0_145, %c0_146] : memref<9x64x32xbf16, #tpu.memory_space<vmem>>, vector<1x64x32xbf16>
    %137 = vector.shape_cast %136 : vector<1x64x32xbf16> to vector<64x32xbf16>
    %cst_147 = arith.constant dense<0.000000e+00> : vector<36x32xf32>
    %138 = tpu.matmul %135, %137, %cst_147 {dimension_numbers = #tpu.dot_dimension_numbers<[1], [0], [0], [1], [0, 0, 1, 1], [], []>} : vector<36x64xbf16>, vector<64x32xbf16>, vector<36x32xf32> -> vector<36x32xf32>
    %139 = arith.addf %134, %138 : vector<36x32xf32>
    %c7_148 = arith.constant 7 : index
    %c0_149 = arith.constant 0 : index
    %140 = vector.load %arg27[%c7_148, %c0_149] : memref<50x64xbf16, #tpu.memory_space<vmem>>, vector<36x64xbf16>
    %c4_150 = arith.constant 4 : index
    %c0_151 = arith.constant 0 : index
    %c0_152 = arith.constant 0 : index
    %141 = vector.load %arg11[%c4_150, %c0_151, %c0_152] : memref<9x64x32xbf16, #tpu.memory_space<vmem>>, vector<1x64x32xbf16>
    %142 = vector.shape_cast %141 : vector<1x64x32xbf16> to vector<64x32xbf16>
    %cst_153 = arith.constant dense<0.000000e+00> : vector<36x32xf32>
    %143 = tpu.matmul %140, %142, %cst_153 {dimension_numbers = #tpu.dot_dimension_numbers<[1], [0], [0], [1], [0, 0, 1, 1], [], []>} : vector<36x64xbf16>, vector<64x32xbf16>, vector<36x32xf32> -> vector<36x32xf32>
    %144 = arith.addf %139, %143 : vector<36x32xf32>
    %c8_154 = arith.constant 8 : index
    %c0_155 = arith.constant 0 : index
    %145 = vector.load %arg27[%c8_154, %c0_155] : memref<50x64xbf16, #tpu.memory_space<vmem>>, vector<36x64xbf16>
    %c5_156 = arith.constant 5 : index
    %c0_157 = arith.constant 0 : index
    %c0_158 = arith.constant 0 : index
    %146 = vector.load %arg11[%c5_156, %c0_157, %c0_158] : memref<9x64x32xbf16, #tpu.memory_space<vmem>>, vector<1x64x32xbf16>
    %147 = vector.shape_cast %146 : vector<1x64x32xbf16> to vector<64x32xbf16>
    %cst_159 = arith.constant dense<0.000000e+00> : vector<36x32xf32>
    %148 = tpu.matmul %145, %147, %cst_159 {dimension_numbers = #tpu.dot_dimension_numbers<[1], [0], [0], [1], [0, 0, 1, 1], [], []>} : vector<36x64xbf16>, vector<64x32xbf16>, vector<36x32xf32> -> vector<36x32xf32>
    %149 = arith.addf %144, %148 : vector<36x32xf32>
    %c12_160 = arith.constant 12 : index
    %c0_161 = arith.constant 0 : index
    %150 = vector.load %arg27[%c12_160, %c0_161] : memref<50x64xbf16, #tpu.memory_space<vmem>>, vector<36x64xbf16>
    %c6_162 = arith.constant 6 : index
    %c0_163 = arith.constant 0 : index
    %c0_164 = arith.constant 0 : index
    %151 = vector.load %arg11[%c6_162, %c0_163, %c0_164] : memref<9x64x32xbf16, #tpu.memory_space<vmem>>, vector<1x64x32xbf16>
    %152 = vector.shape_cast %151 : vector<1x64x32xbf16> to vector<64x32xbf16>
    %cst_165 = arith.constant dense<0.000000e+00> : vector<36x32xf32>
    %153 = tpu.matmul %150, %152, %cst_165 {dimension_numbers = #tpu.dot_dimension_numbers<[1], [0], [0], [1], [0, 0, 1, 1], [], []>} : vector<36x64xbf16>, vector<64x32xbf16>, vector<36x32xf32> -> vector<36x32xf32>
    %154 = arith.addf %149, %153 : vector<36x32xf32>
    %c13_166 = arith.constant 13 : index
    %c0_167 = arith.constant 0 : index
    %155 = vector.load %arg27[%c13_166, %c0_167] : memref<50x64xbf16, #tpu.memory_space<vmem>>, vector<36x64xbf16>
    %c7_168 = arith.constant 7 : index
    %c0_169 = arith.constant 0 : index
    %c0_170 = arith.constant 0 : index
    %156 = vector.load %arg11[%c7_168, %c0_169, %c0_170] : memref<9x64x32xbf16, #tpu.memory_space<vmem>>, vector<1x64x32xbf16>
    %157 = vector.shape_cast %156 : vector<1x64x32xbf16> to vector<64x32xbf16>
    %cst_171 = arith.constant dense<0.000000e+00> : vector<36x32xf32>
    %158 = tpu.matmul %155, %157, %cst_171 {dimension_numbers = #tpu.dot_dimension_numbers<[1], [0], [0], [1], [0, 0, 1, 1], [], []>} : vector<36x64xbf16>, vector<64x32xbf16>, vector<36x32xf32> -> vector<36x32xf32>
    %159 = arith.addf %154, %158 : vector<36x32xf32>
    %c14_172 = arith.constant 14 : index
    %c0_173 = arith.constant 0 : index
    %160 = vector.load %arg27[%c14_172, %c0_173] : memref<50x64xbf16, #tpu.memory_space<vmem>>, vector<36x64xbf16>
    %c8_174 = arith.constant 8 : index
    %c0_175 = arith.constant 0 : index
    %c0_176 = arith.constant 0 : index
    %161 = vector.load %arg11[%c8_174, %c0_175, %c0_176] : memref<9x64x32xbf16, #tpu.memory_space<vmem>>, vector<1x64x32xbf16>
    %162 = vector.shape_cast %161 : vector<1x64x32xbf16> to vector<64x32xbf16>
    %cst_177 = arith.constant dense<0.000000e+00> : vector<36x32xf32>
    %163 = tpu.matmul %160, %162, %cst_177 {dimension_numbers = #tpu.dot_dimension_numbers<[1], [0], [0], [1], [0, 0, 1, 1], [], []>} : vector<36x64xbf16>, vector<64x32xbf16>, vector<36x32xf32> -> vector<36x32xf32>
    %164 = arith.addf %159, %163 : vector<36x32xf32>
    %c0_178 = arith.constant 0 : index
    %c0_179 = arith.constant 0 : index
    %165 = vector.load %arg12[%c0_178, %c0_179] : memref<1x32xf32, #tpu.memory_space<vmem>>, vector<1x32xf32>
    %166 = vector.broadcast %165 : vector<1x32xf32> to vector<36x32xf32>
    %167 = arith.addf %164, %166 : vector<36x32xf32>
    %cst_180 = arith.constant 0.000000e+00 : f32
    %168 = vector.broadcast %cst_180 : f32 to vector<36x32xf32>
    %169 = arith.maximumf %167, %168 : vector<36x32xf32>
    %170 = vector.broadcast %0 : vector<36x1xf32> to vector<36x32xf32>
    %171 = arith.mulf %169, %170 : vector<36x32xf32>
    %172 = arith.truncf %171 : vector<36x32xf32> to vector<36x32xbf16>
    %c0_181 = arith.constant 0 : index
    %c0_182 = arith.constant 0 : index
    %173 = vector.load %arg5[%c0_181, %c0_182] : memref<32x512xbf16, #tpu.memory_space<vmem>>, vector<32x512xbf16>
    %cst_183 = arith.constant dense<0.000000e+00> : vector<36x512xf32>
    %174 = tpu.matmul %172, %173, %cst_183 {dimension_numbers = #tpu.dot_dimension_numbers<[1], [0], [0], [1], [0, 0, 1, 1], [], []>} : vector<36x32xbf16>, vector<32x512xbf16>, vector<36x512xf32> -> vector<36x512xf32>
    %175 = arith.mulf %174, %1 : vector<36x512xf32>
    %176 = arith.truncf %175 : vector<36x512xf32> to vector<36x512xbf16>
    %c0_184 = arith.constant 0 : index
    %c0_185 = arith.constant 0 : index
    %177 = vector.load %arg13[%c0_184, %c0_185] : memref<512x256xbf16, #tpu.memory_space<vmem>>, vector<512x256xbf16>
    %cst_186 = arith.constant dense<0.000000e+00> : vector<36x256xf32>
    %178 = tpu.matmul %176, %177, %cst_186 {dimension_numbers = #tpu.dot_dimension_numbers<[1], [0], [0], [1], [0, 0, 1, 1], [], []>} : vector<36x512xbf16>, vector<512x256xbf16>, vector<36x256xf32> -> vector<36x256xf32>
    %cst_187 = arith.constant dense<0.000000e+00> : vector<256xf32>
    %179 = vector.multi_reduction <add>, %178, %cst_187 [0] : vector<36x256xf32> to vector<256xf32>
    %180 = vector.shape_cast %179 : vector<256xf32> to vector<1x256xf32>
    %c0_188 = arith.constant 0 : index
    %c0_189 = arith.constant 0 : index
    %181 = vector.load %arg14[%c0_188, %c0_189] : memref<1x256xf32, #tpu.memory_space<vmem>>, vector<1x256xf32>
    %182 = arith.addf %180, %181 : vector<1x256xf32>
    %183 = vector.extract_strided_slice %182 {offsets = [0, 0], sizes = [1, 128], strides = [1, 1]} : vector<1x256xf32> to vector<1x128xf32>
    %184 = vector.extract_strided_slice %182 {offsets = [0, 128], sizes = [1, 128], strides = [1, 1]} : vector<1x256xf32> to vector<1x128xf32>
    %c0_190 = arith.constant 0 : index
    %c0_191 = arith.constant 0 : index
    %c0_192 = arith.constant 0 : index
    %185 = vector.load %arg23[%c0_190, %c0_191, %c0_192] : memref<1x1x128xf32, #tpu.memory_space<vmem>>, vector<1x1x128xf32>
    %186 = vector.shape_cast %185 : vector<1x1x128xf32> to vector<1x128xf32>
    %187 = vector.shape_cast %183 : vector<1x128xf32> to vector<1x1x128xf32>
    tpu.vector_store %arg23[%c0_190, %c0_191, %c0_192], %187 {strides = array<i32>} : memref<1x1x128xf32, #tpu.memory_space<vmem>>, vector<1x1x128xf32>,
    %c0_193 = arith.constant 0 : index
    %c0_194 = arith.constant 0 : index
    %c0_195 = arith.constant 0 : index
    %188 = vector.load %arg24[%c0_193, %c0_194, %c0_195] : memref<1x1x128xf32, #tpu.memory_space<vmem>>, vector<1x1x128xf32>
    %189 = vector.shape_cast %188 : vector<1x1x128xf32> to vector<1x128xf32>
    %190 = vector.shape_cast %184 : vector<1x128xf32> to vector<1x1x128xf32>
    tpu.vector_store %arg24[%c0_193, %c0_194, %c0_195], %190 {strides = array<i32>} : memref<1x1x128xf32, #tpu.memory_space<vmem>>, vector<1x1x128xf32>,
    %c0_196 = arith.constant 0 : index
    %c0_197 = arith.constant 0 : index
    %c0_198 = arith.constant 0 : index
    %191 = vector.load %arg2[%c0_196, %c0_197, %c0_198] : memref<1x1x128xf32, #tpu.memory_space<vmem>>, vector<1x1x128xf32>
    %192 = vector.shape_cast %191 : vector<1x1x128xf32> to vector<1x128xf32>
    %cst_199 = arith.constant 5.000000e-01 : f32
    %193 = vector.broadcast %cst_199 : f32 to vector<1x128xf32>
    %194 = arith.mulf %193, %184 : vector<1x128xf32>
    %195 = math.exp %194 : vector<1x128xf32>
    %196 = arith.mulf %192, %195 : vector<1x128xf32>
    %197 = arith.addf %183, %196 : vector<1x128xf32>
    %198 = arith.truncf %197 : vector<1x128xf32> to vector<1x128xbf16>
    %c0_200 = arith.constant 0 : index
    %c0_201 = arith.constant 0 : index
    %199 = vector.load %arg15[%c0_200, %c0_201] : memref<128x512xbf16, #tpu.memory_space<vmem>>, vector<128x512xbf16>
    %cst_202 = arith.constant dense<0.000000e+00> : vector<1x512xf32>
    %200 = tpu.matmul %198, %199, %cst_202 {dimension_numbers = #tpu.dot_dimension_numbers<[1], [0], [0], [1], [0, 0, 1, 1], [], []>} : vector<1x128xbf16>, vector<128x512xbf16>, vector<1x512xf32> -> vector<1x512xf32>
    %c0_203 = arith.constant 0 : index
    %c0_204 = arith.constant 0 : index
    %201 = vector.load %arg16[%c0_203, %c0_204] : memref<1x512xf32, #tpu.memory_space<vmem>>, vector<1x512xf32>
    %202 = arith.addf %200, %201 : vector<1x512xf32>
    %203 = vector.broadcast %202 : vector<1x512xf32> to vector<36x512xf32>
    %204 = arith.mulf %203, %1 : vector<36x512xf32>
    %205 = arith.truncf %204 : vector<36x512xf32> to vector<36x512xbf16>
    %c0_205 = arith.constant 0 : index
    %c0_206 = arith.constant 0 : index
    %206 = vector.load %arg6[%c0_205, %c0_206] : memref<512x32xbf16, #tpu.memory_space<vmem>>, vector<512x32xbf16>
    %cst_207 = arith.constant dense<0.000000e+00> : vector<36x32xf32>
    %207 = tpu.matmul %205, %206, %cst_207 {dimension_numbers = #tpu.dot_dimension_numbers<[1], [0], [0], [1], [0, 0, 1, 1], [], []>} : vector<36x512xbf16>, vector<512x32xbf16>, vector<36x32xf32> -> vector<36x32xf32>
    %cst_208 = arith.constant 0.000000e+00 : bf16
    %208 = vector.broadcast %cst_208 : bf16 to vector<50x32xbf16>
    %c0_209 = arith.constant 0 : index
    %c0_210 = arith.constant 0 : index
    %209 = vector.load %arg28[%c0_209, %c0_210] : memref<50x32xbf16, #tpu.memory_space<vmem>>, vector<50x32xbf16>
    tpu.vector_store %arg28[%c0_209, %c0_210], %208 {strides = array<i32>} : memref<50x32xbf16, #tpu.memory_space<vmem>>, vector<50x32xbf16>,
    %210 = arith.truncf %207 : vector<36x32xf32> to vector<36x32xbf16>
    %c7_211 = arith.constant 7 : index
    %c0_212 = arith.constant 0 : index
    %211 = vector.load %arg28[%c7_211, %c0_212] : memref<50x32xbf16, #tpu.memory_space<vmem>>, vector<36x32xbf16>
    tpu.vector_store %arg28[%c7_211, %c0_212], %210 {strides = array<i32>} : memref<50x32xbf16, #tpu.memory_space<vmem>>, vector<36x32xbf16>,
    %c0_213 = arith.constant 0 : index
    %c0_214 = arith.constant 0 : index
    %212 = vector.load %arg28[%c0_213, %c0_214] : memref<50x32xbf16, #tpu.memory_space<vmem>>, vector<36x32xbf16>
    %c0_215 = arith.constant 0 : index
    %c0_216 = arith.constant 0 : index
    %c0_217 = arith.constant 0 : index
    %213 = vector.load %arg17[%c0_215, %c0_216, %c0_217] : memref<9x32x64xbf16, #tpu.memory_space<vmem>>, vector<1x32x64xbf16>
    %214 = vector.shape_cast %213 : vector<1x32x64xbf16> to vector<32x64xbf16>
    %cst_218 = arith.constant dense<0.000000e+00> : vector<36x64xf32>
    %215 = tpu.matmul %212, %214, %cst_218 {dimension_numbers = #tpu.dot_dimension_numbers<[1], [0], [0], [1], [0, 0, 1, 1], [], []>} : vector<36x32xbf16>, vector<32x64xbf16>, vector<36x64xf32> -> vector<36x64xf32>
    %c1_219 = arith.constant 1 : index
    %c0_220 = arith.constant 0 : index
    %216 = vector.load %arg28[%c1_219, %c0_220] : memref<50x32xbf16, #tpu.memory_space<vmem>>, vector<36x32xbf16>
    %c1_221 = arith.constant 1 : index
    %c0_222 = arith.constant 0 : index
    %c0_223 = arith.constant 0 : index
    %217 = vector.load %arg17[%c1_221, %c0_222, %c0_223] : memref<9x32x64xbf16, #tpu.memory_space<vmem>>, vector<1x32x64xbf16>
    %218 = vector.shape_cast %217 : vector<1x32x64xbf16> to vector<32x64xbf16>
    %cst_224 = arith.constant dense<0.000000e+00> : vector<36x64xf32>
    %219 = tpu.matmul %216, %218, %cst_224 {dimension_numbers = #tpu.dot_dimension_numbers<[1], [0], [0], [1], [0, 0, 1, 1], [], []>} : vector<36x32xbf16>, vector<32x64xbf16>, vector<36x64xf32> -> vector<36x64xf32>
    %220 = arith.addf %215, %219 : vector<36x64xf32>
    %c2_225 = arith.constant 2 : index
    %c0_226 = arith.constant 0 : index
    %221 = vector.load %arg28[%c2_225, %c0_226] : memref<50x32xbf16, #tpu.memory_space<vmem>>, vector<36x32xbf16>
    %c2_227 = arith.constant 2 : index
    %c0_228 = arith.constant 0 : index
    %c0_229 = arith.constant 0 : index
    %222 = vector.load %arg17[%c2_227, %c0_228, %c0_229] : memref<9x32x64xbf16, #tpu.memory_space<vmem>>, vector<1x32x64xbf16>
    %223 = vector.shape_cast %222 : vector<1x32x64xbf16> to vector<32x64xbf16>
    %cst_230 = arith.constant dense<0.000000e+00> : vector<36x64xf32>
    %224 = tpu.matmul %221, %223, %cst_230 {dimension_numbers = #tpu.dot_dimension_numbers<[1], [0], [0], [1], [0, 0, 1, 1], [], []>} : vector<36x32xbf16>, vector<32x64xbf16>, vector<36x64xf32> -> vector<36x64xf32>
    %225 = arith.addf %220, %224 : vector<36x64xf32>
    %c6_231 = arith.constant 6 : index
    %c0_232 = arith.constant 0 : index
    %226 = vector.load %arg28[%c6_231, %c0_232] : memref<50x32xbf16, #tpu.memory_space<vmem>>, vector<36x32xbf16>
    %c3_233 = arith.constant 3 : index
    %c0_234 = arith.constant 0 : index
    %c0_235 = arith.constant 0 : index
    %227 = vector.load %arg17[%c3_233, %c0_234, %c0_235] : memref<9x32x64xbf16, #tpu.memory_space<vmem>>, vector<1x32x64xbf16>
    %228 = vector.shape_cast %227 : vector<1x32x64xbf16> to vector<32x64xbf16>
    %cst_236 = arith.constant dense<0.000000e+00> : vector<36x64xf32>
    %229 = tpu.matmul %226, %228, %cst_236 {dimension_numbers = #tpu.dot_dimension_numbers<[1], [0], [0], [1], [0, 0, 1, 1], [], []>} : vector<36x32xbf16>, vector<32x64xbf16>, vector<36x64xf32> -> vector<36x64xf32>
    %230 = arith.addf %225, %229 : vector<36x64xf32>
    %c7_237 = arith.constant 7 : index
    %c0_238 = arith.constant 0 : index
    %231 = vector.load %arg28[%c7_237, %c0_238] : memref<50x32xbf16, #tpu.memory_space<vmem>>, vector<36x32xbf16>
    %c4_239 = arith.constant 4 : index
    %c0_240 = arith.constant 0 : index
    %c0_241 = arith.constant 0 : index
    %232 = vector.load %arg17[%c4_239, %c0_240, %c0_241] : memref<9x32x64xbf16, #tpu.memory_space<vmem>>, vector<1x32x64xbf16>
    %233 = vector.shape_cast %232 : vector<1x32x64xbf16> to vector<32x64xbf16>
    %cst_242 = arith.constant dense<0.000000e+00> : vector<36x64xf32>
    %234 = tpu.matmul %231, %233, %cst_242 {dimension_numbers = #tpu.dot_dimension_numbers<[1], [0], [0], [1], [0, 0, 1, 1], [], []>} : vector<36x32xbf16>, vector<32x64xbf16>, vector<36x64xf32> -> vector<36x64xf32>
    %235 = arith.addf %230, %234 : vector<36x64xf32>
    %c8_243 = arith.constant 8 : index
    %c0_244 = arith.constant 0 : index
    %236 = vector.load %arg28[%c8_243, %c0_244] : memref<50x32xbf16, #tpu.memory_space<vmem>>, vector<36x32xbf16>
    %c5_245 = arith.constant 5 : index
    %c0_246 = arith.constant 0 : index
    %c0_247 = arith.constant 0 : index
    %237 = vector.load %arg17[%c5_245, %c0_246, %c0_247] : memref<9x32x64xbf16, #tpu.memory_space<vmem>>, vector<1x32x64xbf16>
    %238 = vector.shape_cast %237 : vector<1x32x64xbf16> to vector<32x64xbf16>
    %cst_248 = arith.constant dense<0.000000e+00> : vector<36x64xf32>
    %239 = tpu.matmul %236, %238, %cst_248 {dimension_numbers = #tpu.dot_dimension_numbers<[1], [0], [0], [1], [0, 0, 1, 1], [], []>} : vector<36x32xbf16>, vector<32x64xbf16>, vector<36x64xf32> -> vector<36x64xf32>
    %240 = arith.addf %235, %239 : vector<36x64xf32>
    %c12_249 = arith.constant 12 : index
    %c0_250 = arith.constant 0 : index
    %241 = vector.load %arg28[%c12_249, %c0_250] : memref<50x32xbf16, #tpu.memory_space<vmem>>, vector<36x32xbf16>
    %c6_251 = arith.constant 6 : index
    %c0_252 = arith.constant 0 : index
    %c0_253 = arith.constant 0 : index
    %242 = vector.load %arg17[%c6_251, %c0_252, %c0_253] : memref<9x32x64xbf16, #tpu.memory_space<vmem>>, vector<1x32x64xbf16>
    %243 = vector.shape_cast %242 : vector<1x32x64xbf16> to vector<32x64xbf16>
    %cst_254 = arith.constant dense<0.000000e+00> : vector<36x64xf32>
    %244 = tpu.matmul %241, %243, %cst_254 {dimension_numbers = #tpu.dot_dimension_numbers<[1], [0], [0], [1], [0, 0, 1, 1], [], []>} : vector<36x32xbf16>, vector<32x64xbf16>, vector<36x64xf32> -> vector<36x64xf32>
    %245 = arith.addf %240, %244 : vector<36x64xf32>
    %c13_255 = arith.constant 13 : index
    %c0_256 = arith.constant 0 : index
    %246 = vector.load %arg28[%c13_255, %c0_256] : memref<50x32xbf16, #tpu.memory_space<vmem>>, vector<36x32xbf16>
    %c7_257 = arith.constant 7 : index
    %c0_258 = arith.constant 0 : index
    %c0_259 = arith.constant 0 : index
    %247 = vector.load %arg17[%c7_257, %c0_258, %c0_259] : memref<9x32x64xbf16, #tpu.memory_space<vmem>>, vector<1x32x64xbf16>
    %248 = vector.shape_cast %247 : vector<1x32x64xbf16> to vector<32x64xbf16>
    %cst_260 = arith.constant dense<0.000000e+00> : vector<36x64xf32>
    %249 = tpu.matmul %246, %248, %cst_260 {dimension_numbers = #tpu.dot_dimension_numbers<[1], [0], [0], [1], [0, 0, 1, 1], [], []>} : vector<36x32xbf16>, vector<32x64xbf16>, vector<36x64xf32> -> vector<36x64xf32>
    %250 = arith.addf %245, %249 : vector<36x64xf32>
    %c14_261 = arith.constant 14 : index
    %c0_262 = arith.constant 0 : index
    %251 = vector.load %arg28[%c14_261, %c0_262] : memref<50x32xbf16, #tpu.memory_space<vmem>>, vector<36x32xbf16>
    %c8_263 = arith.constant 8 : index
    %c0_264 = arith.constant 0 : index
    %c0_265 = arith.constant 0 : index
    %252 = vector.load %arg17[%c8_263, %c0_264, %c0_265] : memref<9x32x64xbf16, #tpu.memory_space<vmem>>, vector<1x32x64xbf16>
    %253 = vector.shape_cast %252 : vector<1x32x64xbf16> to vector<32x64xbf16>
    %cst_266 = arith.constant dense<0.000000e+00> : vector<36x64xf32>
    %254 = tpu.matmul %251, %253, %cst_266 {dimension_numbers = #tpu.dot_dimension_numbers<[1], [0], [0], [1], [0, 0, 1, 1], [], []>} : vector<36x32xbf16>, vector<32x64xbf16>, vector<36x64xf32> -> vector<36x64xf32>
    %255 = arith.addf %250, %254 : vector<36x64xf32>
    %c0_267 = arith.constant 0 : index
    %c0_268 = arith.constant 0 : index
    %256 = vector.load %arg18[%c0_267, %c0_268] : memref<1x64xf32, #tpu.memory_space<vmem>>, vector<1x64xf32>
    %257 = vector.broadcast %256 : vector<1x64xf32> to vector<36x64xf32>
    %258 = arith.addf %255, %257 : vector<36x64xf32>
    %cst_269 = arith.constant 0.000000e+00 : f32
    %259 = vector.broadcast %cst_269 : f32 to vector<36x64xf32>
    %260 = arith.maximumf %258, %259 : vector<36x64xf32>
    %261 = vector.broadcast %0 : vector<36x1xf32> to vector<36x64xf32>
    %262 = arith.mulf %260, %261 : vector<36x64xf32>
    %cst_270 = arith.constant 0.000000e+00 : bf16
    %263 = vector.broadcast %cst_270 : bf16 to vector<50x64xbf16>
    %c0_271 = arith.constant 0 : index
    %c0_272 = arith.constant 0 : index
    %264 = vector.load %arg29[%c0_271, %c0_272] : memref<50x64xbf16, #tpu.memory_space<vmem>>, vector<50x64xbf16>
    tpu.vector_store %arg29[%c0_271, %c0_272], %263 {strides = array<i32>} : memref<50x64xbf16, #tpu.memory_space<vmem>>, vector<50x64xbf16>,
    %265 = arith.truncf %262 : vector<36x64xf32> to vector<36x64xbf16>
    %c7_273 = arith.constant 7 : index
    %c0_274 = arith.constant 0 : index
    %266 = vector.load %arg29[%c7_273, %c0_274] : memref<50x64xbf16, #tpu.memory_space<vmem>>, vector<36x64xbf16>
    tpu.vector_store %arg29[%c7_273, %c0_274], %265 {strides = array<i32>} : memref<50x64xbf16, #tpu.memory_space<vmem>>, vector<36x64xbf16>,
    %c0_275 = arith.constant 0 : index
    %c0_276 = arith.constant 0 : index
    %267 = vector.load %arg29[%c0_275, %c0_276] : memref<50x64xbf16, #tpu.memory_space<vmem>>, vector<36x64xbf16>
    %c0_277 = arith.constant 0 : index
    %c0_278 = arith.constant 0 : index
    %c0_279 = arith.constant 0 : index
    %268 = vector.load %arg19[%c0_277, %c0_278, %c0_279] : memref<9x64x128xbf16, #tpu.memory_space<vmem>>, vector<1x64x128xbf16>
    %269 = vector.shape_cast %268 : vector<1x64x128xbf16> to vector<64x128xbf16>
    %cst_280 = arith.constant dense<0.000000e+00> : vector<36x128xf32>
    %270 = tpu.matmul %267, %269, %cst_280 {dimension_numbers = #tpu.dot_dimension_numbers<[1], [0], [0], [1], [0, 0, 1, 1], [], []>} : vector<36x64xbf16>, vector<64x128xbf16>, vector<36x128xf32> -> vector<36x128xf32>
    %c1_281 = arith.constant 1 : index
    %c0_282 = arith.constant 0 : index
    %271 = vector.load %arg29[%c1_281, %c0_282] : memref<50x64xbf16, #tpu.memory_space<vmem>>, vector<36x64xbf16>
    %c1_283 = arith.constant 1 : index
    %c0_284 = arith.constant 0 : index
    %c0_285 = arith.constant 0 : index
    %272 = vector.load %arg19[%c1_283, %c0_284, %c0_285] : memref<9x64x128xbf16, #tpu.memory_space<vmem>>, vector<1x64x128xbf16>
    %273 = vector.shape_cast %272 : vector<1x64x128xbf16> to vector<64x128xbf16>
    %cst_286 = arith.constant dense<0.000000e+00> : vector<36x128xf32>
    %274 = tpu.matmul %271, %273, %cst_286 {dimension_numbers = #tpu.dot_dimension_numbers<[1], [0], [0], [1], [0, 0, 1, 1], [], []>} : vector<36x64xbf16>, vector<64x128xbf16>, vector<36x128xf32> -> vector<36x128xf32>
    %275 = arith.addf %270, %274 : vector<36x128xf32>
    %c2_287 = arith.constant 2 : index
    %c0_288 = arith.constant 0 : index
    %276 = vector.load %arg29[%c2_287, %c0_288] : memref<50x64xbf16, #tpu.memory_space<vmem>>, vector<36x64xbf16>
    %c2_289 = arith.constant 2 : index
    %c0_290 = arith.constant 0 : index
    %c0_291 = arith.constant 0 : index
    %277 = vector.load %arg19[%c2_289, %c0_290, %c0_291] : memref<9x64x128xbf16, #tpu.memory_space<vmem>>, vector<1x64x128xbf16>
    %278 = vector.shape_cast %277 : vector<1x64x128xbf16> to vector<64x128xbf16>
    %cst_292 = arith.constant dense<0.000000e+00> : vector<36x128xf32>
    %279 = tpu.matmul %276, %278, %cst_292 {dimension_numbers = #tpu.dot_dimension_numbers<[1], [0], [0], [1], [0, 0, 1, 1], [], []>} : vector<36x64xbf16>, vector<64x128xbf16>, vector<36x128xf32> -> vector<36x128xf32>
    %280 = arith.addf %275, %279 : vector<36x128xf32>
    %c6_293 = arith.constant 6 : index
    %c0_294 = arith.constant 0 : index
    %281 = vector.load %arg29[%c6_293, %c0_294] : memref<50x64xbf16, #tpu.memory_space<vmem>>, vector<36x64xbf16>
    %c3_295 = arith.constant 3 : index
    %c0_296 = arith.constant 0 : index
    %c0_297 = arith.constant 0 : index
    %282 = vector.load %arg19[%c3_295, %c0_296, %c0_297] : memref<9x64x128xbf16, #tpu.memory_space<vmem>>, vector<1x64x128xbf16>
    %283 = vector.shape_cast %282 : vector<1x64x128xbf16> to vector<64x128xbf16>
    %cst_298 = arith.constant dense<0.000000e+00> : vector<36x128xf32>
    %284 = tpu.matmul %281, %283, %cst_298 {dimension_numbers = #tpu.dot_dimension_numbers<[1], [0], [0], [1], [0, 0, 1, 1], [], []>} : vector<36x64xbf16>, vector<64x128xbf16>, vector<36x128xf32> -> vector<36x128xf32>
    %285 = arith.addf %280, %284 : vector<36x128xf32>
    %c7_299 = arith.constant 7 : index
    %c0_300 = arith.constant 0 : index
    %286 = vector.load %arg29[%c7_299, %c0_300] : memref<50x64xbf16, #tpu.memory_space<vmem>>, vector<36x64xbf16>
    %c4_301 = arith.constant 4 : index
    %c0_302 = arith.constant 0 : index
    %c0_303 = arith.constant 0 : index
    %287 = vector.load %arg19[%c4_301, %c0_302, %c0_303] : memref<9x64x128xbf16, #tpu.memory_space<vmem>>, vector<1x64x128xbf16>
    %288 = vector.shape_cast %287 : vector<1x64x128xbf16> to vector<64x128xbf16>
    %cst_304 = arith.constant dense<0.000000e+00> : vector<36x128xf32>
    %289 = tpu.matmul %286, %288, %cst_304 {dimension_numbers = #tpu.dot_dimension_numbers<[1], [0], [0], [1], [0, 0, 1, 1], [], []>} : vector<36x64xbf16>, vector<64x128xbf16>, vector<36x128xf32> -> vector<36x128xf32>
    %290 = arith.addf %285, %289 : vector<36x128xf32>
    %c8_305 = arith.constant 8 : index
    %c0_306 = arith.constant 0 : index
    %291 = vector.load %arg29[%c8_305, %c0_306] : memref<50x64xbf16, #tpu.memory_space<vmem>>, vector<36x64xbf16>
    %c5_307 = arith.constant 5 : index
    %c0_308 = arith.constant 0 : index
    %c0_309 = arith.constant 0 : index
    %292 = vector.load %arg19[%c5_307, %c0_308, %c0_309] : memref<9x64x128xbf16, #tpu.memory_space<vmem>>, vector<1x64x128xbf16>
    %293 = vector.shape_cast %292 : vector<1x64x128xbf16> to vector<64x128xbf16>
    %cst_310 = arith.constant dense<0.000000e+00> : vector<36x128xf32>
    %294 = tpu.matmul %291, %293, %cst_310 {dimension_numbers = #tpu.dot_dimension_numbers<[1], [0], [0], [1], [0, 0, 1, 1], [], []>} : vector<36x64xbf16>, vector<64x128xbf16>, vector<36x128xf32> -> vector<36x128xf32>
    %295 = arith.addf %290, %294 : vector<36x128xf32>
    %c12_311 = arith.constant 12 : index
    %c0_312 = arith.constant 0 : index
    %296 = vector.load %arg29[%c12_311, %c0_312] : memref<50x64xbf16, #tpu.memory_space<vmem>>, vector<36x64xbf16>
    %c6_313 = arith.constant 6 : index
    %c0_314 = arith.constant 0 : index
    %c0_315 = arith.constant 0 : index
    %297 = vector.load %arg19[%c6_313, %c0_314, %c0_315] : memref<9x64x128xbf16, #tpu.memory_space<vmem>>, vector<1x64x128xbf16>
    %298 = vector.shape_cast %297 : vector<1x64x128xbf16> to vector<64x128xbf16>
    %cst_316 = arith.constant dense<0.000000e+00> : vector<36x128xf32>
    %299 = tpu.matmul %296, %298, %cst_316 {dimension_numbers = #tpu.dot_dimension_numbers<[1], [0], [0], [1], [0, 0, 1, 1], [], []>} : vector<36x64xbf16>, vector<64x128xbf16>, vector<36x128xf32> -> vector<36x128xf32>
    %300 = arith.addf %295, %299 : vector<36x128xf32>
    %c13_317 = arith.constant 13 : index
    %c0_318 = arith.constant 0 : index
    %301 = vector.load %arg29[%c13_317, %c0_318] : memref<50x64xbf16, #tpu.memory_space<vmem>>, vector<36x64xbf16>
    %c7_319 = arith.constant 7 : index
    %c0_320 = arith.constant 0 : index
    %c0_321 = arith.constant 0 : index
    %302 = vector.load %arg19[%c7_319, %c0_320, %c0_321] : memref<9x64x128xbf16, #tpu.memory_space<vmem>>, vector<1x64x128xbf16>
    %303 = vector.shape_cast %302 : vector<1x64x128xbf16> to vector<64x128xbf16>
    %cst_322 = arith.constant dense<0.000000e+00> : vector<36x128xf32>
    %304 = tpu.matmul %301, %303, %cst_322 {dimension_numbers = #tpu.dot_dimension_numbers<[1], [0], [0], [1], [0, 0, 1, 1], [], []>} : vector<36x64xbf16>, vector<64x128xbf16>, vector<36x128xf32> -> vector<36x128xf32>
    %305 = arith.addf %300, %304 : vector<36x128xf32>
    %c14_323 = arith.constant 14 : index
    %c0_324 = arith.constant 0 : index
    %306 = vector.load %arg29[%c14_323, %c0_324] : memref<50x64xbf16, #tpu.memory_space<vmem>>, vector<36x64xbf16>
    %c8_325 = arith.constant 8 : index
    %c0_326 = arith.constant 0 : index
    %c0_327 = arith.constant 0 : index
    %307 = vector.load %arg19[%c8_325, %c0_326, %c0_327] : memref<9x64x128xbf16, #tpu.memory_space<vmem>>, vector<1x64x128xbf16>
    %308 = vector.shape_cast %307 : vector<1x64x128xbf16> to vector<64x128xbf16>
    %cst_328 = arith.constant dense<0.000000e+00> : vector<36x128xf32>
    %309 = tpu.matmul %306, %308, %cst_328 {dimension_numbers = #tpu.dot_dimension_numbers<[1], [0], [0], [1], [0, 0, 1, 1], [], []>} : vector<36x64xbf16>, vector<64x128xbf16>, vector<36x128xf32> -> vector<36x128xf32>
    %310 = arith.addf %305, %309 : vector<36x128xf32>
    %c0_329 = arith.constant 0 : index
    %c0_330 = arith.constant 0 : index
    %311 = vector.load %arg20[%c0_329, %c0_330] : memref<1x128xf32, #tpu.memory_space<vmem>>, vector<1x128xf32>
    %312 = vector.broadcast %311 : vector<1x128xf32> to vector<36x128xf32>
    %313 = arith.addf %310, %312 : vector<36x128xf32>
    %cst_331 = arith.constant 0.000000e+00 : f32
    %314 = vector.broadcast %cst_331 : f32 to vector<36x128xf32>
    %315 = arith.maximumf %313, %314 : vector<36x128xf32>
    %316 = vector.broadcast %0 : vector<36x1xf32> to vector<36x128xf32>
    %317 = arith.mulf %315, %316 : vector<36x128xf32>
    %cst_332 = arith.constant 0.000000e+00 : bf16
    %318 = vector.broadcast %cst_332 : bf16 to vector<50x128xbf16>
    %c0_333 = arith.constant 0 : index
    %c0_334 = arith.constant 0 : index
    %319 = vector.load %arg30[%c0_333, %c0_334] : memref<50x128xbf16, #tpu.memory_space<vmem>>, vector<50x128xbf16>
    tpu.vector_store %arg30[%c0_333, %c0_334], %318 {strides = array<i32>} : memref<50x128xbf16, #tpu.memory_space<vmem>>, vector<50x128xbf16>,
    %320 = arith.truncf %317 : vector<36x128xf32> to vector<36x128xbf16>
    %c7_335 = arith.constant 7 : index
    %c0_336 = arith.constant 0 : index
    %321 = vector.load %arg30[%c7_335, %c0_336] : memref<50x128xbf16, #tpu.memory_space<vmem>>, vector<36x128xbf16>
    tpu.vector_store %arg30[%c7_335, %c0_336], %320 {strides = array<i32>} : memref<50x128xbf16, #tpu.memory_space<vmem>>, vector<36x128xbf16>,
    %c0_337 = arith.constant 0 : index
    %c0_338 = arith.constant 0 : index
    %322 = vector.load %arg30[%c0_337, %c0_338] : memref<50x128xbf16, #tpu.memory_space<vmem>>, vector<36x128xbf16>
    %c0_339 = arith.constant 0 : index
    %c0_340 = arith.constant 0 : index
    %c0_341 = arith.constant 0 : index
    %323 = vector.load %arg21[%c0_339, %c0_340, %c0_341] : memref<9x128x192xbf16, #tpu.memory_space<vmem>>, vector<1x128x192xbf16>
    %324 = vector.shape_cast %323 : vector<1x128x192xbf16> to vector<128x192xbf16>
    %cst_342 = arith.constant dense<0.000000e+00> : vector<36x192xf32>
    %325 = tpu.matmul %322, %324, %cst_342 {dimension_numbers = #tpu.dot_dimension_numbers<[1], [0], [0], [1], [0, 0, 1, 1], [], []>} : vector<36x128xbf16>, vector<128x192xbf16>, vector<36x192xf32> -> vector<36x192xf32>
    %c1_343 = arith.constant 1 : index
    %c0_344 = arith.constant 0 : index
    %326 = vector.load %arg30[%c1_343, %c0_344] : memref<50x128xbf16, #tpu.memory_space<vmem>>, vector<36x128xbf16>
    %c1_345 = arith.constant 1 : index
    %c0_346 = arith.constant 0 : index
    %c0_347 = arith.constant 0 : index
    %327 = vector.load %arg21[%c1_345, %c0_346, %c0_347] : memref<9x128x192xbf16, #tpu.memory_space<vmem>>, vector<1x128x192xbf16>
    %328 = vector.shape_cast %327 : vector<1x128x192xbf16> to vector<128x192xbf16>
    %cst_348 = arith.constant dense<0.000000e+00> : vector<36x192xf32>
    %329 = tpu.matmul %326, %328, %cst_348 {dimension_numbers = #tpu.dot_dimension_numbers<[1], [0], [0], [1], [0, 0, 1, 1], [], []>} : vector<36x128xbf16>, vector<128x192xbf16>, vector<36x192xf32> -> vector<36x192xf32>
    %330 = arith.addf %325, %329 : vector<36x192xf32>
    %c2_349 = arith.constant 2 : index
    %c0_350 = arith.constant 0 : index
    %331 = vector.load %arg30[%c2_349, %c0_350] : memref<50x128xbf16, #tpu.memory_space<vmem>>, vector<36x128xbf16>
    %c2_351 = arith.constant 2 : index
    %c0_352 = arith.constant 0 : index
    %c0_353 = arith.constant 0 : index
    %332 = vector.load %arg21[%c2_351, %c0_352, %c0_353] : memref<9x128x192xbf16, #tpu.memory_space<vmem>>, vector<1x128x192xbf16>
    %333 = vector.shape_cast %332 : vector<1x128x192xbf16> to vector<128x192xbf16>
    %cst_354 = arith.constant dense<0.000000e+00> : vector<36x192xf32>
    %334 = tpu.matmul %331, %333, %cst_354 {dimension_numbers = #tpu.dot_dimension_numbers<[1], [0], [0], [1], [0, 0, 1, 1], [], []>} : vector<36x128xbf16>, vector<128x192xbf16>, vector<36x192xf32> -> vector<36x192xf32>
    %335 = arith.addf %330, %334 : vector<36x192xf32>
    %c6_355 = arith.constant 6 : index
    %c0_356 = arith.constant 0 : index
    %336 = vector.load %arg30[%c6_355, %c0_356] : memref<50x128xbf16, #tpu.memory_space<vmem>>, vector<36x128xbf16>
    %c3_357 = arith.constant 3 : index
    %c0_358 = arith.constant 0 : index
    %c0_359 = arith.constant 0 : index
    %337 = vector.load %arg21[%c3_357, %c0_358, %c0_359] : memref<9x128x192xbf16, #tpu.memory_space<vmem>>, vector<1x128x192xbf16>
    %338 = vector.shape_cast %337 : vector<1x128x192xbf16> to vector<128x192xbf16>
    %cst_360 = arith.constant dense<0.000000e+00> : vector<36x192xf32>
    %339 = tpu.matmul %336, %338, %cst_360 {dimension_numbers = #tpu.dot_dimension_numbers<[1], [0], [0], [1], [0, 0, 1, 1], [], []>} : vector<36x128xbf16>, vector<128x192xbf16>, vector<36x192xf32> -> vector<36x192xf32>
    %340 = arith.addf %335, %339 : vector<36x192xf32>
    %c7_361 = arith.constant 7 : index
    %c0_362 = arith.constant 0 : index
    %341 = vector.load %arg30[%c7_361, %c0_362] : memref<50x128xbf16, #tpu.memory_space<vmem>>, vector<36x128xbf16>
    %c4_363 = arith.constant 4 : index
    %c0_364 = arith.constant 0 : index
    %c0_365 = arith.constant 0 : index
    %342 = vector.load %arg21[%c4_363, %c0_364, %c0_365] : memref<9x128x192xbf16, #tpu.memory_space<vmem>>, vector<1x128x192xbf16>
    %343 = vector.shape_cast %342 : vector<1x128x192xbf16> to vector<128x192xbf16>
    %cst_366 = arith.constant dense<0.000000e+00> : vector<36x192xf32>
    %344 = tpu.matmul %341, %343, %cst_366 {dimension_numbers = #tpu.dot_dimension_numbers<[1], [0], [0], [1], [0, 0, 1, 1], [], []>} : vector<36x128xbf16>, vector<128x192xbf16>, vector<36x192xf32> -> vector<36x192xf32>
    %345 = arith.addf %340, %344 : vector<36x192xf32>
    %c8_367 = arith.constant 8 : index
    %c0_368 = arith.constant 0 : index
    %346 = vector.load %arg30[%c8_367, %c0_368] : memref<50x128xbf16, #tpu.memory_space<vmem>>, vector<36x128xbf16>
    %c5_369 = arith.constant 5 : index
    %c0_370 = arith.constant 0 : index
    %c0_371 = arith.constant 0 : index
    %347 = vector.load %arg21[%c5_369, %c0_370, %c0_371] : memref<9x128x192xbf16, #tpu.memory_space<vmem>>, vector<1x128x192xbf16>
    %348 = vector.shape_cast %347 : vector<1x128x192xbf16> to vector<128x192xbf16>
    %cst_372 = arith.constant dense<0.000000e+00> : vector<36x192xf32>
    %349 = tpu.matmul %346, %348, %cst_372 {dimension_numbers = #tpu.dot_dimension_numbers<[1], [0], [0], [1], [0, 0, 1, 1], [], []>} : vector<36x128xbf16>, vector<128x192xbf16>, vector<36x192xf32> -> vector<36x192xf32>
    %350 = arith.addf %345, %349 : vector<36x192xf32>
    %c12_373 = arith.constant 12 : index
    %c0_374 = arith.constant 0 : index
    %351 = vector.load %arg30[%c12_373, %c0_374] : memref<50x128xbf16, #tpu.memory_space<vmem>>, vector<36x128xbf16>
    %c6_375 = arith.constant 6 : index
    %c0_376 = arith.constant 0 : index
    %c0_377 = arith.constant 0 : index
    %352 = vector.load %arg21[%c6_375, %c0_376, %c0_377] : memref<9x128x192xbf16, #tpu.memory_space<vmem>>, vector<1x128x192xbf16>
    %353 = vector.shape_cast %352 : vector<1x128x192xbf16> to vector<128x192xbf16>
    %cst_378 = arith.constant dense<0.000000e+00> : vector<36x192xf32>
    %354 = tpu.matmul %351, %353, %cst_378 {dimension_numbers = #tpu.dot_dimension_numbers<[1], [0], [0], [1], [0, 0, 1, 1], [], []>} : vector<36x128xbf16>, vector<128x192xbf16>, vector<36x192xf32> -> vector<36x192xf32>
    %355 = arith.addf %350, %354 : vector<36x192xf32>
    %c13_379 = arith.constant 13 : index
    %c0_380 = arith.constant 0 : index
    %356 = vector.load %arg30[%c13_379, %c0_380] : memref<50x128xbf16, #tpu.memory_space<vmem>>, vector<36x128xbf16>
    %c7_381 = arith.constant 7 : index
    %c0_382 = arith.constant 0 : index
    %c0_383 = arith.constant 0 : index
    %357 = vector.load %arg21[%c7_381, %c0_382, %c0_383] : memref<9x128x192xbf16, #tpu.memory_space<vmem>>, vector<1x128x192xbf16>
    %358 = vector.shape_cast %357 : vector<1x128x192xbf16> to vector<128x192xbf16>
    %cst_384 = arith.constant dense<0.000000e+00> : vector<36x192xf32>
    %359 = tpu.matmul %356, %358, %cst_384 {dimension_numbers = #tpu.dot_dimension_numbers<[1], [0], [0], [1], [0, 0, 1, 1], [], []>} : vector<36x128xbf16>, vector<128x192xbf16>, vector<36x192xf32> -> vector<36x192xf32>
    %360 = arith.addf %355, %359 : vector<36x192xf32>
    %c14_385 = arith.constant 14 : index
    %c0_386 = arith.constant 0 : index
    %361 = vector.load %arg30[%c14_385, %c0_386] : memref<50x128xbf16, #tpu.memory_space<vmem>>, vector<36x128xbf16>
    %c8_387 = arith.constant 8 : index
    %c0_388 = arith.constant 0 : index
    %c0_389 = arith.constant 0 : index
    %362 = vector.load %arg21[%c8_387, %c0_388, %c0_389] : memref<9x128x192xbf16, #tpu.memory_space<vmem>>, vector<1x128x192xbf16>
    %363 = vector.shape_cast %362 : vector<1x128x192xbf16> to vector<128x192xbf16>
    %cst_390 = arith.constant dense<0.000000e+00> : vector<36x192xf32>
    %364 = tpu.matmul %361, %363, %cst_390 {dimension_numbers = #tpu.dot_dimension_numbers<[1], [0], [0], [1], [0, 0, 1, 1], [], []>} : vector<36x128xbf16>, vector<128x192xbf16>, vector<36x192xf32> -> vector<36x192xf32>
    %365 = arith.addf %360, %364 : vector<36x192xf32>
    %c0_391 = arith.constant 0 : index
    %c0_392 = arith.constant 0 : index
    %366 = vector.load %arg22[%c0_391, %c0_392] : memref<1x192xf32, #tpu.memory_space<vmem>>, vector<1x192xf32>
    %367 = vector.broadcast %366 : vector<1x192xf32> to vector<36x192xf32>
    %368 = arith.addf %365, %367 : vector<36x192xf32>
    %369 = arith.negf %368 : vector<36x192xf32>
    %370 = math.exp %369 : vector<36x192xf32>
    %cst_393 = arith.constant 1.000000e+00 : f32
    %371 = vector.broadcast %cst_393 : f32 to vector<36x192xf32>
    %372 = arith.addf %371, %370 : vector<36x192xf32>
    %373 = arith.divf %371, %372 : vector<36x192xf32>
    %374 = vector.broadcast %0 : vector<36x1xf32> to vector<36x192xf32>
    %375 = arith.mulf %373, %374 : vector<36x192xf32>
    %c0_394 = arith.constant 0 : index
    %c0_395 = arith.constant 0 : index
    %c0_396 = arith.constant 0 : index
    %376 = vector.load %arg25[%c0_394, %c0_395, %c0_396] : memref<1x36x192xf32, #tpu.memory_space<vmem>>, vector<1x36x192xf32>
    %377 = vector.shape_cast %376 : vector<1x36x192xf32> to vector<36x192xf32>
    %378 = vector.shape_cast %375 : vector<36x192xf32> to vector<1x36x192xf32>
    tpu.vector_store %arg25[%c0_394, %c0_395, %c0_396], %378 {strides = array<i32>} : memref<1x36x192xf32, #tpu.memory_space<vmem>>, vector<1x36x192xf32>,
    return
  }
  func.func @transform_0(%arg0: i32) -> (i32, i32, i32) {
    %c0_i32 = arith.constant 0 : i32
    %c0_i32_0 = arith.constant 0 : i32
    %c0_i32_1 = arith.constant 0 : i32
    return %arg0, %c0_i32, %c0_i32_0 : i32, i32, i32
  }
  func.func @transform_1(%arg0: i32) -> (i32, i32, i32) {
    %c0_i32 = arith.constant 0 : i32
    %c0_i32_0 = arith.constant 0 : i32
    %c0_i32_1 = arith.constant 0 : i32
    return %arg0, %c0_i32, %c0_i32_0 : i32, i32, i32
  }
  func.func @transform_2(%arg0: i32) -> (i32, i32) {
    %c0_i32 = arith.constant 0 : i32
    %c0_i32_0 = arith.constant 0 : i32
    %c0_i32_1 = arith.constant 0 : i32
    return %c0_i32, %c0_i32_0 : i32, i32
  }
  func.func @transform_3(%arg0: i32) -> (i32, i32) {
    %c0_i32 = arith.constant 0 : i32
    %c0_i32_0 = arith.constant 0 : i32
    %c0_i32_1 = arith.constant 0 : i32
    return %c0_i32, %c0_i32_0 : i32, i32
  }
  func.func @transform_4(%arg0: i32) -> (i32, i32) {
    %c0_i32 = arith.constant 0 : i32
    %c0_i32_0 = arith.constant 0 : i32
    %c0_i32_1 = arith.constant 0 : i32
    return %c0_i32, %c0_i32_0 : i32, i32
  }
  func.func @transform_5(%arg0: i32) -> (i32, i32) {
    %c0_i32 = arith.constant 0 : i32
    %c0_i32_0 = arith.constant 0 : i32
    %c0_i32_1 = arith.constant 0 : i32
    return %c0_i32, %c0_i32_0 : i32, i32
  }
  func.func @transform_6(%arg0: i32) -> (i32, i32, i32) {
    %c0_i32 = arith.constant 0 : i32
    %c0_i32_0 = arith.constant 0 : i32
    %c0_i32_1 = arith.constant 0 : i32
    %c0_i32_2 = arith.constant 0 : i32
    return %c0_i32, %c0_i32_0, %c0_i32_1 : i32, i32, i32
  }
  func.func @transform_7(%arg0: i32) -> (i32, i32) {
    %c0_i32 = arith.constant 0 : i32
    %c0_i32_0 = arith.constant 0 : i32
    %c0_i32_1 = arith.constant 0 : i32
    return %c0_i32, %c0_i32_0 : i32, i32
  }
  func.func @transform_8(%arg0: i32) -> (i32, i32, i32) {
    %c0_i32 = arith.constant 0 : i32
    %c0_i32_0 = arith.constant 0 : i32
    %c0_i32_1 = arith.constant 0 : i32
    %c0_i32_2 = arith.constant 0 : i32
    return %c0_i32, %c0_i32_0, %c0_i32_1 : i32, i32, i32
  }
  func.func @transform_9(%arg0: i32) -> (i32, i32) {
    %c0_i32 = arith.constant 0 : i32
    %c0_i32_0 = arith.constant 0 : i32
    %c0_i32_1 = arith.constant 0 : i32
    return %c0_i32, %c0_i32_0 : i32, i32
  }
  func.func @transform_10(%arg0: i32) -> (i32, i32, i32) {
    %c0_i32 = arith.constant 0 : i32
    %c0_i32_0 = arith.constant 0 : i32
    %c0_i32_1 = arith.constant 0 : i32
    %c0_i32_2 = arith.constant 0 : i32
    return %c0_i32, %c0_i32_0, %c0_i32_1 : i32, i32, i32
  }
  func.func @transform_11(%arg0: i32) -> (i32, i32) {
    %c0_i32 = arith.constant 0 : i32
    %c0_i32_0 = arith.constant 0 : i32
    %c0_i32_1 = arith.constant 0 : i32
    return %c0_i32, %c0_i32_0 : i32, i32
  }
  func.func @transform_12(%arg0: i32) -> (i32, i32) {
    %c0_i32 = arith.constant 0 : i32
    %c0_i32_0 = arith.constant 0 : i32
    %c0_i32_1 = arith.constant 0 : i32
    return %c0_i32, %c0_i32_0 : i32, i32
  }
  func.func @transform_13(%arg0: i32) -> (i32, i32) {
    %c0_i32 = arith.constant 0 : i32
    %c0_i32_0 = arith.constant 0 : i32
    %c0_i32_1 = arith.constant 0 : i32
    return %c0_i32, %c0_i32_0 : i32, i32
  }
  func.func @transform_14(%arg0: i32) -> (i32, i32) {
    %c0_i32 = arith.constant 0 : i32
    %c0_i32_0 = arith.constant 0 : i32
    %c0_i32_1 = arith.constant 0 : i32
    return %c0_i32, %c0_i32_0 : i32, i32
  }
  func.func @transform_15(%arg0: i32) -> (i32, i32) {
    %c0_i32 = arith.constant 0 : i32
    %c0_i32_0 = arith.constant 0 : i32
    %c0_i32_1 = arith.constant 0 : i32
    return %c0_i32, %c0_i32_0 : i32, i32
  }
  func.func @transform_16(%arg0: i32) -> (i32, i32, i32) {
    %c0_i32 = arith.constant 0 : i32
    %c0_i32_0 = arith.constant 0 : i32
    %c0_i32_1 = arith.constant 0 : i32
    %c0_i32_2 = arith.constant 0 : i32
    return %c0_i32, %c0_i32_0, %c0_i32_1 : i32, i32, i32
  }
  func.func @transform_17(%arg0: i32) -> (i32, i32) {
    %c0_i32 = arith.constant 0 : i32
    %c0_i32_0 = arith.constant 0 : i32
    %c0_i32_1 = arith.constant 0 : i32
    return %c0_i32, %c0_i32_0 : i32, i32
  }
  func.func @transform_18(%arg0: i32) -> (i32, i32, i32) {
    %c0_i32 = arith.constant 0 : i32
    %c0_i32_0 = arith.constant 0 : i32
    %c0_i32_1 = arith.constant 0 : i32
    %c0_i32_2 = arith.constant 0 : i32
    return %c0_i32, %c0_i32_0, %c0_i32_1 : i32, i32, i32
  }
  func.func @transform_19(%arg0: i32) -> (i32, i32) {
    %c0_i32 = arith.constant 0 : i32
    %c0_i32_0 = arith.constant 0 : i32
    %c0_i32_1 = arith.constant 0 : i32
    return %c0_i32, %c0_i32_0 : i32, i32
  }
  func.func @transform_20(%arg0: i32) -> (i32, i32, i32) {
    %c0_i32 = arith.constant 0 : i32
    %c0_i32_0 = arith.constant 0 : i32
    %c0_i32_1 = arith.constant 0 : i32
    %c0_i32_2 = arith.constant 0 : i32
    return %c0_i32, %c0_i32_0, %c0_i32_1 : i32, i32, i32
  }
  func.func @transform_21(%arg0: i32) -> (i32, i32) {
    %c0_i32 = arith.constant 0 : i32
    %c0_i32_0 = arith.constant 0 : i32
    %c0_i32_1 = arith.constant 0 : i32
    return %c0_i32, %c0_i32_0 : i32, i32
  }
  func.func @transform_22(%arg0: i32) -> (i32, i32, i32) {
    %c0_i32 = arith.constant 0 : i32
    %c0_i32_0 = arith.constant 0 : i32
    %c0_i32_1 = arith.constant 0 : i32
    return %arg0, %c0_i32, %c0_i32_0 : i32, i32, i32
  }
  func.func @transform_23(%arg0: i32) -> (i32, i32, i32) {
    %c0_i32 = arith.constant 0 : i32
    %c0_i32_0 = arith.constant 0 : i32
    %c0_i32_1 = arith.constant 0 : i32
    return %arg0, %c0_i32, %c0_i32_0 : i32, i32, i32
  }
  func.func @transform_24(%arg0: i32) -> (i32, i32, i32) {
    %c0_i32 = arith.constant 0 : i32
    %c0_i32_0 = arith.constant 0 : i32
    %c0_i32_1 = arith.constant 0 : i32
    return %arg0, %c0_i32, %c0_i32_0 : i32, i32, i32
  }
}

</mosaic_0001>

<llo_original>
// kernel: forward.1
$region0: #{forward.1}
  #allocation0 [shape = 'u32[]', space=smem, size = 0x4, offset = 0x4, fixed_abs, tag = 'smem constant byte address 0x4 - core index']
  #allocation1 [shape = 'u32[144,128]{1,0:T(1,128)}', space=vmem, size = 0x12000, scoped, tag = 'internal scratch']
  #allocation2 [shape = 'bf16[50,128]{1,0:T(8,128)(2,1)}', space=vmem, size = 0x3800, scoped, tag = 'scratch operand']
  #allocation3 [shape = 'bf16[50,64]{1,0:T(8,128)(2,1)}', space=vmem, size = 0x3800, scoped, tag = 'scratch operand']
  #allocation4 [shape = 'bf16[50,32]{1,0:T(8,128)(2,1)}', space=vmem, size = 0x3800, scoped, tag = 'scratch operand']
  #allocation5 [shape = 'bf16[50,64]{1,0:T(8,128)(2,1)}', space=vmem, size = 0x3800, scoped, tag = 'scratch operand']
  #allocation6 [shape = 'bf16[50,128]{1,0:T(8,128)(2,1)}', space=vmem, size = 0x3800, scoped, tag = 'scratch operand']
  %s0 = inlined_call_operand.vmem [shape: bf16[2,50,192], index: 0, kind: input, shape index: {}]
  %s1 = inlined_call_operand.vmem [shape: f32[2,1,128], index: 1, kind: input, shape index: {}]
  %s2 = inlined_call_operand.vmem [shape: f32[36,1], index: 2, kind: input, shape index: {}]
  %s3 = inlined_call_operand.vmem [shape: f32[36,512], index: 3, kind: input, shape index: {}]
  %s4 = inlined_call_operand.vmem [shape: bf16[32,512], index: 4, kind: input, shape index: {}]
  %s5 = inlined_call_operand.vmem [shape: bf16[512,32], index: 5, kind: input, shape index: {}]
  %s6 = inlined_call_operand.vmem [shape: bf16[9,192,128], index: 6, kind: input, shape index: {}]
  %s7 = inlined_call_operand.vmem [shape: f32[1,128], index: 7, kind: input, shape index: {}]
  %s8 = inlined_call_operand.vmem [shape: bf16[9,128,64], index: 8, kind: input, shape index: {}]
  %s9 = inlined_call_operand.vmem [shape: f32[1,64], index: 9, kind: input, shape index: {}]
  %s10 = inlined_call_operand.vmem [shape: bf16[9,64,32], index: 10, kind: input, shape index: {}]
  %s11 = inlined_call_operand.vmem [shape: f32[1,32], index: 11, kind: input, shape index: {}]
  %s12 = inlined_call_operand.vmem [shape: bf16[512,256], index: 12, kind: input, shape index: {}]
  %s13 = inlined_call_operand.vmem [shape: f32[1,256], index: 13, kind: input, shape index: {}]
  %s14 = inlined_call_operand.vmem [shape: bf16[128,512], index: 14, kind: input, shape index: {}]
  %s15 = inlined_call_operand.vmem [shape: f32[1,512], index: 15, kind: input, shape index: {}]
  %s16 = inlined_call_operand.vmem [shape: bf16[9,32,64], index: 16, kind: input, shape index: {}]
  %s17 = inlined_call_operand.vmem [shape: f32[1,64], index: 17, kind: input, shape index: {}]
  %s18 = inlined_call_operand.vmem [shape: bf16[9,64,128], index: 18, kind: input, shape index: {}]
  %s19 = inlined_call_operand.vmem [shape: f32[1,128], index: 19, kind: input, shape index: {}]
  %s20 = inlined_call_operand.vmem [shape: bf16[9,128,192], index: 20, kind: input, shape index: {}]
  %s21 = inlined_call_operand.vmem [shape: f32[1,192], index: 21, kind: input, shape index: {}]
  %s22 = inlined_call_operand.hbm [shape: f32[2,1,128], index: 22, kind: output, shape index: {0}]
  %s23 = inlined_call_operand.hbm [shape: f32[2,1,128], index: 23, kind: output, shape index: {1}]
  %s24 = inlined_call_operand.vmem [shape: f32[2,36,192], index: 24, kind: output, shape index: {2}]
  %25 = xla_tuple %s22, %s23, %s24
  %s26 = sld [smem:[#allocation0]]
  $region137: #{forward.1} parent=0
    _
  %s28 = ssub.s32 1, %s26
  %s29 = scalar_select 0, %s28, %s26
  $region1: #{forward.1} parent=0
    #allocation7 [shape = 'u8[1024]{0}', space=vmem, size = 0x400, scoped, tag = 'output window, operand 0']
    #allocation8 [shape = 's32[2]{0}', space=sflag, size = 0x8, scoped, tag = 'scoped memory for forward.1']
    #allocation9 [shape = 'u8[1024]{0}', space=vmem, size = 0x400, scoped, tag = 'output window, operand 1']
    #allocation10 [shape = 's32[2]{0}', space=sflag, size = 0x8, scoped, tag = 'scoped memory for forward.1']
    %30 = vsyncpa [#allocation8], 0
    %s31 = scalar_lea.sflag [#allocation8], 1
    %32 = vsyncpa %s31, 0
    %33 = vsyncpa [#allocation10], 0
    %s34 = scalar_lea.sflag [#allocation10], 1
    %35 = vsyncpa %s34, 0
    loop: start=0, step=1, limit=4
    $region2: #{forward.1} parent=1 // loop_pre_header
      _
    $region3: #{forward.1} parent=1 // loop_header
      %s37 = sphi 0, %s41
      %p38 = scmp.ge.s32.totalorder %s37, 4
      %s47 = sphi 0, %s49
      %s50 = sphi 0, %s47
      %s51 = sphi 0, %s50
      %s67 = sphi 0, %s51
      %s73 = sphi 0, %s75
      %s76 = sphi 0, %s73
      %s77 = sphi 0, %s76
      %s93 = sphi 0, %s77
      %s97 = sphi 0, %s97
      %s99 = sphi 0, %s97
      %s100 = sphi 0, %s99
      %s114 = sphi 0, %s100
      %s118 = sphi 0, %s118
      %s120 = sphi 0, %s118
      %s121 = sphi 0, %s120
      %s135 = sphi 0, %s121
      %s139 = sphi 0, %s139
      %s141 = sphi 0, %s139
      %s142 = sphi 0, %s141
      %s156 = sphi 0, %s142
      %s160 = sphi 0, %s160
      %s162 = sphi 0, %s160
      %s163 = sphi 0, %s162
      %s177 = sphi 0, %s163
      %s181 = sphi 0, %s181
      %s183 = sphi 0, %s181
      %s184 = sphi 0, %s183
      %s198 = sphi 0, %s184
      %s202 = sphi 0, %s202
      %s204 = sphi 0, %s202
      %s205 = sphi 0, %s204
      %s219 = sphi 0, %s205
      %s223 = sphi 0, %s223
      %s225 = sphi 0, %s223
      %s226 = sphi 0, %s225
      %s240 = sphi 0, %s226
      %s244 = sphi 0, %s244
      %s246 = sphi 0, %s244
      %s247 = sphi 0, %s246
      %s261 = sphi 0, %s247
      %s265 = sphi 0, %s265
      %s267 = sphi 0, %s265
      %s268 = sphi 0, %s267
      %s282 = sphi 0, %s268
      %s286 = sphi 0, %s286
      %s288 = sphi 0, %s286
      %s289 = sphi 0, %s288
      %s303 = sphi 0, %s289
      %s307 = sphi 0, %s307
      %s309 = sphi 0, %s307
      %s310 = sphi 0, %s309
      %s324 = sphi 0, %s310
      %s328 = sphi 0, %s328
      %s330 = sphi 0, %s328
      %s331 = sphi 0, %s330
      %s345 = sphi 0, %s331
      %s349 = sphi 0, %s349
      %s351 = sphi 0, %s349
      %s352 = sphi 0, %s351
      %s366 = sphi 0, %s352
      %s370 = sphi 0, %s370
      %s372 = sphi 0, %s370
      %s373 = sphi 0, %s372
      %s387 = sphi 0, %s373
      %s391 = sphi 0, %s391
      %s393 = sphi 0, %s391
      %s394 = sphi 0, %s393
      %s408 = sphi 0, %s394
      %s412 = sphi 0, %s412
      %s414 = sphi 0, %s412
      %s415 = sphi 0, %s414
      %s429 = sphi 0, %s415
      %s433 = sphi 0, %s433
      %s435 = sphi 0, %s433
      %s436 = sphi 0, %s435
      %s450 = sphi 0, %s436
      %s454 = sphi 0, %s454
      %s456 = sphi 0, %s454
      %s457 = sphi 0, %s456
      %s471 = sphi 0, %s457
      %s475 = sphi 0, %s475
      %s477 = sphi 0, %s475
      %s478 = sphi 0, %s477
      %s492 = sphi 0, %s478
      %s496 = sphi 0, %s496
      %s498 = sphi 0, %s496
      %s499 = sphi 0, %s498
      %s513 = sphi 0, %s499
      %s519 = sphi 0, %s521
      %s522 = sphi 0, %s519
      %s523 = sphi 0, %s522
      %s539 = sphi 0, %s523
      %s545 = sphi 0, %s547
      %s548 = sphi 0, %s545
      %s549 = sphi 0, %s548
      %s565 = sphi 0, %s549
      %s571 = sphi 0, %s573
      %s574 = sphi 0, %s571
      %s575 = sphi 0, %s574
      %s591 = sphi 0, %s575
    $region4: #{forward.1} parent=1 // loop_header_branch
      %40 = sbr.rel (%p38) target = $region8
    $region5: #{forward.1} parent=1 // loop_body
      %s42 = ssub.s32 %s37, 1
      %s43 = ssub.s32 %s37, 2
      %s44 = sadd.s32 %s37, 1
      %s45 = ssub.s32 %s37, %s44
      %p46 = scmp.eq.s32.totalorder %s45, 0
      %s48 = sadd.s32 %s47, 1
      %s49 = scalar_select %p46, %s47, %s48
      %p52 = pneg %p46
      %p53 = scmp.eq.s32.totalorder %s37, 1
      %p54 = por %p52, %p53
      %p55 = scmp.ne.s32.totalorder %s47, %s50
      %p56 = scmp.eq.s32.totalorder %s37, 0
      %p57 = por %p55, %p56
      %p58 = scmp.ne.s32.totalorder %s47, %s50
      %p59 = scmp.eq.s32.totalorder %s42, 1
      %p60 = por %p58, %p59
      %p61 = scmp.ne.s32.totalorder %s50, %s51
      %p62 = scmp.eq.s32.totalorder %s42, 0
      %p63 = por %p61, %p62
      %p64 = scmp.ne.s32.totalorder %s50, %s51
      %p65 = scmp.eq.s32.totalorder %s43, 1
      %p66 = por %p64, %p65
      %p68 = scmp.ne.s32.totalorder %s51, %s67
      %p69 = scmp.eq.s32.totalorder %s43, 0
      %p70 = por %p68, %p69
      %s71 = ssub.s32 %s37, %s44
      %p72 = scmp.eq.s32.totalorder %s71, 0
      %s74 = sadd.s32 %s73, 1
      %s75 = scalar_select %p72, %s73, %s74
      %p78 = pneg %p72
      %p79 = scmp.eq.s32.totalorder %s37, 1
      %p80 = por %p78, %p79
      %p81 = scmp.ne.s32.totalorder %s73, %s76
      %p82 = scmp.eq.s32.totalorder %s37, 0
      %p83 = por %p81, %p82
      %p84 = scmp.ne.s32.totalorder %s73, %s76
      %p85 = scmp.eq.s32.totalorder %s42, 1
      %p86 = por %p84, %p85
      %p87 = scmp.ne.s32.totalorder %s76, %s77
      %p88 = scmp.eq.s32.totalorder %s42, 0
      %p89 = por %p87, %p88
      %p90 = scmp.ne.s32.totalorder %s76, %s77
      %p91 = scmp.eq.s32.totalorder %s43, 1
      %p92 = por %p90, %p91
      %p94 = scmp.ne.s32.totalorder %s77, %s93
      %p95 = scmp.eq.s32.totalorder %s43, 0
      %p96 = por %p94, %p95
      %s98 = sadd.s32 %s97, 1
      %p101 = scmp.eq.s32.totalorder %s37, 1
      %p102 = scmp.ne.s32.totalorder %s97, %s99
      %p103 = scmp.eq.s32.totalorder %s37, 0
      %p104 = por %p102, %p103
      %p105 = scmp.ne.s32.totalorder %s97, %s99
      %p106 = scmp.eq.s32.totalorder %s42, 1
      %p107 = por %p105, %p106
      %p108 = scmp.ne.s32.totalorder %s99, %s100
      %p109 = scmp.eq.s32.totalorder %s42, 0
      %p110 = por %p108, %p109
      %p111 = scmp.ne.s32.totalorder %s99, %s100
      %p112 = scmp.eq.s32.totalorder %s43, 1
      %p113 = por %p111, %p112
      %p115 = scmp.ne.s32.totalorder %s100, %s114
      %p116 = scmp.eq.s32.totalorder %s43, 0
      %p117 = por %p115, %p116
      %s119 = sadd.s32 %s118, 1
      %p122 = scmp.eq.s32.totalorder %s37, 1
      %p123 = scmp.ne.s32.totalorder %s118, %s120
      %p124 = scmp.eq.s32.totalorder %s37, 0
      %p125 = por %p123, %p124
      %p126 = scmp.ne.s32.totalorder %s118, %s120
      %p127 = scmp.eq.s32.totalorder %s42, 1
      %p128 = por %p126, %p127
      %p129 = scmp.ne.s32.totalorder %s120, %s121
      %p130 = scmp.eq.s32.totalorder %s42, 0
      %p131 = por %p129, %p130
      %p132 = scmp.ne.s32.totalorder %s120, %s121
      %p133 = scmp.eq.s32.totalorder %s43, 1
      %p134 = por %p132, %p133
      %p136 = scmp.ne.s32.totalorder %s121, %s135
      %p137 = scmp.eq.s32.totalorder %s43, 0
      %p138 = por %p136, %p137
      %s140 = sadd.s32 %s139, 1
      %p143 = scmp.eq.s32.totalorder %s37, 1
      %p144 = scmp.ne.s32.totalorder %s139, %s141
      %p145 = scmp.eq.s32.totalorder %s37, 0
      %p146 = por %p144, %p145
      %p147 = scmp.ne.s32.totalorder %s139, %s141
      %p148 = scmp.eq.s32.totalorder %s42, 1
      %p149 = por %p147, %p148
      %p150 = scmp.ne.s32.totalorder %s141, %s142
      %p151 = scmp.eq.s32.totalorder %s42, 0
      %p152 = por %p150, %p151
      %p153 = scmp.ne.s32.totalorder %s141, %s142
      %p154 = scmp.eq.s32.totalorder %s43, 1
      %p155 = por %p153, %p154
      %p157 = scmp.ne.s32.totalorder %s142, %s156
      %p158 = scmp.eq.s32.totalorder %s43, 0
      %p159 = por %p157, %p158
      %s161 = sadd.s32 %s160, 1
      %p164 = scmp.eq.s32.totalorder %s37, 1
      %p165 = scmp.ne.s32.totalorder %s160, %s162
      %p166 = scmp.eq.s32.totalorder %s37, 0
      %p167 = por %p165, %p166
      %p168 = scmp.ne.s32.totalorder %s160, %s162
      %p169 = scmp.eq.s32.totalorder %s42, 1
      %p170 = por %p168, %p169
      %p171 = scmp.ne.s32.totalorder %s162, %s163
      %p172 = scmp.eq.s32.totalorder %s42, 0
      %p173 = por %p171, %p172
      %p174 = scmp.ne.s32.totalorder %s162, %s163
      %p175 = scmp.eq.s32.totalorder %s43, 1
      %p176 = por %p174, %p175
      %p178 = scmp.ne.s32.totalorder %s163, %s177
      %p179 = scmp.eq.s32.totalorder %s43, 0
      %p180 = por %p178, %p179
      %s182 = sadd.s32 %s181, 1
      %p185 = scmp.eq.s32.totalorder %s37, 1
      %p186 = scmp.ne.s32.totalorder %s181, %s183
      %p187 = scmp.eq.s32.totalorder %s37, 0
      %p188 = por %p186, %p187
      %p189 = scmp.ne.s32.totalorder %s181, %s183
      %p190 = scmp.eq.s32.totalorder %s42, 1
      %p191 = por %p189, %p190
      %p192 = scmp.ne.s32.totalorder %s183, %s184
      %p193 = scmp.eq.s32.totalorder %s42, 0
      %p194 = por %p192, %p193
      %p195 = scmp.ne.s32.totalorder %s183, %s184
      %p196 = scmp.eq.s32.totalorder %s43, 1
      %p197 = por %p195, %p196
      %p199 = scmp.ne.s32.totalorder %s184, %s198
      %p200 = scmp.eq.s32.totalorder %s43, 0
      %p201 = por %p199, %p200
      %s203 = sadd.s32 %s202, 1
      %p206 = scmp.eq.s32.totalorder %s37, 1
      %p207 = scmp.ne.s32.totalorder %s202, %s204
      %p208 = scmp.eq.s32.totalorder %s37, 0
      %p209 = por %p207, %p208
      %p210 = scmp.ne.s32.totalorder %s202, %s204
      %p211 = scmp.eq.s32.totalorder %s42, 1
      %p212 = por %p210, %p211
      %p213 = scmp.ne.s32.totalorder %s204, %s205
      %p214 = scmp.eq.s32.totalorder %s42, 0
      %p215 = por %p213, %p214
      %p216 = scmp.ne.s32.totalorder %s204, %s205
      %p217 = scmp.eq.s32.totalorder %s43, 1
      %p218 = por %p216, %p217
      %p220 = scmp.ne.s32.totalorder %s205, %s219
      %p221 = scmp.eq.s32.totalorder %s43, 0
      %p222 = por %p220, %p221
      %s224 = sadd.s32 %s223, 1
      %p227 = scmp.eq.s32.totalorder %s37, 1
      %p228 = scmp.ne.s32.totalorder %s223, %s225
      %p229 = scmp.eq.s32.totalorder %s37, 0
      %p230 = por %p228, %p229
      %p231 = scmp.ne.s32.totalorder %s223, %s225
      %p232 = scmp.eq.s32.totalorder %s42, 1
      %p233 = por %p231, %p232
      %p234 = scmp.ne.s32.totalorder %s225, %s226
      %p235 = scmp.eq.s32.totalorder %s42, 0
      %p236 = por %p234, %p235
      %p237 = scmp.ne.s32.totalorder %s225, %s226
      %p238 = scmp.eq.s32.totalorder %s43, 1
      %p239 = por %p237, %p238
      %p241 = scmp.ne.s32.totalorder %s226, %s240
      %p242 = scmp.eq.s32.totalorder %s43, 0
      %p243 = por %p241, %p242
      %s245 = sadd.s32 %s244, 1
      %p248 = scmp.eq.s32.totalorder %s37, 1
      %p249 = scmp.ne.s32.totalorder %s244, %s246
      %p250 = scmp.eq.s32.totalorder %s37, 0
      %p251 = por %p249, %p250
      %p252 = scmp.ne.s32.totalorder %s244, %s246
      %p253 = scmp.eq.s32.totalorder %s42, 1
      %p254 = por %p252, %p253
      %p255 = scmp.ne.s32.totalorder %s246, %s247
      %p256 = scmp.eq.s32.totalorder %s42, 0
      %p257 = por %p255, %p256
      %p258 = scmp.ne.s32.totalorder %s246, %s247
      %p259 = scmp.eq.s32.totalorder %s43, 1
      %p260 = por %p258, %p259
      %p262 = scmp.ne.s32.totalorder %s247, %s261
      %p263 = scmp.eq.s32.totalorder %s43, 0
      %p264 = por %p262, %p263
      %s266 = sadd.s32 %s265, 1
      %p269 = scmp.eq.s32.totalorder %s37, 1
      %p270 = scmp.ne.s32.totalorder %s265, %s267
      %p271 = scmp.eq.s32.totalorder %s37, 0
      %p272 = por %p270, %p271
      %p273 = scmp.ne.s32.totalorder %s265, %s267
      %p274 = scmp.eq.s32.totalorder %s42, 1
      %p275 = por %p273, %p274
      %p276 = scmp.ne.s32.totalorder %s267, %s268
      %p277 = scmp.eq.s32.totalorder %s42, 0
      %p278 = por %p276, %p277
      %p279 = scmp.ne.s32.totalorder %s267, %s268
      %p280 = scmp.eq.s32.totalorder %s43, 1
      %p281 = por %p279, %p280
      %p283 = scmp.ne.s32.totalorder %s268, %s282
      %p284 = scmp.eq.s32.totalorder %s43, 0
      %p285 = por %p283, %p284
      %s287 = sadd.s32 %s286, 1
      %p290 = scmp.eq.s32.totalorder %s37, 1
      %p291 = scmp.ne.s32.totalorder %s286, %s288
      %p292 = scmp.eq.s32.totalorder %s37, 0
      %p293 = por %p291, %p292
      %p294 = scmp.ne.s32.totalorder %s286, %s288
      %p295 = scmp.eq.s32.totalorder %s42, 1
      %p296 = por %p294, %p295
      %p297 = scmp.ne.s32.totalorder %s288, %s289
      %p298 = scmp.eq.s32.totalorder %s42, 0
      %p299 = por %p297, %p298
      %p300 = scmp.ne.s32.totalorder %s288, %s289
      %p301 = scmp.eq.s32.totalorder %s43, 1
      %p302 = por %p300, %p301
      %p304 = scmp.ne.s32.totalorder %s289, %s303
      %p305 = scmp.eq.s32.totalorder %s43, 0
      %p306 = por %p304, %p305
      %s308 = sadd.s32 %s307, 1
      %p311 = scmp.eq.s32.totalorder %s37, 1
      %p312 = scmp.ne.s32.totalorder %s307, %s309
      %p313 = scmp.eq.s32.totalorder %s37, 0
      %p314 = por %p312, %p313
      %p315 = scmp.ne.s32.totalorder %s307, %s309
      %p316 = scmp.eq.s32.totalorder %s42, 1
      %p317 = por %p315, %p316
      %p318 = scmp.ne.s32.totalorder %s309, %s310
      %p319 = scmp.eq.s32.totalorder %s42, 0
      %p320 = por %p318, %p319
      %p321 = scmp.ne.s32.totalorder %s309, %s310
      %p322 = scmp.eq.s32.totalorder %s43, 1
      %p323 = por %p321, %p322
      %p325 = scmp.ne.s32.totalorder %s310, %s324
      %p326 = scmp.eq.s32.totalorder %s43, 0
      %p327 = por %p325, %p326
      %s329 = sadd.s32 %s328, 1
      %p332 = scmp.eq.s32.totalorder %s37, 1
      %p333 = scmp.ne.s32.totalorder %s328, %s330
      %p334 = scmp.eq.s32.totalorder %s37, 0
      %p335 = por %p333, %p334
      %p336 = scmp.ne.s32.totalorder %s328, %s330
      %p337 = scmp.eq.s32.totalorder %s42, 1
      %p338 = por %p336, %p337
      %p339 = scmp.ne.s32.totalorder %s330, %s331
      %p340 = scmp.eq.s32.totalorder %s42, 0
      %p341 = por %p339, %p340
      %p342 = scmp.ne.s32.totalorder %s330, %s331
      %p343 = scmp.eq.s32.totalorder %s43, 1
      %p344 = por %p342, %p343
      %p346 = scmp.ne.s32.totalorder %s331, %s345
      %p347 = scmp.eq.s32.totalorder %s43, 0
      %p348 = por %p346, %p347
      %s350 = sadd.s32 %s349, 1
      %p353 = scmp.eq.s32.totalorder %s37, 1
      %p354 = scmp.ne.s32.totalorder %s349, %s351
      %p355 = scmp.eq.s32.totalorder %s37, 0
      %p356 = por %p354, %p355
      %p357 = scmp.ne.s32.totalorder %s349, %s351
      %p358 = scmp.eq.s32.totalorder %s42, 1
      %p359 = por %p357, %p358
      %p360 = scmp.ne.s32.totalorder %s351, %s352
      %p361 = scmp.eq.s32.totalorder %s42, 0
      %p362 = por %p360, %p361
      %p363 = scmp.ne.s32.totalorder %s351, %s352
      %p364 = scmp.eq.s32.totalorder %s43, 1
      %p365 = por %p363, %p364
      %p367 = scmp.ne.s32.totalorder %s352, %s366
      %p368 = scmp.eq.s32.totalorder %s43, 0
      %p369 = por %p367, %p368
      %s371 = sadd.s32 %s370, 1
      %p374 = scmp.eq.s32.totalorder %s37, 1
      %p375 = scmp.ne.s32.totalorder %s370, %s372
      %p376 = scmp.eq.s32.totalorder %s37, 0
      %p377 = por %p375, %p376
      %p378 = scmp.ne.s32.totalorder %s370, %s372
      %p379 = scmp.eq.s32.totalorder %s42, 1
      %p380 = por %p378, %p379
      %p381 = scmp.ne.s32.totalorder %s372, %s373
      %p382 = scmp.eq.s32.totalorder %s42, 0
      %p383 = por %p381, %p382
      %p384 = scmp.ne.s32.totalorder %s372, %s373
      %p385 = scmp.eq.s32.totalorder %s43, 1
      %p386 = por %p384, %p385
      %p388 = scmp.ne.s32.totalorder %s373, %s387
      %p389 = scmp.eq.s32.totalorder %s43, 0
      %p390 = por %p388, %p389
      %s392 = sadd.s32 %s391, 1
      %p395 = scmp.eq.s32.totalorder %s37, 1
      %p396 = scmp.ne.s32.totalorder %s391, %s393
      %p397 = scmp.eq.s32.totalorder %s37, 0
      %p398 = por %p396, %p397
      %p399 = scmp.ne.s32.totalorder %s391, %s393
      %p400 = scmp.eq.s32.totalorder %s42, 1
      %p401 = por %p399, %p400
      %p402 = scmp.ne.s32.totalorder %s393, %s394
      %p403 = scmp.eq.s32.totalorder %s42, 0
      %p404 = por %p402, %p403
      %p405 = scmp.ne.s32.totalorder %s393, %s394
      %p406 = scmp.eq.s32.totalorder %s43, 1
      %p407 = por %p405, %p406
      %p409 = scmp.ne.s32.totalorder %s394, %s408
      %p410 = scmp.eq.s32.totalorder %s43, 0
      %p411 = por %p409, %p410
      %s413 = sadd.s32 %s412, 1
      %p416 = scmp.eq.s32.totalorder %s37, 1
      %p417 = scmp.ne.s32.totalorder %s412, %s414
      %p418 = scmp.eq.s32.totalorder %s37, 0
      %p419 = por %p417, %p418
      %p420 = scmp.ne.s32.totalorder %s412, %s414
      %p421 = scmp.eq.s32.totalorder %s42, 1
      %p422 = por %p420, %p421
      %p423 = scmp.ne.s32.totalorder %s414, %s415
      %p424 = scmp.eq.s32.totalorder %s42, 0
      %p425 = por %p423, %p424
      %p426 = scmp.ne.s32.totalorder %s414, %s415
      %p427 = scmp.eq.s32.totalorder %s43, 1
      %p428 = por %p426, %p427
      %p430 = scmp.ne.s32.totalorder %s415, %s429
      %p431 = scmp.eq.s32.totalorder %s43, 0
      %p432 = por %p430, %p431
      %s434 = sadd.s32 %s433, 1
      %p437 = scmp.eq.s32.totalorder %s37, 1
      %p438 = scmp.ne.s32.totalorder %s433, %s435
      %p439 = scmp.eq.s32.totalorder %s37, 0
      %p440 = por %p438, %p439
      %p441 = scmp.ne.s32.totalorder %s433, %s435
      %p442 = scmp.eq.s32.totalorder %s42, 1
      %p443 = por %p441, %p442
      %p444 = scmp.ne.s32.totalorder %s435, %s436
      %p445 = scmp.eq.s32.totalorder %s42, 0
      %p446 = por %p444, %p445
      %p447 = scmp.ne.s32.totalorder %s435, %s436
      %p448 = scmp.eq.s32.totalorder %s43, 1
      %p449 = por %p447, %p448
      %p451 = scmp.ne.s32.totalorder %s436, %s450
      %p452 = scmp.eq.s32.totalorder %s43, 0
      %p453 = por %p451, %p452
      %s455 = sadd.s32 %s454, 1
      %p458 = scmp.eq.s32.totalorder %s37, 1
      %p459 = scmp.ne.s32.totalorder %s454, %s456
      %p460 = scmp.eq.s32.totalorder %s37, 0
      %p461 = por %p459, %p460
      %p462 = scmp.ne.s32.totalorder %s454, %s456
      %p463 = scmp.eq.s32.totalorder %s42, 1
      %p464 = por %p462, %p463
      %p465 = scmp.ne.s32.totalorder %s456, %s457
      %p466 = scmp.eq.s32.totalorder %s42, 0
      %p467 = por %p465, %p466
      %p468 = scmp.ne.s32.totalorder %s456, %s457
      %p469 = scmp.eq.s32.totalorder %s43, 1
      %p470 = por %p468, %p469
      %p472 = scmp.ne.s32.totalorder %s457, %s471
      %p473 = scmp.eq.s32.totalorder %s43, 0
      %p474 = por %p472, %p473
      %s476 = sadd.s32 %s475, 1
      %p479 = scmp.eq.s32.totalorder %s37, 1
      %p480 = scmp.ne.s32.totalorder %s475, %s477
      %p481 = scmp.eq.s32.totalorder %s37, 0
      %p482 = por %p480, %p481
      %p483 = scmp.ne.s32.totalorder %s475, %s477
      %p484 = scmp.eq.s32.totalorder %s42, 1
      %p485 = por %p483, %p484
      %p486 = scmp.ne.s32.totalorder %s477, %s478
      %p487 = scmp.eq.s32.totalorder %s42, 0
      %p488 = por %p486, %p487
      %p489 = scmp.ne.s32.totalorder %s477, %s478
      %p490 = scmp.eq.s32.totalorder %s43, 1
      %p491 = por %p489, %p490
      %p493 = scmp.ne.s32.totalorder %s478, %s492
      %p494 = scmp.eq.s32.totalorder %s43, 0
      %p495 = por %p493, %p494
      %s497 = sadd.s32 %s496, 1
      %p500 = scmp.eq.s32.totalorder %s37, 1
      %p501 = scmp.ne.s32.totalorder %s496, %s498
      %p502 = scmp.eq.s32.totalorder %s37, 0
      %p503 = por %p501, %p502
      %p504 = scmp.ne.s32.totalorder %s496, %s498
      %p505 = scmp.eq.s32.totalorder %s42, 1
      %p506 = por %p504, %p505
      %p507 = scmp.ne.s32.totalorder %s498, %s499
      %p508 = scmp.eq.s32.totalorder %s42, 0
      %p509 = por %p507, %p508
      %p510 = scmp.ne.s32.totalorder %s498, %s499
      %p511 = scmp.eq.s32.totalorder %s43, 1
      %p512 = por %p510, %p511
      %p514 = scmp.ne.s32.totalorder %s499, %s513
      %p515 = scmp.eq.s32.totalorder %s43, 0
      %p516 = por %p514, %p515
      %s517 = ssub.s32 %s37, %s44
      %p518 = scmp.eq.s32.totalorder %s517, 0
      %s520 = sadd.s32 %s519, 1
      %s521 = scalar_select %p518, %s519, %s520
      %p524 = pneg %p518
      %p525 = scmp.eq.s32.totalorder %s37, 1
      %p526 = por %p524, %p525
      %p527 = scmp.ne.s32.totalorder %s519, %s522
      %p528 = scmp.eq.s32.totalorder %s37, 0
      %p529 = por %p527, %p528
      %p530 = scmp.ne.s32.totalorder %s519, %s522
      %p531 = scmp.eq.s32.totalorder %s42, 1
      %p532 = por %p530, %p531
      %p533 = scmp.ne.s32.totalorder %s522, %s523
      %p534 = scmp.eq.s32.totalorder %s42, 0
      %p535 = por %p533, %p534
      %p536 = scmp.ne.s32.totalorder %s522, %s523
      %p537 = scmp.eq.s32.totalorder %s43, 1
      %p538 = por %p536, %p537
      %p540 = scmp.ne.s32.totalorder %s523, %s539
      %p541 = scmp.eq.s32.totalorder %s43, 0
      %p542 = por %p540, %p541
      %s543 = ssub.s32 %s37, %s44
      %p544 = scmp.eq.s32.totalorder %s543, 0
      %s546 = sadd.s32 %s545, 1
      %s547 = scalar_select %p544, %s545, %s546
      %p550 = pneg %p544
      %p551 = scmp.eq.s32.totalorder %s37, 1
      %p552 = por %p550, %p551
      %p553 = scmp.ne.s32.totalorder %s545, %s548
      %p554 = scmp.eq.s32.totalorder %s37, 0
      %p555 = por %p553, %p554
      %p556 = scmp.ne.s32.totalorder %s545, %s548
      %p557 = scmp.eq.s32.totalorder %s42, 1
      %p558 = por %p556, %p557
      %p559 = scmp.ne.s32.totalorder %s548, %s549
      %p560 = scmp.eq.s32.totalorder %s42, 0
      %p561 = por %p559, %p560
      %p562 = scmp.ne.s32.totalorder %s548, %s549
      %p563 = scmp.eq.s32.totalorder %s43, 1
      %p564 = por %p562, %p563
      %p566 = scmp.ne.s32.totalorder %s549, %s565
      %p567 = scmp.eq.s32.totalorder %s43, 0
      %p568 = por %p566, %p567
      %s569 = ssub.s32 %s37, %s44
      %p570 = scmp.eq.s32.totalorder %s569, 0
      %s572 = sadd.s32 %s571, 1
      %s573 = scalar_select %p570, %s571, %s572
      %p576 = pneg %p570
      %p577 = scmp.eq.s32.totalorder %s37, 1
      %p578 = por %p576, %p577
      %p579 = scmp.ne.s32.totalorder %s571, %s574
      %p580 = scmp.eq.s32.totalorder %s37, 0
      %p581 = por %p579, %p580
      %p582 = scmp.ne.s32.totalorder %s571, %s574
      %p583 = scmp.eq.s32.totalorder %s42, 1
      %p584 = por %p582, %p583
      %p585 = scmp.ne.s32.totalorder %s574, %s575
      %p586 = scmp.eq.s32.totalorder %s42, 0
      %p587 = por %p585, %p586
      %p588 = scmp.ne.s32.totalorder %s574, %s575
      %p589 = scmp.eq.s32.totalorder %s43, 1
      %p590 = por %p588, %p589
      %p592 = scmp.ne.s32.totalorder %s575, %s591
      %p593 = scmp.eq.s32.totalorder %s43, 0
      %p594 = por %p592, %p593
      %p595 = scmp.le.s32.totalorder 1, %s37
      %p596 = scmp.lt.s32.totalorder %s37, 3
      %p597 = pnand %p595, %p596
      %p598 = pneg %p597
      // Predicated region
      $region9: #{forward.1} parent=5 // pred_check
        _
      $region10: #{forward.1} parent=5 // pred_check_branch
        %600 = sbr.rel (%p597) target = $region12
      $region11: #{forward.1} parent=5 // pred_region
        %s601 = ssub.s32 %s37, 1
        // Predicated region
        $region13: #{forward.1} parent=11 // pred_check
          %p602 = pneg %p110
        $region14: #{forward.1} parent=11 // pred_check_branch
          %604 = sbr.rel (%p602) target = $region16
        $region15: #{forward.1} parent=11 // pred_region
          _
        $region16: #{forward.1} parent=11 // pred_fallthru
          _
        // Predicated region
        $region17: #{forward.1} parent=11 // pred_check
          %p605 = pneg %p131
        $region18: #{forward.1} parent=11 // pred_check_branch
          %607 = sbr.rel (%p605) target = $region20
        $region19: #{forward.1} parent=11 // pred_region
          _
        $region20: #{forward.1} parent=11 // pred_fallthru
          _
        // Predicated region
        $region21: #{forward.1} parent=11 // pred_check
          %p608 = pneg %p152
        $region22: #{forward.1} parent=11 // pred_check_branch
          %610 = sbr.rel (%p608) target = $region24
        $region23: #{forward.1} parent=11 // pred_region
          _
        $region24: #{forward.1} parent=11 // pred_fallthru
          _
        // Predicated region
        $region25: #{forward.1} parent=11 // pred_check
          %p611 = pneg %p173
        $region26: #{forward.1} parent=11 // pred_check_branch
          %613 = sbr.rel (%p611) target = $region28
        $region27: #{forward.1} parent=11 // pred_region
          _
        $region28: #{forward.1} parent=11 // pred_fallthru
          _
        // Predicated region
        $region29: #{forward.1} parent=11 // pred_check
          %p614 = pneg %p194
        $region30: #{forward.1} parent=11 // pred_check_branch
          %616 = sbr.rel (%p614) target = $region32
        $region31: #{forward.1} parent=11 // pred_region
          _
        $region32: #{forward.1} parent=11 // pred_fallthru
          _
        // Predicated region
        $region33: #{forward.1} parent=11 // pred_check
          %p617 = pneg %p215
        $region34: #{forward.1} parent=11 // pred_check_branch
          %619 = sbr.rel (%p617) target = $region36
        $region35: #{forward.1} parent=11 // pred_region
          _
        $region36: #{forward.1} parent=11 // pred_fallthru
          _
        // Predicated region
        $region37: #{forward.1} parent=11 // pred_check
          %p620 = pneg %p236
        $region38: #{forward.1} parent=11 // pred_check_branch
          %622 = sbr.rel (%p620) target = $region40
        $region39: #{forward.1} parent=11 // pred_region
          _
        $region40: #{forward.1} parent=11 // pred_fallthru
          _
        // Predicated region
        $region41: #{forward.1} parent=11 // pred_check
          %p623 = pneg %p257
        $region42: #{forward.1} parent=11 // pred_check_branch
          %625 = sbr.rel (%p623) target = $region44
        $region43: #{forward.1} parent=11 // pred_region
          _
        $region44: #{forward.1} parent=11 // pred_fallthru
          _
        // Predicated region
        $region45: #{forward.1} parent=11 // pred_check
          %p626 = pneg %p278
        $region46: #{forward.1} parent=11 // pred_check_branch
          %628 = sbr.rel (%p626) target = $region48
        $region47: #{forward.1} parent=11 // pred_region
          _
        $region48: #{forward.1} parent=11 // pred_fallthru
          _
        // Predicated region
        $region49: #{forward.1} parent=11 // pred_check
          %p629 = pneg %p299
        $region50: #{forward.1} parent=11 // pred_check_branch
          %631 = sbr.rel (%p629) target = $region52
        $region51: #{forward.1} parent=11 // pred_region
          _
        $region52: #{forward.1} parent=11 // pred_fallthru
          _
        // Predicated region
        $region53: #{forward.1} parent=11 // pred_check
          %p632 = pneg %p320
        $region54: #{forward.1} parent=11 // pred_check_branch
          %634 = sbr.rel (%p632) target = $region56
        $region55: #{forward.1} parent=11 // pred_region
          _
        $region56: #{forward.1} parent=11 // pred_fallthru
          _
        // Predicated region
        $region57: #{forward.1} parent=11 // pred_check
          %p635 = pneg %p341
        $region58: #{forward.1} parent=11 // pred_check_branch
          %637 = sbr.rel (%p635) target = $region60
        $region59: #{forward.1} parent=11 // pred_region
          _
        $region60: #{forward.1} parent=11 // pred_fallthru
          _
        // Predicated region
        $region61: #{forward.1} parent=11 // pred_check
          %p638 = pneg %p362
        $region62: #{forward.1} parent=11 // pred_check_branch
          %640 = sbr.rel (%p638) target = $region64
        $region63: #{forward.1} parent=11 // pred_region
          _
        $region64: #{forward.1} parent=11 // pred_fallthru
          _
        // Predicated region
        $region65: #{forward.1} parent=11 // pred_check
          %p641 = pneg %p383
        $region66: #{forward.1} parent=11 // pred_check_branch
          %643 = sbr.rel (%p641) target = $region68
        $region67: #{forward.1} parent=11 // pred_region
          _
        $region68: #{forward.1} parent=11 // pred_fallthru
          _
        // Predicated region
        $region69: #{forward.1} parent=11 // pred_check
          %p644 = pneg %p404
        $region70: #{forward.1} parent=11 // pred_check_branch
          %646 = sbr.rel (%p644) target = $region72
        $region71: #{forward.1} parent=11 // pred_region
          _
        $region72: #{forward.1} parent=11 // pred_fallthru
          _
        // Predicated region
        $region73: #{forward.1} parent=11 // pred_check
          %p647 = pneg %p425
        $region74: #{forward.1} parent=11 // pred_check_branch
          %649 = sbr.rel (%p647) target = $region76
        $region75: #{forward.1} parent=11 // pred_region
          _
        $region76: #{forward.1} parent=11 // pred_fallthru
          _
        // Predicated region
        $region77: #{forward.1} parent=11 // pred_check
          %p650 = pneg %p446
        $region78: #{forward.1} parent=11 // pred_check_branch
          %652 = sbr.rel (%p650) target = $region80
        $region79: #{forward.1} parent=11 // pred_region
          _
        $region80: #{forward.1} parent=11 // pred_fallthru
          _
        // Predicated region
        $region81: #{forward.1} parent=11 // pred_check
          %p653 = pneg %p467
        $region82: #{forward.1} parent=11 // pred_check_branch
          %655 = sbr.rel (%p653) target = $region84
        $region83: #{forward.1} parent=11 // pred_region
          _
        $region84: #{forward.1} parent=11 // pred_fallthru
          _
        // Predicated region
        $region85: #{forward.1} parent=11 // pred_check
          %p656 = pneg %p488
        $region86: #{forward.1} parent=11 // pred_check_branch
          %658 = sbr.rel (%p656) target = $region88
        $region87: #{forward.1} parent=11 // pred_region
          _
        $region88: #{forward.1} parent=11 // pred_fallthru
          _
        // Predicated region
        $region89: #{forward.1} parent=11 // pred_check
          %p659 = pneg %p509
        $region90: #{forward.1} parent=11 // pred_check_branch
          %661 = sbr.rel (%p659) target = $region92
        $region91: #{forward.1} parent=11 // pred_region
          _
        $region92: #{forward.1} parent=11 // pred_fallthru
          _
      $region12: #{forward.1} parent=5 // pred_fallthru
        _
      %p662 = scmp.lt.s32.totalorder %s37, 2
      // Predicated region
      $region93: #{forward.1} parent=5 // pred_check
        %p663 = pneg %p662
      $region94: #{forward.1} parent=5 // pred_check_branch
        %665 = sbr.rel (%p663) target = $region96
      $region95: #{forward.1} parent=5 // pred_region
        // Predicated region
        $region97: #{forward.1} parent=95 // pred_check
          %p666 = pneg %p57
        $region98: #{forward.1} parent=95 // pred_check_branch
          %668 = sbr.rel (%p666) target = $region100
        $region99: #{forward.1} parent=95 // pred_region
          %p669 = scmp.lt.s32.totalorder %s37, 1
          %s670 = scalar_select %p669, %s37, 1
          %s671 = smul.addr %s670, 14
          %s672 = smul.addr %s671, 4
          %s673 = scalar_lea.vmem %s0, %s672
        $region100: #{forward.1} parent=95 // pred_fallthru
          _
        // Predicated region
        $region101: #{forward.1} parent=95 // pred_check
          %p674 = pneg %p83
        $region102: #{forward.1} parent=95 // pred_check_branch
          %676 = sbr.rel (%p674) target = $region104
        $region103: #{forward.1} parent=95 // pred_region
          %p677 = scmp.lt.s32.totalorder %s37, 1
          %s678 = scalar_select %p677, %s37, 1
          %s679 = scalar_lea.vmem %s1, %s678
        $region104: #{forward.1} parent=95 // pred_fallthru
          _
      $region96: #{forward.1} parent=5 // pred_fallthru
        _
      %p680 = scmp.le.s32.totalorder 1, %s37
      %p681 = scmp.lt.s32.totalorder %s37, 3
      %p682 = pnand %p680, %p681
      %p683 = pneg %p682
      // Predicated region
      $region105: #{forward.1} parent=5 // pred_check
        _
      $region106: #{forward.1} parent=5 // pred_check_branch
        %685 = sbr.rel (%p682) target = $region108
      $region107: #{forward.1} parent=5 // pred_region
        %s686 = ssub.s32 %s37, 1
        %p687 = scmp.lt.s32.totalorder %s42, 1
        %s688 = scalar_select %p687, %s42, 1
        %s689 = smul.addr %s688, 14
        %s690 = smul.addr %s689, 4
        %s691 = scalar_lea.vmem %s0, %s690
        %p692 = pneg %p63
        %p693 = pneg %p60
        %p694 = scmp.lt.s32.totalorder %s42, 1
        %s695 = scalar_select %p694, %s42, 1
        %s696 = scalar_lea.vmem %s1, %s695
        %p697 = pneg %p89
        %p698 = pneg %p86
        %p699 = pneg %p110
        %p700 = pneg %p107
        %p701 = pneg %p131
        %p702 = pneg %p128
        %p703 = pneg %p152
        %p704 = pneg %p149
        %p705 = pneg %p173
        %p706 = pneg %p170
        %p707 = pneg %p194
        %p708 = pneg %p191
        %p709 = pneg %p215
        %p710 = pneg %p212
        %p711 = pneg %p236
        %p712 = pneg %p233
        %p713 = pneg %p257
        %p714 = pneg %p254
        %p715 = pneg %p278
        %p716 = pneg %p275
        %p717 = pneg %p299
        %p718 = pneg %p296
        %p719 = pneg %p320
        %p720 = pneg %p317
        %p721 = pneg %p341
        %p722 = pneg %p338
        %p723 = pneg %p362
        %p724 = pneg %p359
        %p725 = pneg %p383
        %p726 = pneg %p380
        %p727 = pneg %p404
        %p728 = pneg %p401
        %p729 = pneg %p425
        %p730 = pneg %p422
        %p731 = pneg %p446
        %p732 = pneg %p443
        %p733 = pneg %p467
        %p734 = pneg %p464
        %p735 = pneg %p488
        %p736 = pneg %p485
        %p737 = pneg %p509
        %p738 = pneg %p506
        %p739 = pneg %p535
        %p740 = pneg %p532
        %s741 = sand.u32 %s522, 1
        %s742 = scalar_lea.sflag [#allocation8], %s741
        %s743 = sand.u32 %s522, 1
        %s744 = scalar_lea.vmem [#allocation7], %s743
        %p745 = pneg %p561
        %p746 = pneg %p558
        %s747 = sand.u32 %s548, 1
        %s748 = scalar_lea.sflag [#allocation10], %s747
        %s749 = sand.u32 %s548, 1
        %s750 = scalar_lea.vmem [#allocation9], %s749
        %p751 = pneg %p587
        %p752 = pneg %p584
        %p753 = scmp.lt.s32.totalorder %s42, 1
        %s754 = scalar_select %p753, %s42, 1
        %s755 = smul.addr %s754, 10
        %s756 = smul.addr %s755, 8
        %s757 = scalar_lea.vmem %s24, %s756
        %p758 = scmp.lt.s32.totalorder %s42, 1
        %s759 = scalar_select %p758, %s42, 1
        %s760 = smul.addr %s759, 14
        %s761 = smul.addr %s760, 4
        %s762 = scalar_lea.vmem %s0, %s761
        %p763 = scmp.lt.s32.totalorder %s42, 1
        %s764 = scalar_select %p763, %s42, 1
        %s765 = scalar_lea.vmem %s1, %s764
        %p766 = scmp.lt.s32.totalorder %s42, 1
        %s767 = scalar_select %p766, %s42, 1
        %s768 = smul.addr %s767, 10
        %s769 = smul.addr %s768, 8
        %s770 = scalar_lea.vmem %s24, %s769
        %v772 = vld [vmem:[%s2] sm:$0xff]
        %v773 = vld [vmem:[%s2 + $0x8] sm:$0xff]
        %v774 = vld [vmem:[%s2 + $0x10] sm:$0xff]
        %v775 = vld [vmem:[%s2 + $0x18] sm:$0xff]
        %v776 = vld [vmem:[%s2 + $0x20] sm:$0xf]
        %v777 = vld [vmem:[%s3] sm:$0xff]
        %v778 = vld [vmem:[%s3 + $0x8] sm:$0xff]
        %v779 = vld [vmem:[%s3 + $0x10] sm:$0xff]
        %v780 = vld [vmem:[%s3 + $0x18] sm:$0xff]
        %v781 = vld [vmem:[%s3 + $0x20] sm:$0xff]
        %v782 = vld [vmem:[%s3 + $0x28] sm:$0xff]
        %v783 = vld [vmem:[%s3 + $0x30] sm:$0xff]
        %v784 = vld [vmem:[%s3 + $0x38] sm:$0xff]
        %v785 = vld [vmem:[%s3 + $0x40] sm:$0xff]
        %v786 = vld [vmem:[%s3 + $0x48] sm:$0xff]
        %v787 = vld [vmem:[%s3 + $0x50] sm:$0xff]
        %v788 = vld [vmem:[%s3 + $0x58] sm:$0xff]
        %v789 = vld [vmem:[%s3 + $0x60] sm:$0xff]
        %v790 = vld [vmem:[%s3 + $0x68] sm:$0xff]
        %v791 = vld [vmem:[%s3 + $0x70] sm:$0xff]
        %v792 = vld [vmem:[%s3 + $0x78] sm:$0xff]
        %v793 = vld [vmem:[%s3 + $0x80] sm:$0xf]
        %v794 = vld [vmem:[%s3 + $0x88] sm:$0xf]
        %v795 = vld [vmem:[%s3 + $0x90] sm:$0xf]
        %v796 = vld [vmem:[%s3 + $0x98] sm:$0xf]
        %v797 = vld [vmem:[%s762] sm:$0xff]
        %v798 = vld [vmem:[%s762 + $0x8] sm:$0xff]
        %v799 = vld [vmem:[%s762 + $0x10] sm:$0xff]
        %v800 = vld [vmem:[%s762 + $0x18] sm:$0xff]
        %v801 = vld [vmem:[%s762 + $0x20] sm:$0x33]
        %v802 = vld [vmem:[%s6] sm:$0xf]
        %v803 = vld [vmem:[%s6 + $0x4] sm:$0xf]
        %v804 = vld [vmem:[%s6 + $0x8] sm:$0xf]
        %v805 = vld [vmem:[%s6 + $0xc] sm:$0xf]
        %v806 = vld [vmem:[%s6 + $0x10] sm:$0xf]
        %v807 = vld [vmem:[%s6 + $0x14] sm:$0xf]
        %v808 = vld [vmem:[%s6 + $0x18] sm:$0xf]
        %v809 = vld [vmem:[%s6 + $0x1c] sm:$0xf]
        %v810 = vld [vmem:[%s6 + $0x20] sm:$0xf]
        %v811 = vld [vmem:[%s6 + $0x24] sm:$0xf]
        %v812 = vld [vmem:[%s6 + $0x28] sm:$0xf]
        %v813 = vld [vmem:[%s6 + $0x2c] sm:$0xf]
        %v814 = vld [vmem:[%s6 + $0x30] sm:$0xf]
        %v815 = vld [vmem:[%s6 + $0x34] sm:$0xf]
        %v816 = vld [vmem:[%s6 + $0x38] sm:$0xf]
        %v817 = vld [vmem:[%s6 + $0x3c] sm:$0xf]
        %v818 = vld [vmem:[%s6 + $0x40] sm:$0xf]
        %v819 = vld [vmem:[%s6 + $0x44] sm:$0xf]
        %v820 = vld [vmem:[%s6 + $0x48] sm:$0xf]
        %v821 = vld [vmem:[%s6 + $0x4c] sm:$0xf]
        %v822 = vld [vmem:[%s6 + $0x50] sm:$0xf]
        %v823 = vld [vmem:[%s6 + $0x54] sm:$0xf]
        %v824 = vld [vmem:[%s6 + $0x58] sm:$0xf]
        %v825 = vld [vmem:[%s6 + $0x5c] sm:$0xf]
        %v826 = vld [vmem:[%s762 + $0x20] sm:$0x77]
        %s827 = scalar_lea.vmem %s6, 96
        %v828 = vld [vmem:[%s827] sm:$0xf]
        %v829 = vld [vmem:[%s827 + $0x4] sm:$0xf]
        %v830 = vld [vmem:[%s827 + $0x8] sm:$0xf]
        %v831 = vld [vmem:[%s827 + $0xc] sm:$0xf]
        %v832 = vld [vmem:[%s827 + $0x10] sm:$0xf]
        %v833 = vld [vmem:[%s827 + $0x14] sm:$0xf]
        %v834 = vld [vmem:[%s827 + $0x18] sm:$0xf]
        %v835 = vld [vmem:[%s827 + $0x1c] sm:$0xf]
        %v836 = vld [vmem:[%s827 + $0x20] sm:$0xf]
        %v837 = vld [vmem:[%s827 + $0x24] sm:$0xf]
        %v838 = vld [vmem:[%s827 + $0x28] sm:$0xf]
        %v839 = vld [vmem:[%s827 + $0x2c] sm:$0xf]
        %v840 = vld [vmem:[%s827 + $0x30] sm:$0xf]
        %v841 = vld [vmem:[%s827 + $0x34] sm:$0xf]
        %v842 = vld [vmem:[%s827 + $0x38] sm:$0xf]
        %v843 = vld [vmem:[%s827 + $0x3c] sm:$0xf]
        %v844 = vld [vmem:[%s827 + $0x40] sm:$0xf]
        %v845 = vld [vmem:[%s827 + $0x44] sm:$0xf]
        %v846 = vld [vmem:[%s827 + $0x48] sm:$0xf]
        %v847 = vld [vmem:[%s827 + $0x4c] sm:$0xf]
        %v848 = vld [vmem:[%s827 + $0x50] sm:$0xf]
        %v849 = vld [vmem:[%s827 + $0x54] sm:$0xf]
        %v850 = vld [vmem:[%s827 + $0x58] sm:$0xf]
        %v851 = vld [vmem:[%s827 + $0x5c] sm:$0xf]
        %v857 = vunpack.c.l.b16 %v797
        %v858 = vunpack.c.h.b16 %v797
        %v859 = vunpack.c.l.b16 %v798
        %v860 = vunpack.c.h.b16 %v798
        %v861 = vunpack.c.l.b16 %v799
        %v862 = vunpack.c.h.b16 %v799
        %v863 = vunpack.c.l.b16 %v800
        %v864 = vunpack.c.h.b16 %v800
        %v865 = vunpack.c.l.b16 %v826
        %v866 = vunpack.c.h.b16 %v826
        %v867 = vpack.c.b16 %v859, %v857
        %v868 = vpack.c.b16 %v860, %v858
        %v869 = vpack.c.b16 %v863, %v861
        %v870 = vpack.c.b16 %v864, %v862
        %v871 = vpack.c.b16 %v865, %v865
        %v872 = vpack.c.b16 %v866, %v866
        %vm873 = vsmask.f32 7424
        %v875 = vshrl.u32 %v867, 16
        %v877 = vshll.u32 %v867, 16
        %v879 = vrot.slane %v877, 1
        %v880 = vor.u32 %v875, %v879
        %v882 = vshll.u32 %v869, 16
        %v884 = vrot.slane %v882, 1
        %v885 = vsel %vm873, %v880, %v884
        %v887 = vshrl.u32 %v868, 16
        %v889 = vshll.u32 %v868, 16
        %v891 = vrot.slane %v889, 1
        %v892 = vor.u32 %v887, %v891
        %v894 = vshll.u32 %v870, 16
        %v896 = vrot.slane %v894, 1
        %v897 = vsel %vm873, %v892, %v896
        %v898 = vshrl.u32 %v869, 16
        %v900 = vor.u32 %v898, %v884
        %v902 = vshll.u32 %v871, 16
        %v904 = vrot.slane %v902, 1
        %v905 = vsel %vm873, %v900, %v904
        %v906 = vshrl.u32 %v870, 16
        %v908 = vor.u32 %v906, %v896
        %v910 = vshll.u32 %v872, 16
        %v912 = vrot.slane %v910, 1
        %v913 = vsel %vm873, %v908, %v912
        %v914 = vshrl.u32 %v871, 16
        %v916 = vor.u32 %v914, %v904
        %v917 = vshrl.u32 %v872, 16
        %v919 = vor.u32 %v917, %v912
        %v947 = vunpack.c.l.b16 %v828
        %v948 = vunpack.c.l.b16 %v829
        %v949 = vunpack.c.l.b16 %v830
        %v950 = vunpack.c.l.b16 %v831
        %v951 = vunpack.c.l.b16 %v832
        %v952 = vunpack.c.l.b16 %v833
        %v953 = vunpack.c.l.b16 %v834
        %v954 = vunpack.c.l.b16 %v835
        %v955 = vunpack.c.l.b16 %v836
        %v956 = vunpack.c.l.b16 %v837
        %v957 = vunpack.c.l.b16 %v838
        %v958 = vunpack.c.l.b16 %v839
        %v959 = vunpack.c.l.b16 %v840
        %v960 = vunpack.c.l.b16 %v841
        %v961 = vunpack.c.l.b16 %v842
        %v962 = vunpack.c.l.b16 %v843
        %v963 = vunpack.c.l.b16 %v844
        %v964 = vunpack.c.l.b16 %v845
        %v965 = vunpack.c.l.b16 %v846
        %v966 = vunpack.c.l.b16 %v847
        %v967 = vunpack.c.l.b16 %v848
        %v968 = vunpack.c.l.b16 %v849
        %v969 = vunpack.c.l.b16 %v850
        %v970 = vunpack.c.l.b16 %v851
        %v971 = vpack.c.b16 %v948, %v947
        %v972 = vpack.c.b16 %v950, %v949
        %v973 = vpack.c.b16 %v952, %v951
        %v974 = vpack.c.b16 %v954, %v953
        %v975 = vpack.c.b16 %v956, %v955
        %v976 = vpack.c.b16 %v958, %v957
        %v977 = vpack.c.b16 %v960, %v959
        %v978 = vpack.c.b16 %v962, %v961
        %v979 = vpack.c.b16 %v964, %v963
        %v980 = vpack.c.b16 %v966, %v965
        %v981 = vpack.c.b16 %v968, %v967
        %v982 = vpack.c.b16 %v970, %v969
        %vm995 = vcmask 523264
        %v997 = vsel %vm995, %v897, 0
        %v1000 = vsel %vm995, %v913, 0
        %v1003 = vsel %vm995, %v919, 0
        %1005 = vmatprep.subr.bf16.mxu0 0
        %1006 = vmatpush1.bf16.msra.mxu0 %v978
        %1007 = vmatprep.subr.bf16.mxu0 0
        %1008 = vmatpush1.bf16.msra.mxu0 %v977
        %1009 = vmatprep.subr.bf16.mxu0 0
        %1010 = vmatpush1.bf16.msra.mxu0 %v976
        %1011 = vmatprep.subr.bf16.mxu0 0
        %1012 = vmatpush1.bf16.msra.mxu0 %v975
        %1013 = vmatprep.subr.bf16.mxu0 0
        %1014 = vmatpush1.bf16.msra.mxu0 %v974
        %1015 = vmatprep.subr.bf16.mxu0 0
        %1016 = vmatpush1.bf16.msra.mxu0 %v973
        %1017 = vmatprep.subr.bf16.mxu0 0
        %1018 = vmatpush1.bf16.msra.mxu0 %v972
        %1019 = vmatprep.subr.bf16.mxu0 0
        %1020 = vmatpush1.bf16.msra.mxu0 %v971
        %1021 = vmatprep.subr.bf16.mxu0 0
        %1022 = vmatpush2.bf16.msra.mxu0 0
        %1023 = vmatprep.subr.bf16.mxu0 0
        %1024 = vmatpush2.bf16.msra.mxu0 0
        %1025 = vmatprep.subr.bf16.mxu0 0
        %1026 = vmatpush2.bf16.msra.mxu0 0
        %1027 = vmatprep.subr.bf16.mxu0 0
        %1028 = vmatpush2.bf16.msra.mxu0 0
        %1029 = vmatprep.subr.bf16.mxu0 0
        %1030 = vmatpush2.bf16.msra.mxu0 %v982
        %1031 = vmatprep.subr.bf16.mxu0 0
        %1032 = vmatpush2.bf16.msra.mxu0 %v981
        %1033 = vmatprep.subr.bf16.mxu0 0
        %1034 = vmatpush2.bf16.msra.mxu0 %v980
        %1035 = vmatprep.subr.bf16.mxu0 0
        %1036 = vmatpush2.bf16.msra.mxu0 %v979
        %1037 = vmatprep.mubr.bf16.mxu0 %v997
        %1038 = vmatmul.mubr.bf16.gmra.mxu0 %v885
        %v1039 = vpop.f32.mrf.mxu0
        %v1040 = vadd.f32 0.0, %v1039
        %v1041 = vpop.f32.mrf.mxu0
        %v1042 = vpop.f32.mrf.mxu0
        %v1043 = vadd.f32 0.0, %v1042
        %v1044 = vpop.f32.mrf.mxu0
        %1045 = vmatprep.mubr.bf16.mxu0 %v1000
        %1046 = vmatmul.mubr.bf16.gmra.mxu0 %v905
        %v1047 = vpop.f32.mrf.mxu0
        %v1048 = vadd.f32 0.0, %v1047
        %v1049 = vpop.f32.mrf.mxu0
        %v1050 = vpop.f32.mrf.mxu0
        %v1051 = vadd.f32 0.0, %v1050
        %v1052 = vpop.f32.mrf.mxu0
        %1053 = vmatprep.mubr.bf16.mxu0 %v1003
        %1054 = vmatmul.mubr.bf16.gmra.mxu0 %v916
        %v1055 = vpop.f32.mrf.mxu0
        %v1056 = vadd.f32 0.0, %v1055
        %v1057 = vpop.f32.mrf.mxu0
        %v1058 = vpop.f32.mrf.mxu0
        %v1059 = vpop.f32.mrf.mxu0
        %1060 = vdwg.mxu0
        %v1062 = vunpack.c.l.b16 %v801
        %v1063 = vunpack.c.h.b16 %v801
        %v1064 = vpack.c.b16 %v1062, %v1062
        %v1065 = vpack.c.b16 %v1063, %v1063
        %v1093 = vunpack.c.l.b16 %v802
        %v1094 = vunpack.c.l.b16 %v803
        %v1095 = vunpack.c.l.b16 %v804
        %v1096 = vunpack.c.l.b16 %v805
        %v1097 = vunpack.c.l.b16 %v806
        %v1098 = vunpack.c.l.b16 %v807
        %v1099 = vunpack.c.l.b16 %v808
        %v1100 = vunpack.c.l.b16 %v809
        %v1101 = vunpack.c.l.b16 %v810
        %v1102 = vunpack.c.l.b16 %v811
        %v1103 = vunpack.c.l.b16 %v812
        %v1104 = vunpack.c.l.b16 %v813
        %v1105 = vunpack.c.l.b16 %v814
        %v1106 = vunpack.c.l.b16 %v815
        %v1107 = vunpack.c.l.b16 %v816
        %v1108 = vunpack.c.l.b16 %v817
        %v1109 = vunpack.c.l.b16 %v818
        %v1110 = vunpack.c.l.b16 %v819
        %v1111 = vunpack.c.l.b16 %v820
        %v1112 = vunpack.c.l.b16 %v821
        %v1113 = vunpack.c.l.b16 %v822
        %v1114 = vunpack.c.l.b16 %v823
        %v1115 = vunpack.c.l.b16 %v824
        %v1116 = vunpack.c.l.b16 %v825
        %v1117 = vpack.c.b16 %v1094, %v1093
        %v1118 = vpack.c.b16 %v1096, %v1095
        %v1119 = vpack.c.b16 %v1098, %v1097
        %v1120 = vpack.c.b16 %v1100, %v1099
        %v1121 = vpack.c.b16 %v1102, %v1101
        %v1122 = vpack.c.b16 %v1104, %v1103
        %v1123 = vpack.c.b16 %v1106, %v1105
        %v1124 = vpack.c.b16 %v1108, %v1107
        %v1125 = vpack.c.b16 %v1110, %v1109
        %v1126 = vpack.c.b16 %v1112, %v1111
        %v1127 = vpack.c.b16 %v1114, %v1113
        %v1128 = vpack.c.b16 %v1116, %v1115
        %v1141 = vsel %vm995, %v868, 0
        %v1143 = vsel %vm995, %v870, 0
        %v1146 = vsel %vm995, %v1065, 0
        %1148 = vmatprep.subr.bf16.mxu0 0
        %1149 = vmatpush1.bf16.msra.mxu0 %v1124
        %1150 = vmatprep.subr.bf16.mxu0 0
        %1151 = vmatpush1.bf16.msra.mxu0 %v1123
        %1152 = vmatprep.subr.bf16.mxu0 0
        %1153 = vmatpush1.bf16.msra.mxu0 %v1122
        %1154 = vmatprep.subr.bf16.mxu0 0
        %1155 = vmatpush1.bf16.msra.mxu0 %v1121
        %1156 = vmatprep.subr.bf16.mxu0 0
        %1157 = vmatpush1.bf16.msra.mxu0 %v1120
        %1158 = vmatprep.subr.bf16.mxu0 0
        %1159 = vmatpush1.bf16.msra.mxu0 %v1119
        %1160 = vmatprep.subr.bf16.mxu0 0
        %1161 = vmatpush1.bf16.msra.mxu0 %v1118
        %1162 = vmatprep.subr.bf16.mxu0 0
        %1163 = vmatpush1.bf16.msra.mxu0 %v1117
        %1164 = vmatprep.subr.bf16.mxu0 0
        %1165 = vmatpush2.bf16.msra.mxu0 0
        %1166 = vmatprep.subr.bf16.mxu0 0
        %1167 = vmatpush2.bf16.msra.mxu0 0
        %1168 = vmatprep.subr.bf16.mxu0 0
        %1169 = vmatpush2.bf16.msra.mxu0 0
        %1170 = vmatprep.subr.bf16.mxu0 0
        %1171 = vmatpush2.bf16.msra.mxu0 0
        %1172 = vmatprep.subr.bf16.mxu0 0
        %1173 = vmatpush2.bf16.msra.mxu0 %v1128
        %1174 = vmatprep.subr.bf16.mxu0 0
        %1175 = vmatpush2.bf16.msra.mxu0 %v1127
        %1176 = vmatprep.subr.bf16.mxu0 0
        %1177 = vmatpush2.bf16.msra.mxu0 %v1126
        %1178 = vmatprep.subr.bf16.mxu0 0
        %1179 = vmatpush2.bf16.msra.mxu0 %v1125
        %1180 = vmatprep.mubr.bf16.mxu0 %v1141
        %1181 = vmatmul.mubr.bf16.gmra.mxu0 %v867
        %v1182 = vpop.f32.mrf.mxu0
        %v1183 = vadd.f32 %v1040, %v1182
        %v1184 = vpop.f32.mrf.mxu0
        %v1185 = vpop.f32.mrf.mxu0
        %v1186 = vadd.f32 %v1043, %v1185
        %v1187 = vpop.f32.mrf.mxu0
        %1188 = vmatprep.mubr.bf16.mxu0 %v1143
        %1189 = vmatmul.mubr.bf16.gmra.mxu0 %v869
        %v1190 = vpop.f32.mrf.mxu0
        %v1191 = vadd.f32 %v1048, %v1190
        %v1192 = vpop.f32.mrf.mxu0
        %v1193 = vpop.f32.mrf.mxu0
        %v1194 = vadd.f32 %v1051, %v1193
        %v1195 = vpop.f32.mrf.mxu0
        %1196 = vmatprep.mubr.bf16.mxu0 %v1146
        %1197 = vmatmul.mubr.bf16.gmra.mxu0 %v1064
        %v1198 = vpop.f32.mrf.mxu0
        %v1199 = vadd.f32 %v1056, %v1198
        %v1200 = vpop.f32.mrf.mxu0
        %v1201 = vpop.f32.mrf.mxu0
        %v1202 = vpop.f32.mrf.mxu0
        %1203 = vdwg.mxu0
        %v1204 = vld [vmem:[%s762] sm:$0xee]
        %s1205 = scalar_lea.vmem %s6, 192
        %v1206 = vld [vmem:[%s1205] sm:$0xf]
        %v1207 = vld [vmem:[%s1205 + $0x4] sm:$0xf]
        %v1208 = vld [vmem:[%s1205 + $0x8] sm:$0xf]
        %v1209 = vld [vmem:[%s1205 + $0xc] sm:$0xf]
        %v1210 = vld [vmem:[%s1205 + $0x10] sm:$0xf]
        %v1211 = vld [vmem:[%s1205 + $0x14] sm:$0xf]
        %v1212 = vld [vmem:[%s1205 + $0x18] sm:$0xf]
        %v1213 = vld [vmem:[%s1205 + $0x1c] sm:$0xf]
        %v1214 = vld [vmem:[%s1205 + $0x20] sm:$0xf]
        %v1215 = vld [vmem:[%s1205 + $0x24] sm:$0xf]
        %v1216 = vld [vmem:[%s1205 + $0x28] sm:$0xf]
        %v1217 = vld [vmem:[%s1205 + $0x2c] sm:$0xf]
        %v1218 = vld [vmem:[%s1205 + $0x30] sm:$0xf]
        %v1219 = vld [vmem:[%s1205 + $0x34] sm:$0xf]
        %v1220 = vld [vmem:[%s1205 + $0x38] sm:$0xf]
        %v1221 = vld [vmem:[%s1205 + $0x3c] sm:$0xf]
        %v1222 = vld [vmem:[%s1205 + $0x40] sm:$0xf]
        %v1223 = vld [vmem:[%s1205 + $0x44] sm:$0xf]
        %v1224 = vld [vmem:[%s1205 + $0x48] sm:$0xf]
        %v1225 = vld [vmem:[%s1205 + $0x4c] sm:$0xf]
        %v1226 = vld [vmem:[%s1205 + $0x50] sm:$0xf]
        %v1227 = vld [vmem:[%s1205 + $0x54] sm:$0xf]
        %v1228 = vld [vmem:[%s1205 + $0x58] sm:$0xf]
        %v1229 = vld [vmem:[%s1205 + $0x5c] sm:$0xf]
        %v1231 = vunpack.c.l.b16 %v1204
        %v1232 = vunpack.c.h.b16 %v1204
        %v1233 = vpack.c.b16 %v859, %v1231
        %v1234 = vpack.c.b16 %v860, %v1232
        %vm1235 = vcmask 1046528
        %v1236 = vrot.slane %v1233, 1
        %v1237 = vrot.slane %v869, 1
        %v1238 = vsel %vm1235, %v1236, %v1237
        %v1239 = vrot.slane %v1234, 1
        %v1240 = vrot.slane %v870, 1
        %v1241 = vsel %vm1235, %v1239, %v1240
        %v1242 = vrot.slane %v871, 1
        %v1243 = vsel %vm1235, %v1237, %v1242
        %v1244 = vrot.slane %v872, 1
        %v1245 = vsel %vm1235, %v1240, %v1244
        %v1273 = vunpack.c.l.b16 %v1206
        %v1274 = vunpack.c.l.b16 %v1207
        %v1275 = vunpack.c.l.b16 %v1208
        %v1276 = vunpack.c.l.b16 %v1209
        %v1277 = vunpack.c.l.b16 %v1210
        %v1278 = vunpack.c.l.b16 %v1211
        %v1279 = vunpack.c.l.b16 %v1212
        %v1280 = vunpack.c.l.b16 %v1213
        %v1281 = vunpack.c.l.b16 %v1214
        %v1282 = vunpack.c.l.b16 %v1215
        %v1283 = vunpack.c.l.b16 %v1216
        %v1284 = vunpack.c.l.b16 %v1217
        %v1285 = vunpack.c.l.b16 %v1218
        %v1286 = vunpack.c.l.b16 %v1219
        %v1287 = vunpack.c.l.b16 %v1220
        %v1288 = vunpack.c.l.b16 %v1221
        %v1289 = vunpack.c.l.b16 %v1222
        %v1290 = vunpack.c.l.b16 %v1223
        %v1291 = vunpack.c.l.b16 %v1224
        %v1292 = vunpack.c.l.b16 %v1225
        %v1293 = vunpack.c.l.b16 %v1226
        %v1294 = vunpack.c.l.b16 %v1227
        %v1295 = vunpack.c.l.b16 %v1228
        %v1296 = vunpack.c.l.b16 %v1229
        %v1297 = vpack.c.b16 %v1274, %v1273
        %v1298 = vpack.c.b16 %v1276, %v1275
        %v1299 = vpack.c.b16 %v1278, %v1277
        %v1300 = vpack.c.b16 %v1280, %v1279
        %v1301 = vpack.c.b16 %v1282, %v1281
        %v1302 = vpack.c.b16 %v1284, %v1283
        %v1303 = vpack.c.b16 %v1286, %v1285
        %v1304 = vpack.c.b16 %v1288, %v1287
        %v1305 = vpack.c.b16 %v1290, %v1289
        %v1306 = vpack.c.b16 %v1292, %v1291
        %v1307 = vpack.c.b16 %v1294, %v1293
        %v1308 = vpack.c.b16 %v1296, %v1295
        %v1322 = vsel %vm995, %v1241, 0
        %v1325 = vsel %vm995, %v1245, 0
        %v1328 = vsel %vm995, %v1244, 0
        %1330 = vmatprep.subr.bf16.mxu0 0
        %1331 = vmatpush1.bf16.msra.mxu0 %v1304
        %1332 = vmatprep.subr.bf16.mxu0 0
        %1333 = vmatpush1.bf16.msra.mxu0 %v1303
        %1334 = vmatprep.subr.bf16.mxu0 0
        %1335 = vmatpush1.bf16.msra.mxu0 %v1302
        %1336 = vmatprep.subr.bf16.mxu0 0
        %1337 = vmatpush1.bf16.msra.mxu0 %v1301
        %1338 = vmatprep.subr.bf16.mxu0 0
        %1339 = vmatpush1.bf16.msra.mxu0 %v1300
        %1340 = vmatprep.subr.bf16.mxu0 0
        %1341 = vmatpush1.bf16.msra.mxu0 %v1299
        %1342 = vmatprep.subr.bf16.mxu0 0
        %1343 = vmatpush1.bf16.msra.mxu0 %v1298
        %1344 = vmatprep.subr.bf16.mxu0 0
        %1345 = vmatpush1.bf16.msra.mxu0 %v1297
        %1346 = vmatprep.subr.bf16.mxu0 0
        %1347 = vmatpush2.bf16.msra.mxu0 0
        %1348 = vmatprep.subr.bf16.mxu0 0
        %1349 = vmatpush2.bf16.msra.mxu0 0
        %1350 = vmatprep.subr.bf16.mxu0 0
        %1351 = vmatpush2.bf16.msra.mxu0 0
        %1352 = vmatprep.subr.bf16.mxu0 0
        %1353 = vmatpush2.bf16.msra.mxu0 0
        %1354 = vmatprep.subr.bf16.mxu0 0
        %1355 = vmatpush2.bf16.msra.mxu0 %v1308
        %1356 = vmatprep.subr.bf16.mxu0 0
        %1357 = vmatpush2.bf16.msra.mxu0 %v1307
        %1358 = vmatprep.subr.bf16.mxu0 0
        %1359 = vmatpush2.bf16.msra.mxu0 %v1306
        %1360 = vmatprep.subr.bf16.mxu0 0
        %1361 = vmatpush2.bf16.msra.mxu0 %v1305
        %1362 = vmatprep.mubr.bf16.mxu0 %v1322
        %1363 = vmatmul.mubr.bf16.gmra.mxu0 %v1238
        %v1364 = vpop.f32.mrf.mxu0
        %v1365 = vadd.f32 0.0, %v1364
        %v1366 = vpop.f32.mrf.mxu0
        %v1367 = vpop.f32.mrf.mxu0
        %v1368 = vadd.f32 0.0, %v1367
        %v1369 = vpop.f32.mrf.mxu0
        %1370 = vmatprep.mubr.bf16.mxu0 %v1325
        %1371 = vmatmul.mubr.bf16.gmra.mxu0 %v1243
        %v1372 = vpop.f32.mrf.mxu0
        %v1373 = vadd.f32 0.0, %v1372
        %v1374 = vpop.f32.mrf.mxu0
        %v1375 = vpop.f32.mrf.mxu0
        %v1376 = vadd.f32 0.0, %v1375
        %v1377 = vpop.f32.mrf.mxu0
        %1378 = vmatprep.mubr.bf16.mxu0 %v1328
        %1379 = vmatmul.mubr.bf16.gmra.mxu0 %v1242
        %v1380 = vpop.f32.mrf.mxu0
        %v1381 = vadd.f32 0.0, %v1380
        %v1382 = vpop.f32.mrf.mxu0
        %v1383 = vpop.f32.mrf.mxu0
        %v1384 = vpop.f32.mrf.mxu0
        %1385 = vdwg.mxu0
        %v1386 = vadd.f32 %v1183, %v1365
        %v1387 = vadd.f32 %v1186, %v1368
        %v1388 = vadd.f32 %v1191, %v1373
        %v1389 = vadd.f32 %v1194, %v1376
        %v1390 = vadd.f32 %v1199, %v1381
        %v1391 = vld [vmem:[%s762] sm:$0x88]
        %v1392 = vld [vmem:[%s762 + $0x8] sm:$0xff]
        %v1393 = vld [vmem:[%s762 + $0x10] sm:$0xff]
        %v1394 = vld [vmem:[%s762 + $0x18] sm:$0xff]
        %v1395 = vld [vmem:[%s762 + $0x20] sm:$0xff]
        %v1396 = vld [vmem:[%s762 + $0x28] sm:$0x11]
        %s1397 = scalar_lea.vmem %s6, 288
        %v1398 = vld [vmem:[%s1397] sm:$0xf]
        %v1399 = vld [vmem:[%s1397 + $0x4] sm:$0xf]
        %v1400 = vld [vmem:[%s1397 + $0x8] sm:$0xf]
        %v1401 = vld [vmem:[%s1397 + $0xc] sm:$0xf]
        %v1402 = vld [vmem:[%s1397 + $0x10] sm:$0xf]
        %v1403 = vld [vmem:[%s1397 + $0x14] sm:$0xf]
        %v1404 = vld [vmem:[%s1397 + $0x18] sm:$0xf]
        %v1405 = vld [vmem:[%s1397 + $0x1c] sm:$0xf]
        %v1406 = vld [vmem:[%s1397 + $0x20] sm:$0xf]
        %v1407 = vld [vmem:[%s1397 + $0x24] sm:$0xf]
        %v1408 = vld [vmem:[%s1397 + $0x28] sm:$0xf]
        %v1409 = vld [vmem:[%s1397 + $0x2c] sm:$0xf]
        %v1410 = vld [vmem:[%s1397 + $0x30] sm:$0xf]
        %v1411 = vld [vmem:[%s1397 + $0x34] sm:$0xf]
        %v1412 = vld [vmem:[%s1397 + $0x38] sm:$0xf]
        %v1413 = vld [vmem:[%s1397 + $0x3c] sm:$0xf]
        %v1414 = vld [vmem:[%s1397 + $0x40] sm:$0xf]
        %v1415 = vld [vmem:[%s1397 + $0x44] sm:$0xf]
        %v1416 = vld [vmem:[%s1397 + $0x48] sm:$0xf]
        %v1417 = vld [vmem:[%s1397 + $0x4c] sm:$0xf]
        %v1418 = vld [vmem:[%s1397 + $0x50] sm:$0xf]
        %v1419 = vld [vmem:[%s1397 + $0x54] sm:$0xf]
        %v1420 = vld [vmem:[%s1397 + $0x58] sm:$0xf]
        %v1421 = vld [vmem:[%s1397 + $0x5c] sm:$0xf]
        %v1428 = vunpack.c.l.b16 %v1391
        %v1429 = vunpack.c.h.b16 %v1391
        %v1430 = vunpack.c.l.b16 %v1392
        %v1431 = vunpack.c.h.b16 %v1392
        %v1432 = vunpack.c.l.b16 %v1393
        %v1433 = vunpack.c.h.b16 %v1393
        %v1434 = vunpack.c.l.b16 %v1394
        %v1435 = vunpack.c.h.b16 %v1394
        %v1436 = vunpack.c.l.b16 %v1395
        %v1437 = vunpack.c.h.b16 %v1395
        %v1438 = vunpack.c.l.b16 %v1396
        %v1439 = vunpack.c.h.b16 %v1396
        %v1440 = vpack.c.b16 %v1430, %v1428
        %v1441 = vpack.c.b16 %v1431, %v1429
        %v1442 = vpack.c.b16 %v1434, %v1432
        %v1443 = vpack.c.b16 %v1435, %v1433
        %v1444 = vpack.c.b16 %v1438, %v1436
        %v1445 = vpack.c.b16 %v1439, %v1437
        %vm1446 = vcmask 1044480
        %v1447 = vrot.slane %v1440, 3
        %v1448 = vrot.slane %v1442, 3
        %v1449 = vsel %vm1446, %v1447, %v1448
        %v1450 = vrot.slane %v1441, 3
        %v1451 = vrot.slane %v1443, 3
        %v1452 = vsel %vm1446, %v1450, %v1451
        %v1453 = vrot.slane %v1444, 3
        %v1454 = vsel %vm1446, %v1448, %v1453
        %v1455 = vrot.slane %v1445, 3
        %v1456 = vsel %vm1446, %v1451, %v1455
        %v1484 = vunpack.c.l.b16 %v1398
        %v1485 = vunpack.c.l.b16 %v1399
        %v1486 = vunpack.c.l.b16 %v1400
        %v1487 = vunpack.c.l.b16 %v1401
        %v1488 = vunpack.c.l.b16 %v1402
        %v1489 = vunpack.c.l.b16 %v1403
        %v1490 = vunpack.c.l.b16 %v1404
        %v1491 = vunpack.c.l.b16 %v1405
        %v1492 = vunpack.c.l.b16 %v1406
        %v1493 = vunpack.c.l.b16 %v1407
        %v1494 = vunpack.c.l.b16 %v1408
        %v1495 = vunpack.c.l.b16 %v1409
        %v1496 = vunpack.c.l.b16 %v1410
        %v1497 = vunpack.c.l.b16 %v1411
        %v1498 = vunpack.c.l.b16 %v1412
        %v1499 = vunpack.c.l.b16 %v1413
        %v1500 = vunpack.c.l.b16 %v1414
        %v1501 = vunpack.c.l.b16 %v1415
        %v1502 = vunpack.c.l.b16 %v1416
        %v1503 = vunpack.c.l.b16 %v1417
        %v1504 = vunpack.c.l.b16 %v1418
        %v1505 = vunpack.c.l.b16 %v1419
        %v1506 = vunpack.c.l.b16 %v1420
        %v1507 = vunpack.c.l.b16 %v1421
        %v1508 = vpack.c.b16 %v1485, %v1484
        %v1509 = vpack.c.b16 %v1487, %v1486
        %v1510 = vpack.c.b16 %v1489, %v1488
        %v1511 = vpack.c.b16 %v1491, %v1490
        %v1512 = vpack.c.b16 %v1493, %v1492
        %v1513 = vpack.c.b16 %v1495, %v1494
        %v1514 = vpack.c.b16 %v1497, %v1496
        %v1515 = vpack.c.b16 %v1499, %v1498
        %v1516 = vpack.c.b16 %v1501, %v1500
        %v1517 = vpack.c.b16 %v1503, %v1502
        %v1518 = vpack.c.b16 %v1505, %v1504
        %v1519 = vpack.c.b16 %v1507, %v1506
        %v1533 = vsel %vm995, %v1452, 0
        %v1536 = vsel %vm995, %v1456, 0
        %v1539 = vsel %vm995, %v1455, 0
        %1541 = vmatprep.subr.bf16.mxu0 0
        %1542 = vmatpush1.bf16.msra.mxu0 %v1515
        %1543 = vmatprep.subr.bf16.mxu0 0
        %1544 = vmatpush1.bf16.msra.mxu0 %v1514
        %1545 = vmatprep.subr.bf16.mxu0 0
        %1546 = vmatpush1.bf16.msra.mxu0 %v1513
        %1547 = vmatprep.subr.bf16.mxu0 0
        %1548 = vmatpush1.bf16.msra.mxu0 %v1512
        %1549 = vmatprep.subr.bf16.mxu0 0
        %1550 = vmatpush1.bf16.msra.mxu0 %v1511
        %1551 = vmatprep.subr.bf16.mxu0 0
        %1552 = vmatpush1.bf16.msra.mxu0 %v1510
        %1553 = vmatprep.subr.bf16.mxu0 0
        %1554 = vmatpush1.bf16.msra.mxu0 %v1509
        %1555 = vmatprep.subr.bf16.mxu0 0
        %1556 = vmatpush1.bf16.msra.mxu0 %v1508
        %1557 = vmatprep.subr.bf16.mxu0 0
        %1558 = vmatpush2.bf16.msra.mxu0 0
        %1559 = vmatprep.subr.bf16.mxu0 0
        %1560 = vmatpush2.bf16.msra.mxu0 0
        %1561 = vmatprep.subr.bf16.mxu0 0
        %1562 = vmatpush2.bf16.msra.mxu0 0
        %1563 = vmatprep.subr.bf16.mxu0 0
        %1564 = vmatpush2.bf16.msra.mxu0 0
        %1565 = vmatprep.subr.bf16.mxu0 0
        %1566 = vmatpush2.bf16.msra.mxu0 %v1519
        %1567 = vmatprep.subr.bf16.mxu0 0
        %1568 = vmatpush2.bf16.msra.mxu0 %v1518
        %1569 = vmatprep.subr.bf16.mxu0 0
        %1570 = vmatpush2.bf16.msra.mxu0 %v1517
        %1571 = vmatprep.subr.bf16.mxu0 0
        %1572 = vmatpush2.bf16.msra.mxu0 %v1516
        %1573 = vmatprep.mubr.bf16.mxu0 %v1533
        %1574 = vmatmul.mubr.bf16.gmra.mxu0 %v1449
        %v1575 = vpop.f32.mrf.mxu0
        %v1576 = vadd.f32 0.0, %v1575
        %v1577 = vpop.f32.mrf.mxu0
        %v1578 = vpop.f32.mrf.mxu0
        %v1579 = vadd.f32 0.0, %v1578
        %v1580 = vpop.f32.mrf.mxu0
        %1581 = vmatprep.mubr.bf16.mxu0 %v1536
        %1582 = vmatmul.mubr.bf16.gmra.mxu0 %v1454
        %v1583 = vpop.f32.mrf.mxu0
        %v1584 = vadd.f32 0.0, %v1583
        %v1585 = vpop.f32.mrf.mxu0
        %v1586 = vpop.f32.mrf.mxu0
        %v1587 = vadd.f32 0.0, %v1586
        %v1588 = vpop.f32.mrf.mxu0
        %1589 = vmatprep.mubr.bf16.mxu0 %v1539
        %1590 = vmatmul.mubr.bf16.gmra.mxu0 %v1453
        %v1591 = vpop.f32.mrf.mxu0
        %v1592 = vadd.f32 0.0, %v1591
        %v1593 = vpop.f32.mrf.mxu0
        %v1594 = vpop.f32.mrf.mxu0
        %v1595 = vpop.f32.mrf.mxu0
        %1596 = vdwg.mxu0
        %v1597 = vadd.f32 %v1386, %v1576
        %v1598 = vadd.f32 %v1387, %v1579
        %v1599 = vadd.f32 %v1388, %v1584
        %v1600 = vadd.f32 %v1389, %v1587
        %v1601 = vadd.f32 %v1390, %v1592
        %v1602 = vld [vmem:[%s762 + $0x28] sm:$0x33]
        %s1603 = scalar_lea.vmem %s6, 384
        %v1604 = vld [vmem:[%s1603] sm:$0xf]
        %v1605 = vld [vmem:[%s1603 + $0x4] sm:$0xf]
        %v1606 = vld [vmem:[%s1603 + $0x8] sm:$0xf]
        %v1607 = vld [vmem:[%s1603 + $0xc] sm:$0xf]
        %v1608 = vld [vmem:[%s1603 + $0x10] sm:$0xf]
        %v1609 = vld [vmem:[%s1603 + $0x14] sm:$0xf]
        %v1610 = vld [vmem:[%s1603 + $0x18] sm:$0xf]
        %v1611 = vld [vmem:[%s1603 + $0x1c] sm:$0xf]
        %v1612 = vld [vmem:[%s1603 + $0x20] sm:$0xf]
        %v1613 = vld [vmem:[%s1603 + $0x24] sm:$0xf]
        %v1614 = vld [vmem:[%s1603 + $0x28] sm:$0xf]
        %v1615 = vld [vmem:[%s1603 + $0x2c] sm:$0xf]
        %v1616 = vld [vmem:[%s1603 + $0x30] sm:$0xf]
        %v1617 = vld [vmem:[%s1603 + $0x34] sm:$0xf]
        %v1618 = vld [vmem:[%s1603 + $0x38] sm:$0xf]
        %v1619 = vld [vmem:[%s1603 + $0x3c] sm:$0xf]
        %v1620 = vld [vmem:[%s1603 + $0x40] sm:$0xf]
        %v1621 = vld [vmem:[%s1603 + $0x44] sm:$0xf]
        %v1622 = vld [vmem:[%s1603 + $0x48] sm:$0xf]
        %v1623 = vld [vmem:[%s1603 + $0x4c] sm:$0xf]
        %v1624 = vld [vmem:[%s1603 + $0x50] sm:$0xf]
        %v1625 = vld [vmem:[%s1603 + $0x54] sm:$0xf]
        %v1626 = vld [vmem:[%s1603 + $0x58] sm:$0xf]
        %v1627 = vld [vmem:[%s1603 + $0x5c] sm:$0xf]
        %v1629 = vunpack.c.l.b16 %v1602
        %v1630 = vunpack.c.h.b16 %v1602
        %v1631 = vpack.c.b16 %v1629, %v1436
        %v1632 = vpack.c.b16 %v1630, %v1437
        %vm1633 = vsmask.f32 4352
        %v1635 = vshrl.u32 %v1440, 16
        %v1637 = vrot.slane %v1635, 3
        %v1638 = vshll.u32 %v1440, 16
        %v1640 = vrot.slane %v1638, 4
        %v1641 = vor.u32 %v1637, %v1640
        %v1643 = vshrl.u32 %v1442, 16
        %v1645 = vrot.slane %v1643, 3
        %v1646 = vshll.u32 %v1442, 16
        %v1648 = vrot.slane %v1646, 4
        %v1649 = vor.u32 %v1645, %v1648
        %v1650 = vsel %vm1633, %v1641, %v1649
        %v1652 = vshrl.u32 %v1441, 16
        %v1654 = vrot.slane %v1652, 3
        %v1655 = vshll.u32 %v1441, 16
        %v1657 = vrot.slane %v1655, 4
        %v1658 = vor.u32 %v1654, %v1657
        %v1660 = vshrl.u32 %v1443, 16
        %v1662 = vrot.slane %v1660, 3
        %v1663 = vshll.u32 %v1443, 16
        %v1665 = vrot.slane %v1663, 4
        %v1666 = vor.u32 %v1662, %v1665
        %v1667 = vsel %vm1633, %v1658, %v1666
        %v1669 = vshrl.u32 %v1631, 16
        %v1671 = vrot.slane %v1669, 3
        %v1672 = vshll.u32 %v1631, 16
        %v1674 = vrot.slane %v1672, 4
        %v1675 = vor.u32 %v1671, %v1674
        %v1676 = vsel %vm1633, %v1649, %v1675
        %v1678 = vshrl.u32 %v1632, 16
        %v1680 = vrot.slane %v1678, 3
        %v1681 = vshll.u32 %v1632, 16
        %v1683 = vrot.slane %v1681, 4
        %v1684 = vor.u32 %v1680, %v1683
        %v1685 = vsel %vm1633, %v1666, %v1684
        %v1713 = vunpack.c.l.b16 %v1604
        %v1714 = vunpack.c.l.b16 %v1605
        %v1715 = vunpack.c.l.b16 %v1606
        %v1716 = vunpack.c.l.b16 %v1607
        %v1717 = vunpack.c.l.b16 %v1608
        %v1718 = vunpack.c.l.b16 %v1609
        %v1719 = vunpack.c.l.b16 %v1610
        %v1720 = vunpack.c.l.b16 %v1611
        %v1721 = vunpack.c.l.b16 %v1612
        %v1722 = vunpack.c.l.b16 %v1613
        %v1723 = vunpack.c.l.b16 %v1614
        %v1724 = vunpack.c.l.b16 %v1615
        %v1725 = vunpack.c.l.b16 %v1616
        %v1726 = vunpack.c.l.b16 %v1617
        %v1727 = vunpack.c.l.b16 %v1618
        %v1728 = vunpack.c.l.b16 %v1619
        %v1729 = vunpack.c.l.b16 %v1620
        %v1730 = vunpack.c.l.b16 %v1621
        %v1731 = vunpack.c.l.b16 %v1622
        %v1732 = vunpack.c.l.b16 %v1623
        %v1733 = vunpack.c.l.b16 %v1624
        %v1734 = vunpack.c.l.b16 %v1625
        %v1735 = vunpack.c.l.b16 %v1626
        %v1736 = vunpack.c.l.b16 %v1627
        %v1737 = vpack.c.b16 %v1714, %v1713
        %v1738 = vpack.c.b16 %v1716, %v1715
        %v1739 = vpack.c.b16 %v1718, %v1717
        %v1740 = vpack.c.b16 %v1720, %v1719
        %v1741 = vpack.c.b16 %v1722, %v1721
        %v1742 = vpack.c.b16 %v1724, %v1723
        %v1743 = vpack.c.b16 %v1726, %v1725
        %v1744 = vpack.c.b16 %v1728, %v1727
        %v1745 = vpack.c.b16 %v1730, %v1729
        %v1746 = vpack.c.b16 %v1732, %v1731
        %v1747 = vpack.c.b16 %v1734, %v1733
        %v1748 = vpack.c.b16 %v1736, %v1735
        %v1762 = vsel %vm995, %v1667, 0
        %v1765 = vsel %vm995, %v1685, 0
        %v1768 = vsel %vm995, %v1684, 0
        %1770 = vmatprep.subr.bf16.mxu0 0
        %1771 = vmatpush1.bf16.msra.mxu0 %v1744
        %1772 = vmatprep.subr.bf16.mxu0 0
        %1773 = vmatpush1.bf16.msra.mxu0 %v1743
        %1774 = vmatprep.subr.bf16.mxu0 0
        %1775 = vmatpush1.bf16.msra.mxu0 %v1742
        %1776 = vmatprep.subr.bf16.mxu0 0
        %1777 = vmatpush1.bf16.msra.mxu0 %v1741
        %1778 = vmatprep.subr.bf16.mxu0 0
        %1779 = vmatpush1.bf16.msra.mxu0 %v1740
        %1780 = vmatprep.subr.bf16.mxu0 0
        %1781 = vmatpush1.bf16.msra.mxu0 %v1739
        %1782 = vmatprep.subr.bf16.mxu0 0
        %1783 = vmatpush1.bf16.msra.mxu0 %v1738
        %1784 = vmatprep.subr.bf16.mxu0 0
        %1785 = vmatpush1.bf16.msra.mxu0 %v1737
        %1786 = vmatprep.subr.bf16.mxu0 0
        %1787 = vmatpush2.bf16.msra.mxu0 0
        %1788 = vmatprep.subr.bf16.mxu0 0
        %1789 = vmatpush2.bf16.msra.mxu0 0
        %1790 = vmatprep.subr.bf16.mxu0 0
        %1791 = vmatpush2.bf16.msra.mxu0 0
        %1792 = vmatprep.subr.bf16.mxu0 0
        %1793 = vmatpush2.bf16.msra.mxu0 0
        %1794 = vmatprep.subr.bf16.mxu0 0
        %1795 = vmatpush2.bf16.msra.mxu0 %v1748
        %1796 = vmatprep.subr.bf16.mxu0 0
        %1797 = vmatpush2.bf16.msra.mxu0 %v1747
        %1798 = vmatprep.subr.bf16.mxu0 0
        %1799 = vmatpush2.bf16.msra.mxu0 %v1746
        %1800 = vmatprep.subr.bf16.mxu0 0
        %1801 = vmatpush2.bf16.msra.mxu0 %v1745
        %1802 = vmatprep.mubr.bf16.mxu0 %v1762
        %1803 = vmatmul.mubr.bf16.gmra.mxu0 %v1650
        %v1804 = vpop.f32.mrf.mxu0
        %v1805 = vadd.f32 0.0, %v1804
        %v1806 = vpop.f32.mrf.mxu0
        %v1807 = vpop.f32.mrf.mxu0
        %v1808 = vadd.f32 0.0, %v1807
        %v1809 = vpop.f32.mrf.mxu0
        %1810 = vmatprep.mubr.bf16.mxu0 %v1765
        %1811 = vmatmul.mubr.bf16.gmra.mxu0 %v1676
        %v1812 = vpop.f32.mrf.mxu0
        %v1813 = vadd.f32 0.0, %v1812
        %v1814 = vpop.f32.mrf.mxu0
        %v1815 = vpop.f32.mrf.mxu0
        %v1816 = vadd.f32 0.0, %v1815
        %v1817 = vpop.f32.mrf.mxu0
        %1818 = vmatprep.mubr.bf16.mxu0 %v1768
        %1819 = vmatmul.mubr.bf16.gmra.mxu0 %v1675
        %v1820 = vpop.f32.mrf.mxu0
        %v1821 = vadd.f32 0.0, %v1820
        %v1822 = vpop.f32.mrf.mxu0
        %v1823 = vpop.f32.mrf.mxu0
        %v1824 = vpop.f32.mrf.mxu0
        %1825 = vdwg.mxu0
        %v1826 = vadd.f32 %v1597, %v1805
        %v1827 = vadd.f32 %v1598, %v1808
        %v1828 = vadd.f32 %v1599, %v1813
        %v1829 = vadd.f32 %v1600, %v1816
        %v1830 = vadd.f32 %v1601, %v1821
        %s1831 = scalar_lea.vmem %s6, 480
        %v1832 = vld [vmem:[%s1831] sm:$0xf]
        %v1833 = vld [vmem:[%s1831 + $0x4] sm:$0xf]
        %v1834 = vld [vmem:[%s1831 + $0x8] sm:$0xf]
        %v1835 = vld [vmem:[%s1831 + $0xc] sm:$0xf]
        %v1836 = vld [vmem:[%s1831 + $0x10] sm:$0xf]
        %v1837 = vld [vmem:[%s1831 + $0x14] sm:$0xf]
        %v1838 = vld [vmem:[%s1831 + $0x18] sm:$0xf]
        %v1839 = vld [vmem:[%s1831 + $0x1c] sm:$0xf]
        %v1840 = vld [vmem:[%s1831 + $0x20] sm:$0xf]
        %v1841 = vld [vmem:[%s1831 + $0x24] sm:$0xf]
        %v1842 = vld [vmem:[%s1831 + $0x28] sm:$0xf]
        %v1843 = vld [vmem:[%s1831 + $0x2c] sm:$0xf]
        %v1844 = vld [vmem:[%s1831 + $0x30] sm:$0xf]
        %v1845 = vld [vmem:[%s1831 + $0x34] sm:$0xf]
        %v1846 = vld [vmem:[%s1831 + $0x38] sm:$0xf]
        %v1847 = vld [vmem:[%s1831 + $0x3c] sm:$0xf]
        %v1848 = vld [vmem:[%s1831 + $0x40] sm:$0xf]
        %v1849 = vld [vmem:[%s1831 + $0x44] sm:$0xf]
        %v1850 = vld [vmem:[%s1831 + $0x48] sm:$0xf]
        %v1851 = vld [vmem:[%s1831 + $0x4c] sm:$0xf]
        %v1852 = vld [vmem:[%s1831 + $0x50] sm:$0xf]
        %v1853 = vld [vmem:[%s1831 + $0x54] sm:$0xf]
        %v1854 = vld [vmem:[%s1831 + $0x58] sm:$0xf]
        %v1855 = vld [vmem:[%s1831 + $0x5c] sm:$0xf]
        %v1856 = vpack.c.b16 %v1432, %v1430
        %v1857 = vpack.c.b16 %v1433, %v1431
        %v1858 = vpack.c.b16 %v1436, %v1434
        %v1859 = vpack.c.b16 %v1437, %v1435
        %v1860 = vpack.c.b16 %v1629, %v1629
        %v1861 = vpack.c.b16 %v1630, %v1630
        %v1889 = vunpack.c.l.b16 %v1832
        %v1890 = vunpack.c.l.b16 %v1833
        %v1891 = vunpack.c.l.b16 %v1834
        %v1892 = vunpack.c.l.b16 %v1835
        %v1893 = vunpack.c.l.b16 %v1836
        %v1894 = vunpack.c.l.b16 %v1837
        %v1895 = vunpack.c.l.b16 %v1838
        %v1896 = vunpack.c.l.b16 %v1839
        %v1897 = vunpack.c.l.b16 %v1840
        %v1898 = vunpack.c.l.b16 %v1841
        %v1899 = vunpack.c.l.b16 %v1842
        %v1900 = vunpack.c.l.b16 %v1843
        %v1901 = vunpack.c.l.b16 %v1844
        %v1902 = vunpack.c.l.b16 %v1845
        %v1903 = vunpack.c.l.b16 %v1846
        %v1904 = vunpack.c.l.b16 %v1847
        %v1905 = vunpack.c.l.b16 %v1848
        %v1906 = vunpack.c.l.b16 %v1849
        %v1907 = vunpack.c.l.b16 %v1850
        %v1908 = vunpack.c.l.b16 %v1851
        %v1909 = vunpack.c.l.b16 %v1852
        %v1910 = vunpack.c.l.b16 %v1853
        %v1911 = vunpack.c.l.b16 %v1854
        %v1912 = vunpack.c.l.b16 %v1855
        %v1913 = vpack.c.b16 %v1890, %v1889
        %v1914 = vpack.c.b16 %v1892, %v1891
        %v1915 = vpack.c.b16 %v1894, %v1893
        %v1916 = vpack.c.b16 %v1896, %v1895
        %v1917 = vpack.c.b16 %v1898, %v1897
        %v1918 = vpack.c.b16 %v1900, %v1899
        %v1919 = vpack.c.b16 %v1902, %v1901
        %v1920 = vpack.c.b16 %v1904, %v1903
        %v1921 = vpack.c.b16 %v1906, %v1905
        %v1922 = vpack.c.b16 %v1908, %v1907
        %v1923 = vpack.c.b16 %v1910, %v1909
        %v1924 = vpack.c.b16 %v1912, %v1911
        %v1938 = vsel %vm995, %v1857, 0
        %v1941 = vsel %vm995, %v1859, 0
        %v1944 = vsel %vm995, %v1861, 0
        %1946 = vmatprep.subr.bf16.mxu0 0
        %1947 = vmatpush1.bf16.msra.mxu0 %v1920
        %1948 = vmatprep.subr.bf16.mxu0 0
        %1949 = vmatpush1.bf16.msra.mxu0 %v1919
        %1950 = vmatprep.subr.bf16.mxu0 0
        %1951 = vmatpush1.bf16.msra.mxu0 %v1918
        %1952 = vmatprep.subr.bf16.mxu0 0
        %1953 = vmatpush1.bf16.msra.mxu0 %v1917
        %1954 = vmatprep.subr.bf16.mxu0 0
        %1955 = vmatpush1.bf16.msra.mxu0 %v1916
        %1956 = vmatprep.subr.bf16.mxu0 0
        %1957 = vmatpush1.bf16.msra.mxu0 %v1915
        %1958 = vmatprep.subr.bf16.mxu0 0
        %1959 = vmatpush1.bf16.msra.mxu0 %v1914
        %1960 = vmatprep.subr.bf16.mxu0 0
        %1961 = vmatpush1.bf16.msra.mxu0 %v1913
        %1962 = vmatprep.subr.bf16.mxu0 0
        %1963 = vmatpush2.bf16.msra.mxu0 0
        %1964 = vmatprep.subr.bf16.mxu0 0
        %1965 = vmatpush2.bf16.msra.mxu0 0
        %1966 = vmatprep.subr.bf16.mxu0 0
        %1967 = vmatpush2.bf16.msra.mxu0 0
        %1968 = vmatprep.subr.bf16.mxu0 0
        %1969 = vmatpush2.bf16.msra.mxu0 0
        %1970 = vmatprep.subr.bf16.mxu0 0
        %1971 = vmatpush2.bf16.msra.mxu0 %v1924
        %1972 = vmatprep.subr.bf16.mxu0 0
        %1973 = vmatpush2.bf16.msra.mxu0 %v1923
        %1974 = vmatprep.subr.bf16.mxu0 0
        %1975 = vmatpush2.bf16.msra.mxu0 %v1922
        %1976 = vmatprep.subr.bf16.mxu0 0
        %1977 = vmatpush2.bf16.msra.mxu0 %v1921
        %1978 = vmatprep.mubr.bf16.mxu0 %v1938
        %1979 = vmatmul.mubr.bf16.gmra.mxu0 %v1856
        %v1980 = vpop.f32.mrf.mxu0
        %v1981 = vadd.f32 0.0, %v1980
        %v1982 = vpop.f32.mrf.mxu0
        %v1983 = vpop.f32.mrf.mxu0
        %v1984 = vadd.f32 0.0, %v1983
        %v1985 = vpop.f32.mrf.mxu0
        %1986 = vmatprep.mubr.bf16.mxu0 %v1941
        %1987 = vmatmul.mubr.bf16.gmra.mxu0 %v1858
        %v1988 = vpop.f32.mrf.mxu0
        %v1989 = vadd.f32 0.0, %v1988
        %v1990 = vpop.f32.mrf.mxu0
        %v1991 = vpop.f32.mrf.mxu0
        %v1992 = vadd.f32 0.0, %v1991
        %v1993 = vpop.f32.mrf.mxu0
        %1994 = vmatprep.mubr.bf16.mxu0 %v1944
        %1995 = vmatmul.mubr.bf16.gmra.mxu0 %v1860
        %v1996 = vpop.f32.mrf.mxu0
        %v1997 = vadd.f32 0.0, %v1996
        %v1998 = vpop.f32.mrf.mxu0
        %v1999 = vpop.f32.mrf.mxu0
        %v2000 = vpop.f32.mrf.mxu0
        %2001 = vdwg.mxu0
        %v2002 = vadd.f32 %v1826, %v1981
        %v2003 = vadd.f32 %v1827, %v1984
        %v2004 = vadd.f32 %v1828, %v1989
        %v2005 = vadd.f32 %v1829, %v1992
        %v2006 = vadd.f32 %v1830, %v1997
        %v2007 = vld [vmem:[%s762 + $0x8] sm:$0xcc]
        %v2008 = vld [vmem:[%s762 + $0x28] sm:$0xff]
        %s2009 = scalar_lea.vmem %s6, 576
        %v2010 = vld [vmem:[%s2009] sm:$0xf]
        %v2011 = vld [vmem:[%s2009 + $0x4] sm:$0xf]
        %v2012 = vld [vmem:[%s2009 + $0x8] sm:$0xf]
        %v2013 = vld [vmem:[%s2009 + $0xc] sm:$0xf]
        %v2014 = vld [vmem:[%s2009 + $0x10] sm:$0xf]
        %v2015 = vld [vmem:[%s2009 + $0x14] sm:$0xf]
        %v2016 = vld [vmem:[%s2009 + $0x18] sm:$0xf]
        %v2017 = vld [vmem:[%s2009 + $0x1c] sm:$0xf]
        %v2018 = vld [vmem:[%s2009 + $0x20] sm:$0xf]
        %v2019 = vld [vmem:[%s2009 + $0x24] sm:$0xf]
        %v2020 = vld [vmem:[%s2009 + $0x28] sm:$0xf]
        %v2021 = vld [vmem:[%s2009 + $0x2c] sm:$0xf]
        %v2022 = vld [vmem:[%s2009 + $0x30] sm:$0xf]
        %v2023 = vld [vmem:[%s2009 + $0x34] sm:$0xf]
        %v2024 = vld [vmem:[%s2009 + $0x38] sm:$0xf]
        %v2025 = vld [vmem:[%s2009 + $0x3c] sm:$0xf]
        %v2026 = vld [vmem:[%s2009 + $0x40] sm:$0xf]
        %v2027 = vld [vmem:[%s2009 + $0x44] sm:$0xf]
        %v2028 = vld [vmem:[%s2009 + $0x48] sm:$0xf]
        %v2029 = vld [vmem:[%s2009 + $0x4c] sm:$0xf]
        %v2030 = vld [vmem:[%s2009 + $0x50] sm:$0xf]
        %v2031 = vld [vmem:[%s2009 + $0x54] sm:$0xf]
        %v2032 = vld [vmem:[%s2009 + $0x58] sm:$0xf]
        %v2033 = vld [vmem:[%s2009 + $0x5c] sm:$0xf]
        %v2036 = vunpack.c.l.b16 %v2007
        %v2037 = vunpack.c.h.b16 %v2007
        %v2038 = vunpack.c.l.b16 %v2008
        %v2039 = vunpack.c.h.b16 %v2008
        %v2040 = vpack.c.b16 %v1432, %v2036
        %v2041 = vpack.c.b16 %v1433, %v2037
        %v2042 = vpack.c.b16 %v2038, %v2038
        %v2043 = vpack.c.b16 %v2039, %v2039
        %vm2044 = vcmask 1045504
        %v2045 = vrot.slane %v2040, 2
        %v2046 = vrot.slane %v1858, 2
        %v2047 = vsel %vm2044, %v2045, %v2046
        %v2048 = vrot.slane %v2041, 2
        %v2049 = vrot.slane %v1859, 2
        %v2050 = vsel %vm2044, %v2048, %v2049
        %v2051 = vrot.slane %v2042, 2
        %v2052 = vsel %vm2044, %v2046, %v2051
        %v2053 = vrot.slane %v2043, 2
        %v2054 = vsel %vm2044, %v2049, %v2053
        %v2082 = vunpack.c.l.b16 %v2010
        %v2083 = vunpack.c.l.b16 %v2011
        %v2084 = vunpack.c.l.b16 %v2012
        %v2085 = vunpack.c.l.b16 %v2013
        %v2086 = vunpack.c.l.b16 %v2014
        %v2087 = vunpack.c.l.b16 %v2015
        %v2088 = vunpack.c.l.b16 %v2016
        %v2089 = vunpack.c.l.b16 %v2017
        %v2090 = vunpack.c.l.b16 %v2018
        %v2091 = vunpack.c.l.b16 %v2019
        %v2092 = vunpack.c.l.b16 %v2020
        %v2093 = vunpack.c.l.b16 %v2021
        %v2094 = vunpack.c.l.b16 %v2022
        %v2095 = vunpack.c.l.b16 %v2023
        %v2096 = vunpack.c.l.b16 %v2024
        %v2097 = vunpack.c.l.b16 %v2025
        %v2098 = vunpack.c.l.b16 %v2026
        %v2099 = vunpack.c.l.b16 %v2027
        %v2100 = vunpack.c.l.b16 %v2028
        %v2101 = vunpack.c.l.b16 %v2029
        %v2102 = vunpack.c.l.b16 %v2030
        %v2103 = vunpack.c.l.b16 %v2031
        %v2104 = vunpack.c.l.b16 %v2032
        %v2105 = vunpack.c.l.b16 %v2033
        %v2106 = vpack.c.b16 %v2083, %v2082
        %v2107 = vpack.c.b16 %v2085, %v2084
        %v2108 = vpack.c.b16 %v2087, %v2086
        %v2109 = vpack.c.b16 %v2089, %v2088
        %v2110 = vpack.c.b16 %v2091, %v2090
        %v2111 = vpack.c.b16 %v2093, %v2092
        %v2112 = vpack.c.b16 %v2095, %v2094
        %v2113 = vpack.c.b16 %v2097, %v2096
        %v2114 = vpack.c.b16 %v2099, %v2098
        %v2115 = vpack.c.b16 %v2101, %v2100
        %v2116 = vpack.c.b16 %v2103, %v2102
        %v2117 = vpack.c.b16 %v2105, %v2104
        %v2131 = vsel %vm995, %v2050, 0
        %v2134 = vsel %vm995, %v2054, 0
        %v2137 = vsel %vm995, %v2053, 0
        %2139 = vmatprep.subr.bf16.mxu0 0
        %2140 = vmatpush1.bf16.msra.mxu0 %v2113
        %2141 = vmatprep.subr.bf16.mxu0 0
        %2142 = vmatpush1.bf16.msra.mxu0 %v2112
        %2143 = vmatprep.subr.bf16.mxu0 0
        %2144 = vmatpush1.bf16.msra.mxu0 %v2111
        %2145 = vmatprep.subr.bf16.mxu0 0
        %2146 = vmatpush1.bf16.msra.mxu0 %v2110
        %2147 = vmatprep.subr.bf16.mxu0 0
        %2148 = vmatpush1.bf16.msra.mxu0 %v2109
        %2149 = vmatprep.subr.bf16.mxu0 0
        %2150 = vmatpush1.bf16.msra.mxu0 %v2108
        %2151 = vmatprep.subr.bf16.mxu0 0
        %2152 = vmatpush1.bf16.msra.mxu0 %v2107
        %2153 = vmatprep.subr.bf16.mxu0 0
        %2154 = vmatpush1.bf16.msra.mxu0 %v2106
        %2155 = vmatprep.subr.bf16.mxu0 0
        %2156 = vmatpush2.bf16.msra.mxu0 0
        %2157 = vmatprep.subr.bf16.mxu0 0
        %2158 = vmatpush2.bf16.msra.mxu0 0
        %2159 = vmatprep.subr.bf16.mxu0 0
        %2160 = vmatpush2.bf16.msra.mxu0 0
        %2161 = vmatprep.subr.bf16.mxu0 0
        %2162 = vmatpush2.bf16.msra.mxu0 0
        %2163 = vmatprep.subr.bf16.mxu0 0
        %2164 = vmatpush2.bf16.msra.mxu0 %v2117
        %2165 = vmatprep.subr.bf16.mxu0 0
        %2166 = vmatpush2.bf16.msra.mxu0 %v2116
        %2167 = vmatprep.subr.bf16.mxu0 0
        %2168 = vmatpush2.bf16.msra.mxu0 %v2115
        %2169 = vmatprep.subr.bf16.mxu0 0
        %2170 = vmatpush2.bf16.msra.mxu0 %v2114
        %2171 = vmatprep.mubr.bf16.mxu0 %v2131
        %2172 = vmatmul.mubr.bf16.gmra.mxu0 %v2047
        %v2173 = vpop.f32.mrf.mxu0
        %v2174 = vadd.f32 0.0, %v2173
        %v2175 = vpop.f32.mrf.mxu0
        %v2176 = vpop.f32.mrf.mxu0
        %v2177 = vadd.f32 0.0, %v2176
        %v2178 = vpop.f32.mrf.mxu0
        %2179 = vmatprep.mubr.bf16.mxu0 %v2134
        %2180 = vmatmul.mubr.bf16.gmra.mxu0 %v2052
        %v2181 = vpop.f32.mrf.mxu0
        %v2182 = vadd.f32 0.0, %v2181
        %v2183 = vpop.f32.mrf.mxu0
        %v2184 = vpop.f32.mrf.mxu0
        %v2185 = vadd.f32 0.0, %v2184
        %v2186 = vpop.f32.mrf.mxu0
        %2187 = vmatprep.mubr.bf16.mxu0 %v2137
        %2188 = vmatmul.mubr.bf16.gmra.mxu0 %v2051
        %v2189 = vpop.f32.mrf.mxu0
        %v2190 = vadd.f32 0.0, %v2189
        %v2191 = vpop.f32.mrf.mxu0
        %v2192 = vpop.f32.mrf.mxu0
        %v2193 = vpop.f32.mrf.mxu0
        %2194 = vdwg.mxu0
        %v2195 = vadd.f32 %v2002, %v2174
        %v2196 = vadd.f32 %v2003, %v2177
        %v2197 = vadd.f32 %v2004, %v2182
        %v2198 = vadd.f32 %v2005, %v2185
        %v2199 = vadd.f32 %v2006, %v2190
        %v2200 = vld [vmem:[%s762 + $0x8] sm:$0xcc]
        %v2201 = vld [vmem:[%s762 + $0x10] sm:$0xff]
        %v2202 = vld [vmem:[%s762 + $0x18] sm:$0xff]
        %v2203 = vld [vmem:[%s762 + $0x20] sm:$0xff]
        %v2204 = vld [vmem:[%s762 + $0x28] sm:$0xff]
        %v2205 = vld [vmem:[%s762 + $0x30] sm:$0x11]
        %s2206 = scalar_lea.vmem %s6, 672
        %v2207 = vld [vmem:[%s2206] sm:$0xf]
        %v2208 = vld [vmem:[%s2206 + $0x4] sm:$0xf]
        %v2209 = vld [vmem:[%s2206 + $0x8] sm:$0xf]
        %v2210 = vld [vmem:[%s2206 + $0xc] sm:$0xf]
        %v2211 = vld [vmem:[%s2206 + $0x10] sm:$0xf]
        %v2212 = vld [vmem:[%s2206 + $0x14] sm:$0xf]
        %v2213 = vld [vmem:[%s2206 + $0x18] sm:$0xf]
        %v2214 = vld [vmem:[%s2206 + $0x1c] sm:$0xf]
        %v2215 = vld [vmem:[%s2206 + $0x20] sm:$0xf]
        %v2216 = vld [vmem:[%s2206 + $0x24] sm:$0xf]
        %v2217 = vld [vmem:[%s2206 + $0x28] sm:$0xf]
        %v2218 = vld [vmem:[%s2206 + $0x2c] sm:$0xf]
        %v2219 = vld [vmem:[%s2206 + $0x30] sm:$0xf]
        %v2220 = vld [vmem:[%s2206 + $0x34] sm:$0xf]
        %v2221 = vld [vmem:[%s2206 + $0x38] sm:$0xf]
        %v2222 = vld [vmem:[%s2206 + $0x3c] sm:$0xf]
        %v2223 = vld [vmem:[%s2206 + $0x40] sm:$0xf]
        %v2224 = vld [vmem:[%s2206 + $0x44] sm:$0xf]
        %v2225 = vld [vmem:[%s2206 + $0x48] sm:$0xf]
        %v2226 = vld [vmem:[%s2206 + $0x4c] sm:$0xf]
        %v2227 = vld [vmem:[%s2206 + $0x50] sm:$0xf]
        %v2228 = vld [vmem:[%s2206 + $0x54] sm:$0xf]
        %v2229 = vld [vmem:[%s2206 + $0x58] sm:$0xf]
        %v2230 = vld [vmem:[%s2206 + $0x5c] sm:$0xf]
        %v2237 = vunpack.c.l.b16 %v2200
        %v2238 = vunpack.c.h.b16 %v2200
        %v2239 = vunpack.c.l.b16 %v2201
        %v2240 = vunpack.c.h.b16 %v2201
        %v2241 = vunpack.c.l.b16 %v2202
        %v2242 = vunpack.c.h.b16 %v2202
        %v2243 = vunpack.c.l.b16 %v2203
        %v2244 = vunpack.c.h.b16 %v2203
        %v2245 = vunpack.c.l.b16 %v2204
        %v2246 = vunpack.c.h.b16 %v2204
        %v2247 = vunpack.c.l.b16 %v2205
        %v2248 = vunpack.c.h.b16 %v2205
        %v2249 = vpack.c.b16 %v2239, %v2237
        %v2250 = vpack.c.b16 %v2240, %v2238
        %v2251 = vpack.c.b16 %v2243, %v2241
        %v2252 = vpack.c.b16 %v2244, %v2242
        %v2253 = vpack.c.b16 %v2247, %v2245
        %v2254 = vpack.c.b16 %v2248, %v2246
        %vm2255 = vsmask.f32 5376
        %v2257 = vshrl.u32 %v2249, 16
        %v2259 = vrot.slane %v2257, 2
        %v2260 = vshll.u32 %v2249, 16
        %v2262 = vrot.slane %v2260, 3
        %v2263 = vor.u32 %v2259, %v2262
        %v2265 = vshrl.u32 %v2251, 16
        %v2267 = vrot.slane %v2265, 2
        %v2268 = vshll.u32 %v2251, 16
        %v2270 = vrot.slane %v2268, 3
        %v2271 = vor.u32 %v2267, %v2270
        %v2272 = vsel %vm2255, %v2263, %v2271
        %v2274 = vshrl.u32 %v2250, 16
        %v2276 = vrot.slane %v2274, 2
        %v2277 = vshll.u32 %v2250, 16
        %v2279 = vrot.slane %v2277, 3
        %v2280 = vor.u32 %v2276, %v2279
        %v2282 = vshrl.u32 %v2252, 16
        %v2284 = vrot.slane %v2282, 2
        %v2285 = vshll.u32 %v2252, 16
        %v2287 = vrot.slane %v2285, 3
        %v2288 = vor.u32 %v2284, %v2287
        %v2289 = vsel %vm2255, %v2280, %v2288
        %v2291 = vshrl.u32 %v2253, 16
        %v2293 = vrot.slane %v2291, 2
        %v2294 = vshll.u32 %v2253, 16
        %v2296 = vrot.slane %v2294, 3
        %v2297 = vor.u32 %v2293, %v2296
        %v2298 = vsel %vm2255, %v2271, %v2297
        %v2300 = vshrl.u32 %v2254, 16
        %v2302 = vrot.slane %v2300, 2
        %v2303 = vshll.u32 %v2254, 16
        %v2305 = vrot.slane %v2303, 3
        %v2306 = vor.u32 %v2302, %v2305
        %v2307 = vsel %vm2255, %v2288, %v2306
        %v2335 = vunpack.c.l.b16 %v2207
        %v2336 = vunpack.c.l.b16 %v2208
        %v2337 = vunpack.c.l.b16 %v2209
        %v2338 = vunpack.c.l.b16 %v2210
        %v2339 = vunpack.c.l.b16 %v2211
        %v2340 = vunpack.c.l.b16 %v2212
        %v2341 = vunpack.c.l.b16 %v2213
        %v2342 = vunpack.c.l.b16 %v2214
        %v2343 = vunpack.c.l.b16 %v2215
        %v2344 = vunpack.c.l.b16 %v2216
        %v2345 = vunpack.c.l.b16 %v2217
        %v2346 = vunpack.c.l.b16 %v2218
        %v2347 = vunpack.c.l.b16 %v2219
        %v2348 = vunpack.c.l.b16 %v2220
        %v2349 = vunpack.c.l.b16 %v2221
        %v2350 = vunpack.c.l.b16 %v2222
        %v2351 = vunpack.c.l.b16 %v2223
        %v2352 = vunpack.c.l.b16 %v2224
        %v2353 = vunpack.c.l.b16 %v2225
        %v2354 = vunpack.c.l.b16 %v2226
        %v2355 = vunpack.c.l.b16 %v2227
        %v2356 = vunpack.c.l.b16 %v2228
        %v2357 = vunpack.c.l.b16 %v2229
        %v2358 = vunpack.c.l.b16 %v2230
        %v2359 = vpack.c.b16 %v2336, %v2335
        %v2360 = vpack.c.b16 %v2338, %v2337
        %v2361 = vpack.c.b16 %v2340, %v2339
        %v2362 = vpack.c.b16 %v2342, %v2341
        %v2363 = vpack.c.b16 %v2344, %v2343
        %v2364 = vpack.c.b16 %v2346, %v2345
        %v2365 = vpack.c.b16 %v2348, %v2347
        %v2366 = vpack.c.b16 %v2350, %v2349
        %v2367 = vpack.c.b16 %v2352, %v2351
        %v2368 = vpack.c.b16 %v2354, %v2353
        %v2369 = vpack.c.b16 %v2356, %v2355
        %v2370 = vpack.c.b16 %v2358, %v2357
        %v2384 = vsel %vm995, %v2289, 0
        %v2387 = vsel %vm995, %v2307, 0
        %v2390 = vsel %vm995, %v2306, 0
        %2392 = vmatprep.subr.bf16.mxu0 0
        %2393 = vmatpush1.bf16.msra.mxu0 %v2366
        %2394 = vmatprep.subr.bf16.mxu0 0
        %2395 = vmatpush1.bf16.msra.mxu0 %v2365
        %2396 = vmatprep.subr.bf16.mxu0 0
        %2397 = vmatpush1.bf16.msra.mxu0 %v2364
        %2398 = vmatprep.subr.bf16.mxu0 0
        %2399 = vmatpush1.bf16.msra.mxu0 %v2363
        %2400 = vmatprep.subr.bf16.mxu0 0
        %2401 = vmatpush1.bf16.msra.mxu0 %v2362
        %2402 = vmatprep.subr.bf16.mxu0 0
        %2403 = vmatpush1.bf16.msra.mxu0 %v2361
        %2404 = vmatprep.subr.bf16.mxu0 0
        %2405 = vmatpush1.bf16.msra.mxu0 %v2360
        %2406 = vmatprep.subr.bf16.mxu0 0
        %2407 = vmatpush1.bf16.msra.mxu0 %v2359
        %2408 = vmatprep.subr.bf16.mxu0 0
        %2409 = vmatpush2.bf16.msra.mxu0 0
        %2410 = vmatprep.subr.bf16.mxu0 0
        %2411 = vmatpush2.bf16.msra.mxu0 0
        %2412 = vmatprep.subr.bf16.mxu0 0
        %2413 = vmatpush2.bf16.msra.mxu0 0
        %2414 = vmatprep.subr.bf16.mxu0 0
        %2415 = vmatpush2.bf16.msra.mxu0 0
        %2416 = vmatprep.subr.bf16.mxu0 0
        %2417 = vmatpush2.bf16.msra.mxu0 %v2370
        %2418 = vmatprep.subr.bf16.mxu0 0
        %2419 = vmatpush2.bf16.msra.mxu0 %v2369
        %2420 = vmatprep.subr.bf16.mxu0 0
        %2421 = vmatpush2.bf16.msra.mxu0 %v2368
        %2422 = vmatprep.subr.bf16.mxu0 0
        %2423 = vmatpush2.bf16.msra.mxu0 %v2367
        %2424 = vmatprep.mubr.bf16.mxu0 %v2384
        %2425 = vmatmul.mubr.bf16.gmra.mxu0 %v2272
        %v2426 = vpop.f32.mrf.mxu0
        %v2427 = vadd.f32 0.0, %v2426
        %v2428 = vpop.f32.mrf.mxu0
        %v2429 = vpop.f32.mrf.mxu0
        %v2430 = vadd.f32 0.0, %v2429
        %v2431 = vpop.f32.mrf.mxu0
        %2432 = vmatprep.mubr.bf16.mxu0 %v2387
        %2433 = vmatmul.mubr.bf16.gmra.mxu0 %v2298
        %v2434 = vpop.f32.mrf.mxu0
        %v2435 = vadd.f32 0.0, %v2434
        %v2436 = vpop.f32.mrf.mxu0
        %v2437 = vpop.f32.mrf.mxu0
        %v2438 = vadd.f32 0.0, %v2437
        %v2439 = vpop.f32.mrf.mxu0
        %2440 = vmatprep.mubr.bf16.mxu0 %v2390
        %2441 = vmatmul.mubr.bf16.gmra.mxu0 %v2297
        %v2442 = vpop.f32.mrf.mxu0
        %v2443 = vadd.f32 0.0, %v2442
        %v2444 = vpop.f32.mrf.mxu0
        %v2445 = vpop.f32.mrf.mxu0
        %v2446 = vpop.f32.mrf.mxu0
        %2447 = vdwg.mxu0
        %v2448 = vadd.f32 %v2195, %v2427
        %v2449 = vadd.f32 %v2196, %v2430
        %v2450 = vadd.f32 %v2197, %v2435
        %v2451 = vadd.f32 %v2198, %v2438
        %v2452 = vadd.f32 %v2199, %v2443
        %v2453 = vld [vmem:[%s762 + $0x8] sm:$0x88]
        %s2454 = scalar_lea.vmem %s6, 768
        %v2455 = vld [vmem:[%s2454] sm:$0xf]
        %v2456 = vld [vmem:[%s2454 + $0x4] sm:$0xf]
        %v2457 = vld [vmem:[%s2454 + $0x8] sm:$0xf]
        %v2458 = vld [vmem:[%s2454 + $0xc] sm:$0xf]
        %v2459 = vld [vmem:[%s2454 + $0x10] sm:$0xf]
        %v2460 = vld [vmem:[%s2454 + $0x14] sm:$0xf]
        %v2461 = vld [vmem:[%s2454 + $0x18] sm:$0xf]
        %v2462 = vld [vmem:[%s2454 + $0x1c] sm:$0xf]
        %v2463 = vld [vmem:[%s2454 + $0x20] sm:$0xf]
        %v2464 = vld [vmem:[%s2454 + $0x24] sm:$0xf]
        %v2465 = vld [vmem:[%s2454 + $0x28] sm:$0xf]
        %v2466 = vld [vmem:[%s2454 + $0x2c] sm:$0xf]
        %v2467 = vld [vmem:[%s2454 + $0x30] sm:$0xf]
        %v2468 = vld [vmem:[%s2454 + $0x34] sm:$0xf]
        %v2469 = vld [vmem:[%s2454 + $0x38] sm:$0xf]
        %v2470 = vld [vmem:[%s2454 + $0x3c] sm:$0xf]
        %v2471 = vld [vmem:[%s2454 + $0x40] sm:$0xf]
        %v2472 = vld [vmem:[%s2454 + $0x44] sm:$0xf]
        %v2473 = vld [vmem:[%s2454 + $0x48] sm:$0xf]
        %v2474 = vld [vmem:[%s2454 + $0x4c] sm:$0xf]
        %v2475 = vld [vmem:[%s2454 + $0x50] sm:$0xf]
        %v2476 = vld [vmem:[%s2454 + $0x54] sm:$0xf]
        %v2477 = vld [vmem:[%s2454 + $0x58] sm:$0xf]
        %v2478 = vld [vmem:[%s2454 + $0x5c] sm:$0xf]
        %v2480 = vunpack.c.l.b16 %v2453
        %v2481 = vunpack.c.h.b16 %v2453
        %v2482 = vpack.c.b16 %v2239, %v2480
        %v2483 = vpack.c.b16 %v2240, %v2481
        %v2484 = vrot.slane %v2482, 3
        %v2485 = vrot.slane %v2251, 3
        %v2486 = vsel %vm1446, %v2484, %v2485
        %v2487 = vrot.slane %v2483, 3
        %v2488 = vrot.slane %v2252, 3
        %v2489 = vsel %vm1446, %v2487, %v2488
        %v2490 = vrot.slane %v2253, 3
        %v2491 = vsel %vm1446, %v2485, %v2490
        %v2492 = vrot.slane %v2254, 3
        %v2493 = vsel %vm1446, %v2488, %v2492
        %v2521 = vunpack.c.l.b16 %v2455
        %v2522 = vunpack.c.l.b16 %v2456
        %v2523 = vunpack.c.l.b16 %v2457
        %v2524 = vunpack.c.l.b16 %v2458
        %v2525 = vunpack.c.l.b16 %v2459
        %v2526 = vunpack.c.l.b16 %v2460
        %v2527 = vunpack.c.l.b16 %v2461
        %v2528 = vunpack.c.l.b16 %v2462
        %v2529 = vunpack.c.l.b16 %v2463
        %v2530 = vunpack.c.l.b16 %v2464
        %v2531 = vunpack.c.l.b16 %v2465
        %v2532 = vunpack.c.l.b16 %v2466
        %v2533 = vunpack.c.l.b16 %v2467
        %v2534 = vunpack.c.l.b16 %v2468
        %v2535 = vunpack.c.l.b16 %v2469
        %v2536 = vunpack.c.l.b16 %v2470
        %v2537 = vunpack.c.l.b16 %v2471
        %v2538 = vunpack.c.l.b16 %v2472
        %v2539 = vunpack.c.l.b16 %v2473
        %v2540 = vunpack.c.l.b16 %v2474
        %v2541 = vunpack.c.l.b16 %v2475
        %v2542 = vunpack.c.l.b16 %v2476
        %v2543 = vunpack.c.l.b16 %v2477
        %v2544 = vunpack.c.l.b16 %v2478
        %v2545 = vpack.c.b16 %v2522, %v2521
        %v2546 = vpack.c.b16 %v2524, %v2523
        %v2547 = vpack.c.b16 %v2526, %v2525
        %v2548 = vpack.c.b16 %v2528, %v2527
        %v2549 = vpack.c.b16 %v2530, %v2529
        %v2550 = vpack.c.b16 %v2532, %v2531
        %v2551 = vpack.c.b16 %v2534, %v2533
        %v2552 = vpack.c.b16 %v2536, %v2535
        %v2553 = vpack.c.b16 %v2538, %v2537
        %v2554 = vpack.c.b16 %v2540, %v2539
        %v2555 = vpack.c.b16 %v2542, %v2541
        %v2556 = vpack.c.b16 %v2544, %v2543
        %v2570 = vsel %vm995, %v2489, 0
        %v2573 = vsel %vm995, %v2493, 0
        %v2576 = vsel %vm995, %v2492, 0
        %2578 = vmatprep.subr.bf16.mxu0 0
        %2579 = vmatpush1.bf16.msra.mxu0 %v2552
        %2580 = vmatprep.subr.bf16.mxu0 0
        %2581 = vmatpush1.bf16.msra.mxu0 %v2551
        %2582 = vmatprep.subr.bf16.mxu0 0
        %2583 = vmatpush1.bf16.msra.mxu0 %v2550
        %2584 = vmatprep.subr.bf16.mxu0 0
        %2585 = vmatpush1.bf16.msra.mxu0 %v2549
        %2586 = vmatprep.subr.bf16.mxu0 0
        %2587 = vmatpush1.bf16.msra.mxu0 %v2548
        %2588 = vmatprep.subr.bf16.mxu0 0
        %2589 = vmatpush1.bf16.msra.mxu0 %v2547
        %2590 = vmatprep.subr.bf16.mxu0 0
        %2591 = vmatpush1.bf16.msra.mxu0 %v2546
        %2592 = vmatprep.subr.bf16.mxu0 0
        %2593 = vmatpush1.bf16.msra.mxu0 %v2545
        %2594 = vmatprep.subr.bf16.mxu0 0
        %2595 = vmatpush2.bf16.msra.mxu0 0
        %2596 = vmatprep.subr.bf16.mxu0 0
        %2597 = vmatpush2.bf16.msra.mxu0 0
        %2598 = vmatprep.subr.bf16.mxu0 0
        %2599 = vmatpush2.bf16.msra.mxu0 0
        %2600 = vmatprep.subr.bf16.mxu0 0
        %2601 = vmatpush2.bf16.msra.mxu0 0
        %2602 = vmatprep.subr.bf16.mxu0 0
        %2603 = vmatpush2.bf16.msra.mxu0 %v2556
        %2604 = vmatprep.subr.bf16.mxu0 0
        %2605 = vmatpush2.bf16.msra.mxu0 %v2555
        %2606 = vmatprep.subr.bf16.mxu0 0
        %2607 = vmatpush2.bf16.msra.mxu0 %v2554
        %2608 = vmatprep.subr.bf16.mxu0 0
        %2609 = vmatpush2.bf16.msra.mxu0 %v2553
        %2610 = vmatprep.mubr.bf16.mxu0 %v2570
        %2611 = vmatmul.mubr.bf16.gmra.mxu0 %v2486
        %v2612 = vpop.f32.mrf.mxu0
        %v2613 = vadd.f32 0.0, %v2612
        %v2614 = vpop.f32.mrf.mxu0
        %v2615 = vpop.f32.mrf.mxu0
        %v2616 = vadd.f32 0.0, %v2615
        %v2617 = vpop.f32.mrf.mxu0
        %2618 = vmatprep.mubr.bf16.mxu0 %v2573
        %2619 = vmatmul.mubr.bf16.gmra.mxu0 %v2491
        %v2620 = vpop.f32.mrf.mxu0
        %v2621 = vadd.f32 0.0, %v2620
        %v2622 = vpop.f32.mrf.mxu0
        %v2623 = vpop.f32.mrf.mxu0
        %v2624 = vadd.f32 0.0, %v2623
        %v2625 = vpop.f32.mrf.mxu0
        %2626 = vmatprep.mubr.bf16.mxu0 %v2576
        %2627 = vmatmul.mubr.bf16.gmra.mxu0 %v2490
        %v2628 = vpop.f32.mrf.mxu0
        %v2629 = vadd.f32 0.0, %v2628
        %v2630 = vpop.f32.mrf.mxu0
        %v2631 = vpop.f32.mrf.mxu0
        %v2632 = vpop.f32.mrf.mxu0
        %2633 = vdwg.mxu0
        %v2634 = vadd.f32 %v2448, %v2613
        %v2635 = vadd.f32 %v2449, %v2616
        %v2636 = vadd.f32 %v2450, %v2621
        %v2637 = vadd.f32 %v2451, %v2624
        %v2638 = vadd.f32 %v2452, %v2629
        %v2639 = vld [vmem:[%s7] sm:$0x1]
        %v2641 = vlaneseq
        %v2642 = vshrl.u32 %v2641, 7
        %v2643 = vsub.s32 0, %v2642
        %v2644 = vrot.slane %v2639, %v2643
        %v2646 = vadd.f32 %v2634, %v2644
        %v2647 = vadd.f32 %v2635, %v2644
        %v2648 = vadd.f32 %v2636, %v2644
        %v2649 = vadd.f32 %v2637, %v2644
        %v2650 = vadd.f32 %v2638, %v2644
        %v2651 = vmax.f32 %v2646, 0.0
        %v2652 = vmax.f32 %v2647, 0.0
        %v2653 = vmax.f32 %v2648, 0.0
        %v2654 = vmax.f32 %v2649, 0.0
        %v2655 = vmax.f32 %v2650, 0.0
        %2657 = vset.pattern.permute.xlu0 0
        %2658 = vperm.xlu0 %2657, %v772
        %v2659 = vpop.permute.xlu0 %2658
        %2662 = vset.pattern.permute.xlu0 0
        %2663 = vperm.xlu0 %2662, %v773
        %v2664 = vpop.permute.xlu0 %2663
        %2667 = vset.pattern.permute.xlu0 0
        %2668 = vperm.xlu0 %2667, %v774
        %v2669 = vpop.permute.xlu0 %2668
        %2672 = vset.pattern.permute.xlu0 0
        %2673 = vperm.xlu0 %2672, %v775
        %v2674 = vpop.permute.xlu0 %2673
        %2677 = vset.pattern.permute.xlu0 0
        %2678 = vperm.xlu0 %2677, %v776
        %v2679 = vpop.permute.xlu0 %2678
        %v2681 = vmul.f32 %v2651, %v2659
        %v2682 = vmul.f32 %v2652, %v2664
        %v2683 = vmul.f32 %v2653, %v2669
        %v2684 = vmul.f32 %v2654, %v2674
        %v2685 = vmul.f32 %v2655, %v2679
        %2686 = vst [vmem:[#allocation2] sm:$0xf] 0
        %2687 = vst [vmem:[#allocation2 + $0x4] sm:$0xf] 0
        %2688 = vst [vmem:[#allocation2 + $0x8] sm:$0xf] 0
        %2689 = vst [vmem:[#allocation2 + $0xc] sm:$0xf] 0
        %2690 = vst [vmem:[#allocation2 + $0x10] sm:$0xf] 0
        %2691 = vst [vmem:[#allocation2 + $0x14] sm:$0xf] 0
        %2692 = vst [vmem:[#allocation2 + $0x18] sm:$0x1] 0
        %v2693 = vpack.c.bf16 %v2682, %v2681
        %v2694 = vpack.c.bf16 %v2684, %v2683
        %v2695 = vpack.c.bf16 %v2685, %v2685
        %v2699 = vunpack.c.l.b16 %v2693
        %v2700 = vunpack.c.h.b16 %v2693
        %v2701 = vunpack.c.l.b16 %v2694
        %v2702 = vunpack.c.h.b16 %v2694
        %v2703 = vunpack.c.l.b16 %v2695
        %v2704 = vpack.c.b16 %v2699, %v2699
        %v2705 = vpack.c.b16 %v2700, %v2700
        %v2706 = vpack.c.b16 %v2701, %v2701
        %v2707 = vpack.c.b16 %v2702, %v2702
        %v2708 = vpack.c.b16 %v2703, %v2703
        %vm2709 = vsmask.f32 3328
        %vm2710 = vsmask.f32 7440
        %vm2711 = vmor %vm2709, %vm2710
        %v2713 = vshll.u32 %v2704, 16
        %v2715 = vrot.slane %v2713, 5
        %v2716 = vshrl.u32 %v2704, 16
        %v2718 = vrot.slane %v2716, 4
        %v2719 = vor.u32 %v2718, %v2715
        %v2720 = vrot.slane %v2719, 4
        %v2722 = vshll.u32 %v2705, 16
        %v2724 = vrot.slane %v2722, 5
        %v2725 = vsel %vm2711, %v2720, %v2724
        %v2726 = vshrl.u32 %v2705, 16
        %v2728 = vrot.slane %v2726, 4
        %v2729 = vor.u32 %v2728, %v2724
        %v2730 = vrot.slane %v2729, 4
        %v2732 = vshll.u32 %v2706, 16
        %v2734 = vrot.slane %v2732, 5
        %v2735 = vsel %vm2711, %v2730, %v2734
        %v2736 = vshrl.u32 %v2706, 16
        %v2738 = vrot.slane %v2736, 4
        %v2739 = vor.u32 %v2738, %v2734
        %v2740 = vrot.slane %v2739, 4
        %v2742 = vshll.u32 %v2707, 16
        %v2744 = vrot.slane %v2742, 5
        %v2745 = vsel %vm2711, %v2740, %v2744
        %v2746 = vshrl.u32 %v2707, 16
        %v2748 = vrot.slane %v2746, 4
        %v2749 = vor.u32 %v2748, %v2744
        %v2750 = vrot.slane %v2749, 4
        %v2752 = vshll.u32 %v2708, 16
        %v2754 = vrot.slane %v2752, 5
        %v2755 = vsel %vm2711, %v2750, %v2754
        %v2756 = vshrl.u32 %v2708, 16
        %v2758 = vrot.slane %v2756, 4
        %v2759 = vor.u32 %v2758, %v2754
        %v2760 = vrot.slane %v2759, 4
        %vm2767 = vcmask 1043459
        %vm2768 = vsmask.f32 7950
        %vm2769 = vmand %vm2767, %vm2768
        %v2770 = vld [vmem:[#allocation2] sm:$0x8]
        %v2771 = vsel %vm2769, %v2715, %v2770
        %2772 = vst [vmem:[#allocation2] sm:$0x8] %v2771
        %2773 = vst [vmem:[#allocation2 + $0x4] sm:$0xf] %v2725
        %2774 = vst [vmem:[#allocation2 + $0x8] sm:$0xf] %v2735
        %2775 = vst [vmem:[#allocation2 + $0xc] sm:$0xf] %v2745
        %2776 = vst [vmem:[#allocation2 + $0x10] sm:$0xf] %v2755
        %vm2777 = vcmask 1041408
        %vm2778 = vsmask.f32 1280
        %vm2779 = vmand %vm2777, %vm2778
        %v2780 = vld [vmem:[#allocation2 + $0x14] sm:$0x3]
        %v2781 = vsel %vm2779, %v2760, %v2780
        %2782 = vst [vmem:[#allocation2 + $0x14] sm:$0x3] %v2781
        %v2783 = vld [vmem:[#allocation2] sm:$0xf]
        %v2784 = vld [vmem:[#allocation2 + $0x4] sm:$0xf]
        %v2785 = vld [vmem:[#allocation2 + $0x8] sm:$0xf]
        %v2786 = vld [vmem:[#allocation2 + $0xc] sm:$0xf]
        %v2787 = vld [vmem:[#allocation2 + $0x10] sm:$0x3]
        %v2788 = vld [vmem:[%s8] sm:$0xf]
        %v2789 = vld [vmem:[%s8 + $0x4] sm:$0xf]
        %v2790 = vld [vmem:[%s8 + $0x8] sm:$0xf]
        %v2791 = vld [vmem:[%s8 + $0xc] sm:$0xf]
        %v2792 = vld [vmem:[%s8 + $0x10] sm:$0xf]
        %v2793 = vld [vmem:[%s8 + $0x14] sm:$0xf]
        %v2794 = vld [vmem:[%s8 + $0x18] sm:$0xf]
        %v2795 = vld [vmem:[%s8 + $0x1c] sm:$0xf]
        %v2796 = vld [vmem:[%s8 + $0x20] sm:$0xf]
        %v2797 = vld [vmem:[%s8 + $0x24] sm:$0xf]
        %v2798 = vld [vmem:[%s8 + $0x28] sm:$0xf]
        %v2799 = vld [vmem:[%s8 + $0x2c] sm:$0xf]
        %v2800 = vld [vmem:[%s8 + $0x30] sm:$0xf]
        %v2801 = vld [vmem:[%s8 + $0x34] sm:$0xf]
        %v2802 = vld [vmem:[%s8 + $0x38] sm:$0xf]
        %v2803 = vld [vmem:[%s8 + $0x3c] sm:$0xf]
        %v2804 = vld [vmem:[#allocation2 + $0x10] sm:$0x7]
        %s2805 = scalar_lea.vmem %s8, 64
        %v2806 = vld [vmem:[%s2805] sm:$0xf]
        %v2807 = vld [vmem:[%s2805 + $0x4] sm:$0xf]
        %v2808 = vld [vmem:[%s2805 + $0x8] sm:$0xf]
        %v2809 = vld [vmem:[%s2805 + $0xc] sm:$0xf]
        %v2810 = vld [vmem:[%s2805 + $0x10] sm:$0xf]
        %v2811 = vld [vmem:[%s2805 + $0x14] sm:$0xf]
        %v2812 = vld [vmem:[%s2805 + $0x18] sm:$0xf]
        %v2813 = vld [vmem:[%s2805 + $0x1c] sm:$0xf]
        %v2814 = vld [vmem:[%s2805 + $0x20] sm:$0xf]
        %v2815 = vld [vmem:[%s2805 + $0x24] sm:$0xf]
        %v2816 = vld [vmem:[%s2805 + $0x28] sm:$0xf]
        %v2817 = vld [vmem:[%s2805 + $0x2c] sm:$0xf]
        %v2818 = vld [vmem:[%s2805 + $0x30] sm:$0xf]
        %v2819 = vld [vmem:[%s2805 + $0x34] sm:$0xf]
        %v2820 = vld [vmem:[%s2805 + $0x38] sm:$0xf]
        %v2821 = vld [vmem:[%s2805 + $0x3c] sm:$0xf]
        %v2827 = vunpack.c.l.b16 %v2783
        %v2828 = vunpack.c.l.b16 %v2784
        %v2829 = vunpack.c.l.b16 %v2785
        %v2830 = vunpack.c.l.b16 %v2786
        %v2831 = vunpack.c.l.b16 %v2804
        %v2832 = vpack.c.b16 %v2828, %v2827
        %v2833 = vpack.c.b16 %v2830, %v2829
        %v2834 = vpack.c.b16 %v2831, %v2831
        %v2836 = vshrl.u32 %v2832, 16
        %v2838 = vshll.u32 %v2832, 16
        %v2840 = vrot.slane %v2838, 1
        %v2841 = vor.u32 %v2836, %v2840
        %v2843 = vshll.u32 %v2833, 16
        %v2845 = vrot.slane %v2843, 1
        %v2846 = vsel %vm873, %v2841, %v2845
        %v2847 = vshrl.u32 %v2833, 16
        %v2849 = vor.u32 %v2847, %v2845
        %v2851 = vshll.u32 %v2834, 16
        %v2853 = vrot.slane %v2851, 1
        %v2854 = vsel %vm873, %v2849, %v2853
        %v2855 = vshrl.u32 %v2834, 16
        %v2857 = vor.u32 %v2855, %v2853
        %v2877 = vunpack.c.l.b16 %v2806
        %v2878 = vunpack.c.l.b16 %v2807
        %v2879 = vunpack.c.l.b16 %v2808
        %v2880 = vunpack.c.l.b16 %v2809
        %v2881 = vunpack.c.l.b16 %v2810
        %v2882 = vunpack.c.l.b16 %v2811
        %v2883 = vunpack.c.l.b16 %v2812
        %v2884 = vunpack.c.l.b16 %v2813
        %v2885 = vunpack.c.l.b16 %v2814
        %v2886 = vunpack.c.l.b16 %v2815
        %v2887 = vunpack.c.l.b16 %v2816
        %v2888 = vunpack.c.l.b16 %v2817
        %v2889 = vunpack.c.l.b16 %v2818
        %v2890 = vunpack.c.l.b16 %v2819
        %v2891 = vunpack.c.l.b16 %v2820
        %v2892 = vunpack.c.l.b16 %v2821
        %v2893 = vpack.c.b16 %v2878, %v2877
        %v2894 = vpack.c.b16 %v2880, %v2879
        %v2895 = vpack.c.b16 %v2882, %v2881
        %v2896 = vpack.c.b16 %v2884, %v2883
        %v2897 = vpack.c.b16 %v2886, %v2885
        %v2898 = vpack.c.b16 %v2888, %v2887
        %v2899 = vpack.c.b16 %v2890, %v2889
        %v2900 = vpack.c.b16 %v2892, %v2891
        %2909 = vmatprep.subr.bf16.mxu0 0
        %2910 = vmatpush1.bf16.msra.mxu0 %v2900
        %2911 = vmatprep.subr.bf16.mxu0 0
        %2912 = vmatpush1.bf16.msra.mxu0 %v2899
        %2913 = vmatprep.subr.bf16.mxu0 0
        %2914 = vmatpush1.bf16.msra.mxu0 %v2898
        %2915 = vmatprep.subr.bf16.mxu0 0
        %2916 = vmatpush1.bf16.msra.mxu0 %v2897
        %2917 = vmatprep.subr.bf16.mxu0 0
        %2918 = vmatpush1.bf16.msra.mxu0 %v2896
        %2919 = vmatprep.subr.bf16.mxu0 0
        %2920 = vmatpush1.bf16.msra.mxu0 %v2895
        %2921 = vmatprep.subr.bf16.mxu0 0
        %2922 = vmatpush1.bf16.msra.mxu0 %v2894
        %2923 = vmatprep.subr.bf16.mxu0 0
        %2924 = vmatpush1.bf16.msra.mxu0 %v2893
        %2925 = vmatprep.subr.bf16.mxu0 0
        %2926 = vmatpush2.bf16.msra.mxu0 0
        %2927 = vmatprep.subr.bf16.mxu0 0
        %2928 = vmatpush2.bf16.msra.mxu0 0
        %2929 = vmatprep.subr.bf16.mxu0 0
        %2930 = vmatpush2.bf16.msra.mxu0 0
        %2931 = vmatprep.subr.bf16.mxu0 0
        %2932 = vmatpush2.bf16.msra.mxu0 0
        %2933 = vmatprep.subr.bf16.mxu0 0
        %2934 = vmatpush2.bf16.msra.mxu0 0
        %2935 = vmatprep.subr.bf16.mxu0 0
        %2936 = vmatpush2.bf16.msra.mxu0 0
        %2937 = vmatprep.subr.bf16.mxu0 0
        %2938 = vmatpush2.bf16.msra.mxu0 0
        %2939 = vmatprep.subr.bf16.mxu0 0
        %2940 = vmatpush2.bf16.msra.mxu0 0
        %2941 = vmatprep.mubr.bf16.mxu0 0
        %2942 = vmatmul.mubr.bf16.gmra.mxu0 %v2846
        %v2943 = vpop.f32.mrf.mxu0
        %v2944 = vadd.f32 0.0, %v2943
        %v2945 = vpop.f32.mrf.mxu0
        %v2946 = vpop.f32.mrf.mxu0
        %v2947 = vadd.f32 0.0, %v2946
        %v2948 = vpop.f32.mrf.mxu0
        %2949 = vmatprep.mubr.bf16.mxu0 0
        %2950 = vmatmul.mubr.bf16.gmra.mxu0 %v2854
        %v2951 = vpop.f32.mrf.mxu0
        %v2952 = vadd.f32 0.0, %v2951
        %v2953 = vpop.f32.mrf.mxu0
        %v2954 = vpop.f32.mrf.mxu0
        %v2955 = vadd.f32 0.0, %v2954
        %v2956 = vpop.f32.mrf.mxu0
        %2957 = vmatprep.mubr.bf16.mxu0 0
        %2958 = vmatmul.mubr.bf16.gmra.mxu0 %v2857
        %v2959 = vpop.f32.mrf.mxu0
        %v2960 = vadd.f32 0.0, %v2959
        %v2961 = vpop.f32.mrf.mxu0
        %v2962 = vpop.f32.mrf.mxu0
        %v2963 = vpop.f32.mrf.mxu0
        %2964 = vdwg.mxu0
        %v2966 = vunpack.c.l.b16 %v2787
        %v2967 = vpack.c.b16 %v2966, %v2966
        %v2987 = vunpack.c.l.b16 %v2788
        %v2988 = vunpack.c.l.b16 %v2789
        %v2989 = vunpack.c.l.b16 %v2790
        %v2990 = vunpack.c.l.b16 %v2791
        %v2991 = vunpack.c.l.b16 %v2792
        %v2992 = vunpack.c.l.b16 %v2793
        %v2993 = vunpack.c.l.b16 %v2794
        %v2994 = vunpack.c.l.b16 %v2795
        %v2995 = vunpack.c.l.b16 %v2796
        %v2996 = vunpack.c.l.b16 %v2797
        %v2997 = vunpack.c.l.b16 %v2798
        %v2998 = vunpack.c.l.b16 %v2799
        %v2999 = vunpack.c.l.b16 %v2800
        %v3000 = vunpack.c.l.b16 %v2801
        %v3001 = vunpack.c.l.b16 %v2802
        %v3002 = vunpack.c.l.b16 %v2803
        %v3003 = vpack.c.b16 %v2988, %v2987
        %v3004 = vpack.c.b16 %v2990, %v2989
        %v3005 = vpack.c.b16 %v2992, %v2991
        %v3006 = vpack.c.b16 %v2994, %v2993
        %v3007 = vpack.c.b16 %v2996, %v2995
        %v3008 = vpack.c.b16 %v2998, %v2997
        %v3009 = vpack.c.b16 %v3000, %v2999
        %v3010 = vpack.c.b16 %v3002, %v3001
        %3019 = vmatprep.subr.bf16.mxu0 0
        %3020 = vmatpush1.bf16.msra.mxu0 %v3010
        %3021 = vmatprep.subr.bf16.mxu0 0
        %3022 = vmatpush1.bf16.msra.mxu0 %v3009
        %3023 = vmatprep.subr.bf16.mxu0 0
        %3024 = vmatpush1.bf16.msra.mxu0 %v3008
        %3025 = vmatprep.subr.bf16.mxu0 0
        %3026 = vmatpush1.bf16.msra.mxu0 %v3007
        %3027 = vmatprep.subr.bf16.mxu0 0
        %3028 = vmatpush1.bf16.msra.mxu0 %v3006
        %3029 = vmatprep.subr.bf16.mxu0 0
        %3030 = vmatpush1.bf16.msra.mxu0 %v3005
        %3031 = vmatprep.subr.bf16.mxu0 0
        %3032 = vmatpush1.bf16.msra.mxu0 %v3004
        %3033 = vmatprep.subr.bf16.mxu0 0
        %3034 = vmatpush1.bf16.msra.mxu0 %v3003
        %3035 = vmatprep.subr.bf16.mxu0 0
        %3036 = vmatpush2.bf16.msra.mxu0 0
        %3037 = vmatprep.subr.bf16.mxu0 0
        %3038 = vmatpush2.bf16.msra.mxu0 0
        %3039 = vmatprep.subr.bf16.mxu0 0
        %3040 = vmatpush2.bf16.msra.mxu0 0
        %3041 = vmatprep.subr.bf16.mxu0 0
        %3042 = vmatpush2.bf16.msra.mxu0 0
        %3043 = vmatprep.subr.bf16.mxu0 0
        %3044 = vmatpush2.bf16.msra.mxu0 0
        %3045 = vmatprep.subr.bf16.mxu0 0
        %3046 = vmatpush2.bf16.msra.mxu0 0
        %3047 = vmatprep.subr.bf16.mxu0 0
        %3048 = vmatpush2.bf16.msra.mxu0 0
        %3049 = vmatprep.subr.bf16.mxu0 0
        %3050 = vmatpush2.bf16.msra.mxu0 0
        %3051 = vmatprep.mubr.bf16.mxu0 0
        %3052 = vmatmul.mubr.bf16.gmra.mxu0 %v2832
        %v3053 = vpop.f32.mrf.mxu0
        %v3054 = vadd.f32 %v2944, %v3053
        %v3055 = vpop.f32.mrf.mxu0
        %v3056 = vpop.f32.mrf.mxu0
        %v3057 = vadd.f32 %v2947, %v3056
        %v3058 = vpop.f32.mrf.mxu0
        %3059 = vmatprep.mubr.bf16.mxu0 0
        %3060 = vmatmul.mubr.bf16.gmra.mxu0 %v2833
        %v3061 = vpop.f32.mrf.mxu0
        %v3062 = vadd.f32 %v2952, %v3061
        %v3063 = vpop.f32.mrf.mxu0
        %v3064 = vpop.f32.mrf.mxu0
        %v3065 = vadd.f32 %v2955, %v3064
        %v3066 = vpop.f32.mrf.mxu0
        %3067 = vmatprep.mubr.bf16.mxu0 0
        %3068 = vmatmul.mubr.bf16.gmra.mxu0 %v2967
        %v3069 = vpop.f32.mrf.mxu0
        %v3070 = vadd.f32 %v2960, %v3069
        %v3071 = vpop.f32.mrf.mxu0
        %v3072 = vpop.f32.mrf.mxu0
        %v3073 = vpop.f32.mrf.mxu0
        %3074 = vdwg.mxu0
        %v3075 = vld [vmem:[#allocation2] sm:$0xe]
        %s3076 = scalar_lea.vmem %s8, 128
        %v3077 = vld [vmem:[%s3076] sm:$0xf]
        %v3078 = vld [vmem:[%s3076 + $0x4] sm:$0xf]
        %v3079 = vld [vmem:[%s3076 + $0x8] sm:$0xf]
        %v3080 = vld [vmem:[%s3076 + $0xc] sm:$0xf]
        %v3081 = vld [vmem:[%s3076 + $0x10] sm:$0xf]
        %v3082 = vld [vmem:[%s3076 + $0x14] sm:$0xf]
        %v3083 = vld [vmem:[%s3076 + $0x18] sm:$0xf]
        %v3084 = vld [vmem:[%s3076 + $0x1c] sm:$0xf]
        %v3085 = vld [vmem:[%s3076 + $0x20] sm:$0xf]
        %v3086 = vld [vmem:[%s3076 + $0x24] sm:$0xf]
        %v3087 = vld [vmem:[%s3076 + $0x28] sm:$0xf]
        %v3088 = vld [vmem:[%s3076 + $0x2c] sm:$0xf]
        %v3089 = vld [vmem:[%s3076 + $0x30] sm:$0xf]
        %v3090 = vld [vmem:[%s3076 + $0x34] sm:$0xf]
        %v3091 = vld [vmem:[%s3076 + $0x38] sm:$0xf]
        %v3092 = vld [vmem:[%s3076 + $0x3c] sm:$0xf]
        %v3094 = vunpack.c.l.b16 %v3075
        %v3095 = vpack.c.b16 %v2828, %v3094
        %v3096 = vrot.slane %v3095, 1
        %v3097 = vrot.slane %v2833, 1
        %v3098 = vsel %vm1235, %v3096, %v3097
        %v3099 = vrot.slane %v2834, 1
        %v3100 = vsel %vm1235, %v3097, %v3099
        %v3120 = vunpack.c.l.b16 %v3077
        %v3121 = vunpack.c.l.b16 %v3078
        %v3122 = vunpack.c.l.b16 %v3079
        %v3123 = vunpack.c.l.b16 %v3080
        %v3124 = vunpack.c.l.b16 %v3081
        %v3125 = vunpack.c.l.b16 %v3082
        %v3126 = vunpack.c.l.b16 %v3083
        %v3127 = vunpack.c.l.b16 %v3084
        %v3128 = vunpack.c.l.b16 %v3085
        %v3129 = vunpack.c.l.b16 %v3086
        %v3130 = vunpack.c.l.b16 %v3087
        %v3131 = vunpack.c.l.b16 %v3088
        %v3132 = vunpack.c.l.b16 %v3089
        %v3133 = vunpack.c.l.b16 %v3090
        %v3134 = vunpack.c.l.b16 %v3091
        %v3135 = vunpack.c.l.b16 %v3092
        %v3136 = vpack.c.b16 %v3121, %v3120
        %v3137 = vpack.c.b16 %v3123, %v3122
        %v3138 = vpack.c.b16 %v3125, %v3124
        %v3139 = vpack.c.b16 %v3127, %v3126
        %v3140 = vpack.c.b16 %v3129, %v3128
        %v3141 = vpack.c.b16 %v3131, %v3130
        %v3142 = vpack.c.b16 %v3133, %v3132
        %v3143 = vpack.c.b16 %v3135, %v3134
        %3152 = vmatprep.subr.bf16.mxu0 0
        %3153 = vmatpush1.bf16.msra.mxu0 %v3143
        %3154 = vmatprep.subr.bf16.mxu0 0
        %3155 = vmatpush1.bf16.msra.mxu0 %v3142
        %3156 = vmatprep.subr.bf16.mxu0 0
        %3157 = vmatpush1.bf16.msra.mxu0 %v3141
        %3158 = vmatprep.subr.bf16.mxu0 0
        %3159 = vmatpush1.bf16.msra.mxu0 %v3140
        %3160 = vmatprep.subr.bf16.mxu0 0
        %3161 = vmatpush1.bf16.msra.mxu0 %v3139
        %3162 = vmatprep.subr.bf16.mxu0 0
        %3163 = vmatpush1.bf16.msra.mxu0 %v3138
        %3164 = vmatprep.subr.bf16.mxu0 0
        %3165 = vmatpush1.bf16.msra.mxu0 %v3137
        %3166 = vmatprep.subr.bf16.mxu0 0
        %3167 = vmatpush1.bf16.msra.mxu0 %v3136
        %3168 = vmatprep.subr.bf16.mxu0 0
        %3169 = vmatpush2.bf16.msra.mxu0 0
        %3170 = vmatprep.subr.bf16.mxu0 0
        %3171 = vmatpush2.bf16.msra.mxu0 0
        %3172 = vmatprep.subr.bf16.mxu0 0
        %3173 = vmatpush2.bf16.msra.mxu0 0
        %3174 = vmatprep.subr.bf16.mxu0 0
        %3175 = vmatpush2.bf16.msra.mxu0 0
        %3176 = vmatprep.subr.bf16.mxu0 0
        %3177 = vmatpush2.bf16.msra.mxu0 0
        %3178 = vmatprep.subr.bf16.mxu0 0
        %3179 = vmatpush2.bf16.msra.mxu0 0
        %3180 = vmatprep.subr.bf16.mxu0 0
        %3181 = vmatpush2.bf16.msra.mxu0 0
        %3182 = vmatprep.subr.bf16.mxu0 0
        %3183 = vmatpush2.bf16.msra.mxu0 0
        %3184 = vmatprep.mubr.bf16.mxu0 0
        %3185 = vmatmul.mubr.bf16.gmra.mxu0 %v3098
        %v3186 = vpop.f32.mrf.mxu0
        %v3187 = vadd.f32 0.0, %v3186
        %v3188 = vpop.f32.mrf.mxu0
        %v3189 = vpop.f32.mrf.mxu0
        %v3190 = vadd.f32 0.0, %v3189
        %v3191 = vpop.f32.mrf.mxu0
        %3192 = vmatprep.mubr.bf16.mxu0 0
        %3193 = vmatmul.mubr.bf16.gmra.mxu0 %v3100
        %v3194 = vpop.f32.mrf.mxu0
        %v3195 = vadd.f32 0.0, %v3194
        %v3196 = vpop.f32.mrf.mxu0
        %v3197 = vpop.f32.mrf.mxu0
        %v3198 = vadd.f32 0.0, %v3197
        %v3199 = vpop.f32.mrf.mxu0
        %3200 = vmatprep.mubr.bf16.mxu0 0
        %3201 = vmatmul.mubr.bf16.gmra.mxu0 %v3099
        %v3202 = vpop.f32.mrf.mxu0
        %v3203 = vadd.f32 0.0, %v3202
        %v3204 = vpop.f32.mrf.mxu0
        %v3205 = vpop.f32.mrf.mxu0
        %v3206 = vpop.f32.mrf.mxu0
        %3207 = vdwg.mxu0
        %v3208 = vadd.f32 %v3054, %v3187
        %v3209 = vadd.f32 %v3057, %v3190
        %v3210 = vadd.f32 %v3062, %v3195
        %v3211 = vadd.f32 %v3065, %v3198
        %v3212 = vadd.f32 %v3070, %v3203
        %v3213 = vld [vmem:[#allocation2] sm:$0x8]
        %v3214 = vld [vmem:[#allocation2 + $0x4] sm:$0xf]
        %v3215 = vld [vmem:[#allocation2 + $0x8] sm:$0xf]
        %v3216 = vld [vmem:[#allocation2 + $0xc] sm:$0xf]
        %v3217 = vld [vmem:[#allocation2 + $0x10] sm:$0xf]
        %v3218 = vld [vmem:[#allocation2 + $0x14] sm:$0x1]
        %s3219 = scalar_lea.vmem %s8, 192
        %v3220 = vld [vmem:[%s3219] sm:$0xf]
        %v3221 = vld [vmem:[%s3219 + $0x4] sm:$0xf]
        %v3222 = vld [vmem:[%s3219 + $0x8] sm:$0xf]
        %v3223 = vld [vmem:[%s3219 + $0xc] sm:$0xf]
        %v3224 = vld [vmem:[%s3219 + $0x10] sm:$0xf]
        %v3225 = vld [vmem:[%s3219 + $0x14] sm:$0xf]
        %v3226 = vld [vmem:[%s3219 + $0x18] sm:$0xf]
        %v3227 = vld [vmem:[%s3219 + $0x1c] sm:$0xf]
        %v3228 = vld [vmem:[%s3219 + $0x20] sm:$0xf]
        %v3229 = vld [vmem:[%s3219 + $0x24] sm:$0xf]
        %v3230 = vld [vmem:[%s3219 + $0x28] sm:$0xf]
        %v3231 = vld [vmem:[%s3219 + $0x2c] sm:$0xf]
        %v3232 = vld [vmem:[%s3219 + $0x30] sm:$0xf]
        %v3233 = vld [vmem:[%s3219 + $0x34] sm:$0xf]
        %v3234 = vld [vmem:[%s3219 + $0x38] sm:$0xf]
        %v3235 = vld [vmem:[%s3219 + $0x3c] sm:$0xf]
        %v3242 = vunpack.c.l.b16 %v3213
        %v3243 = vunpack.c.l.b16 %v3214
        %v3244 = vunpack.c.l.b16 %v3215
        %v3245 = vunpack.c.l.b16 %v3216
        %v3246 = vunpack.c.l.b16 %v3217
        %v3247 = vunpack.c.l.b16 %v3218
        %v3248 = vpack.c.b16 %v3243, %v3242
        %v3249 = vpack.c.b16 %v3245, %v3244
        %v3250 = vpack.c.b16 %v3247, %v3246
        %v3251 = vrot.slane %v3248, 3
        %v3252 = vrot.slane %v3249, 3
        %v3253 = vsel %vm1446, %v3251, %v3252
        %v3254 = vrot.slane %v3250, 3
        %v3255 = vsel %vm1446, %v3252, %v3254
        %v3275 = vunpack.c.l.b16 %v3220
        %v3276 = vunpack.c.l.b16 %v3221
        %v3277 = vunpack.c.l.b16 %v3222
        %v3278 = vunpack.c.l.b16 %v3223
        %v3279 = vunpack.c.l.b16 %v3224
        %v3280 = vunpack.c.l.b16 %v3225
        %v3281 = vunpack.c.l.b16 %v3226
        %v3282 = vunpack.c.l.b16 %v3227
        %v3283 = vunpack.c.l.b16 %v3228
        %v3284 = vunpack.c.l.b16 %v3229
        %v3285 = vunpack.c.l.b16 %v3230
        %v3286 = vunpack.c.l.b16 %v3231
        %v3287 = vunpack.c.l.b16 %v3232
        %v3288 = vunpack.c.l.b16 %v3233
        %v3289 = vunpack.c.l.b16 %v3234
        %v3290 = vunpack.c.l.b16 %v3235
        %v3291 = vpack.c.b16 %v3276, %v3275
        %v3292 = vpack.c.b16 %v3278, %v3277
        %v3293 = vpack.c.b16 %v3280, %v3279
        %v3294 = vpack.c.b16 %v3282, %v3281
        %v3295 = vpack.c.b16 %v3284, %v3283
        %v3296 = vpack.c.b16 %v3286, %v3285
        %v3297 = vpack.c.b16 %v3288, %v3287
        %v3298 = vpack.c.b16 %v3290, %v3289
        %3307 = vmatprep.subr.bf16.mxu0 0
        %3308 = vmatpush1.bf16.msra.mxu0 %v3298
        %3309 = vmatprep.subr.bf16.mxu0 0
        %3310 = vmatpush1.bf16.msra.mxu0 %v3297
        %3311 = vmatprep.subr.bf16.mxu0 0
        %3312 = vmatpush1.bf16.msra.mxu0 %v3296
        %3313 = vmatprep.subr.bf16.mxu0 0
        %3314 = vmatpush1.bf16.msra.mxu0 %v3295
        %3315 = vmatprep.subr.bf16.mxu0 0
        %3316 = vmatpush1.bf16.msra.mxu0 %v3294
        %3317 = vmatprep.subr.bf16.mxu0 0
        %3318 = vmatpush1.bf16.msra.mxu0 %v3293
        %3319 = vmatprep.subr.bf16.mxu0 0
        %3320 = vmatpush1.bf16.msra.mxu0 %v3292
        %3321 = vmatprep.subr.bf16.mxu0 0
        %3322 = vmatpush1.bf16.msra.mxu0 %v3291
        %3323 = vmatprep.subr.bf16.mxu0 0
        %3324 = vmatpush2.bf16.msra.mxu0 0
        %3325 = vmatprep.subr.bf16.mxu0 0
        %3326 = vmatpush2.bf16.msra.mxu0 0
        %3327 = vmatprep.subr.bf16.mxu0 0
        %3328 = vmatpush2.bf16.msra.mxu0 0
        %3329 = vmatprep.subr.bf16.mxu0 0
        %3330 = vmatpush2.bf16.msra.mxu0 0
        %3331 = vmatprep.subr.bf16.mxu0 0
        %3332 = vmatpush2.bf16.msra.mxu0 0
        %3333 = vmatprep.subr.bf16.mxu0 0
        %3334 = vmatpush2.bf16.msra.mxu0 0
        %3335 = vmatprep.subr.bf16.mxu0 0
        %3336 = vmatpush2.bf16.msra.mxu0 0
        %3337 = vmatprep.subr.bf16.mxu0 0
        %3338 = vmatpush2.bf16.msra.mxu0 0
        %3339 = vmatprep.mubr.bf16.mxu0 0
        %3340 = vmatmul.mubr.bf16.gmra.mxu0 %v3253
        %v3341 = vpop.f32.mrf.mxu0
        %v3342 = vadd.f32 0.0, %v3341
        %v3343 = vpop.f32.mrf.mxu0
        %v3344 = vpop.f32.mrf.mxu0
        %v3345 = vadd.f32 0.0, %v3344
        %v3346 = vpop.f32.mrf.mxu0
        %3347 = vmatprep.mubr.bf16.mxu0 0
        %3348 = vmatmul.mubr.bf16.gmra.mxu0 %v3255
        %v3349 = vpop.f32.mrf.mxu0
        %v3350 = vadd.f32 0.0, %v3349
        %v3351 = vpop.f32.mrf.mxu0
        %v3352 = vpop.f32.mrf.mxu0
        %v3353 = vadd.f32 0.0, %v3352
        %v3354 = vpop.f32.mrf.mxu0
        %3355 = vmatprep.mubr.bf16.mxu0 0
        %3356 = vmatmul.mubr.bf16.gmra.mxu0 %v3254
        %v3357 = vpop.f32.mrf.mxu0
        %v3358 = vadd.f32 0.0, %v3357
        %v3359 = vpop.f32.mrf.mxu0
        %v3360 = vpop.f32.mrf.mxu0
        %v3361 = vpop.f32.mrf.mxu0
        %3362 = vdwg.mxu0
        %v3363 = vadd.f32 %v3208, %v3342
        %v3364 = vadd.f32 %v3209, %v3345
        %v3365 = vadd.f32 %v3210, %v3350
        %v3366 = vadd.f32 %v3211, %v3353
        %v3367 = vadd.f32 %v3212, %v3358
        %v3368 = vld [vmem:[#allocation2 + $0x14] sm:$0x3]
        %s3369 = scalar_lea.vmem %s8, 256
        %v3370 = vld [vmem:[%s3369] sm:$0xf]
        %v3371 = vld [vmem:[%s3369 + $0x4] sm:$0xf]
        %v3372 = vld [vmem:[%s3369 + $0x8] sm:$0xf]
        %v3373 = vld [vmem:[%s3369 + $0xc] sm:$0xf]
        %v3374 = vld [vmem:[%s3369 + $0x10] sm:$0xf]
        %v3375 = vld [vmem:[%s3369 + $0x14] sm:$0xf]
        %v3376 = vld [vmem:[%s3369 + $0x18] sm:$0xf]
        %v3377 = vld [vmem:[%s3369 + $0x1c] sm:$0xf]
        %v3378 = vld [vmem:[%s3369 + $0x20] sm:$0xf]
        %v3379 = vld [vmem:[%s3369 + $0x24] sm:$0xf]
        %v3380 = vld [vmem:[%s3369 + $0x28] sm:$0xf]
        %v3381 = vld [vmem:[%s3369 + $0x2c] sm:$0xf]
        %v3382 = vld [vmem:[%s3369 + $0x30] sm:$0xf]
        %v3383 = vld [vmem:[%s3369 + $0x34] sm:$0xf]
        %v3384 = vld [vmem:[%s3369 + $0x38] sm:$0xf]
        %v3385 = vld [vmem:[%s3369 + $0x3c] sm:$0xf]
        %v3387 = vunpack.c.l.b16 %v3368
        %v3388 = vpack.c.b16 %v3387, %v3246
        %v3390 = vshrl.u32 %v3248, 16
        %v3392 = vrot.slane %v3390, 3
        %v3393 = vshll.u32 %v3248, 16
        %v3395 = vrot.slane %v3393, 4
        %v3396 = vor.u32 %v3392, %v3395
        %v3398 = vshrl.u32 %v3249, 16
        %v3400 = vrot.slane %v3398, 3
        %v3401 = vshll.u32 %v3249, 16
        %v3403 = vrot.slane %v3401, 4
        %v3404 = vor.u32 %v3400, %v3403
        %v3405 = vsel %vm1633, %v3396, %v3404
        %v3407 = vshrl.u32 %v3388, 16
        %v3409 = vrot.slane %v3407, 3
        %v3410 = vshll.u32 %v3388, 16
        %v3412 = vrot.slane %v3410, 4
        %v3413 = vor.u32 %v3409, %v3412
        %v3414 = vsel %vm1633, %v3404, %v3413
        %v3434 = vunpack.c.l.b16 %v3370
        %v3435 = vunpack.c.l.b16 %v3371
        %v3436 = vunpack.c.l.b16 %v3372
        %v3437 = vunpack.c.l.b16 %v3373
        %v3438 = vunpack.c.l.b16 %v3374
        %v3439 = vunpack.c.l.b16 %v3375
        %v3440 = vunpack.c.l.b16 %v3376
        %v3441 = vunpack.c.l.b16 %v3377
        %v3442 = vunpack.c.l.b16 %v3378
        %v3443 = vunpack.c.l.b16 %v3379
        %v3444 = vunpack.c.l.b16 %v3380
        %v3445 = vunpack.c.l.b16 %v3381
        %v3446 = vunpack.c.l.b16 %v3382
        %v3447 = vunpack.c.l.b16 %v3383
        %v3448 = vunpack.c.l.b16 %v3384
        %v3449 = vunpack.c.l.b16 %v3385
        %v3450 = vpack.c.b16 %v3435, %v3434
        %v3451 = vpack.c.b16 %v3437, %v3436
        %v3452 = vpack.c.b16 %v3439, %v3438
        %v3453 = vpack.c.b16 %v3441, %v3440
        %v3454 = vpack.c.b16 %v3443, %v3442
        %v3455 = vpack.c.b16 %v3445, %v3444
        %v3456 = vpack.c.b16 %v3447, %v3446
        %v3457 = vpack.c.b16 %v3449, %v3448
        %3466 = vmatprep.subr.bf16.mxu0 0
        %3467 = vmatpush1.bf16.msra.mxu0 %v3457
        %3468 = vmatprep.subr.bf16.mxu0 0
        %3469 = vmatpush1.bf16.msra.mxu0 %v3456
        %3470 = vmatprep.subr.bf16.mxu0 0
        %3471 = vmatpush1.bf16.msra.mxu0 %v3455
        %3472 = vmatprep.subr.bf16.mxu0 0
        %3473 = vmatpush1.bf16.msra.mxu0 %v3454
        %3474 = vmatprep.subr.bf16.mxu0 0
        %3475 = vmatpush1.bf16.msra.mxu0 %v3453
        %3476 = vmatprep.subr.bf16.mxu0 0
        %3477 = vmatpush1.bf16.msra.mxu0 %v3452
        %3478 = vmatprep.subr.bf16.mxu0 0
        %3479 = vmatpush1.bf16.msra.mxu0 %v3451
        %3480 = vmatprep.subr.bf16.mxu0 0
        %3481 = vmatpush1.bf16.msra.mxu0 %v3450
        %3482 = vmatprep.subr.bf16.mxu0 0
        %3483 = vmatpush2.bf16.msra.mxu0 0
        %3484 = vmatprep.subr.bf16.mxu0 0
        %3485 = vmatpush2.bf16.msra.mxu0 0
        %3486 = vmatprep.subr.bf16.mxu0 0
        %3487 = vmatpush2.bf16.msra.mxu0 0
        %3488 = vmatprep.subr.bf16.mxu0 0
        %3489 = vmatpush2.bf16.msra.mxu0 0
        %3490 = vmatprep.subr.bf16.mxu0 0
        %3491 = vmatpush2.bf16.msra.mxu0 0
        %3492 = vmatprep.subr.bf16.mxu0 0
        %3493 = vmatpush2.bf16.msra.mxu0 0
        %3494 = vmatprep.subr.bf16.mxu0 0
        %3495 = vmatpush2.bf16.msra.mxu0 0
        %3496 = vmatprep.subr.bf16.mxu0 0
        %3497 = vmatpush2.bf16.msra.mxu0 0
        %3498 = vmatprep.mubr.bf16.mxu0 0
        %3499 = vmatmul.mubr.bf16.gmra.mxu0 %v3405
        %v3500 = vpop.f32.mrf.mxu0
        %v3501 = vadd.f32 0.0, %v3500
        %v3502 = vpop.f32.mrf.mxu0
        %v3503 = vpop.f32.mrf.mxu0
        %v3504 = vadd.f32 0.0, %v3503
        %v3505 = vpop.f32.mrf.mxu0
        %3506 = vmatprep.mubr.bf16.mxu0 0
        %3507 = vmatmul.mubr.bf16.gmra.mxu0 %v3414
        %v3508 = vpop.f32.mrf.mxu0
        %v3509 = vadd.f32 0.0, %v3508
        %v3510 = vpop.f32.mrf.mxu0
        %v3511 = vpop.f32.mrf.mxu0
        %v3512 = vadd.f32 0.0, %v3511
        %v3513 = vpop.f32.mrf.mxu0
        %3514 = vmatprep.mubr.bf16.mxu0 0
        %3515 = vmatmul.mubr.bf16.gmra.mxu0 %v3413
        %v3516 = vpop.f32.mrf.mxu0
        %v3517 = vadd.f32 0.0, %v3516
        %v3518 = vpop.f32.mrf.mxu0
        %v3519 = vpop.f32.mrf.mxu0
        %v3520 = vpop.f32.mrf.mxu0
        %3521 = vdwg.mxu0
        %v3522 = vadd.f32 %v3363, %v3501
        %v3523 = vadd.f32 %v3364, %v3504
        %v3524 = vadd.f32 %v3365, %v3509
        %v3525 = vadd.f32 %v3366, %v3512
        %v3526 = vadd.f32 %v3367, %v3517
        %s3527 = scalar_lea.vmem %s8, 320
        %v3528 = vld [vmem:[%s3527] sm:$0xf]
        %v3529 = vld [vmem:[%s3527 + $0x4] sm:$0xf]
        %v3530 = vld [vmem:[%s3527 + $0x8] sm:$0xf]
        %v3531 = vld [vmem:[%s3527 + $0xc] sm:$0xf]
        %v3532 = vld [vmem:[%s3527 + $0x10] sm:$0xf]
        %v3533 = vld [vmem:[%s3527 + $0x14] sm:$0xf]
        %v3534 = vld [vmem:[%s3527 + $0x18] sm:$0xf]
        %v3535 = vld [vmem:[%s3527 + $0x1c] sm:$0xf]
        %v3536 = vld [vmem:[%s3527 + $0x20] sm:$0xf]
        %v3537 = vld [vmem:[%s3527 + $0x24] sm:$0xf]
        %v3538 = vld [vmem:[%s3527 + $0x28] sm:$0xf]
        %v3539 = vld [vmem:[%s3527 + $0x2c] sm:$0xf]
        %v3540 = vld [vmem:[%s3527 + $0x30] sm:$0xf]
        %v3541 = vld [vmem:[%s3527 + $0x34] sm:$0xf]
        %v3542 = vld [vmem:[%s3527 + $0x38] sm:$0xf]
        %v3543 = vld [vmem:[%s3527 + $0x3c] sm:$0xf]
        %v3544 = vpack.c.b16 %v3244, %v3243
        %v3545 = vpack.c.b16 %v3246, %v3245
        %v3546 = vpack.c.b16 %v3387, %v3387
        %v3566 = vunpack.c.l.b16 %v3528
        %v3567 = vunpack.c.l.b16 %v3529
        %v3568 = vunpack.c.l.b16 %v3530
        %v3569 = vunpack.c.l.b16 %v3531
        %v3570 = vunpack.c.l.b16 %v3532
        %v3571 = vunpack.c.l.b16 %v3533
        %v3572 = vunpack.c.l.b16 %v3534
        %v3573 = vunpack.c.l.b16 %v3535
        %v3574 = vunpack.c.l.b16 %v3536
        %v3575 = vunpack.c.l.b16 %v3537
        %v3576 = vunpack.c.l.b16 %v3538
        %v3577 = vunpack.c.l.b16 %v3539
        %v3578 = vunpack.c.l.b16 %v3540
        %v3579 = vunpack.c.l.b16 %v3541
        %v3580 = vunpack.c.l.b16 %v3542
        %v3581 = vunpack.c.l.b16 %v3543
        %v3582 = vpack.c.b16 %v3567, %v3566
        %v3583 = vpack.c.b16 %v3569, %v3568
        %v3584 = vpack.c.b16 %v3571, %v3570
        %v3585 = vpack.c.b16 %v3573, %v3572
        %v3586 = vpack.c.b16 %v3575, %v3574
        %v3587 = vpack.c.b16 %v3577, %v3576
        %v3588 = vpack.c.b16 %v3579, %v3578
        %v3589 = vpack.c.b16 %v3581, %v3580
        %3598 = vmatprep.subr.bf16.mxu0 0
        %3599 = vmatpush1.bf16.msra.mxu0 %v3589
        %3600 = vmatprep.subr.bf16.mxu0 0
        %3601 = vmatpush1.bf16.msra.mxu0 %v3588
        %3602 = vmatprep.subr.bf16.mxu0 0
        %3603 = vmatpush1.bf16.msra.mxu0 %v3587
        %3604 = vmatprep.subr.bf16.mxu0 0
        %3605 = vmatpush1.bf16.msra.mxu0 %v3586
        %3606 = vmatprep.subr.bf16.mxu0 0
        %3607 = vmatpush1.bf16.msra.mxu0 %v3585
        %3608 = vmatprep.subr.bf16.mxu0 0
        %3609 = vmatpush1.bf16.msra.mxu0 %v3584
        %3610 = vmatprep.subr.bf16.mxu0 0
        %3611 = vmatpush1.bf16.msra.mxu0 %v3583
        %3612 = vmatprep.subr.bf16.mxu0 0
        %3613 = vmatpush1.bf16.msra.mxu0 %v3582
        %3614 = vmatprep.subr.bf16.mxu0 0
        %3615 = vmatpush2.bf16.msra.mxu0 0
        %3616 = vmatprep.subr.bf16.mxu0 0
        %3617 = vmatpush2.bf16.msra.mxu0 0
        %3618 = vmatprep.subr.bf16.mxu0 0
        %3619 = vmatpush2.bf16.msra.mxu0 0
        %3620 = vmatprep.subr.bf16.mxu0 0
        %3621 = vmatpush2.bf16.msra.mxu0 0
        %3622 = vmatprep.subr.bf16.mxu0 0
        %3623 = vmatpush2.bf16.msra.mxu0 0
        %3624 = vmatprep.subr.bf16.mxu0 0
        %3625 = vmatpush2.bf16.msra.mxu0 0
        %3626 = vmatprep.subr.bf16.mxu0 0
        %3627 = vmatpush2.bf16.msra.mxu0 0
        %3628 = vmatprep.subr.bf16.mxu0 0
        %3629 = vmatpush2.bf16.msra.mxu0 0
        %3630 = vmatprep.mubr.bf16.mxu0 0
        %3631 = vmatmul.mubr.bf16.gmra.mxu0 %v3544
        %v3632 = vpop.f32.mrf.mxu0
        %v3633 = vadd.f32 0.0, %v3632
        %v3634 = vpop.f32.mrf.mxu0
        %v3635 = vpop.f32.mrf.mxu0
        %v3636 = vadd.f32 0.0, %v3635
        %v3637 = vpop.f32.mrf.mxu0
        %3638 = vmatprep.mubr.bf16.mxu0 0
        %3639 = vmatmul.mubr.bf16.gmra.mxu0 %v3545
        %v3640 = vpop.f32.mrf.mxu0
        %v3641 = vadd.f32 0.0, %v3640
        %v3642 = vpop.f32.mrf.mxu0
        %v3643 = vpop.f32.mrf.mxu0
        %v3644 = vadd.f32 0.0, %v3643
        %v3645 = vpop.f32.mrf.mxu0
        %3646 = vmatprep.mubr.bf16.mxu0 0
        %3647 = vmatmul.mubr.bf16.gmra.mxu0 %v3546
        %v3648 = vpop.f32.mrf.mxu0
        %v3649 = vadd.f32 0.0, %v3648
        %v3650 = vpop.f32.mrf.mxu0
        %v3651 = vpop.f32.mrf.mxu0
        %v3652 = vpop.f32.mrf.mxu0
        %3653 = vdwg.mxu0
        %v3654 = vadd.f32 %v3522, %v3633
        %v3655 = vadd.f32 %v3523, %v3636
        %v3656 = vadd.f32 %v3524, %v3641
        %v3657 = vadd.f32 %v3525, %v3644
        %v3658 = vadd.f32 %v3526, %v3649
        %v3659 = vld [vmem:[#allocation2 + $0x4] sm:$0xc]
        %v3660 = vld [vmem:[#allocation2 + $0x14] sm:$0xf]
        %s3661 = scalar_lea.vmem %s8, 384
        %v3662 = vld [vmem:[%s3661] sm:$0xf]
        %v3663 = vld [vmem:[%s3661 + $0x4] sm:$0xf]
        %v3664 = vld [vmem:[%s3661 + $0x8] sm:$0xf]
        %v3665 = vld [vmem:[%s3661 + $0xc] sm:$0xf]
        %v3666 = vld [vmem:[%s3661 + $0x10] sm:$0xf]
        %v3667 = vld [vmem:[%s3661 + $0x14] sm:$0xf]
        %v3668 = vld [vmem:[%s3661 + $0x18] sm:$0xf]
        %v3669 = vld [vmem:[%s3661 + $0x1c] sm:$0xf]
        %v3670 = vld [vmem:[%s3661 + $0x20] sm:$0xf]
        %v3671 = vld [vmem:[%s3661 + $0x24] sm:$0xf]
        %v3672 = vld [vmem:[%s3661 + $0x28] sm:$0xf]
        %v3673 = vld [vmem:[%s3661 + $0x2c] sm:$0xf]
        %v3674 = vld [vmem:[%s3661 + $0x30] sm:$0xf]
        %v3675 = vld [vmem:[%s3661 + $0x34] sm:$0xf]
        %v3676 = vld [vmem:[%s3661 + $0x38] sm:$0xf]
        %v3677 = vld [vmem:[%s3661 + $0x3c] sm:$0xf]
        %v3680 = vunpack.c.l.b16 %v3659
        %v3681 = vunpack.c.l.b16 %v3660
        %v3682 = vpack.c.b16 %v3244, %v3680
        %v3683 = vpack.c.b16 %v3681, %v3681
        %v3684 = vrot.slane %v3682, 2
        %v3685 = vrot.slane %v3545, 2
        %v3686 = vsel %vm2044, %v3684, %v3685
        %v3687 = vrot.slane %v3683, 2
        %v3688 = vsel %vm2044, %v3685, %v3687
        %v3708 = vunpack.c.l.b16 %v3662
        %v3709 = vunpack.c.l.b16 %v3663
        %v3710 = vunpack.c.l.b16 %v3664
        %v3711 = vunpack.c.l.b16 %v3665
        %v3712 = vunpack.c.l.b16 %v3666
        %v3713 = vunpack.c.l.b16 %v3667
        %v3714 = vunpack.c.l.b16 %v3668
        %v3715 = vunpack.c.l.b16 %v3669
        %v3716 = vunpack.c.l.b16 %v3670
        %v3717 = vunpack.c.l.b16 %v3671
        %v3718 = vunpack.c.l.b16 %v3672
        %v3719 = vunpack.c.l.b16 %v3673
        %v3720 = vunpack.c.l.b16 %v3674
        %v3721 = vunpack.c.l.b16 %v3675
        %v3722 = vunpack.c.l.b16 %v3676
        %v3723 = vunpack.c.l.b16 %v3677
        %v3724 = vpack.c.b16 %v3709, %v3708
        %v3725 = vpack.c.b16 %v3711, %v3710
        %v3726 = vpack.c.b16 %v3713, %v3712
        %v3727 = vpack.c.b16 %v3715, %v3714
        %v3728 = vpack.c.b16 %v3717, %v3716
        %v3729 = vpack.c.b16 %v3719, %v3718
        %v3730 = vpack.c.b16 %v3721, %v3720
        %v3731 = vpack.c.b16 %v3723, %v3722
        %3740 = vmatprep.subr.bf16.mxu0 0
        %3741 = vmatpush1.bf16.msra.mxu0 %v3731
        %3742 = vmatprep.subr.bf16.mxu0 0
        %3743 = vmatpush1.bf16.msra.mxu0 %v3730
        %3744 = vmatprep.subr.bf16.mxu0 0
        %3745 = vmatpush1.bf16.msra.mxu0 %v3729
        %3746 = vmatprep.subr.bf16.mxu0 0
        %3747 = vmatpush1.bf16.msra.mxu0 %v3728
        %3748 = vmatprep.subr.bf16.mxu0 0
        %3749 = vmatpush1.bf16.msra.mxu0 %v3727
        %3750 = vmatprep.subr.bf16.mxu0 0
        %3751 = vmatpush1.bf16.msra.mxu0 %v3726
        %3752 = vmatprep.subr.bf16.mxu0 0
        %3753 = vmatpush1.bf16.msra.mxu0 %v3725
        %3754 = vmatprep.subr.bf16.mxu0 0
        %3755 = vmatpush1.bf16.msra.mxu0 %v3724
        %3756 = vmatprep.subr.bf16.mxu0 0
        %3757 = vmatpush2.bf16.msra.mxu0 0
        %3758 = vmatprep.subr.bf16.mxu0 0
        %3759 = vmatpush2.bf16.msra.mxu0 0
        %3760 = vmatprep.subr.bf16.mxu0 0
        %3761 = vmatpush2.bf16.msra.mxu0 0
        %3762 = vmatprep.subr.bf16.mxu0 0
        %3763 = vmatpush2.bf16.msra.mxu0 0
        %3764 = vmatprep.subr.bf16.mxu0 0
        %3765 = vmatpush2.bf16.msra.mxu0 0
        %3766 = vmatprep.subr.bf16.mxu0 0
        %3767 = vmatpush2.bf16.msra.mxu0 0
        %3768 = vmatprep.subr.bf16.mxu0 0
        %3769 = vmatpush2.bf16.msra.mxu0 0
        %3770 = vmatprep.subr.bf16.mxu0 0
        %3771 = vmatpush2.bf16.msra.mxu0 0
        %3772 = vmatprep.mubr.bf16.mxu0 0
        %3773 = vmatmul.mubr.bf16.gmra.mxu0 %v3686
        %v3774 = vpop.f32.mrf.mxu0
        %v3775 = vadd.f32 0.0, %v3774
        %v3776 = vpop.f32.mrf.mxu0
        %v3777 = vpop.f32.mrf.mxu0
        %v3778 = vadd.f32 0.0, %v3777
        %v3779 = vpop.f32.mrf.mxu0
        %3780 = vmatprep.mubr.bf16.mxu0 0
        %3781 = vmatmul.mubr.bf16.gmra.mxu0 %v3688
        %v3782 = vpop.f32.mrf.mxu0
        %v3783 = vadd.f32 0.0, %v3782
        %v3784 = vpop.f32.mrf.mxu0
        %v3785 = vpop.f32.mrf.mxu0
        %v3786 = vadd.f32 0.0, %v3785
        %v3787 = vpop.f32.mrf.mxu0
        %3788 = vmatprep.mubr.bf16.mxu0 0
        %3789 = vmatmul.mubr.bf16.gmra.mxu0 %v3687
        %v3790 = vpop.f32.mrf.mxu0
        %v3791 = vadd.f32 0.0, %v3790
        %v3792 = vpop.f32.mrf.mxu0
        %v3793 = vpop.f32.mrf.mxu0
        %v3794 = vpop.f32.mrf.mxu0
        %3795 = vdwg.mxu0
        %v3796 = vadd.f32 %v3654, %v3775
        %v3797 = vadd.f32 %v3655, %v3778
        %v3798 = vadd.f32 %v3656, %v3783
        %v3799 = vadd.f32 %v3657, %v3786
        %v3800 = vadd.f32 %v3658, %v3791
        %v3801 = vld [vmem:[#allocation2 + $0x4] sm:$0xc]
        %v3802 = vld [vmem:[#allocation2 + $0x8] sm:$0xf]
        %v3803 = vld [vmem:[#allocation2 + $0xc] sm:$0xf]
        %v3804 = vld [vmem:[#allocation2 + $0x10] sm:$0xf]
        %v3805 = vld [vmem:[#allocation2 + $0x14] sm:$0xf]
        %v3806 = vld [vmem:[#allocation2 + $0x18] sm:$0x1]
        %s3807 = scalar_lea.vmem %s8, 448
        %v3808 = vld [vmem:[%s3807] sm:$0xf]
        %v3809 = vld [vmem:[%s3807 + $0x4] sm:$0xf]
        %v3810 = vld [vmem:[%s3807 + $0x8] sm:$0xf]
        %v3811 = vld [vmem:[%s3807 + $0xc] sm:$0xf]
        %v3812 = vld [vmem:[%s3807 + $0x10] sm:$0xf]
        %v3813 = vld [vmem:[%s3807 + $0x14] sm:$0xf]
        %v3814 = vld [vmem:[%s3807 + $0x18] sm:$0xf]
        %v3815 = vld [vmem:[%s3807 + $0x1c] sm:$0xf]
        %v3816 = vld [vmem:[%s3807 + $0x20] sm:$0xf]
        %v3817 = vld [vmem:[%s3807 + $0x24] sm:$0xf]
        %v3818 = vld [vmem:[%s3807 + $0x28] sm:$0xf]
        %v3819 = vld [vmem:[%s3807 + $0x2c] sm:$0xf]
        %v3820 = vld [vmem:[%s3807 + $0x30] sm:$0xf]
        %v3821 = vld [vmem:[%s3807 + $0x34] sm:$0xf]
        %v3822 = vld [vmem:[%s3807 + $0x38] sm:$0xf]
        %v3823 = vld [vmem:[%s3807 + $0x3c] sm:$0xf]
        %v3830 = vunpack.c.l.b16 %v3801
        %v3831 = vunpack.c.l.b16 %v3802
        %v3832 = vunpack.c.l.b16 %v3803
        %v3833 = vunpack.c.l.b16 %v3804
        %v3834 = vunpack.c.l.b16 %v3805
        %v3835 = vunpack.c.l.b16 %v3806
        %v3836 = vpack.c.b16 %v3831, %v3830
        %v3837 = vpack.c.b16 %v3833, %v3832
        %v3838 = vpack.c.b16 %v3835, %v3834
        %v3840 = vshrl.u32 %v3836, 16
        %v3842 = vrot.slane %v3840, 2
        %v3843 = vshll.u32 %v3836, 16
        %v3845 = vrot.slane %v3843, 3
        %v3846 = vor.u32 %v3842, %v3845
        %v3848 = vshrl.u32 %v3837, 16
        %v3850 = vrot.slane %v3848, 2
        %v3851 = vshll.u32 %v3837, 16
        %v3853 = vrot.slane %v3851, 3
        %v3854 = vor.u32 %v3850, %v3853
        %v3855 = vsel %vm2255, %v3846, %v3854
        %v3857 = vshrl.u32 %v3838, 16
        %v3859 = vrot.slane %v3857, 2
        %v3860 = vshll.u32 %v3838, 16
        %v3862 = vrot.slane %v3860, 3
        %v3863 = vor.u32 %v3859, %v3862
        %v3864 = vsel %vm2255, %v3854, %v3863
        %v3884 = vunpack.c.l.b16 %v3808
        %v3885 = vunpack.c.l.b16 %v3809
        %v3886 = vunpack.c.l.b16 %v3810
        %v3887 = vunpack.c.l.b16 %v3811
        %v3888 = vunpack.c.l.b16 %v3812
        %v3889 = vunpack.c.l.b16 %v3813
        %v3890 = vunpack.c.l.b16 %v3814
        %v3891 = vunpack.c.l.b16 %v3815
        %v3892 = vunpack.c.l.b16 %v3816
        %v3893 = vunpack.c.l.b16 %v3817
        %v3894 = vunpack.c.l.b16 %v3818
        %v3895 = vunpack.c.l.b16 %v3819
        %v3896 = vunpack.c.l.b16 %v3820
        %v3897 = vunpack.c.l.b16 %v3821
        %v3898 = vunpack.c.l.b16 %v3822
        %v3899 = vunpack.c.l.b16 %v3823
        %v3900 = vpack.c.b16 %v3885, %v3884
        %v3901 = vpack.c.b16 %v3887, %v3886
        %v3902 = vpack.c.b16 %v3889, %v3888
        %v3903 = vpack.c.b16 %v3891, %v3890
        %v3904 = vpack.c.b16 %v3893, %v3892
        %v3905 = vpack.c.b16 %v3895, %v3894
        %v3906 = vpack.c.b16 %v3897, %v3896
        %v3907 = vpack.c.b16 %v3899, %v3898
        %3916 = vmatprep.subr.bf16.mxu0 0
        %3917 = vmatpush1.bf16.msra.mxu0 %v3907
        %3918 = vmatprep.subr.bf16.mxu0 0
        %3919 = vmatpush1.bf16.msra.mxu0 %v3906
        %3920 = vmatprep.subr.bf16.mxu0 0
        %3921 = vmatpush1.bf16.msra.mxu0 %v3905
        %3922 = vmatprep.subr.bf16.mxu0 0
        %3923 = vmatpush1.bf16.msra.mxu0 %v3904
        %3924 = vmatprep.subr.bf16.mxu0 0
        %3925 = vmatpush1.bf16.msra.mxu0 %v3903
        %3926 = vmatprep.subr.bf16.mxu0 0
        %3927 = vmatpush1.bf16.msra.mxu0 %v3902
        %3928 = vmatprep.subr.bf16.mxu0 0
        %3929 = vmatpush1.bf16.msra.mxu0 %v3901
        %3930 = vmatprep.subr.bf16.mxu0 0
        %3931 = vmatpush1.bf16.msra.mxu0 %v3900
        %3932 = vmatprep.subr.bf16.mxu0 0
        %3933 = vmatpush2.bf16.msra.mxu0 0
        %3934 = vmatprep.subr.bf16.mxu0 0
        %3935 = vmatpush2.bf16.msra.mxu0 0
        %3936 = vmatprep.subr.bf16.mxu0 0
        %3937 = vmatpush2.bf16.msra.mxu0 0
        %3938 = vmatprep.subr.bf16.mxu0 0
        %3939 = vmatpush2.bf16.msra.mxu0 0
        %3940 = vmatprep.subr.bf16.mxu0 0
        %3941 = vmatpush2.bf16.msra.mxu0 0
        %3942 = vmatprep.subr.bf16.mxu0 0
        %3943 = vmatpush2.bf16.msra.mxu0 0
        %3944 = vmatprep.subr.bf16.mxu0 0
        %3945 = vmatpush2.bf16.msra.mxu0 0
        %3946 = vmatprep.subr.bf16.mxu0 0
        %3947 = vmatpush2.bf16.msra.mxu0 0
        %3948 = vmatprep.mubr.bf16.mxu0 0
        %3949 = vmatmul.mubr.bf16.gmra.mxu0 %v3855
        %v3950 = vpop.f32.mrf.mxu0
        %v3951 = vadd.f32 0.0, %v3950
        %v3952 = vpop.f32.mrf.mxu0
        %v3953 = vpop.f32.mrf.mxu0
        %v3954 = vadd.f32 0.0, %v3953
        %v3955 = vpop.f32.mrf.mxu0
        %3956 = vmatprep.mubr.bf16.mxu0 0
        %3957 = vmatmul.mubr.bf16.gmra.mxu0 %v3864
        %v3958 = vpop.f32.mrf.mxu0
        %v3959 = vadd.f32 0.0, %v3958
        %v3960 = vpop.f32.mrf.mxu0
        %v3961 = vpop.f32.mrf.mxu0
        %v3962 = vadd.f32 0.0, %v3961
        %v3963 = vpop.f32.mrf.mxu0
        %3964 = vmatprep.mubr.bf16.mxu0 0
        %3965 = vmatmul.mubr.bf16.gmra.mxu0 %v3863
        %v3966 = vpop.f32.mrf.mxu0
        %v3967 = vadd.f32 0.0, %v3966
        %v3968 = vpop.f32.mrf.mxu0
        %v3969 = vpop.f32.mrf.mxu0
        %v3970 = vpop.f32.mrf.mxu0
        %3971 = vdwg.mxu0
        %v3972 = vadd.f32 %v3796, %v3951
        %v3973 = vadd.f32 %v3797, %v3954
        %v3974 = vadd.f32 %v3798, %v3959
        %v3975 = vadd.f32 %v3799, %v3962
        %v3976 = vadd.f32 %v3800, %v3967
        %v3977 = vld [vmem:[#allocation2 + $0x4] sm:$0x8]
        %s3978 = scalar_lea.vmem %s8, 512
        %v3979 = vld [vmem:[%s3978] sm:$0xf]
        %v3980 = vld [vmem:[%s3978 + $0x4] sm:$0xf]
        %v3981 = vld [vmem:[%s3978 + $0x8] sm:$0xf]
        %v3982 = vld [vmem:[%s3978 + $0xc] sm:$0xf]
        %v3983 = vld [vmem:[%s3978 + $0x10] sm:$0xf]
        %v3984 = vld [vmem:[%s3978 + $0x14] sm:$0xf]
        %v3985 = vld [vmem:[%s3978 + $0x18] sm:$0xf]
        %v3986 = vld [vmem:[%s3978 + $0x1c] sm:$0xf]
        %v3987 = vld [vmem:[%s3978 + $0x20] sm:$0xf]
        %v3988 = vld [vmem:[%s3978 + $0x24] sm:$0xf]
        %v3989 = vld [vmem:[%s3978 + $0x28] sm:$0xf]
        %v3990 = vld [vmem:[%s3978 + $0x2c] sm:$0xf]
        %v3991 = vld [vmem:[%s3978 + $0x30] sm:$0xf]
        %v3992 = vld [vmem:[%s3978 + $0x34] sm:$0xf]
        %v3993 = vld [vmem:[%s3978 + $0x38] sm:$0xf]
        %v3994 = vld [vmem:[%s3978 + $0x3c] sm:$0xf]
        %v3996 = vunpack.c.l.b16 %v3977
        %v3997 = vpack.c.b16 %v3831, %v3996
        %v3998 = vrot.slane %v3997, 3
        %v3999 = vrot.slane %v3837, 3
        %v4000 = vsel %vm1446, %v3998, %v3999
        %v4001 = vrot.slane %v3838, 3
        %v4002 = vsel %vm1446, %v3999, %v4001
        %v4022 = vunpack.c.l.b16 %v3979
        %v4023 = vunpack.c.l.b16 %v3980
        %v4024 = vunpack.c.l.b16 %v3981
        %v4025 = vunpack.c.l.b16 %v3982
        %v4026 = vunpack.c.l.b16 %v3983
        %v4027 = vunpack.c.l.b16 %v3984
        %v4028 = vunpack.c.l.b16 %v3985
        %v4029 = vunpack.c.l.b16 %v3986
        %v4030 = vunpack.c.l.b16 %v3987
        %v4031 = vunpack.c.l.b16 %v3988
        %v4032 = vunpack.c.l.b16 %v3989
        %v4033 = vunpack.c.l.b16 %v3990
        %v4034 = vunpack.c.l.b16 %v3991
        %v4035 = vunpack.c.l.b16 %v3992
        %v4036 = vunpack.c.l.b16 %v3993
        %v4037 = vunpack.c.l.b16 %v3994
        %v4038 = vpack.c.b16 %v4023, %v4022
        %v4039 = vpack.c.b16 %v4025, %v4024
        %v4040 = vpack.c.b16 %v4027, %v4026
        %v4041 = vpack.c.b16 %v4029, %v4028
        %v4042 = vpack.c.b16 %v4031, %v4030
        %v4043 = vpack.c.b16 %v4033, %v4032
        %v4044 = vpack.c.b16 %v4035, %v4034
        %v4045 = vpack.c.b16 %v4037, %v4036
        %4054 = vmatprep.subr.bf16.mxu0 0
        %4055 = vmatpush1.bf16.msra.mxu0 %v4045
        %4056 = vmatprep.subr.bf16.mxu0 0
        %4057 = vmatpush1.bf16.msra.mxu0 %v4044
        %4058 = vmatprep.subr.bf16.mxu0 0
        %4059 = vmatpush1.bf16.msra.mxu0 %v4043
        %4060 = vmatprep.subr.bf16.mxu0 0
        %4061 = vmatpush1.bf16.msra.mxu0 %v4042
        %4062 = vmatprep.subr.bf16.mxu0 0
        %4063 = vmatpush1.bf16.msra.mxu0 %v4041
        %4064 = vmatprep.subr.bf16.mxu0 0
        %4065 = vmatpush1.bf16.msra.mxu0 %v4040
        %4066 = vmatprep.subr.bf16.mxu0 0
        %4067 = vmatpush1.bf16.msra.mxu0 %v4039
        %4068 = vmatprep.subr.bf16.mxu0 0
        %4069 = vmatpush1.bf16.msra.mxu0 %v4038
        %4070 = vmatprep.subr.bf16.mxu0 0
        %4071 = vmatpush2.bf16.msra.mxu0 0
        %4072 = vmatprep.subr.bf16.mxu0 0
        %4073 = vmatpush2.bf16.msra.mxu0 0
        %4074 = vmatprep.subr.bf16.mxu0 0
        %4075 = vmatpush2.bf16.msra.mxu0 0
        %4076 = vmatprep.subr.bf16.mxu0 0
        %4077 = vmatpush2.bf16.msra.mxu0 0
        %4078 = vmatprep.subr.bf16.mxu0 0
        %4079 = vmatpush2.bf16.msra.mxu0 0
        %4080 = vmatprep.subr.bf16.mxu0 0
        %4081 = vmatpush2.bf16.msra.mxu0 0
        %4082 = vmatprep.subr.bf16.mxu0 0
        %4083 = vmatpush2.bf16.msra.mxu0 0
        %4084 = vmatprep.subr.bf16.mxu0 0
        %4085 = vmatpush2.bf16.msra.mxu0 0
        %4086 = vmatprep.mubr.bf16.mxu0 0
        %4087 = vmatmul.mubr.bf16.gmra.mxu0 %v4000
        %v4088 = vpop.f32.mrf.mxu0
        %v4089 = vadd.f32 0.0, %v4088
        %v4090 = vpop.f32.mrf.mxu0
        %v4091 = vpop.f32.mrf.mxu0
        %v4092 = vadd.f32 0.0, %v4091
        %v4093 = vpop.f32.mrf.mxu0
        %4094 = vmatprep.mubr.bf16.mxu0 0
        %4095 = vmatmul.mubr.bf16.gmra.mxu0 %v4002
        %v4096 = vpop.f32.mrf.mxu0
        %v4097 = vadd.f32 0.0, %v4096
        %v4098 = vpop.f32.mrf.mxu0
        %v4099 = vpop.f32.mrf.mxu0
        %v4100 = vadd.f32 0.0, %v4099
        %v4101 = vpop.f32.mrf.mxu0
        %4102 = vmatprep.mubr.bf16.mxu0 0
        %4103 = vmatmul.mubr.bf16.gmra.mxu0 %v4001
        %v4104 = vpop.f32.mrf.mxu0
        %v4105 = vadd.f32 0.0, %v4104
        %v4106 = vpop.f32.mrf.mxu0
        %v4107 = vpop.f32.mrf.mxu0
        %v4108 = vpop.f32.mrf.mxu0
        %4109 = vdwg.mxu0
        %v4110 = vadd.f32 %v3972, %v4089
        %v4111 = vadd.f32 %v3973, %v4092
        %v4112 = vadd.f32 %v3974, %v4097
        %v4113 = vadd.f32 %v3975, %v4100
        %v4114 = vadd.f32 %v3976, %v4105
        %v4115 = vld [vmem:[%s9] sm:$0x1]
        %v4117 = vlaneseq
        %v4118 = vshrl.u32 %v4117, 7
        %v4119 = vsub.s32 0, %v4118
        %v4120 = vrot.slane %v4115, %v4119
        %v4122 = vadd.f32 %v4110, %v4120
        %v4123 = vadd.f32 %v4111, %v4120
        %v4124 = vadd.f32 %v4112, %v4120
        %v4125 = vadd.f32 %v4113, %v4120
        %v4126 = vadd.f32 %v4114, %v4120
        %v4127 = vmax.f32 %v4122, 0.0
        %v4128 = vmax.f32 %v4123, 0.0
        %v4129 = vmax.f32 %v4124, 0.0
        %v4130 = vmax.f32 %v4125, 0.0
        %v4131 = vmax.f32 %v4126, 0.0
        %v4132 = vmul.f32 %v4127, %v2659
        %v4133 = vmul.f32 %v4128, %v2664
        %v4134 = vmul.f32 %v4129, %v2669
        %v4135 = vmul.f32 %v4130, %v2674
        %v4136 = vmul.f32 %v4131, %v2679
        %vm4137 = vcmask 519168
        %4138 = vst.msk [vmem:[#allocation3] sm:$0xf] %vm4137, 0
        %4139 = vst.msk [vmem:[#allocation3 + $0x4] sm:$0xf] %vm4137, 0
        %4140 = vst.msk [vmem:[#allocation3 + $0x8] sm:$0xf] %vm4137, 0
        %4141 = vst.msk [vmem:[#allocation3 + $0xc] sm:$0xf] %vm4137, 0
        %4142 = vst.msk [vmem:[#allocation3 + $0x10] sm:$0xf] %vm4137, 0
        %4143 = vst.msk [vmem:[#allocation3 + $0x14] sm:$0xf] %vm4137, 0
        %vm4144 = vcmask 516096
        %4145 = vst.msk [vmem:[#allocation3 + $0x18] sm:$0x1] %vm4144, 0
        %v4146 = vpack.c.bf16 %v4133, %v4132
        %v4147 = vpack.c.bf16 %v4135, %v4134
        %v4148 = vpack.c.bf16 %v4136, %v4136
        %v4152 = vunpack.c.l.b16 %v4146
        %v4153 = vunpack.c.h.b16 %v4146
        %v4154 = vunpack.c.l.b16 %v4147
        %v4155 = vunpack.c.h.b16 %v4147
        %v4156 = vunpack.c.l.b16 %v4148
        %v4157 = vpack.c.b16 %v4152, %v4152
        %v4158 = vpack.c.b16 %v4153, %v4153
        %v4159 = vpack.c.b16 %v4154, %v4154
        %v4160 = vpack.c.b16 %v4155, %v4155
        %v4161 = vpack.c.b16 %v4156, %v4156
        %v4163 = vshll.u32 %v4157, 16
        %v4165 = vrot.slane %v4163, 5
        %v4166 = vshrl.u32 %v4157, 16
        %v4168 = vrot.slane %v4166, 4
        %v4169 = vor.u32 %v4168, %v4165
        %v4170 = vrot.slane %v4169, 4
        %v4172 = vshll.u32 %v4158, 16
        %v4174 = vrot.slane %v4172, 5
        %v4175 = vsel %vm2711, %v4170, %v4174
        %v4176 = vshrl.u32 %v4158, 16
        %v4178 = vrot.slane %v4176, 4
        %v4179 = vor.u32 %v4178, %v4174
        %v4180 = vrot.slane %v4179, 4
        %v4182 = vshll.u32 %v4159, 16
        %v4184 = vrot.slane %v4182, 5
        %v4185 = vsel %vm2711, %v4180, %v4184
        %v4186 = vshrl.u32 %v4159, 16
        %v4188 = vrot.slane %v4186, 4
        %v4189 = vor.u32 %v4188, %v4184
        %v4190 = vrot.slane %v4189, 4
        %v4192 = vshll.u32 %v4160, 16
        %v4194 = vrot.slane %v4192, 5
        %v4195 = vsel %vm2711, %v4190, %v4194
        %v4196 = vshrl.u32 %v4160, 16
        %v4198 = vrot.slane %v4196, 4
        %v4199 = vor.u32 %v4198, %v4194
        %v4200 = vrot.slane %v4199, 4
        %v4202 = vshll.u32 %v4161, 16
        %v4204 = vrot.slane %v4202, 5
        %v4205 = vsel %vm2711, %v4200, %v4204
        %v4206 = vshrl.u32 %v4161, 16
        %v4208 = vrot.slane %v4206, 4
        %v4209 = vor.u32 %v4208, %v4204
        %v4210 = vrot.slane %v4209, 4
        %vm4217 = vcmask 519171
        %vm4218 = vmand %vm4217, %vm2768
        %v4219 = vld [vmem:[#allocation3] sm:$0x8]
        %v4220 = vsel %vm4218, %v4165, %v4219
        %4221 = vst [vmem:[#allocation3] sm:$0x8] %v4220
        %4222 = vst.msk [vmem:[#allocation3 + $0x4] sm:$0xf] %vm4137, %v4175
        %4223 = vst.msk [vmem:[#allocation3 + $0x8] sm:$0xf] %vm4137, %v4185
        %4224 = vst.msk [vmem:[#allocation3 + $0xc] sm:$0xf] %vm4137, %v4195
        %4225 = vst.msk [vmem:[#allocation3 + $0x10] sm:$0xf] %vm4137, %v4205
        %vm4226 = vcmask 517120
        %vm4227 = vmand %vm4226, %vm2778
        %v4228 = vld [vmem:[#allocation3 + $0x14] sm:$0x3]
        %v4229 = vsel %vm4227, %v4210, %v4228
        %4230 = vst [vmem:[#allocation3 + $0x14] sm:$0x3] %v4229
        %v4231 = vld [vmem:[#allocation3] sm:$0xf]
        %v4232 = vld [vmem:[#allocation3 + $0x4] sm:$0xf]
        %v4233 = vld [vmem:[#allocation3 + $0x8] sm:$0xf]
        %v4234 = vld [vmem:[#allocation3 + $0xc] sm:$0xf]
        %v4235 = vld [vmem:[#allocation3 + $0x10] sm:$0x3]
        %v4236 = vld [vmem:[%s10] sm:$0xf]
        %v4237 = vld [vmem:[%s10 + $0x4] sm:$0xf]
        %v4238 = vld [vmem:[%s10 + $0x8] sm:$0xf]
        %v4239 = vld [vmem:[%s10 + $0xc] sm:$0xf]
        %v4240 = vld [vmem:[%s10 + $0x10] sm:$0xf]
        %v4241 = vld [vmem:[%s10 + $0x14] sm:$0xf]
        %v4242 = vld [vmem:[%s10 + $0x18] sm:$0xf]
        %v4243 = vld [vmem:[%s10 + $0x1c] sm:$0xf]
        %v4244 = vld [vmem:[#allocation3 + $0x10] sm:$0x7]
        %s4245 = scalar_lea.vmem %s10, 32
        %v4246 = vld [vmem:[%s4245] sm:$0xf]
        %v4247 = vld [vmem:[%s4245 + $0x4] sm:$0xf]
        %v4248 = vld [vmem:[%s4245 + $0x8] sm:$0xf]
        %v4249 = vld [vmem:[%s4245 + $0xc] sm:$0xf]
        %v4250 = vld [vmem:[%s4245 + $0x10] sm:$0xf]
        %v4251 = vld [vmem:[%s4245 + $0x14] sm:$0xf]
        %v4252 = vld [vmem:[%s4245 + $0x18] sm:$0xf]
        %v4253 = vld [vmem:[%s4245 + $0x1c] sm:$0xf]
        %v4259 = vunpack.c.l.b16 %v4231
        %v4260 = vunpack.c.l.b16 %v4232
        %v4261 = vunpack.c.l.b16 %v4233
        %v4262 = vunpack.c.l.b16 %v4234
        %v4263 = vunpack.c.l.b16 %v4244
        %v4264 = vpack.c.b16 %v4260, %v4259
        %v4265 = vpack.c.b16 %v4262, %v4261
        %v4266 = vpack.c.b16 %v4263, %v4263
        %v4268 = vshrl.u32 %v4264, 16
        %v4270 = vshll.u32 %v4264, 16
        %v4272 = vrot.slane %v4270, 1
        %v4273 = vor.u32 %v4268, %v4272
        %v4275 = vshll.u32 %v4265, 16
        %v4277 = vrot.slane %v4275, 1
        %v4278 = vsel %vm873, %v4273, %v4277
        %v4279 = vshrl.u32 %v4265, 16
        %v4281 = vor.u32 %v4279, %v4277
        %v4283 = vshll.u32 %v4266, 16
        %v4285 = vrot.slane %v4283, 1
        %v4286 = vsel %vm873, %v4281, %v4285
        %v4287 = vshrl.u32 %v4266, 16
        %v4289 = vor.u32 %v4287, %v4285
        %v4298 = vunpack.c.l.b16 %v4246
        %v4299 = vunpack.c.l.b16 %v4247
        %v4300 = vunpack.c.l.b16 %v4248
        %v4301 = vunpack.c.l.b16 %v4249
        %v4302 = vunpack.c.l.b16 %v4250
        %v4303 = vunpack.c.l.b16 %v4251
        %v4304 = vunpack.c.l.b16 %v4252
        %v4305 = vunpack.c.l.b16 %v4253
        %v4306 = vpack.c.b16 %v4299, %v4298
        %v4307 = vpack.c.b16 %v4301, %v4300
        %v4308 = vpack.c.b16 %v4303, %v4302
        %v4309 = vpack.c.b16 %v4305, %v4304
        %v4315 = vsel %vm995, %v4278, 0
        %v4318 = vsel %vm995, %v4286, 0
        %v4321 = vsel %vm995, %v4289, 0
        %4323 = vmatprep.subr.bf16.mxu0 0
        %4324 = vmatpush1.bf16.msra.mxu0 0
        %4325 = vmatprep.subr.bf16.mxu0 0
        %4326 = vmatpush1.bf16.msra.mxu0 0
        %4327 = vmatprep.subr.bf16.mxu0 0
        %4328 = vmatpush1.bf16.msra.mxu0 0
        %4329 = vmatprep.subr.bf16.mxu0 0
        %4330 = vmatpush1.bf16.msra.mxu0 0
        %4331 = vmatprep.subr.bf16.mxu0 0
        %4332 = vmatpush1.bf16.msra.mxu0 %v4309
        %4333 = vmatprep.subr.bf16.mxu0 0
        %4334 = vmatpush1.bf16.msra.mxu0 %v4308
        %4335 = vmatprep.subr.bf16.mxu0 0
        %4336 = vmatpush1.bf16.msra.mxu0 %v4307
        %4337 = vmatprep.subr.bf16.mxu0 0
        %4338 = vmatpush1.bf16.msra.mxu0 %v4306
        %4339 = vmatprep.subr.bf16.mxu0 0
        %4340 = vmatpush2.bf16.msra.mxu0 0
        %4341 = vmatprep.subr.bf16.mxu0 0
        %4342 = vmatpush2.bf16.msra.mxu0 0
        %4343 = vmatprep.subr.bf16.mxu0 0
        %4344 = vmatpush2.bf16.msra.mxu0 0
        %4345 = vmatprep.subr.bf16.mxu0 0
        %4346 = vmatpush2.bf16.msra.mxu0 0
        %4347 = vmatprep.subr.bf16.mxu0 0
        %4348 = vmatpush2.bf16.msra.mxu0 0
        %4349 = vmatprep.subr.bf16.mxu0 0
        %4350 = vmatpush2.bf16.msra.mxu0 0
        %4351 = vmatprep.subr.bf16.mxu0 0
        %4352 = vmatpush2.bf16.msra.mxu0 0
        %4353 = vmatprep.subr.bf16.mxu0 0
        %4354 = vmatpush2.bf16.msra.mxu0 0
        %4355 = vmatprep.mubr.bf16.mxu0 0
        %4356 = vmatmul.mubr.bf16.gmra.mxu0 %v4315
        %v4357 = vpop.f32.mrf.mxu0
        %v4358 = vadd.f32 0.0, %v4357
        %v4359 = vpop.f32.mrf.mxu0
        %v4360 = vpop.f32.mrf.mxu0
        %v4361 = vadd.f32 0.0, %v4360
        %v4362 = vpop.f32.mrf.mxu0
        %4363 = vmatprep.mubr.bf16.mxu0 0
        %4364 = vmatmul.mubr.bf16.gmra.mxu0 %v4318
        %v4365 = vpop.f32.mrf.mxu0
        %v4366 = vadd.f32 0.0, %v4365
        %v4367 = vpop.f32.mrf.mxu0
        %v4368 = vpop.f32.mrf.mxu0
        %v4369 = vadd.f32 0.0, %v4368
        %v4370 = vpop.f32.mrf.mxu0
        %4371 = vmatprep.mubr.bf16.mxu0 0
        %4372 = vmatmul.mubr.bf16.gmra.mxu0 %v4321
        %v4373 = vpop.f32.mrf.mxu0
        %v4374 = vadd.f32 0.0, %v4373
        %v4375 = vpop.f32.mrf.mxu0
        %v4376 = vpop.f32.mrf.mxu0
        %v4377 = vpop.f32.mrf.mxu0
        %4378 = vdwg.mxu0
        %v4380 = vunpack.c.l.b16 %v4235
        %v4381 = vpack.c.b16 %v4380, %v4380
        %v4390 = vunpack.c.l.b16 %v4236
        %v4391 = vunpack.c.l.b16 %v4237
        %v4392 = vunpack.c.l.b16 %v4238
        %v4393 = vunpack.c.l.b16 %v4239
        %v4394 = vunpack.c.l.b16 %v4240
        %v4395 = vunpack.c.l.b16 %v4241
        %v4396 = vunpack.c.l.b16 %v4242
        %v4397 = vunpack.c.l.b16 %v4243
        %v4398 = vpack.c.b16 %v4391, %v4390
        %v4399 = vpack.c.b16 %v4393, %v4392
        %v4400 = vpack.c.b16 %v4395, %v4394
        %v4401 = vpack.c.b16 %v4397, %v4396
        %v4406 = vsel %vm995, %v4264, 0
        %v4408 = vsel %vm995, %v4265, 0
        %v4411 = vsel %vm995, %v4381, 0
        %4413 = vmatprep.subr.bf16.mxu0 0
        %4414 = vmatpush1.bf16.msra.mxu0 0
        %4415 = vmatprep.subr.bf16.mxu0 0
        %4416 = vmatpush1.bf16.msra.mxu0 0
        %4417 = vmatprep.subr.bf16.mxu0 0
        %4418 = vmatpush1.bf16.msra.mxu0 0
        %4419 = vmatprep.subr.bf16.mxu0 0
        %4420 = vmatpush1.bf16.msra.mxu0 0
        %4421 = vmatprep.subr.bf16.mxu0 0
        %4422 = vmatpush1.bf16.msra.mxu0 %v4401
        %4423 = vmatprep.subr.bf16.mxu0 0
        %4424 = vmatpush1.bf16.msra.mxu0 %v4400
        %4425 = vmatprep.subr.bf16.mxu0 0
        %4426 = vmatpush1.bf16.msra.mxu0 %v4399
        %4427 = vmatprep.subr.bf16.mxu0 0
        %4428 = vmatpush1.bf16.msra.mxu0 %v4398
        %4429 = vmatprep.subr.bf16.mxu0 0
        %4430 = vmatpush2.bf16.msra.mxu0 0
        %4431 = vmatprep.subr.bf16.mxu0 0
        %4432 = vmatpush2.bf16.msra.mxu0 0
        %4433 = vmatprep.subr.bf16.mxu0 0
        %4434 = vmatpush2.bf16.msra.mxu0 0
        %4435 = vmatprep.subr.bf16.mxu0 0
        %4436 = vmatpush2.bf16.msra.mxu0 0
        %4437 = vmatprep.subr.bf16.mxu0 0
        %4438 = vmatpush2.bf16.msra.mxu0 0
        %4439 = vmatprep.subr.bf16.mxu0 0
        %4440 = vmatpush2.bf16.msra.mxu0 0
        %4441 = vmatprep.subr.bf16.mxu0 0
        %4442 = vmatpush2.bf16.msra.mxu0 0
        %4443 = vmatprep.subr.bf16.mxu0 0
        %4444 = vmatpush2.bf16.msra.mxu0 0
        %4445 = vmatprep.mubr.bf16.mxu0 0
        %4446 = vmatmul.mubr.bf16.gmra.mxu0 %v4406
        %v4447 = vpop.f32.mrf.mxu0
        %v4448 = vadd.f32 %v4358, %v4447
        %v4449 = vpop.f32.mrf.mxu0
        %v4450 = vpop.f32.mrf.mxu0
        %v4451 = vadd.f32 %v4361, %v4450
        %v4452 = vpop.f32.mrf.mxu0
        %4453 = vmatprep.mubr.bf16.mxu0 0
        %4454 = vmatmul.mubr.bf16.gmra.mxu0 %v4408
        %v4455 = vpop.f32.mrf.mxu0
        %v4456 = vadd.f32 %v4366, %v4455
        %v4457 = vpop.f32.mrf.mxu0
        %v4458 = vpop.f32.mrf.mxu0
        %v4459 = vadd.f32 %v4369, %v4458
        %v4460 = vpop.f32.mrf.mxu0
        %4461 = vmatprep.mubr.bf16.mxu0 0
        %4462 = vmatmul.mubr.bf16.gmra.mxu0 %v4411
        %v4463 = vpop.f32.mrf.mxu0
        %v4464 = vadd.f32 %v4374, %v4463
        %v4465 = vpop.f32.mrf.mxu0
        %v4466 = vpop.f32.mrf.mxu0
        %v4467 = vpop.f32.mrf.mxu0
        %4468 = vdwg.mxu0
        %v4469 = vld [vmem:[#allocation3] sm:$0xe]
        %s4470 = scalar_lea.vmem %s10, 64
        %v4471 = vld [vmem:[%s4470] sm:$0xf]
        %v4472 = vld [vmem:[%s4470 + $0x4] sm:$0xf]
        %v4473 = vld [vmem:[%s4470 + $0x8] sm:$0xf]
        %v4474 = vld [vmem:[%s4470 + $0xc] sm:$0xf]
        %v4475 = vld [vmem:[%s4470 + $0x10] sm:$0xf]
        %v4476 = vld [vmem:[%s4470 + $0x14] sm:$0xf]
        %v4477 = vld [vmem:[%s4470 + $0x18] sm:$0xf]
        %v4478 = vld [vmem:[%s4470 + $0x1c] sm:$0xf]
        %v4480 = vunpack.c.l.b16 %v4469
        %v4481 = vpack.c.b16 %v4260, %v4480
        %v4482 = vrot.slane %v4481, 1
        %v4483 = vrot.slane %v4265, 1
        %v4484 = vsel %vm1235, %v4482, %v4483
        %v4485 = vrot.slane %v4266, 1
        %v4486 = vsel %vm1235, %v4483, %v4485
        %v4495 = vunpack.c.l.b16 %v4471
        %v4496 = vunpack.c.l.b16 %v4472
        %v4497 = vunpack.c.l.b16 %v4473
        %v4498 = vunpack.c.l.b16 %v4474
        %v4499 = vunpack.c.l.b16 %v4475
        %v4500 = vunpack.c.l.b16 %v4476
        %v4501 = vunpack.c.l.b16 %v4477
        %v4502 = vunpack.c.l.b16 %v4478
        %v4503 = vpack.c.b16 %v4496, %v4495
        %v4504 = vpack.c.b16 %v4498, %v4497
        %v4505 = vpack.c.b16 %v4500, %v4499
        %v4506 = vpack.c.b16 %v4502, %v4501
        %v4512 = vsel %vm995, %v4484, 0
        %v4515 = vsel %vm995, %v4486, 0
        %v4518 = vsel %vm995, %v4485, 0
        %4520 = vmatprep.subr.bf16.mxu0 0
        %4521 = vmatpush1.bf16.msra.mxu0 0
        %4522 = vmatprep.subr.bf16.mxu0 0
        %4523 = vmatpush1.bf16.msra.mxu0 0
        %4524 = vmatprep.subr.bf16.mxu0 0
        %4525 = vmatpush1.bf16.msra.mxu0 0
        %4526 = vmatprep.subr.bf16.mxu0 0
        %4527 = vmatpush1.bf16.msra.mxu0 0
        %4528 = vmatprep.subr.bf16.mxu0 0
        %4529 = vmatpush1.bf16.msra.mxu0 %v4506
        %4530 = vmatprep.subr.bf16.mxu0 0
        %4531 = vmatpush1.bf16.msra.mxu0 %v4505
        %4532 = vmatprep.subr.bf16.mxu0 0
        %4533 = vmatpush1.bf16.msra.mxu0 %v4504
        %4534 = vmatprep.subr.bf16.mxu0 0
        %4535 = vmatpush1.bf16.msra.mxu0 %v4503
        %4536 = vmatprep.subr.bf16.mxu0 0
        %4537 = vmatpush2.bf16.msra.mxu0 0
        %4538 = vmatprep.subr.bf16.mxu0 0
        %4539 = vmatpush2.bf16.msra.mxu0 0
        %4540 = vmatprep.subr.bf16.mxu0 0
        %4541 = vmatpush2.bf16.msra.mxu0 0
        %4542 = vmatprep.subr.bf16.mxu0 0
        %4543 = vmatpush2.bf16.msra.mxu0 0
        %4544 = vmatprep.subr.bf16.mxu0 0
        %4545 = vmatpush2.bf16.msra.mxu0 0
        %4546 = vmatprep.subr.bf16.mxu0 0
        %4547 = vmatpush2.bf16.msra.mxu0 0
        %4548 = vmatprep.subr.bf16.mxu0 0
        %4549 = vmatpush2.bf16.msra.mxu0 0
        %4550 = vmatprep.subr.bf16.mxu0 0
        %4551 = vmatpush2.bf16.msra.mxu0 0
        %4552 = vmatprep.mubr.bf16.mxu0 0
        %4553 = vmatmul.mubr.bf16.gmra.mxu0 %v4512
        %v4554 = vpop.f32.mrf.mxu0
        %v4555 = vadd.f32 0.0, %v4554
        %v4556 = vpop.f32.mrf.mxu0
        %v4557 = vpop.f32.mrf.mxu0
        %v4558 = vadd.f32 0.0, %v4557
        %v4559 = vpop.f32.mrf.mxu0
        %4560 = vmatprep.mubr.bf16.mxu0 0
        %4561 = vmatmul.mubr.bf16.gmra.mxu0 %v4515
        %v4562 = vpop.f32.mrf.mxu0
        %v4563 = vadd.f32 0.0, %v4562
        %v4564 = vpop.f32.mrf.mxu0
        %v4565 = vpop.f32.mrf.mxu0
        %v4566 = vadd.f32 0.0, %v4565
        %v4567 = vpop.f32.mrf.mxu0
        %4568 = vmatprep.mubr.bf16.mxu0 0
        %4569 = vmatmul.mubr.bf16.gmra.mxu0 %v4518
        %v4570 = vpop.f32.mrf.mxu0
        %v4571 = vadd.f32 0.0, %v4570
        %v4572 = vpop.f32.mrf.mxu0
        %v4573 = vpop.f32.mrf.mxu0
        %v4574 = vpop.f32.mrf.mxu0
        %4575 = vdwg.mxu0
        %v4576 = vadd.f32 %v4448, %v4555
        %v4577 = vadd.f32 %v4451, %v4558
        %v4578 = vadd.f32 %v4456, %v4563
        %v4579 = vadd.f32 %v4459, %v4566
        %v4580 = vadd.f32 %v4464, %v4571
        %v4581 = vld [vmem:[#allocation3] sm:$0x8]
        %v4582 = vld [vmem:[#allocation3 + $0x4] sm:$0xf]
        %v4583 = vld [vmem:[#allocation3 + $0x8] sm:$0xf]
        %v4584 = vld [vmem:[#allocation3 + $0xc] sm:$0xf]
        %v4585 = vld [vmem:[#allocation3 + $0x10] sm:$0xf]
        %v4586 = vld [vmem:[#allocation3 + $0x14] sm:$0x1]
        %s4587 = scalar_lea.vmem %s10, 96
        %v4588 = vld [vmem:[%s4587] sm:$0xf]
        %v4589 = vld [vmem:[%s4587 + $0x4] sm:$0xf]
        %v4590 = vld [vmem:[%s4587 + $0x8] sm:$0xf]
        %v4591 = vld [vmem:[%s4587 + $0xc] sm:$0xf]
        %v4592 = vld [vmem:[%s4587 + $0x10] sm:$0xf]
        %v4593 = vld [vmem:[%s4587 + $0x14] sm:$0xf]
        %v4594 = vld [vmem:[%s4587 + $0x18] sm:$0xf]
        %v4595 = vld [vmem:[%s4587 + $0x1c] sm:$0xf]
        %v4602 = vunpack.c.l.b16 %v4581
        %v4603 = vunpack.c.l.b16 %v4582
        %v4604 = vunpack.c.l.b16 %v4583
        %v4605 = vunpack.c.l.b16 %v4584
        %v4606 = vunpack.c.l.b16 %v4585
        %v4607 = vunpack.c.l.b16 %v4586
        %v4608 = vpack.c.b16 %v4603, %v4602
        %v4609 = vpack.c.b16 %v4605, %v4604
        %v4610 = vpack.c.b16 %v4607, %v4606
        %v4611 = vrot.slane %v4608, 3
        %v4612 = vrot.slane %v4609, 3
        %v4613 = vsel %vm1446, %v4611, %v4612
        %v4614 = vrot.slane %v4610, 3
        %v4615 = vsel %vm1446, %v4612, %v4614
        %v4624 = vunpack.c.l.b16 %v4588
        %v4625 = vunpack.c.l.b16 %v4589
        %v4626 = vunpack.c.l.b16 %v4590
        %v4627 = vunpack.c.l.b16 %v4591
        %v4628 = vunpack.c.l.b16 %v4592
        %v4629 = vunpack.c.l.b16 %v4593
        %v4630 = vunpack.c.l.b16 %v4594
        %v4631 = vunpack.c.l.b16 %v4595
        %v4632 = vpack.c.b16 %v4625, %v4624
        %v4633 = vpack.c.b16 %v4627, %v4626
        %v4634 = vpack.c.b16 %v4629, %v4628
        %v4635 = vpack.c.b16 %v4631, %v4630
        %v4641 = vsel %vm995, %v4613, 0
        %v4644 = vsel %vm995, %v4615, 0
        %v4647 = vsel %vm995, %v4614, 0
        %4649 = vmatprep.subr.bf16.mxu0 0
        %4650 = vmatpush1.bf16.msra.mxu0 0
        %4651 = vmatprep.subr.bf16.mxu0 0
        %4652 = vmatpush1.bf16.msra.mxu0 0
        %4653 = vmatprep.subr.bf16.mxu0 0
        %4654 = vmatpush1.bf16.msra.mxu0 0
        %4655 = vmatprep.subr.bf16.mxu0 0
        %4656 = vmatpush1.bf16.msra.mxu0 0
        %4657 = vmatprep.subr.bf16.mxu0 0
        %4658 = vmatpush1.bf16.msra.mxu0 %v4635
        %4659 = vmatprep.subr.bf16.mxu0 0
        %4660 = vmatpush1.bf16.msra.mxu0 %v4634
        %4661 = vmatprep.subr.bf16.mxu0 0
        %4662 = vmatpush1.bf16.msra.mxu0 %v4633
        %4663 = vmatprep.subr.bf16.mxu0 0
        %4664 = vmatpush1.bf16.msra.mxu0 %v4632
        %4665 = vmatprep.subr.bf16.mxu0 0
        %4666 = vmatpush2.bf16.msra.mxu0 0
        %4667 = vmatprep.subr.bf16.mxu0 0
        %4668 = vmatpush2.bf16.msra.mxu0 0
        %4669 = vmatprep.subr.bf16.mxu0 0
        %4670 = vmatpush2.bf16.msra.mxu0 0
        %4671 = vmatprep.subr.bf16.mxu0 0
        %4672 = vmatpush2.bf16.msra.mxu0 0
        %4673 = vmatprep.subr.bf16.mxu0 0
        %4674 = vmatpush2.bf16.msra.mxu0 0
        %4675 = vmatprep.subr.bf16.mxu0 0
        %4676 = vmatpush2.bf16.msra.mxu0 0
        %4677 = vmatprep.subr.bf16.mxu0 0
        %4678 = vmatpush2.bf16.msra.mxu0 0
        %4679 = vmatprep.subr.bf16.mxu0 0
        %4680 = vmatpush2.bf16.msra.mxu0 0
        %4681 = vmatprep.mubr.bf16.mxu0 0
        %4682 = vmatmul.mubr.bf16.gmra.mxu0 %v4641
        %v4683 = vpop.f32.mrf.mxu0
        %v4684 = vadd.f32 0.0, %v4683
        %v4685 = vpop.f32.mrf.mxu0
        %v4686 = vpop.f32.mrf.mxu0
        %v4687 = vadd.f32 0.0, %v4686
        %v4688 = vpop.f32.mrf.mxu0
        %4689 = vmatprep.mubr.bf16.mxu0 0
        %4690 = vmatmul.mubr.bf16.gmra.mxu0 %v4644
        %v4691 = vpop.f32.mrf.mxu0
        %v4692 = vadd.f32 0.0, %v4691
        %v4693 = vpop.f32.mrf.mxu0
        %v4694 = vpop.f32.mrf.mxu0
        %v4695 = vadd.f32 0.0, %v4694
        %v4696 = vpop.f32.mrf.mxu0
        %4697 = vmatprep.mubr.bf16.mxu0 0
        %4698 = vmatmul.mubr.bf16.gmra.mxu0 %v4647
        %v4699 = vpop.f32.mrf.mxu0
        %v4700 = vadd.f32 0.0, %v4699
        %v4701 = vpop.f32.mrf.mxu0
        %v4702 = vpop.f32.mrf.mxu0
        %v4703 = vpop.f32.mrf.mxu0
        %4704 = vdwg.mxu0
        %v4705 = vadd.f32 %v4576, %v4684
        %v4706 = vadd.f32 %v4577, %v4687
        %v4707 = vadd.f32 %v4578, %v4692
        %v4708 = vadd.f32 %v4579, %v4695
        %v4709 = vadd.f32 %v4580, %v4700
        %v4710 = vld [vmem:[#allocation3 + $0x14] sm:$0x3]
        %s4711 = scalar_lea.vmem %s10, 128
        %v4712 = vld [vmem:[%s4711] sm:$0xf]
        %v4713 = vld [vmem:[%s4711 + $0x4] sm:$0xf]
        %v4714 = vld [vmem:[%s4711 + $0x8] sm:$0xf]
        %v4715 = vld [vmem:[%s4711 + $0xc] sm:$0xf]
        %v4716 = vld [vmem:[%s4711 + $0x10] sm:$0xf]
        %v4717 = vld [vmem:[%s4711 + $0x14] sm:$0xf]
        %v4718 = vld [vmem:[%s4711 + $0x18] sm:$0xf]
        %v4719 = vld [vmem:[%s4711 + $0x1c] sm:$0xf]
        %v4721 = vunpack.c.l.b16 %v4710
        %v4722 = vpack.c.b16 %v4721, %v4606
        %v4724 = vshrl.u32 %v4608, 16
        %v4726 = vrot.slane %v4724, 3
        %v4727 = vshll.u32 %v4608, 16
        %v4729 = vrot.slane %v4727, 4
        %v4730 = vor.u32 %v4726, %v4729
        %v4732 = vshrl.u32 %v4609, 16
        %v4734 = vrot.slane %v4732, 3
        %v4735 = vshll.u32 %v4609, 16
        %v4737 = vrot.slane %v4735, 4
        %v4738 = vor.u32 %v4734, %v4737
        %v4739 = vsel %vm1633, %v4730, %v4738
        %v4741 = vshrl.u32 %v4722, 16
        %v4743 = vrot.slane %v4741, 3
        %v4744 = vshll.u32 %v4722, 16
        %v4746 = vrot.slane %v4744, 4
        %v4747 = vor.u32 %v4743, %v4746
        %v4748 = vsel %vm1633, %v4738, %v4747
        %v4757 = vunpack.c.l.b16 %v4712
        %v4758 = vunpack.c.l.b16 %v4713
        %v4759 = vunpack.c.l.b16 %v4714
        %v4760 = vunpack.c.l.b16 %v4715
        %v4761 = vunpack.c.l.b16 %v4716
        %v4762 = vunpack.c.l.b16 %v4717
        %v4763 = vunpack.c.l.b16 %v4718
        %v4764 = vunpack.c.l.b16 %v4719
        %v4765 = vpack.c.b16 %v4758, %v4757
        %v4766 = vpack.c.b16 %v4760, %v4759
        %v4767 = vpack.c.b16 %v4762, %v4761
        %v4768 = vpack.c.b16 %v4764, %v4763
        %v4774 = vsel %vm995, %v4739, 0
        %v4777 = vsel %vm995, %v4748, 0
        %v4780 = vsel %vm995, %v4747, 0
        %4782 = vmatprep.subr.bf16.mxu0 0
        %4783 = vmatpush1.bf16.msra.mxu0 0
        %4784 = vmatprep.subr.bf16.mxu0 0
        %4785 = vmatpush1.bf16.msra.mxu0 0
        %4786 = vmatprep.subr.bf16.mxu0 0
        %4787 = vmatpush1.bf16.msra.mxu0 0
        %4788 = vmatprep.subr.bf16.mxu0 0
        %4789 = vmatpush1.bf16.msra.mxu0 0
        %4790 = vmatprep.subr.bf16.mxu0 0
        %4791 = vmatpush1.bf16.msra.mxu0 %v4768
        %4792 = vmatprep.subr.bf16.mxu0 0
        %4793 = vmatpush1.bf16.msra.mxu0 %v4767
        %4794 = vmatprep.subr.bf16.mxu0 0
        %4795 = vmatpush1.bf16.msra.mxu0 %v4766
        %4796 = vmatprep.subr.bf16.mxu0 0
        %4797 = vmatpush1.bf16.msra.mxu0 %v4765
        %4798 = vmatprep.subr.bf16.mxu0 0
        %4799 = vmatpush2.bf16.msra.mxu0 0
        %4800 = vmatprep.subr.bf16.mxu0 0
        %4801 = vmatpush2.bf16.msra.mxu0 0
        %4802 = vmatprep.subr.bf16.mxu0 0
        %4803 = vmatpush2.bf16.msra.mxu0 0
        %4804 = vmatprep.subr.bf16.mxu0 0
        %4805 = vmatpush2.bf16.msra.mxu0 0
        %4806 = vmatprep.subr.bf16.mxu0 0
        %4807 = vmatpush2.bf16.msra.mxu0 0
        %4808 = vmatprep.subr.bf16.mxu0 0
        %4809 = vmatpush2.bf16.msra.mxu0 0
        %4810 = vmatprep.subr.bf16.mxu0 0
        %4811 = vmatpush2.bf16.msra.mxu0 0
        %4812 = vmatprep.subr.bf16.mxu0 0
        %4813 = vmatpush2.bf16.msra.mxu0 0
        %4814 = vmatprep.mubr.bf16.mxu0 0
        %4815 = vmatmul.mubr.bf16.gmra.mxu0 %v4774
        %v4816 = vpop.f32.mrf.mxu0
        %v4817 = vadd.f32 0.0, %v4816
        %v4818 = vpop.f32.mrf.mxu0
        %v4819 = vpop.f32.mrf.mxu0
        %v4820 = vadd.f32 0.0, %v4819
        %v4821 = vpop.f32.mrf.mxu0
        %4822 = vmatprep.mubr.bf16.mxu0 0
        %4823 = vmatmul.mubr.bf16.gmra.mxu0 %v4777
        %v4824 = vpop.f32.mrf.mxu0
        %v4825 = vadd.f32 0.0, %v4824
        %v4826 = vpop.f32.mrf.mxu0
        %v4827 = vpop.f32.mrf.mxu0
        %v4828 = vadd.f32 0.0, %v4827
        %v4829 = vpop.f32.mrf.mxu0
        %4830 = vmatprep.mubr.bf16.mxu0 0
        %4831 = vmatmul.mubr.bf16.gmra.mxu0 %v4780
        %v4832 = vpop.f32.mrf.mxu0
        %v4833 = vadd.f32 0.0, %v4832
        %v4834 = vpop.f32.mrf.mxu0
        %v4835 = vpop.f32.mrf.mxu0
        %v4836 = vpop.f32.mrf.mxu0
        %4837 = vdwg.mxu0
        %v4838 = vadd.f32 %v4705, %v4817
        %v4839 = vadd.f32 %v4706, %v4820
        %v4840 = vadd.f32 %v4707, %v4825
        %v4841 = vadd.f32 %v4708, %v4828
        %v4842 = vadd.f32 %v4709, %v4833
        %s4843 = scalar_lea.vmem %s10, 160
        %v4844 = vld [vmem:[%s4843] sm:$0xf]
        %v4845 = vld [vmem:[%s4843 + $0x4] sm:$0xf]
        %v4846 = vld [vmem:[%s4843 + $0x8] sm:$0xf]
        %v4847 = vld [vmem:[%s4843 + $0xc] sm:$0xf]
        %v4848 = vld [vmem:[%s4843 + $0x10] sm:$0xf]
        %v4849 = vld [vmem:[%s4843 + $0x14] sm:$0xf]
        %v4850 = vld [vmem:[%s4843 + $0x18] sm:$0xf]
        %v4851 = vld [vmem:[%s4843 + $0x1c] sm:$0xf]
        %v4852 = vpack.c.b16 %v4604, %v4603
        %v4853 = vpack.c.b16 %v4606, %v4605
        %v4854 = vpack.c.b16 %v4721, %v4721
        %v4863 = vunpack.c.l.b16 %v4844
        %v4864 = vunpack.c.l.b16 %v4845
        %v4865 = vunpack.c.l.b16 %v4846
        %v4866 = vunpack.c.l.b16 %v4847
        %v4867 = vunpack.c.l.b16 %v4848
        %v4868 = vunpack.c.l.b16 %v4849
        %v4869 = vunpack.c.l.b16 %v4850
        %v4870 = vunpack.c.l.b16 %v4851
        %v4871 = vpack.c.b16 %v4864, %v4863
        %v4872 = vpack.c.b16 %v4866, %v4865
        %v4873 = vpack.c.b16 %v4868, %v4867
        %v4874 = vpack.c.b16 %v4870, %v4869
        %v4880 = vsel %vm995, %v4852, 0
        %v4883 = vsel %vm995, %v4853, 0
        %v4886 = vsel %vm995, %v4854, 0
        %4888 = vmatprep.subr.bf16.mxu0 0
        %4889 = vmatpush1.bf16.msra.mxu0 0
        %4890 = vmatprep.subr.bf16.mxu0 0
        %4891 = vmatpush1.bf16.msra.mxu0 0
        %4892 = vmatprep.subr.bf16.mxu0 0
        %4893 = vmatpush1.bf16.msra.mxu0 0
        %4894 = vmatprep.subr.bf16.mxu0 0
        %4895 = vmatpush1.bf16.msra.mxu0 0
        %4896 = vmatprep.subr.bf16.mxu0 0
        %4897 = vmatpush1.bf16.msra.mxu0 %v4874
        %4898 = vmatprep.subr.bf16.mxu0 0
        %4899 = vmatpush1.bf16.msra.mxu0 %v4873
        %4900 = vmatprep.subr.bf16.mxu0 0
        %4901 = vmatpush1.bf16.msra.mxu0 %v4872
        %4902 = vmatprep.subr.bf16.mxu0 0
        %4903 = vmatpush1.bf16.msra.mxu0 %v4871
        %4904 = vmatprep.subr.bf16.mxu0 0
        %4905 = vmatpush2.bf16.msra.mxu0 0
        %4906 = vmatprep.subr.bf16.mxu0 0
        %4907 = vmatpush2.bf16.msra.mxu0 0
        %4908 = vmatprep.subr.bf16.mxu0 0
        %4909 = vmatpush2.bf16.msra.mxu0 0
        %4910 = vmatprep.subr.bf16.mxu0 0
        %4911 = vmatpush2.bf16.msra.mxu0 0
        %4912 = vmatprep.subr.bf16.mxu0 0
        %4913 = vmatpush2.bf16.msra.mxu0 0
        %4914 = vmatprep.subr.bf16.mxu0 0
        %4915 = vmatpush2.bf16.msra.mxu0 0
        %4916 = vmatprep.subr.bf16.mxu0 0
        %4917 = vmatpush2.bf16.msra.mxu0 0
        %4918 = vmatprep.subr.bf16.mxu0 0
        %4919 = vmatpush2.bf16.msra.mxu0 0
        %4920 = vmatprep.mubr.bf16.mxu0 0
        %4921 = vmatmul.mubr.bf16.gmra.mxu0 %v4880
        %v4922 = vpop.f32.mrf.mxu0
        %v4923 = vadd.f32 0.0, %v4922
        %v4924 = vpop.f32.mrf.mxu0
        %v4925 = vpop.f32.mrf.mxu0
        %v4926 = vadd.f32 0.0, %v4925
        %v4927 = vpop.f32.mrf.mxu0
        %4928 = vmatprep.mubr.bf16.mxu0 0
        %4929 = vmatmul.mubr.bf16.gmra.mxu0 %v4883
        %v4930 = vpop.f32.mrf.mxu0
        %v4931 = vadd.f32 0.0, %v4930
        %v4932 = vpop.f32.mrf.mxu0
        %v4933 = vpop.f32.mrf.mxu0
        %v4934 = vadd.f32 0.0, %v4933
        %v4935 = vpop.f32.mrf.mxu0
        %4936 = vmatprep.mubr.bf16.mxu0 0
        %4937 = vmatmul.mubr.bf16.gmra.mxu0 %v4886
        %v4938 = vpop.f32.mrf.mxu0
        %v4939 = vadd.f32 0.0, %v4938
        %v4940 = vpop.f32.mrf.mxu0
        %v4941 = vpop.f32.mrf.mxu0
        %v4942 = vpop.f32.mrf.mxu0
        %4943 = vdwg.mxu0
        %v4944 = vadd.f32 %v4838, %v4923
        %v4945 = vadd.f32 %v4839, %v4926
        %v4946 = vadd.f32 %v4840, %v4931
        %v4947 = vadd.f32 %v4841, %v4934
        %v4948 = vadd.f32 %v4842, %v4939
        %v4949 = vld [vmem:[#allocation3 + $0x4] sm:$0xc]
        %v4950 = vld [vmem:[#allocation3 + $0x14] sm:$0xf]
        %s4951 = scalar_lea.vmem %s10, 192
        %v4952 = vld [vmem:[%s4951] sm:$0xf]
        %v4953 = vld [vmem:[%s4951 + $0x4] sm:$0xf]
        %v4954 = vld [vmem:[%s4951 + $0x8] sm:$0xf]
        %v4955 = vld [vmem:[%s4951 + $0xc] sm:$0xf]
        %v4956 = vld [vmem:[%s4951 + $0x10] sm:$0xf]
        %v4957 = vld [vmem:[%s4951 + $0x14] sm:$0xf]
        %v4958 = vld [vmem:[%s4951 + $0x18] sm:$0xf]
        %v4959 = vld [vmem:[%s4951 + $0x1c] sm:$0xf]
        %v4962 = vunpack.c.l.b16 %v4949
        %v4963 = vunpack.c.l.b16 %v4950
        %v4964 = vpack.c.b16 %v4604, %v4962
        %v4965 = vpack.c.b16 %v4963, %v4963
        %v4966 = vrot.slane %v4964, 2
        %v4967 = vrot.slane %v4853, 2
        %v4968 = vsel %vm2044, %v4966, %v4967
        %v4969 = vrot.slane %v4965, 2
        %v4970 = vsel %vm2044, %v4967, %v4969
        %v4979 = vunpack.c.l.b16 %v4952
        %v4980 = vunpack.c.l.b16 %v4953
        %v4981 = vunpack.c.l.b16 %v4954
        %v4982 = vunpack.c.l.b16 %v4955
        %v4983 = vunpack.c.l.b16 %v4956
        %v4984 = vunpack.c.l.b16 %v4957
        %v4985 = vunpack.c.l.b16 %v4958
        %v4986 = vunpack.c.l.b16 %v4959
        %v4987 = vpack.c.b16 %v4980, %v4979
        %v4988 = vpack.c.b16 %v4982, %v4981
        %v4989 = vpack.c.b16 %v4984, %v4983
        %v4990 = vpack.c.b16 %v4986, %v4985
        %v4996 = vsel %vm995, %v4968, 0
        %v4999 = vsel %vm995, %v4970, 0
        %v5002 = vsel %vm995, %v4969, 0
        %5004 = vmatprep.subr.bf16.mxu0 0
        %5005 = vmatpush1.bf16.msra.mxu0 0
        %5006 = vmatprep.subr.bf16.mxu0 0
        %5007 = vmatpush1.bf16.msra.mxu0 0
        %5008 = vmatprep.subr.bf16.mxu0 0
        %5009 = vmatpush1.bf16.msra.mxu0 0
        %5010 = vmatprep.subr.bf16.mxu0 0
        %5011 = vmatpush1.bf16.msra.mxu0 0
        %5012 = vmatprep.subr.bf16.mxu0 0
        %5013 = vmatpush1.bf16.msra.mxu0 %v4990
        %5014 = vmatprep.subr.bf16.mxu0 0
        %5015 = vmatpush1.bf16.msra.mxu0 %v4989
        %5016 = vmatprep.subr.bf16.mxu0 0
        %5017 = vmatpush1.bf16.msra.mxu0 %v4988
        %5018 = vmatprep.subr.bf16.mxu0 0
        %5019 = vmatpush1.bf16.msra.mxu0 %v4987
        %5020 = vmatprep.subr.bf16.mxu0 0
        %5021 = vmatpush2.bf16.msra.mxu0 0
        %5022 = vmatprep.subr.bf16.mxu0 0
        %5023 = vmatpush2.bf16.msra.mxu0 0
        %5024 = vmatprep.subr.bf16.mxu0 0
        %5025 = vmatpush2.bf16.msra.mxu0 0
        %5026 = vmatprep.subr.bf16.mxu0 0
        %5027 = vmatpush2.bf16.msra.mxu0 0
        %5028 = vmatprep.subr.bf16.mxu0 0
        %5029 = vmatpush2.bf16.msra.mxu0 0
        %5030 = vmatprep.subr.bf16.mxu0 0
        %5031 = vmatpush2.bf16.msra.mxu0 0
        %5032 = vmatprep.subr.bf16.mxu0 0
        %5033 = vmatpush2.bf16.msra.mxu0 0
        %5034 = vmatprep.subr.bf16.mxu0 0
        %5035 = vmatpush2.bf16.msra.mxu0 0
        %5036 = vmatprep.mubr.bf16.mxu0 0
        %5037 = vmatmul.mubr.bf16.gmra.mxu0 %v4996
        %v5038 = vpop.f32.mrf.mxu0
        %v5039 = vadd.f32 0.0, %v5038
        %v5040 = vpop.f32.mrf.mxu0
        %v5041 = vpop.f32.mrf.mxu0
        %v5042 = vadd.f32 0.0, %v5041
        %v5043 = vpop.f32.mrf.mxu0
        %5044 = vmatprep.mubr.bf16.mxu0 0
        %5045 = vmatmul.mubr.bf16.gmra.mxu0 %v4999
        %v5046 = vpop.f32.mrf.mxu0
        %v5047 = vadd.f32 0.0, %v5046
        %v5048 = vpop.f32.mrf.mxu0
        %v5049 = vpop.f32.mrf.mxu0
        %v5050 = vadd.f32 0.0, %v5049
        %v5051 = vpop.f32.mrf.mxu0
        %5052 = vmatprep.mubr.bf16.mxu0 0
        %5053 = vmatmul.mubr.bf16.gmra.mxu0 %v5002
        %v5054 = vpop.f32.mrf.mxu0
        %v5055 = vadd.f32 0.0, %v5054
        %v5056 = vpop.f32.mrf.mxu0
        %v5057 = vpop.f32.mrf.mxu0
        %v5058 = vpop.f32.mrf.mxu0
        %5059 = vdwg.mxu0
        %v5060 = vadd.f32 %v4944, %v5039
        %v5061 = vadd.f32 %v4945, %v5042
        %v5062 = vadd.f32 %v4946, %v5047
        %v5063 = vadd.f32 %v4947, %v5050
        %v5064 = vadd.f32 %v4948, %v5055
        %v5065 = vld [vmem:[#allocation3 + $0x4] sm:$0xc]
        %v5066 = vld [vmem:[#allocation3 + $0x8] sm:$0xf]
        %v5067 = vld [vmem:[#allocation3 + $0xc] sm:$0xf]
        %v5068 = vld [vmem:[#allocation3 + $0x10] sm:$0xf]
        %v5069 = vld [vmem:[#allocation3 + $0x14] sm:$0xf]
        %v5070 = vld [vmem:[#allocation3 + $0x18] sm:$0x1]
        %s5071 = scalar_lea.vmem %s10, 224
        %v5072 = vld [vmem:[%s5071] sm:$0xf]
        %v5073 = vld [vmem:[%s5071 + $0x4] sm:$0xf]
        %v5074 = vld [vmem:[%s5071 + $0x8] sm:$0xf]
        %v5075 = vld [vmem:[%s5071 + $0xc] sm:$0xf]
        %v5076 = vld [vmem:[%s5071 + $0x10] sm:$0xf]
        %v5077 = vld [vmem:[%s5071 + $0x14] sm:$0xf]
        %v5078 = vld [vmem:[%s5071 + $0x18] sm:$0xf]
        %v5079 = vld [vmem:[%s5071 + $0x1c] sm:$0xf]
        %v5086 = vunpack.c.l.b16 %v5065
        %v5087 = vunpack.c.l.b16 %v5066
        %v5088 = vunpack.c.l.b16 %v5067
        %v5089 = vunpack.c.l.b16 %v5068
        %v5090 = vunpack.c.l.b16 %v5069
        %v5091 = vunpack.c.l.b16 %v5070
        %v5092 = vpack.c.b16 %v5087, %v5086
        %v5093 = vpack.c.b16 %v5089, %v5088
        %v5094 = vpack.c.b16 %v5091, %v5090
        %v5096 = vshrl.u32 %v5092, 16
        %v5098 = vrot.slane %v5096, 2
        %v5099 = vshll.u32 %v5092, 16
        %v5101 = vrot.slane %v5099, 3
        %v5102 = vor.u32 %v5098, %v5101
        %v5104 = vshrl.u32 %v5093, 16
        %v5106 = vrot.slane %v5104, 2
        %v5107 = vshll.u32 %v5093, 16
        %v5109 = vrot.slane %v5107, 3
        %v5110 = vor.u32 %v5106, %v5109
        %v5111 = vsel %vm2255, %v5102, %v5110
        %v5113 = vshrl.u32 %v5094, 16
        %v5115 = vrot.slane %v5113, 2
        %v5116 = vshll.u32 %v5094, 16
        %v5118 = vrot.slane %v5116, 3
        %v5119 = vor.u32 %v5115, %v5118
        %v5120 = vsel %vm2255, %v5110, %v5119
        %v5129 = vunpack.c.l.b16 %v5072
        %v5130 = vunpack.c.l.b16 %v5073
        %v5131 = vunpack.c.l.b16 %v5074
        %v5132 = vunpack.c.l.b16 %v5075
        %v5133 = vunpack.c.l.b16 %v5076
        %v5134 = vunpack.c.l.b16 %v5077
        %v5135 = vunpack.c.l.b16 %v5078
        %v5136 = vunpack.c.l.b16 %v5079
        %v5137 = vpack.c.b16 %v5130, %v5129
        %v5138 = vpack.c.b16 %v5132, %v5131
        %v5139 = vpack.c.b16 %v5134, %v5133
        %v5140 = vpack.c.b16 %v5136, %v5135
        %v5146 = vsel %vm995, %v5111, 0
        %v5149 = vsel %vm995, %v5120, 0
        %v5152 = vsel %vm995, %v5119, 0
        %5154 = vmatprep.subr.bf16.mxu0 0
        %5155 = vmatpush1.bf16.msra.mxu0 0
        %5156 = vmatprep.subr.bf16.mxu0 0
        %5157 = vmatpush1.bf16.msra.mxu0 0
        %5158 = vmatprep.subr.bf16.mxu0 0
        %5159 = vmatpush1.bf16.msra.mxu0 0
        %5160 = vmatprep.subr.bf16.mxu0 0
        %5161 = vmatpush1.bf16.msra.mxu0 0
        %5162 = vmatprep.subr.bf16.mxu0 0
        %5163 = vmatpush1.bf16.msra.mxu0 %v5140
        %5164 = vmatprep.subr.bf16.mxu0 0
        %5165 = vmatpush1.bf16.msra.mxu0 %v5139
        %5166 = vmatprep.subr.bf16.mxu0 0
        %5167 = vmatpush1.bf16.msra.mxu0 %v5138
        %5168 = vmatprep.subr.bf16.mxu0 0
        %5169 = vmatpush1.bf16.msra.mxu0 %v5137
        %5170 = vmatprep.subr.bf16.mxu0 0
        %5171 = vmatpush2.bf16.msra.mxu0 0
        %5172 = vmatprep.subr.bf16.mxu0 0
        %5173 = vmatpush2.bf16.msra.mxu0 0
        %5174 = vmatprep.subr.bf16.mxu0 0
        %5175 = vmatpush2.bf16.msra.mxu0 0
        %5176 = vmatprep.subr.bf16.mxu0 0
        %5177 = vmatpush2.bf16.msra.mxu0 0
        %5178 = vmatprep.subr.bf16.mxu0 0
        %5179 = vmatpush2.bf16.msra.mxu0 0
        %5180 = vmatprep.subr.bf16.mxu0 0
        %5181 = vmatpush2.bf16.msra.mxu0 0
        %5182 = vmatprep.subr.bf16.mxu0 0
        %5183 = vmatpush2.bf16.msra.mxu0 0
        %5184 = vmatprep.subr.bf16.mxu0 0
        %5185 = vmatpush2.bf16.msra.mxu0 0
        %5186 = vmatprep.mubr.bf16.mxu0 0
        %5187 = vmatmul.mubr.bf16.gmra.mxu0 %v5146
        %v5188 = vpop.f32.mrf.mxu0
        %v5189 = vadd.f32 0.0, %v5188
        %v5190 = vpop.f32.mrf.mxu0
        %v5191 = vpop.f32.mrf.mxu0
        %v5192 = vadd.f32 0.0, %v5191
        %v5193 = vpop.f32.mrf.mxu0
        %5194 = vmatprep.mubr.bf16.mxu0 0
        %5195 = vmatmul.mubr.bf16.gmra.mxu0 %v5149
        %v5196 = vpop.f32.mrf.mxu0
        %v5197 = vadd.f32 0.0, %v5196
        %v5198 = vpop.f32.mrf.mxu0
        %v5199 = vpop.f32.mrf.mxu0
        %v5200 = vadd.f32 0.0, %v5199
        %v5201 = vpop.f32.mrf.mxu0
        %5202 = vmatprep.mubr.bf16.mxu0 0
        %5203 = vmatmul.mubr.bf16.gmra.mxu0 %v5152
        %v5204 = vpop.f32.mrf.mxu0
        %v5205 = vadd.f32 0.0, %v5204
        %v5206 = vpop.f32.mrf.mxu0
        %v5207 = vpop.f32.mrf.mxu0
        %v5208 = vpop.f32.mrf.mxu0
        %5209 = vdwg.mxu0
        %v5210 = vadd.f32 %v5060, %v5189
        %v5211 = vadd.f32 %v5061, %v5192
        %v5212 = vadd.f32 %v5062, %v5197
        %v5213 = vadd.f32 %v5063, %v5200
        %v5214 = vadd.f32 %v5064, %v5205
        %v5215 = vld [vmem:[#allocation3 + $0x4] sm:$0x8]
        %s5216 = scalar_lea.vmem %s10, 256
        %v5217 = vld [vmem:[%s5216] sm:$0xf]
        %v5218 = vld [vmem:[%s5216 + $0x4] sm:$0xf]
        %v5219 = vld [vmem:[%s5216 + $0x8] sm:$0xf]
        %v5220 = vld [vmem:[%s5216 + $0xc] sm:$0xf]
        %v5221 = vld [vmem:[%s5216 + $0x10] sm:$0xf]
        %v5222 = vld [vmem:[%s5216 + $0x14] sm:$0xf]
        %v5223 = vld [vmem:[%s5216 + $0x18] sm:$0xf]
        %v5224 = vld [vmem:[%s5216 + $0x1c] sm:$0xf]
        %v5226 = vunpack.c.l.b16 %v5215
        %v5227 = vpack.c.b16 %v5087, %v5226
        %v5228 = vrot.slane %v5227, 3
        %v5229 = vrot.slane %v5093, 3
        %v5230 = vsel %vm1446, %v5228, %v5229
        %v5231 = vrot.slane %v5094, 3
        %v5232 = vsel %vm1446, %v5229, %v5231
        %v5241 = vunpack.c.l.b16 %v5217
        %v5242 = vunpack.c.l.b16 %v5218
        %v5243 = vunpack.c.l.b16 %v5219
        %v5244 = vunpack.c.l.b16 %v5220
        %v5245 = vunpack.c.l.b16 %v5221
        %v5246 = vunpack.c.l.b16 %v5222
        %v5247 = vunpack.c.l.b16 %v5223
        %v5248 = vunpack.c.l.b16 %v5224
        %v5249 = vpack.c.b16 %v5242, %v5241
        %v5250 = vpack.c.b16 %v5244, %v5243
        %v5251 = vpack.c.b16 %v5246, %v5245
        %v5252 = vpack.c.b16 %v5248, %v5247
        %v5258 = vsel %vm995, %v5230, 0
        %v5261 = vsel %vm995, %v5232, 0
        %v5264 = vsel %vm995, %v5231, 0
        %5266 = vmatprep.subr.bf16.mxu0 0
        %5267 = vmatpush1.bf16.msra.mxu0 0
        %5268 = vmatprep.subr.bf16.mxu0 0
        %5269 = vmatpush1.bf16.msra.mxu0 0
        %5270 = vmatprep.subr.bf16.mxu0 0
        %5271 = vmatpush1.bf16.msra.mxu0 0
        %5272 = vmatprep.subr.bf16.mxu0 0
        %5273 = vmatpush1.bf16.msra.mxu0 0
        %5274 = vmatprep.subr.bf16.mxu0 0
        %5275 = vmatpush1.bf16.msra.mxu0 %v5252
        %5276 = vmatprep.subr.bf16.mxu0 0
        %5277 = vmatpush1.bf16.msra.mxu0 %v5251
        %5278 = vmatprep.subr.bf16.mxu0 0
        %5279 = vmatpush1.bf16.msra.mxu0 %v5250
        %5280 = vmatprep.subr.bf16.mxu0 0
        %5281 = vmatpush1.bf16.msra.mxu0 %v5249
        %5282 = vmatprep.subr.bf16.mxu0 0
        %5283 = vmatpush2.bf16.msra.mxu0 0
        %5284 = vmatprep.subr.bf16.mxu0 0
        %5285 = vmatpush2.bf16.msra.mxu0 0
        %5286 = vmatprep.subr.bf16.mxu0 0
        %5287 = vmatpush2.bf16.msra.mxu0 0
        %5288 = vmatprep.subr.bf16.mxu0 0
        %5289 = vmatpush2.bf16.msra.mxu0 0
        %5290 = vmatprep.subr.bf16.mxu0 0
        %5291 = vmatpush2.bf16.msra.mxu0 0
        %5292 = vmatprep.subr.bf16.mxu0 0
        %5293 = vmatpush2.bf16.msra.mxu0 0
        %5294 = vmatprep.subr.bf16.mxu0 0
        %5295 = vmatpush2.bf16.msra.mxu0 0
        %5296 = vmatprep.subr.bf16.mxu0 0
        %5297 = vmatpush2.bf16.msra.mxu0 0
        %5298 = vmatprep.mubr.bf16.mxu0 0
        %5299 = vmatmul.mubr.bf16.gmra.mxu0 %v5258
        %v5300 = vpop.f32.mrf.mxu0
        %v5301 = vadd.f32 0.0, %v5300
        %v5302 = vpop.f32.mrf.mxu0
        %v5303 = vpop.f32.mrf.mxu0
        %v5304 = vadd.f32 0.0, %v5303
        %v5305 = vpop.f32.mrf.mxu0
        %5306 = vmatprep.mubr.bf16.mxu0 0
        %5307 = vmatmul.mubr.bf16.gmra.mxu0 %v5261
        %v5308 = vpop.f32.mrf.mxu0
        %v5309 = vadd.f32 0.0, %v5308
        %v5310 = vpop.f32.mrf.mxu0
        %v5311 = vpop.f32.mrf.mxu0
        %v5312 = vadd.f32 0.0, %v5311
        %v5313 = vpop.f32.mrf.mxu0
        %5314 = vmatprep.mubr.bf16.mxu0 0
        %5315 = vmatmul.mubr.bf16.gmra.mxu0 %v5264
        %v5316 = vpop.f32.mrf.mxu0
        %v5317 = vadd.f32 0.0, %v5316
        %v5318 = vpop.f32.mrf.mxu0
        %v5319 = vpop.f32.mrf.mxu0
        %v5320 = vpop.f32.mrf.mxu0
        %5321 = vdwg.mxu0
        %v5322 = vadd.f32 %v5210, %v5301
        %v5323 = vadd.f32 %v5211, %v5304
        %v5324 = vadd.f32 %v5212, %v5309
        %v5325 = vadd.f32 %v5213, %v5312
        %v5326 = vadd.f32 %v5214, %v5317
        %v5327 = vld [vmem:[%s11] sm:$0x1]
        %v5329 = vlaneseq
        %v5330 = vshrl.u32 %v5329, 7
        %v5331 = vsub.s32 0, %v5330
        %v5332 = vrot.slane %v5327, %v5331
        %v5334 = vadd.f32 %v5322, %v5332
        %v5335 = vadd.f32 %v5323, %v5332
        %v5336 = vadd.f32 %v5324, %v5332
        %v5337 = vadd.f32 %v5325, %v5332
        %v5338 = vadd.f32 %v5326, %v5332
        %v5339 = vmax.f32 %v5334, 0.0
        %v5340 = vmax.f32 %v5335, 0.0
        %v5341 = vmax.f32 %v5336, 0.0
        %v5342 = vmax.f32 %v5337, 0.0
        %v5343 = vmax.f32 %v5338, 0.0
        %v5344 = vmul.f32 %v5339, %v2659
        %v5345 = vmul.f32 %v5340, %v2664
        %v5346 = vmul.f32 %v5341, %v2669
        %v5347 = vmul.f32 %v5342, %v2674
        %v5348 = vmul.f32 %v5343, %v2679
        %v5349 = vpack.c.bf16 %v5345, %v5344
        %v5350 = vpack.c.bf16 %v5347, %v5346
        %v5351 = vpack.c.bf16 %v5348, %v5348
        %v5352 = vld [vmem:[%s4] sm:$0xff]
        %v5353 = vld [vmem:[%s4 + $0x8] sm:$0xff]
        %v5354 = vld [vmem:[%s4 + $0x10] sm:$0xff]
        %v5355 = vld [vmem:[%s4 + $0x18] sm:$0xff]
        %v5356 = vld [vmem:[%s4 + $0x20] sm:$0xff]
        %v5357 = vld [vmem:[%s4 + $0x28] sm:$0xff]
        %v5358 = vld [vmem:[%s4 + $0x30] sm:$0xff]
        %v5359 = vld [vmem:[%s4 + $0x38] sm:$0xff]
        %v5368 = vunpack.c.l.b16 %v5352
        %v5369 = vunpack.c.h.b16 %v5352
        %v5370 = vunpack.c.l.b16 %v5353
        %v5371 = vunpack.c.h.b16 %v5353
        %v5372 = vunpack.c.l.b16 %v5354
        %v5373 = vunpack.c.h.b16 %v5354
        %v5374 = vunpack.c.l.b16 %v5355
        %v5375 = vunpack.c.h.b16 %v5355
        %v5376 = vunpack.c.l.b16 %v5356
        %v5377 = vunpack.c.h.b16 %v5356
        %v5378 = vunpack.c.l.b16 %v5357
        %v5379 = vunpack.c.h.b16 %v5357
        %v5380 = vunpack.c.l.b16 %v5358
        %v5381 = vunpack.c.h.b16 %v5358
        %v5382 = vunpack.c.l.b16 %v5359
        %v5383 = vunpack.c.h.b16 %v5359
        %v5384 = vpack.c.b16 %v5372, %v5368
        %v5385 = vpack.c.b16 %v5373, %v5369
        %v5386 = vpack.c.b16 %v5374, %v5370
        %v5387 = vpack.c.b16 %v5375, %v5371
        %v5388 = vpack.c.b16 %v5380, %v5376
        %v5389 = vpack.c.b16 %v5381, %v5377
        %v5390 = vpack.c.b16 %v5382, %v5378
        %v5391 = vpack.c.b16 %v5383, %v5379
        %vm5400 = vcmask 261120
        %v5402 = vsel %vm5400, %v5349, 0
        %v5405 = vsel %vm5400, %v5350, 0
        %v5408 = vsel %vm5400, %v5351, 0
        %5410 = vmatprep.subr.bf16.mxu0 0
        %5411 = vmatpush1.bf16.msra.mxu0 0
        %5412 = vmatprep.subr.bf16.mxu0 0
        %5413 = vmatpush1.bf16.msra.mxu0 0
        %5414 = vmatprep.subr.bf16.mxu0 0
        %5415 = vmatpush1.bf16.msra.mxu0 0
        %5416 = vmatprep.subr.bf16.mxu0 0
        %5417 = vmatpush1.bf16.msra.mxu0 0
        %5418 = vmatprep.subr.bf16.mxu0 0
        %5419 = vmatpush1.bf16.msra.mxu0 0
        %5420 = vmatprep.subr.bf16.mxu0 0
        %5421 = vmatpush1.bf16.msra.mxu0 0
        %5422 = vmatprep.subr.bf16.mxu0 %v5389
        %5423 = vmatpush1.bf16.msra.mxu0 %v5388
        %5424 = vmatprep.subr.bf16.mxu0 %v5385
        %5425 = vmatpush1.bf16.msra.mxu0 %v5384
        %5426 = vmatprep.subr.bf16.mxu0 0
        %5427 = vmatpush2.bf16.msra.mxu0 0
        %5428 = vmatprep.subr.bf16.mxu0 0
        %5429 = vmatpush2.bf16.msra.mxu0 0
        %5430 = vmatprep.subr.bf16.mxu0 0
        %5431 = vmatpush2.bf16.msra.mxu0 0
        %5432 = vmatprep.subr.bf16.mxu0 0
        %5433 = vmatpush2.bf16.msra.mxu0 0
        %5434 = vmatprep.subr.bf16.mxu0 0
        %5435 = vmatpush2.bf16.msra.mxu0 0
        %5436 = vmatprep.subr.bf16.mxu0 0
        %5437 = vmatpush2.bf16.msra.mxu0 0
        %5438 = vmatprep.subr.bf16.mxu0 0
        %5439 = vmatpush2.bf16.msra.mxu0 0
        %5440 = vmatprep.subr.bf16.mxu0 0
        %5441 = vmatpush2.bf16.msra.mxu0 0
        %5442 = vmatprep.mubr.bf16.mxu0 0
        %5443 = vmatmul.mubr.bf16.gmra.mxu0 %v5402
        %v5444 = vpop.f32.mrf.mxu0
        %v5445 = vadd.f32 0.0, %v5444
        %v5446 = vpop.f32.mrf.mxu0
        %v5447 = vadd.f32 0.0, %v5446
        %v5448 = vpop.f32.mrf.mxu0
        %v5449 = vadd.f32 0.0, %v5448
        %v5450 = vpop.f32.mrf.mxu0
        %v5451 = vadd.f32 0.0, %v5450
        %5452 = vmatprep.mubr.bf16.mxu0 0
        %5453 = vmatmul.mubr.bf16.gmra.mxu0 %v5405
        %v5454 = vpop.f32.mrf.mxu0
        %v5455 = vadd.f32 0.0, %v5454
        %v5456 = vpop.f32.mrf.mxu0
        %v5457 = vadd.f32 0.0, %v5456
        %v5458 = vpop.f32.mrf.mxu0
        %v5459 = vadd.f32 0.0, %v5458
        %v5460 = vpop.f32.mrf.mxu0
        %v5461 = vadd.f32 0.0, %v5460
        %5462 = vmatprep.mubr.bf16.mxu0 0
        %5463 = vmatmul.mubr.bf16.gmra.mxu0 %v5408
        %v5464 = vpop.f32.mrf.mxu0
        %v5465 = vadd.f32 0.0, %v5464
        %v5466 = vpop.f32.mrf.mxu0
        %v5467 = vadd.f32 0.0, %v5466
        %v5468 = vpop.f32.mrf.mxu0
        %v5469 = vpop.f32.mrf.mxu0
        %5470 = vdwg.mxu0
        %5471 = vmatprep.subr.bf16.mxu0 0
        %5472 = vmatpush1.bf16.msra.mxu0 0
        %5473 = vmatprep.subr.bf16.mxu0 0
        %5474 = vmatpush1.bf16.msra.mxu0 0
        %5475 = vmatprep.subr.bf16.mxu0 0
        %5476 = vmatpush1.bf16.msra.mxu0 0
        %5477 = vmatprep.subr.bf16.mxu0 0
        %5478 = vmatpush1.bf16.msra.mxu0 0
        %5479 = vmatprep.subr.bf16.mxu0 0
        %5480 = vmatpush1.bf16.msra.mxu0 0
        %5481 = vmatprep.subr.bf16.mxu0 0
        %5482 = vmatpush1.bf16.msra.mxu0 0
        %5483 = vmatprep.subr.bf16.mxu0 %v5391
        %5484 = vmatpush1.bf16.msra.mxu0 %v5390
        %5485 = vmatprep.subr.bf16.mxu0 %v5387
        %5486 = vmatpush1.bf16.msra.mxu0 %v5386
        %5487 = vmatprep.subr.bf16.mxu0 0
        %5488 = vmatpush2.bf16.msra.mxu0 0
        %5489 = vmatprep.subr.bf16.mxu0 0
        %5490 = vmatpush2.bf16.msra.mxu0 0
        %5491 = vmatprep.subr.bf16.mxu0 0
        %5492 = vmatpush2.bf16.msra.mxu0 0
        %5493 = vmatprep.subr.bf16.mxu0 0
        %5494 = vmatpush2.bf16.msra.mxu0 0
        %5495 = vmatprep.subr.bf16.mxu0 0
        %5496 = vmatpush2.bf16.msra.mxu0 0
        %5497 = vmatprep.subr.bf16.mxu0 0
        %5498 = vmatpush2.bf16.msra.mxu0 0
        %5499 = vmatprep.subr.bf16.mxu0 0
        %5500 = vmatpush2.bf16.msra.mxu0 0
        %5501 = vmatprep.subr.bf16.mxu0 0
        %5502 = vmatpush2.bf16.msra.mxu0 0
        %5503 = vmatprep.mubr.bf16.mxu0 0
        %5504 = vmatmul.mubr.bf16.gmra.mxu0 %v5402
        %v5505 = vpop.f32.mrf.mxu0
        %v5506 = vadd.f32 0.0, %v5505
        %v5507 = vpop.f32.mrf.mxu0
        %v5508 = vadd.f32 0.0, %v5507
        %v5509 = vpop.f32.mrf.mxu0
        %v5510 = vadd.f32 0.0, %v5509
        %v5511 = vpop.f32.mrf.mxu0
        %v5512 = vadd.f32 0.0, %v5511
        %5513 = vmatprep.mubr.bf16.mxu0 0
        %5514 = vmatmul.mubr.bf16.gmra.mxu0 %v5405
        %v5515 = vpop.f32.mrf.mxu0
        %v5516 = vadd.f32 0.0, %v5515
        %v5517 = vpop.f32.mrf.mxu0
        %v5518 = vadd.f32 0.0, %v5517
        %v5519 = vpop.f32.mrf.mxu0
        %v5520 = vadd.f32 0.0, %v5519
        %v5521 = vpop.f32.mrf.mxu0
        %v5522 = vadd.f32 0.0, %v5521
        %5523 = vmatprep.mubr.bf16.mxu0 0
        %5524 = vmatmul.mubr.bf16.gmra.mxu0 %v5408
        %v5525 = vpop.f32.mrf.mxu0
        %v5526 = vadd.f32 0.0, %v5525
        %v5527 = vpop.f32.mrf.mxu0
        %v5528 = vadd.f32 0.0, %v5527
        %v5529 = vpop.f32.mrf.mxu0
        %v5530 = vpop.f32.mrf.mxu0
        %5531 = vdwg.mxu0
        %v5532 = vmul.f32 %v5445, %v777
        %v5533 = vmul.f32 %v5447, %v778
        %v5534 = vmul.f32 %v5506, %v779
        %v5535 = vmul.f32 %v5508, %v780
        %v5536 = vmul.f32 %v5449, %v781
        %v5537 = vmul.f32 %v5451, %v782
        %v5538 = vmul.f32 %v5510, %v783
        %v5539 = vmul.f32 %v5512, %v784
        %v5540 = vmul.f32 %v5455, %v785
        %v5541 = vmul.f32 %v5457, %v786
        %v5542 = vmul.f32 %v5516, %v787
        %v5543 = vmul.f32 %v5518, %v788
        %v5544 = vmul.f32 %v5459, %v789
        %v5545 = vmul.f32 %v5461, %v790
        %v5546 = vmul.f32 %v5520, %v791
        %v5547 = vmul.f32 %v5522, %v792
        %v5548 = vmul.f32 %v5465, %v793
        %v5549 = vmul.f32 %v5467, %v794
        %v5550 = vmul.f32 %v5526, %v795
        %v5551 = vmul.f32 %v5528, %v796
        %v5552 = vpack.c.bf16 %v5536, %v5532
        %v5553 = vpack.c.bf16 %v5537, %v5533
        %v5554 = vpack.c.bf16 %v5538, %v5534
        %v5555 = vpack.c.bf16 %v5539, %v5535
        %v5556 = vpack.c.bf16 %v5544, %v5540
        %v5557 = vpack.c.bf16 %v5545, %v5541
        %v5558 = vpack.c.bf16 %v5546, %v5542
        %v5559 = vpack.c.bf16 %v5547, %v5543
        %v5560 = vpack.c.bf16 %v5548, %v5548
        %v5561 = vpack.c.bf16 %v5549, %v5549
        %v5562 = vpack.c.bf16 %v5550, %v5550
        %v5563 = vpack.c.bf16 %v5551, %v5551
        %v5564 = vld [vmem:[%s12] sm:$0xff]
        %v5565 = vld [vmem:[%s12 + $0x8] sm:$0xff]
        %v5566 = vld [vmem:[%s12 + $0x10] sm:$0xff]
        %v5567 = vld [vmem:[%s12 + $0x18] sm:$0xff]
        %v5568 = vld [vmem:[%s12 + $0x20] sm:$0xff]
        %v5569 = vld [vmem:[%s12 + $0x28] sm:$0xff]
        %v5570 = vld [vmem:[%s12 + $0x30] sm:$0xff]
        %v5571 = vld [vmem:[%s12 + $0x38] sm:$0xff]
        %v5572 = vld [vmem:[%s12 + $0x40] sm:$0xff]
        %v5573 = vld [vmem:[%s12 + $0x48] sm:$0xff]
        %v5574 = vld [vmem:[%s12 + $0x50] sm:$0xff]
        %v5575 = vld [vmem:[%s12 + $0x58] sm:$0xff]
        %v5576 = vld [vmem:[%s12 + $0x60] sm:$0xff]
        %v5577 = vld [vmem:[%s12 + $0x68] sm:$0xff]
        %v5578 = vld [vmem:[%s12 + $0x70] sm:$0xff]
        %v5579 = vld [vmem:[%s12 + $0x78] sm:$0xff]
        %v5580 = vld [vmem:[%s12 + $0x80] sm:$0xff]
        %v5581 = vld [vmem:[%s12 + $0x88] sm:$0xff]
        %v5582 = vld [vmem:[%s12 + $0x90] sm:$0xff]
        %v5583 = vld [vmem:[%s12 + $0x98] sm:$0xff]
        %v5584 = vld [vmem:[%s12 + $0xa0] sm:$0xff]
        %v5585 = vld [vmem:[%s12 + $0xa8] sm:$0xff]
        %v5586 = vld [vmem:[%s12 + $0xb0] sm:$0xff]
        %v5587 = vld [vmem:[%s12 + $0xb8] sm:$0xff]
        %v5588 = vld [vmem:[%s12 + $0xc0] sm:$0xff]
        %v5589 = vld [vmem:[%s12 + $0xc8] sm:$0xff]
        %v5590 = vld [vmem:[%s12 + $0xd0] sm:$0xff]
        %v5591 = vld [vmem:[%s12 + $0xd8] sm:$0xff]
        %v5592 = vld [vmem:[%s12 + $0xe0] sm:$0xff]
        %v5593 = vld [vmem:[%s12 + $0xe8] sm:$0xff]
        %v5594 = vld [vmem:[%s12 + $0xf0] sm:$0xff]
        %v5595 = vld [vmem:[%s12 + $0xf8] sm:$0xff]
        %v5596 = vld [vmem:[%s12 + $0x100] sm:$0xff]
        %v5597 = vld [vmem:[%s12 + $0x108] sm:$0xff]
        %v5598 = vld [vmem:[%s12 + $0x110] sm:$0xff]
        %v5599 = vld [vmem:[%s12 + $0x118] sm:$0xff]
        %v5600 = vld [vmem:[%s12 + $0x120] sm:$0xff]
        %v5601 = vld [vmem:[%s12 + $0x128] sm:$0xff]
        %v5602 = vld [vmem:[%s12 + $0x130] sm:$0xff]
        %v5603 = vld [vmem:[%s12 + $0x138] sm:$0xff]
        %v5604 = vld [vmem:[%s12 + $0x140] sm:$0xff]
        %v5605 = vld [vmem:[%s12 + $0x148] sm:$0xff]
        %v5606 = vld [vmem:[%s12 + $0x150] sm:$0xff]
        %v5607 = vld [vmem:[%s12 + $0x158] sm:$0xff]
        %v5608 = vld [vmem:[%s12 + $0x160] sm:$0xff]
        %v5609 = vld [vmem:[%s12 + $0x168] sm:$0xff]
        %v5610 = vld [vmem:[%s12 + $0x170] sm:$0xff]
        %v5611 = vld [vmem:[%s12 + $0x178] sm:$0xff]
        %v5612 = vld [vmem:[%s12 + $0x180] sm:$0xff]
        %v5613 = vld [vmem:[%s12 + $0x188] sm:$0xff]
        %v5614 = vld [vmem:[%s12 + $0x190] sm:$0xff]
        %v5615 = vld [vmem:[%s12 + $0x198] sm:$0xff]
        %v5616 = vld [vmem:[%s12 + $0x1a0] sm:$0xff]
        %v5617 = vld [vmem:[%s12 + $0x1a8] sm:$0xff]
        %v5618 = vld [vmem:[%s12 + $0x1b0] sm:$0xff]
        %v5619 = vld [vmem:[%s12 + $0x1b8] sm:$0xff]
        %v5620 = vld [vmem:[%s12 + $0x1c0] sm:$0xff]
        %v5621 = vld [vmem:[%s12 + $0x1c8] sm:$0xff]
        %v5622 = vld [vmem:[%s12 + $0x1d0] sm:$0xff]
        %v5623 = vld [vmem:[%s12 + $0x1d8] sm:$0xff]
        %v5624 = vld [vmem:[%s12 + $0x1e0] sm:$0xff]
        %v5625 = vld [vmem:[%s12 + $0x1e8] sm:$0xff]
        %v5626 = vld [vmem:[%s12 + $0x1f0] sm:$0xff]
        %v5627 = vld [vmem:[%s12 + $0x1f8] sm:$0xff]
        %v5692 = vunpack.c.l.b16 %v5564
        %v5693 = vunpack.c.h.b16 %v5564
        %v5694 = vunpack.c.l.b16 %v5565
        %v5695 = vunpack.c.h.b16 %v5565
        %v5696 = vunpack.c.l.b16 %v5566
        %v5697 = vunpack.c.h.b16 %v5566
        %v5698 = vunpack.c.l.b16 %v5567
        %v5699 = vunpack.c.h.b16 %v5567
        %v5700 = vunpack.c.l.b16 %v5568
        %v5701 = vunpack.c.h.b16 %v5568
        %v5702 = vunpack.c.l.b16 %v5569
        %v5703 = vunpack.c.h.b16 %v5569
        %v5704 = vunpack.c.l.b16 %v5570
        %v5705 = vunpack.c.h.b16 %v5570
        %v5706 = vunpack.c.l.b16 %v5571
        %v5707 = vunpack.c.h.b16 %v5571
        %v5708 = vunpack.c.l.b16 %v5572
        %v5709 = vunpack.c.h.b16 %v5572
        %v5710 = vunpack.c.l.b16 %v5573
        %v5711 = vunpack.c.h.b16 %v5573
        %v5712 = vunpack.c.l.b16 %v5574
        %v5713 = vunpack.c.h.b16 %v5574
        %v5714 = vunpack.c.l.b16 %v5575
        %v5715 = vunpack.c.h.b16 %v5575
        %v5716 = vunpack.c.l.b16 %v5576
        %v5717 = vunpack.c.h.b16 %v5576
        %v5718 = vunpack.c.l.b16 %v5577
        %v5719 = vunpack.c.h.b16 %v5577
        %v5720 = vunpack.c.l.b16 %v5578
        %v5721 = vunpack.c.h.b16 %v5578
        %v5722 = vunpack.c.l.b16 %v5579
        %v5723 = vunpack.c.h.b16 %v5579
        %v5724 = vunpack.c.l.b16 %v5580
        %v5725 = vunpack.c.h.b16 %v5580
        %v5726 = vunpack.c.l.b16 %v5581
        %v5727 = vunpack.c.h.b16 %v5581
        %v5728 = vunpack.c.l.b16 %v5582
        %v5729 = vunpack.c.h.b16 %v5582
        %v5730 = vunpack.c.l.b16 %v5583
        %v5731 = vunpack.c.h.b16 %v5583
        %v5732 = vunpack.c.l.b16 %v5584
        %v5733 = vunpack.c.h.b16 %v5584
        %v5734 = vunpack.c.l.b16 %v5585
        %v5735 = vunpack.c.h.b16 %v5585
        %v5736 = vunpack.c.l.b16 %v5586
        %v5737 = vunpack.c.h.b16 %v5586
        %v5738 = vunpack.c.l.b16 %v5587
        %v5739 = vunpack.c.h.b16 %v5587
        %v5740 = vunpack.c.l.b16 %v5588
        %v5741 = vunpack.c.h.b16 %v5588
        %v5742 = vunpack.c.l.b16 %v5589
        %v5743 = vunpack.c.h.b16 %v5589
        %v5744 = vunpack.c.l.b16 %v5590
        %v5745 = vunpack.c.h.b16 %v5590
        %v5746 = vunpack.c.l.b16 %v5591
        %v5747 = vunpack.c.h.b16 %v5591
        %v5748 = vunpack.c.l.b16 %v5592
        %v5749 = vunpack.c.h.b16 %v5592
        %v5750 = vunpack.c.l.b16 %v5593
        %v5751 = vunpack.c.h.b16 %v5593
        %v5752 = vunpack.c.l.b16 %v5594
        %v5753 = vunpack.c.h.b16 %v5594
        %v5754 = vunpack.c.l.b16 %v5595
        %v5755 = vunpack.c.h.b16 %v5595
        %v5756 = vunpack.c.l.b16 %v5596
        %v5757 = vunpack.c.h.b16 %v5596
        %v5758 = vunpack.c.l.b16 %v5597
        %v5759 = vunpack.c.h.b16 %v5597
        %v5760 = vunpack.c.l.b16 %v5598
        %v5761 = vunpack.c.h.b16 %v5598
        %v5762 = vunpack.c.l.b16 %v5599
        %v5763 = vunpack.c.h.b16 %v5599
        %v5764 = vunpack.c.l.b16 %v5600
        %v5765 = vunpack.c.h.b16 %v5600
        %v5766 = vunpack.c.l.b16 %v5601
        %v5767 = vunpack.c.h.b16 %v5601
        %v5768 = vunpack.c.l.b16 %v5602
        %v5769 = vunpack.c.h.b16 %v5602
        %v5770 = vunpack.c.l.b16 %v5603
        %v5771 = vunpack.c.h.b16 %v5603
        %v5772 = vunpack.c.l.b16 %v5604
        %v5773 = vunpack.c.h.b16 %v5604
        %v5774 = vunpack.c.l.b16 %v5605
        %v5775 = vunpack.c.h.b16 %v5605
        %v5776 = vunpack.c.l.b16 %v5606
        %v5777 = vunpack.c.h.b16 %v5606
        %v5778 = vunpack.c.l.b16 %v5607
        %v5779 = vunpack.c.h.b16 %v5607
        %v5780 = vunpack.c.l.b16 %v5608
        %v5781 = vunpack.c.h.b16 %v5608
        %v5782 = vunpack.c.l.b16 %v5609
        %v5783 = vunpack.c.h.b16 %v5609
        %v5784 = vunpack.c.l.b16 %v5610
        %v5785 = vunpack.c.h.b16 %v5610
        %v5786 = vunpack.c.l.b16 %v5611
        %v5787 = vunpack.c.h.b16 %v5611
        %v5788 = vunpack.c.l.b16 %v5612
        %v5789 = vunpack.c.h.b16 %v5612
        %v5790 = vunpack.c.l.b16 %v5613
        %v5791 = vunpack.c.h.b16 %v5613
        %v5792 = vunpack.c.l.b16 %v5614
        %v5793 = vunpack.c.h.b16 %v5614
        %v5794 = vunpack.c.l.b16 %v5615
        %v5795 = vunpack.c.h.b16 %v5615
        %v5796 = vunpack.c.l.b16 %v5616
        %v5797 = vunpack.c.h.b16 %v5616
        %v5798 = vunpack.c.l.b16 %v5617
        %v5799 = vunpack.c.h.b16 %v5617
        %v5800 = vunpack.c.l.b16 %v5618
        %v5801 = vunpack.c.h.b16 %v5618
        %v5802 = vunpack.c.l.b16 %v5619
        %v5803 = vunpack.c.h.b16 %v5619
        %v5804 = vunpack.c.l.b16 %v5620
        %v5805 = vunpack.c.h.b16 %v5620
        %v5806 = vunpack.c.l.b16 %v5621
        %v5807 = vunpack.c.h.b16 %v5621
        %v5808 = vunpack.c.l.b16 %v5622
        %v5809 = vunpack.c.h.b16 %v5622
        %v5810 = vunpack.c.l.b16 %v5623
        %v5811 = vunpack.c.h.b16 %v5623
        %v5812 = vunpack.c.l.b16 %v5624
        %v5813 = vunpack.c.h.b16 %v5624
        %v5814 = vunpack.c.l.b16 %v5625
        %v5815 = vunpack.c.h.b16 %v5625
        %v5816 = vunpack.c.l.b16 %v5626
        %v5817 = vunpack.c.h.b16 %v5626
        %v5818 = vunpack.c.l.b16 %v5627
        %v5819 = vunpack.c.h.b16 %v5627
        %v5820 = vpack.c.b16 %v5694, %v5692
        %v5821 = vpack.c.b16 %v5695, %v5693
        %v5822 = vpack.c.b16 %v5698, %v5696
        %v5823 = vpack.c.b16 %v5699, %v5697
        %v5824 = vpack.c.b16 %v5702, %v5700
        %v5825 = vpack.c.b16 %v5703, %v5701
        %v5826 = vpack.c.b16 %v5706, %v5704
        %v5827 = vpack.c.b16 %v5707, %v5705
        %v5828 = vpack.c.b16 %v5710, %v5708
        %v5829 = vpack.c.b16 %v5711, %v5709
        %v5830 = vpack.c.b16 %v5714, %v5712
        %v5831 = vpack.c.b16 %v5715, %v5713
        %v5832 = vpack.c.b16 %v5718, %v5716
        %v5833 = vpack.c.b16 %v5719, %v5717
        %v5834 = vpack.c.b16 %v5722, %v5720
        %v5835 = vpack.c.b16 %v5723, %v5721
        %v5836 = vpack.c.b16 %v5726, %v5724
        %v5837 = vpack.c.b16 %v5727, %v5725
        %v5838 = vpack.c.b16 %v5730, %v5728
        %v5839 = vpack.c.b16 %v5731, %v5729
        %v5840 = vpack.c.b16 %v5734, %v5732
        %v5841 = vpack.c.b16 %v5735, %v5733
        %v5842 = vpack.c.b16 %v5738, %v5736
        %v5843 = vpack.c.b16 %v5739, %v5737
        %v5844 = vpack.c.b16 %v5742, %v5740
        %v5845 = vpack.c.b16 %v5743, %v5741
        %v5846 = vpack.c.b16 %v5746, %v5744
        %v5847 = vpack.c.b16 %v5747, %v5745
        %v5848 = vpack.c.b16 %v5750, %v5748
        %v5849 = vpack.c.b16 %v5751, %v5749
        %v5850 = vpack.c.b16 %v5754, %v5752
        %v5851 = vpack.c.b16 %v5755, %v5753
        %v5852 = vpack.c.b16 %v5758, %v5756
        %v5853 = vpack.c.b16 %v5759, %v5757
        %v5854 = vpack.c.b16 %v5762, %v5760
        %v5855 = vpack.c.b16 %v5763, %v5761
        %v5856 = vpack.c.b16 %v5766, %v5764
        %v5857 = vpack.c.b16 %v5767, %v5765
        %v5858 = vpack.c.b16 %v5770, %v5768
        %v5859 = vpack.c.b16 %v5771, %v5769
        %v5860 = vpack.c.b16 %v5774, %v5772
        %v5861 = vpack.c.b16 %v5775, %v5773
        %v5862 = vpack.c.b16 %v5778, %v5776
        %v5863 = vpack.c.b16 %v5779, %v5777
        %v5864 = vpack.c.b16 %v5782, %v5780
        %v5865 = vpack.c.b16 %v5783, %v5781
        %v5866 = vpack.c.b16 %v5786, %v5784
        %v5867 = vpack.c.b16 %v5787, %v5785
        %v5868 = vpack.c.b16 %v5790, %v5788
        %v5869 = vpack.c.b16 %v5791, %v5789
        %v5870 = vpack.c.b16 %v5794, %v5792
        %v5871 = vpack.c.b16 %v5795, %v5793
        %v5872 = vpack.c.b16 %v5798, %v5796
        %v5873 = vpack.c.b16 %v5799, %v5797
        %v5874 = vpack.c.b16 %v5802, %v5800
        %v5875 = vpack.c.b16 %v5803, %v5801
        %v5876 = vpack.c.b16 %v5806, %v5804
        %v5877 = vpack.c.b16 %v5807, %v5805
        %v5878 = vpack.c.b16 %v5810, %v5808
        %v5879 = vpack.c.b16 %v5811, %v5809
        %v5880 = vpack.c.b16 %v5814, %v5812
        %v5881 = vpack.c.b16 %v5815, %v5813
        %v5882 = vpack.c.b16 %v5818, %v5816
        %v5883 = vpack.c.b16 %v5819, %v5817
        %5948 = vmatprep.subr.bf16.mxu0 %v5835
        %5949 = vmatpush1.bf16.msra.mxu0 %v5834
        %5950 = vmatprep.subr.bf16.mxu0 %v5833
        %5951 = vmatpush1.bf16.msra.mxu0 %v5832
        %5952 = vmatprep.subr.bf16.mxu0 %v5831
        %5953 = vmatpush1.bf16.msra.mxu0 %v5830
        %5954 = vmatprep.subr.bf16.mxu0 %v5829
        %5955 = vmatpush1.bf16.msra.mxu0 %v5828
        %5956 = vmatprep.subr.bf16.mxu0 %v5827
        %5957 = vmatpush1.bf16.msra.mxu0 %v5826
        %5958 = vmatprep.subr.bf16.mxu0 %v5825
        %5959 = vmatpush1.bf16.msra.mxu0 %v5824
        %5960 = vmatprep.subr.bf16.mxu0 %v5823
        %5961 = vmatpush1.bf16.msra.mxu0 %v5822
        %5962 = vmatprep.subr.bf16.mxu0 %v5821
        %5963 = vmatpush1.bf16.msra.mxu0 %v5820
        %5964 = vmatprep.subr.bf16.mxu0 %v5851
        %5965 = vmatpush2.bf16.msra.mxu0 %v5850
        %5966 = vmatprep.subr.bf16.mxu0 %v5849
        %5967 = vmatpush2.bf16.msra.mxu0 %v5848
        %5968 = vmatprep.subr.bf16.mxu0 %v5847
        %5969 = vmatpush2.bf16.msra.mxu0 %v5846
        %5970 = vmatprep.subr.bf16.mxu0 %v5845
        %5971 = vmatpush2.bf16.msra.mxu0 %v5844
        %5972 = vmatprep.subr.bf16.mxu0 %v5843
        %5973 = vmatpush2.bf16.msra.mxu0 %v5842
        %5974 = vmatprep.subr.bf16.mxu0 %v5841
        %5975 = vmatpush2.bf16.msra.mxu0 %v5840
        %5976 = vmatprep.subr.bf16.mxu0 %v5839
        %5977 = vmatpush2.bf16.msra.mxu0 %v5838
        %5978 = vmatprep.subr.bf16.mxu0 %v5837
        %5979 = vmatpush2.bf16.msra.mxu0 %v5836
        %5980 = vmatprep.mubr.bf16.mxu0 %v5553
        %5981 = vmatmul.mubr.bf16.gmra.mxu0 %v5552
        %v5982 = vpop.f32.mrf.mxu0
        %v5983 = vadd.f32 0.0, %v5982
        %v5984 = vpop.f32.mrf.mxu0
        %v5985 = vadd.f32 0.0, %v5984
        %v5986 = vpop.f32.mrf.mxu0
        %v5987 = vadd.f32 0.0, %v5986
        %v5988 = vpop.f32.mrf.mxu0
        %v5989 = vadd.f32 0.0, %v5988
        %5990 = vmatprep.mubr.bf16.mxu0 %v5557
        %5991 = vmatmul.mubr.bf16.gmra.mxu0 %v5556
        %v5992 = vpop.f32.mrf.mxu0
        %v5993 = vadd.f32 0.0, %v5992
        %v5994 = vpop.f32.mrf.mxu0
        %v5995 = vadd.f32 0.0, %v5994
        %v5996 = vpop.f32.mrf.mxu0
        %v5997 = vadd.f32 0.0, %v5996
        %v5998 = vpop.f32.mrf.mxu0
        %v5999 = vadd.f32 0.0, %v5998
        %6000 = vmatprep.mubr.bf16.mxu0 %v5561
        %6001 = vmatmul.mubr.bf16.gmra.mxu0 %v5560
        %v6002 = vpop.f32.mrf.mxu0
        %v6003 = vadd.f32 0.0, %v6002
        %v6004 = vpop.f32.mrf.mxu0
        %v6005 = vadd.f32 0.0, %v6004
        %v6006 = vpop.f32.mrf.mxu0
        %v6007 = vpop.f32.mrf.mxu0
        %6008 = vdwg.mxu0
        %6009 = vmatprep.subr.bf16.mxu0 %v5867
        %6010 = vmatpush1.bf16.msra.mxu0 %v5866
        %6011 = vmatprep.subr.bf16.mxu0 %v5865
        %6012 = vmatpush1.bf16.msra.mxu0 %v5864
        %6013 = vmatprep.subr.bf16.mxu0 %v5863
        %6014 = vmatpush1.bf16.msra.mxu0 %v5862
        %6015 = vmatprep.subr.bf16.mxu0 %v5861
        %6016 = vmatpush1.bf16.msra.mxu0 %v5860
        %6017 = vmatprep.subr.bf16.mxu0 %v5859
        %6018 = vmatpush1.bf16.msra.mxu0 %v5858
        %6019 = vmatprep.subr.bf16.mxu0 %v5857
        %6020 = vmatpush1.bf16.msra.mxu0 %v5856
        %6021 = vmatprep.subr.bf16.mxu0 %v5855
        %6022 = vmatpush1.bf16.msra.mxu0 %v5854
        %6023 = vmatprep.subr.bf16.mxu0 %v5853
        %6024 = vmatpush1.bf16.msra.mxu0 %v5852
        %6025 = vmatprep.subr.bf16.mxu0 %v5883
        %6026 = vmatpush2.bf16.msra.mxu0 %v5882
        %6027 = vmatprep.subr.bf16.mxu0 %v5881
        %6028 = vmatpush2.bf16.msra.mxu0 %v5880
        %6029 = vmatprep.subr.bf16.mxu0 %v5879
        %6030 = vmatpush2.bf16.msra.mxu0 %v5878
        %6031 = vmatprep.subr.bf16.mxu0 %v5877
        %6032 = vmatpush2.bf16.msra.mxu0 %v5876
        %6033 = vmatprep.subr.bf16.mxu0 %v5875
        %6034 = vmatpush2.bf16.msra.mxu0 %v5874
        %6035 = vmatprep.subr.bf16.mxu0 %v5873
        %6036 = vmatpush2.bf16.msra.mxu0 %v5872
        %6037 = vmatprep.subr.bf16.mxu0 %v5871
        %6038 = vmatpush2.bf16.msra.mxu0 %v5870
        %6039 = vmatprep.subr.bf16.mxu0 %v5869
        %6040 = vmatpush2.bf16.msra.mxu0 %v5868
        %6041 = vmatprep.mubr.bf16.mxu0 %v5555
        %6042 = vmatmul.mubr.bf16.gmra.mxu0 %v5554
        %v6043 = vpop.f32.mrf.mxu0
        %v6044 = vadd.f32 %v5983, %v6043
        %v6045 = vpop.f32.mrf.mxu0
        %v6046 = vadd.f32 %v5985, %v6045
        %v6047 = vpop.f32.mrf.mxu0
        %v6048 = vadd.f32 %v5987, %v6047
        %v6049 = vpop.f32.mrf.mxu0
        %v6050 = vadd.f32 %v5989, %v6049
        %6051 = vmatprep.mubr.bf16.mxu0 %v5559
        %6052 = vmatmul.mubr.bf16.gmra.mxu0 %v5558
        %v6053 = vpop.f32.mrf.mxu0
        %v6054 = vadd.f32 %v5993, %v6053
        %v6055 = vpop.f32.mrf.mxu0
        %v6056 = vadd.f32 %v5995, %v6055
        %v6057 = vpop.f32.mrf.mxu0
        %v6058 = vadd.f32 %v5997, %v6057
        %v6059 = vpop.f32.mrf.mxu0
        %v6060 = vadd.f32 %v5999, %v6059
        %6061 = vmatprep.mubr.bf16.mxu0 %v5563
        %6062 = vmatmul.mubr.bf16.gmra.mxu0 %v5562
        %v6063 = vpop.f32.mrf.mxu0
        %v6064 = vadd.f32 %v6003, %v6063
        %v6065 = vpop.f32.mrf.mxu0
        %v6066 = vadd.f32 %v6005, %v6065
        %v6067 = vpop.f32.mrf.mxu0
        %v6068 = vpop.f32.mrf.mxu0
        %6069 = vdwg.mxu0
        %v6070 = vadd.f32 %v6044, %v6048
        %v6071 = vadd.f32 %v6070, %v6054
        %v6072 = vadd.f32 %v6071, %v6058
        %vm6073 = vcmask 1043456
        %v6074 = vsel %vm6073, %v6064, 0.0
        %v6075 = vadd.f32 %v6072, %v6074
        %v6076 = vrot.slane %v6075, 4
        %v6077 = vadd.f32 %v6075, %v6076
        %v6078 = vrot.slane %v6077, 2
        %v6079 = vadd.f32 %v6077, %v6078
        %v6080 = vrot.slane %v6079, 1
        %v6081 = vadd.f32 %v6079, %v6080
        %v6082 = vadd.f32 %v6046, %v6050
        %v6083 = vadd.f32 %v6082, %v6056
        %v6084 = vadd.f32 %v6083, %v6060
        %v6085 = vsel %vm6073, %v6066, 0.0
        %v6086 = vadd.f32 %v6084, %v6085
        %v6087 = vrot.slane %v6086, 4
        %v6088 = vadd.f32 %v6086, %v6087
        %v6089 = vrot.slane %v6088, 2
        %v6090 = vadd.f32 %v6088, %v6089
        %v6091 = vrot.slane %v6090, 1
        %v6092 = vadd.f32 %v6090, %v6091
        %v6093 = vld [vmem:[%s13] sm:$0x3]
        %v6095 = vlaneseq
        %v6096 = vshrl.u32 %v6095, 7
        %v6097 = vsub.s32 0, %v6096
        %v6098 = vrot.slane %v6093, %v6097
        %v6099 = vlaneseq
        %v6100 = vshrl.u32 %v6099, 7
        %v6101 = vsub.s32 1, %v6100
        %v6102 = vrot.slane %v6093, %v6101
        %v6105 = vadd.f32 %v6081, %v6098
        %v6106 = vadd.f32 %v6092, %v6102
        %6107 = vst [vmem:[%s744] sm:$0x1] %v6105
        %6108 = vst [vmem:[%s750] sm:$0x1] %v6106
        %v6109 = vld [vmem:[%s765] sm:$0x1]
        %v6110 = vmul.f32 %v6106, 0.5
        %v6111 = vmul.f32 %v6110, 1.442695
        %v6112 = vpow.pop %v6111
        %v6113 = vmul.f32 %v6109, %v6112
        %v6114 = vadd.f32 %v6105, %v6113
        %v6115 = vpack.c.bf16 %v6114, %v6114
        %v6116 = vld [vmem:[%s14] sm:$0xff]
        %v6117 = vld [vmem:[%s14 + $0x8] sm:$0xff]
        %v6118 = vld [vmem:[%s14 + $0x10] sm:$0xff]
        %v6119 = vld [vmem:[%s14 + $0x18] sm:$0xff]
        %v6120 = vld [vmem:[%s14 + $0x20] sm:$0xff]
        %v6121 = vld [vmem:[%s14 + $0x28] sm:$0xff]
        %v6122 = vld [vmem:[%s14 + $0x30] sm:$0xff]
        %v6123 = vld [vmem:[%s14 + $0x38] sm:$0xff]
        %v6124 = vld [vmem:[%s14 + $0x40] sm:$0xff]
        %v6125 = vld [vmem:[%s14 + $0x48] sm:$0xff]
        %v6126 = vld [vmem:[%s14 + $0x50] sm:$0xff]
        %v6127 = vld [vmem:[%s14 + $0x58] sm:$0xff]
        %v6128 = vld [vmem:[%s14 + $0x60] sm:$0xff]
        %v6129 = vld [vmem:[%s14 + $0x68] sm:$0xff]
        %v6130 = vld [vmem:[%s14 + $0x70] sm:$0xff]
        %v6131 = vld [vmem:[%s14 + $0x78] sm:$0xff]
        %v6132 = vld [vmem:[%s14 + $0x80] sm:$0xff]
        %v6133 = vld [vmem:[%s14 + $0x88] sm:$0xff]
        %v6134 = vld [vmem:[%s14 + $0x90] sm:$0xff]
        %v6135 = vld [vmem:[%s14 + $0x98] sm:$0xff]
        %v6136 = vld [vmem:[%s14 + $0xa0] sm:$0xff]
        %v6137 = vld [vmem:[%s14 + $0xa8] sm:$0xff]
        %v6138 = vld [vmem:[%s14 + $0xb0] sm:$0xff]
        %v6139 = vld [vmem:[%s14 + $0xb8] sm:$0xff]
        %v6140 = vld [vmem:[%s14 + $0xc0] sm:$0xff]
        %v6141 = vld [vmem:[%s14 + $0xc8] sm:$0xff]
        %v6142 = vld [vmem:[%s14 + $0xd0] sm:$0xff]
        %v6143 = vld [vmem:[%s14 + $0xd8] sm:$0xff]
        %v6144 = vld [vmem:[%s14 + $0xe0] sm:$0xff]
        %v6145 = vld [vmem:[%s14 + $0xe8] sm:$0xff]
        %v6146 = vld [vmem:[%s14 + $0xf0] sm:$0xff]
        %v6147 = vld [vmem:[%s14 + $0xf8] sm:$0xff]
        %v6148 = vld [vmem:[%s15] sm:$0xf]
        %v6181 = vunpack.c.l.b16 %v6116
        %v6182 = vunpack.c.h.b16 %v6116
        %v6183 = vunpack.c.l.b16 %v6117
        %v6184 = vunpack.c.h.b16 %v6117
        %v6185 = vunpack.c.l.b16 %v6118
        %v6186 = vunpack.c.h.b16 %v6118
        %v6187 = vunpack.c.l.b16 %v6119
        %v6188 = vunpack.c.h.b16 %v6119
        %v6189 = vunpack.c.l.b16 %v6120
        %v6190 = vunpack.c.h.b16 %v6120
        %v6191 = vunpack.c.l.b16 %v6121
        %v6192 = vunpack.c.h.b16 %v6121
        %v6193 = vunpack.c.l.b16 %v6122
        %v6194 = vunpack.c.h.b16 %v6122
        %v6195 = vunpack.c.l.b16 %v6123
        %v6196 = vunpack.c.h.b16 %v6123
        %v6197 = vunpack.c.l.b16 %v6124
        %v6198 = vunpack.c.h.b16 %v6124
        %v6199 = vunpack.c.l.b16 %v6125
        %v6200 = vunpack.c.h.b16 %v6125
        %v6201 = vunpack.c.l.b16 %v6126
        %v6202 = vunpack.c.h.b16 %v6126
        %v6203 = vunpack.c.l.b16 %v6127
        %v6204 = vunpack.c.h.b16 %v6127
        %v6205 = vunpack.c.l.b16 %v6128
        %v6206 = vunpack.c.h.b16 %v6128
        %v6207 = vunpack.c.l.b16 %v6129
        %v6208 = vunpack.c.h.b16 %v6129
        %v6209 = vunpack.c.l.b16 %v6130
        %v6210 = vunpack.c.h.b16 %v6130
        %v6211 = vunpack.c.l.b16 %v6131
        %v6212 = vunpack.c.h.b16 %v6131
        %v6213 = vunpack.c.l.b16 %v6132
        %v6214 = vunpack.c.h.b16 %v6132
        %v6215 = vunpack.c.l.b16 %v6133
        %v6216 = vunpack.c.h.b16 %v6133
        %v6217 = vunpack.c.l.b16 %v6134
        %v6218 = vunpack.c.h.b16 %v6134
        %v6219 = vunpack.c.l.b16 %v6135
        %v6220 = vunpack.c.h.b16 %v6135
        %v6221 = vunpack.c.l.b16 %v6136
        %v6222 = vunpack.c.h.b16 %v6136
        %v6223 = vunpack.c.l.b16 %v6137
        %v6224 = vunpack.c.h.b16 %v6137
        %v6225 = vunpack.c.l.b16 %v6138
        %v6226 = vunpack.c.h.b16 %v6138
        %v6227 = vunpack.c.l.b16 %v6139
        %v6228 = vunpack.c.h.b16 %v6139
        %v6229 = vunpack.c.l.b16 %v6140
        %v6230 = vunpack.c.h.b16 %v6140
        %v6231 = vunpack.c.l.b16 %v6141
        %v6232 = vunpack.c.h.b16 %v6141
        %v6233 = vunpack.c.l.b16 %v6142
        %v6234 = vunpack.c.h.b16 %v6142
        %v6235 = vunpack.c.l.b16 %v6143
        %v6236 = vunpack.c.h.b16 %v6143
        %v6237 = vunpack.c.l.b16 %v6144
        %v6238 = vunpack.c.h.b16 %v6144
        %v6239 = vunpack.c.l.b16 %v6145
        %v6240 = vunpack.c.h.b16 %v6145
        %v6241 = vunpack.c.l.b16 %v6146
        %v6242 = vunpack.c.h.b16 %v6146
        %v6243 = vunpack.c.l.b16 %v6147
        %v6244 = vunpack.c.h.b16 %v6147
        %v6245 = vpack.c.b16 %v6185, %v6181
        %v6246 = vpack.c.b16 %v6186, %v6182
        %v6247 = vpack.c.b16 %v6187, %v6183
        %v6248 = vpack.c.b16 %v6188, %v6184
        %v6249 = vpack.c.b16 %v6193, %v6189
        %v6250 = vpack.c.b16 %v6194, %v6190
        %v6251 = vpack.c.b16 %v6195, %v6191
        %v6252 = vpack.c.b16 %v6196, %v6192
        %v6253 = vpack.c.b16 %v6201, %v6197
        %v6254 = vpack.c.b16 %v6202, %v6198
        %v6255 = vpack.c.b16 %v6203, %v6199
        %v6256 = vpack.c.b16 %v6204, %v6200
        %v6257 = vpack.c.b16 %v6209, %v6205
        %v6258 = vpack.c.b16 %v6210, %v6206
        %v6259 = vpack.c.b16 %v6211, %v6207
        %v6260 = vpack.c.b16 %v6212, %v6208
        %v6261 = vpack.c.b16 %v6217, %v6213
        %v6262 = vpack.c.b16 %v6218, %v6214
        %v6263 = vpack.c.b16 %v6219, %v6215
        %v6264 = vpack.c.b16 %v6220, %v6216
        %v6265 = vpack.c.b16 %v6225, %v6221
        %v6266 = vpack.c.b16 %v6226, %v6222
        %v6267 = vpack.c.b16 %v6227, %v6223
        %v6268 = vpack.c.b16 %v6228, %v6224
        %v6269 = vpack.c.b16 %v6233, %v6229
        %v6270 = vpack.c.b16 %v6234, %v6230
        %v6271 = vpack.c.b16 %v6235, %v6231
        %v6272 = vpack.c.b16 %v6236, %v6232
        %v6273 = vpack.c.b16 %v6241, %v6237
        %v6274 = vpack.c.b16 %v6242, %v6238
        %v6275 = vpack.c.b16 %v6243, %v6239
        %v6276 = vpack.c.b16 %v6244, %v6240
        %v6310 = vlaneseq
        %v6311 = vshrl.u32 %v6310, 7
        %v6312 = vsub.s32 0, %v6311
        %v6313 = vrot.slane %v6148, %v6312
        %v6314 = vlaneseq
        %v6315 = vshrl.u32 %v6314, 7
        %v6316 = vsub.s32 1, %v6315
        %v6317 = vrot.slane %v6148, %v6316
        %v6318 = vlaneseq
        %v6319 = vshrl.u32 %v6318, 7
        %v6320 = vsub.s32 2, %v6319
        %v6321 = vrot.slane %v6148, %v6320
        %v6322 = vlaneseq
        %v6323 = vshrl.u32 %v6322, 7
        %v6324 = vsub.s32 3, %v6323
        %v6325 = vrot.slane %v6148, %v6324
        %6330 = vmatprep.subr.bf16.mxu0 %v6274
        %6331 = vmatpush1.bf16.msra.mxu0 %v6273
        %6332 = vmatprep.subr.bf16.mxu0 %v6270
        %6333 = vmatpush1.bf16.msra.mxu0 %v6269
        %6334 = vmatprep.subr.bf16.mxu0 %v6266
        %6335 = vmatpush1.bf16.msra.mxu0 %v6265
        %6336 = vmatprep.subr.bf16.mxu0 %v6262
        %6337 = vmatpush1.bf16.msra.mxu0 %v6261
        %6338 = vmatprep.subr.bf16.mxu0 %v6258
        %6339 = vmatpush1.bf16.msra.mxu0 %v6257
        %6340 = vmatprep.subr.bf16.mxu0 %v6254
        %6341 = vmatpush1.bf16.msra.mxu0 %v6253
        %6342 = vmatprep.subr.bf16.mxu0 %v6250
        %6343 = vmatpush1.bf16.msra.mxu0 %v6249
        %6344 = vmatprep.subr.bf16.mxu0 %v6246
        %6345 = vmatpush1.bf16.msra.mxu0 %v6245
        %6346 = vmatprep.subr.bf16.mxu0 0
        %6347 = vmatpush2.bf16.msra.mxu0 0
        %6348 = vmatprep.subr.bf16.mxu0 0
        %6349 = vmatpush2.bf16.msra.mxu0 0
        %6350 = vmatprep.subr.bf16.mxu0 0
        %6351 = vmatpush2.bf16.msra.mxu0 0
        %6352 = vmatprep.subr.bf16.mxu0 0
        %6353 = vmatpush2.bf16.msra.mxu0 0
        %6354 = vmatprep.subr.bf16.mxu0 0
        %6355 = vmatpush2.bf16.msra.mxu0 0
        %6356 = vmatprep.subr.bf16.mxu0 0
        %6357 = vmatpush2.bf16.msra.mxu0 0
        %6358 = vmatprep.subr.bf16.mxu0 0
        %6359 = vmatpush2.bf16.msra.mxu0 0
        %6360 = vmatprep.subr.bf16.mxu0 0
        %6361 = vmatpush2.bf16.msra.mxu0 0
        %6362 = vmatprep.mubr.bf16.mxu0 0
        %6363 = vmatmul.mubr.bf16.gmra.mxu0 %v6115
        %v6364 = vpop.f32.mrf.mxu0
        %v6365 = vadd.f32 %v6313, %v6364
        %v6366 = vpop.f32.mrf.mxu0
        %v6367 = vadd.f32 %v6317, %v6366
        %v6368 = vpop.f32.mrf.mxu0
        %v6369 = vpop.f32.mrf.mxu0
        %6370 = vdwg.mxu0
        %6371 = vmatprep.subr.bf16.mxu0 %v6276
        %6372 = vmatpush1.bf16.msra.mxu0 %v6275
        %6373 = vmatprep.subr.bf16.mxu0 %v6272
        %6374 = vmatpush1.bf16.msra.mxu0 %v6271
        %6375 = vmatprep.subr.bf16.mxu0 %v6268
        %6376 = vmatpush1.bf16.msra.mxu0 %v6267
        %6377 = vmatprep.subr.bf16.mxu0 %v6264
        %6378 = vmatpush1.bf16.msra.mxu0 %v6263
        %6379 = vmatprep.subr.bf16.mxu0 %v6260
        %6380 = vmatpush1.bf16.msra.mxu0 %v6259
        %6381 = vmatprep.subr.bf16.mxu0 %v6256
        %6382 = vmatpush1.bf16.msra.mxu0 %v6255
        %6383 = vmatprep.subr.bf16.mxu0 %v6252
        %6384 = vmatpush1.bf16.msra.mxu0 %v6251
        %6385 = vmatprep.subr.bf16.mxu0 %v6248
        %6386 = vmatpush1.bf16.msra.mxu0 %v6247
        %6387 = vmatprep.subr.bf16.mxu0 0
        %6388 = vmatpush2.bf16.msra.mxu0 0
        %6389 = vmatprep.subr.bf16.mxu0 0
        %6390 = vmatpush2.bf16.msra.mxu0 0
        %6391 = vmatprep.subr.bf16.mxu0 0
        %6392 = vmatpush2.bf16.msra.mxu0 0
        %6393 = vmatprep.subr.bf16.mxu0 0
        %6394 = vmatpush2.bf16.msra.mxu0 0
        %6395 = vmatprep.subr.bf16.mxu0 0
        %6396 = vmatpush2.bf16.msra.mxu0 0
        %6397 = vmatprep.subr.bf16.mxu0 0
        %6398 = vmatpush2.bf16.msra.mxu0 0
        %6399 = vmatprep.subr.bf16.mxu0 0
        %6400 = vmatpush2.bf16.msra.mxu0 0
        %6401 = vmatprep.subr.bf16.mxu0 0
        %6402 = vmatpush2.bf16.msra.mxu0 0
        %6403 = vmatprep.mubr.bf16.mxu0 0
        %6404 = vmatmul.mubr.bf16.gmra.mxu0 %v6115
        %v6405 = vpop.f32.mrf.mxu0
        %v6406 = vadd.f32 %v6321, %v6405
        %v6407 = vpop.f32.mrf.mxu0
        %v6408 = vadd.f32 %v6325, %v6407
        %v6409 = vpop.f32.mrf.mxu0
        %v6410 = vpop.f32.mrf.mxu0
        %6411 = vdwg.mxu0
        %v6412 = vlaneseq
        %v6413 = vshrl.u32 %v6412, 7
        %v6414 = vsub.s32 0, %v6413
        %v6415 = vrot.slane %v6365, %v6414
        %v6416 = vlaneseq
        %v6417 = vshrl.u32 %v6416, 7
        %v6418 = vsub.s32 0, %v6417
        %v6419 = vrot.slane %v6367, %v6418
        %v6420 = vlaneseq
        %v6421 = vshrl.u32 %v6420, 7
        %v6422 = vsub.s32 0, %v6421
        %v6423 = vrot.slane %v6406, %v6422
        %v6424 = vlaneseq
        %v6425 = vshrl.u32 %v6424, 7
        %v6426 = vsub.s32 0, %v6425
        %v6427 = vrot.slane %v6408, %v6426
        %v6428 = vmul.f32 %v6415, %v777
        %v6429 = vmul.f32 %v6419, %v778
        %v6430 = vmul.f32 %v6423, %v779
        %v6431 = vmul.f32 %v6427, %v780
        %v6432 = vmul.f32 %v6415, %v781
        %v6433 = vmul.f32 %v6419, %v782
        %v6434 = vmul.f32 %v6423, %v783
        %v6435 = vmul.f32 %v6427, %v784
        %v6436 = vmul.f32 %v6415, %v785
        %v6437 = vmul.f32 %v6419, %v786
        %v6438 = vmul.f32 %v6423, %v787
        %v6439 = vmul.f32 %v6427, %v788
        %v6440 = vmul.f32 %v6415, %v789
        %v6441 = vmul.f32 %v6419, %v790
        %v6442 = vmul.f32 %v6423, %v791
        %v6443 = vmul.f32 %v6427, %v792
        %v6444 = vmul.f32 %v6415, %v793
        %v6445 = vmul.f32 %v6419, %v794
        %v6446 = vmul.f32 %v6423, %v795
        %v6447 = vmul.f32 %v6427, %v796
        %v6448 = vpack.c.bf16 %v6432, %v6428
        %v6449 = vpack.c.bf16 %v6433, %v6429
        %v6450 = vpack.c.bf16 %v6434, %v6430
        %v6451 = vpack.c.bf16 %v6435, %v6431
        %v6452 = vpack.c.bf16 %v6440, %v6436
        %v6453 = vpack.c.bf16 %v6441, %v6437
        %v6454 = vpack.c.bf16 %v6442, %v6438
        %v6455 = vpack.c.bf16 %v6443, %v6439
        %v6456 = vpack.c.bf16 %v6444, %v6444
        %v6457 = vpack.c.bf16 %v6445, %v6445
        %v6458 = vpack.c.bf16 %v6446, %v6446
        %v6459 = vpack.c.bf16 %v6447, %v6447
        %v6460 = vld [vmem:[%s5] sm:$0xf]
        %v6461 = vld [vmem:[%s5 + $0x4] sm:$0xf]
        %v6462 = vld [vmem:[%s5 + $0x8] sm:$0xf]
        %v6463 = vld [vmem:[%s5 + $0xc] sm:$0xf]
        %v6464 = vld [vmem:[%s5 + $0x10] sm:$0xf]
        %v6465 = vld [vmem:[%s5 + $0x14] sm:$0xf]
        %v6466 = vld [vmem:[%s5 + $0x18] sm:$0xf]
        %v6467 = vld [vmem:[%s5 + $0x1c] sm:$0xf]
        %v6468 = vld [vmem:[%s5 + $0x20] sm:$0xf]
        %v6469 = vld [vmem:[%s5 + $0x24] sm:$0xf]
        %v6470 = vld [vmem:[%s5 + $0x28] sm:$0xf]
        %v6471 = vld [vmem:[%s5 + $0x2c] sm:$0xf]
        %v6472 = vld [vmem:[%s5 + $0x30] sm:$0xf]
        %v6473 = vld [vmem:[%s5 + $0x34] sm:$0xf]
        %v6474 = vld [vmem:[%s5 + $0x38] sm:$0xf]
        %v6475 = vld [vmem:[%s5 + $0x3c] sm:$0xf]
        %v6476 = vld [vmem:[%s5 + $0x40] sm:$0xf]
        %v6477 = vld [vmem:[%s5 + $0x44] sm:$0xf]
        %v6478 = vld [vmem:[%s5 + $0x48] sm:$0xf]
        %v6479 = vld [vmem:[%s5 + $0x4c] sm:$0xf]
        %v6480 = vld [vmem:[%s5 + $0x50] sm:$0xf]
        %v6481 = vld [vmem:[%s5 + $0x54] sm:$0xf]
        %v6482 = vld [vmem:[%s5 + $0x58] sm:$0xf]
        %v6483 = vld [vmem:[%s5 + $0x5c] sm:$0xf]
        %v6484 = vld [vmem:[%s5 + $0x60] sm:$0xf]
        %v6485 = vld [vmem:[%s5 + $0x64] sm:$0xf]
        %v6486 = vld [vmem:[%s5 + $0x68] sm:$0xf]
        %v6487 = vld [vmem:[%s5 + $0x6c] sm:$0xf]
        %v6488 = vld [vmem:[%s5 + $0x70] sm:$0xf]
        %v6489 = vld [vmem:[%s5 + $0x74] sm:$0xf]
        %v6490 = vld [vmem:[%s5 + $0x78] sm:$0xf]
        %v6491 = vld [vmem:[%s5 + $0x7c] sm:$0xf]
        %v6492 = vld [vmem:[%s5 + $0x80] sm:$0xf]
        %v6493 = vld [vmem:[%s5 + $0x84] sm:$0xf]
        %v6494 = vld [vmem:[%s5 + $0x88] sm:$0xf]
        %v6495 = vld [vmem:[%s5 + $0x8c] sm:$0xf]
        %v6496 = vld [vmem:[%s5 + $0x90] sm:$0xf]
        %v6497 = vld [vmem:[%s5 + $0x94] sm:$0xf]
        %v6498 = vld [vmem:[%s5 + $0x98] sm:$0xf]
        %v6499 = vld [vmem:[%s5 + $0x9c] sm:$0xf]
        %v6500 = vld [vmem:[%s5 + $0xa0] sm:$0xf]
        %v6501 = vld [vmem:[%s5 + $0xa4] sm:$0xf]
        %v6502 = vld [vmem:[%s5 + $0xa8] sm:$0xf]
        %v6503 = vld [vmem:[%s5 + $0xac] sm:$0xf]
        %v6504 = vld [vmem:[%s5 + $0xb0] sm:$0xf]
        %v6505 = vld [vmem:[%s5 + $0xb4] sm:$0xf]
        %v6506 = vld [vmem:[%s5 + $0xb8] sm:$0xf]
        %v6507 = vld [vmem:[%s5 + $0xbc] sm:$0xf]
        %v6508 = vld [vmem:[%s5 + $0xc0] sm:$0xf]
        %v6509 = vld [vmem:[%s5 + $0xc4] sm:$0xf]
        %v6510 = vld [vmem:[%s5 + $0xc8] sm:$0xf]
        %v6511 = vld [vmem:[%s5 + $0xcc] sm:$0xf]
        %v6512 = vld [vmem:[%s5 + $0xd0] sm:$0xf]
        %v6513 = vld [vmem:[%s5 + $0xd4] sm:$0xf]
        %v6514 = vld [vmem:[%s5 + $0xd8] sm:$0xf]
        %v6515 = vld [vmem:[%s5 + $0xdc] sm:$0xf]
        %v6516 = vld [vmem:[%s5 + $0xe0] sm:$0xf]
        %v6517 = vld [vmem:[%s5 + $0xe4] sm:$0xf]
        %v6518 = vld [vmem:[%s5 + $0xe8] sm:$0xf]
        %v6519 = vld [vmem:[%s5 + $0xec] sm:$0xf]
        %v6520 = vld [vmem:[%s5 + $0xf0] sm:$0xf]
        %v6521 = vld [vmem:[%s5 + $0xf4] sm:$0xf]
        %v6522 = vld [vmem:[%s5 + $0xf8] sm:$0xf]
        %v6523 = vld [vmem:[%s5 + $0xfc] sm:$0xf]
        %v6588 = vunpack.c.l.b16 %v6460
        %v6589 = vunpack.c.l.b16 %v6461
        %v6590 = vunpack.c.l.b16 %v6462
        %v6591 = vunpack.c.l.b16 %v6463
        %v6592 = vunpack.c.l.b16 %v6464
        %v6593 = vunpack.c.l.b16 %v6465
        %v6594 = vunpack.c.l.b16 %v6466
        %v6595 = vunpack.c.l.b16 %v6467
        %v6596 = vunpack.c.l.b16 %v6468
        %v6597 = vunpack.c.l.b16 %v6469
        %v6598 = vunpack.c.l.b16 %v6470
        %v6599 = vunpack.c.l.b16 %v6471
        %v6600 = vunpack.c.l.b16 %v6472
        %v6601 = vunpack.c.l.b16 %v6473
        %v6602 = vunpack.c.l.b16 %v6474
        %v6603 = vunpack.c.l.b16 %v6475
        %v6604 = vunpack.c.l.b16 %v6476
        %v6605 = vunpack.c.l.b16 %v6477
        %v6606 = vunpack.c.l.b16 %v6478
        %v6607 = vunpack.c.l.b16 %v6479
        %v6608 = vunpack.c.l.b16 %v6480
        %v6609 = vunpack.c.l.b16 %v6481
        %v6610 = vunpack.c.l.b16 %v6482
        %v6611 = vunpack.c.l.b16 %v6483
        %v6612 = vunpack.c.l.b16 %v6484
        %v6613 = vunpack.c.l.b16 %v6485
        %v6614 = vunpack.c.l.b16 %v6486
        %v6615 = vunpack.c.l.b16 %v6487
        %v6616 = vunpack.c.l.b16 %v6488
        %v6617 = vunpack.c.l.b16 %v6489
        %v6618 = vunpack.c.l.b16 %v6490
        %v6619 = vunpack.c.l.b16 %v6491
        %v6620 = vunpack.c.l.b16 %v6492
        %v6621 = vunpack.c.l.b16 %v6493
        %v6622 = vunpack.c.l.b16 %v6494
        %v6623 = vunpack.c.l.b16 %v6495
        %v6624 = vunpack.c.l.b16 %v6496
        %v6625 = vunpack.c.l.b16 %v6497
        %v6626 = vunpack.c.l.b16 %v6498
        %v6627 = vunpack.c.l.b16 %v6499
        %v6628 = vunpack.c.l.b16 %v6500
        %v6629 = vunpack.c.l.b16 %v6501
        %v6630 = vunpack.c.l.b16 %v6502
        %v6631 = vunpack.c.l.b16 %v6503
        %v6632 = vunpack.c.l.b16 %v6504
        %v6633 = vunpack.c.l.b16 %v6505
        %v6634 = vunpack.c.l.b16 %v6506
        %v6635 = vunpack.c.l.b16 %v6507
        %v6636 = vunpack.c.l.b16 %v6508
        %v6637 = vunpack.c.l.b16 %v6509
        %v6638 = vunpack.c.l.b16 %v6510
        %v6639 = vunpack.c.l.b16 %v6511
        %v6640 = vunpack.c.l.b16 %v6512
        %v6641 = vunpack.c.l.b16 %v6513
        %v6642 = vunpack.c.l.b16 %v6514
        %v6643 = vunpack.c.l.b16 %v6515
        %v6644 = vunpack.c.l.b16 %v6516
        %v6645 = vunpack.c.l.b16 %v6517
        %v6646 = vunpack.c.l.b16 %v6518
        %v6647 = vunpack.c.l.b16 %v6519
        %v6648 = vunpack.c.l.b16 %v6520
        %v6649 = vunpack.c.l.b16 %v6521
        %v6650 = vunpack.c.l.b16 %v6522
        %v6651 = vunpack.c.l.b16 %v6523
        %v6652 = vpack.c.b16 %v6589, %v6588
        %v6653 = vpack.c.b16 %v6591, %v6590
        %v6654 = vpack.c.b16 %v6593, %v6592
        %v6655 = vpack.c.b16 %v6595, %v6594
        %v6656 = vpack.c.b16 %v6597, %v6596
        %v6657 = vpack.c.b16 %v6599, %v6598
        %v6658 = vpack.c.b16 %v6601, %v6600
        %v6659 = vpack.c.b16 %v6603, %v6602
        %v6660 = vpack.c.b16 %v6605, %v6604
        %v6661 = vpack.c.b16 %v6607, %v6606
        %v6662 = vpack.c.b16 %v6609, %v6608
        %v6663 = vpack.c.b16 %v6611, %v6610
        %v6664 = vpack.c.b16 %v6613, %v6612
        %v6665 = vpack.c.b16 %v6615, %v6614
        %v6666 = vpack.c.b16 %v6617, %v6616
        %v6667 = vpack.c.b16 %v6619, %v6618
        %v6668 = vpack.c.b16 %v6621, %v6620
        %v6669 = vpack.c.b16 %v6623, %v6622
        %v6670 = vpack.c.b16 %v6625, %v6624
        %v6671 = vpack.c.b16 %v6627, %v6626
        %v6672 = vpack.c.b16 %v6629, %v6628
        %v6673 = vpack.c.b16 %v6631, %v6630
        %v6674 = vpack.c.b16 %v6633, %v6632
        %v6675 = vpack.c.b16 %v6635, %v6634
        %v6676 = vpack.c.b16 %v6637, %v6636
        %v6677 = vpack.c.b16 %v6639, %v6638
        %v6678 = vpack.c.b16 %v6641, %v6640
        %v6679 = vpack.c.b16 %v6643, %v6642
        %v6680 = vpack.c.b16 %v6645, %v6644
        %v6681 = vpack.c.b16 %v6647, %v6646
        %v6682 = vpack.c.b16 %v6649, %v6648
        %v6683 = vpack.c.b16 %v6651, %v6650
        %6716 = vmatprep.subr.bf16.mxu0 0
        %6717 = vmatpush1.bf16.msra.mxu0 %v6659
        %6718 = vmatprep.subr.bf16.mxu0 0
        %6719 = vmatpush1.bf16.msra.mxu0 %v6658
        %6720 = vmatprep.subr.bf16.mxu0 0
        %6721 = vmatpush1.bf16.msra.mxu0 %v6657
        %6722 = vmatprep.subr.bf16.mxu0 0
        %6723 = vmatpush1.bf16.msra.mxu0 %v6656
        %6724 = vmatprep.subr.bf16.mxu0 0
        %6725 = vmatpush1.bf16.msra.mxu0 %v6655
        %6726 = vmatprep.subr.bf16.mxu0 0
        %6727 = vmatpush1.bf16.msra.mxu0 %v6654
        %6728 = vmatprep.subr.bf16.mxu0 0
        %6729 = vmatpush1.bf16.msra.mxu0 %v6653
        %6730 = vmatprep.subr.bf16.mxu0 0
        %6731 = vmatpush1.bf16.msra.mxu0 %v6652
        %6732 = vmatprep.subr.bf16.mxu0 0
        %6733 = vmatpush2.bf16.msra.mxu0 %v6667
        %6734 = vmatprep.subr.bf16.mxu0 0
        %6735 = vmatpush2.bf16.msra.mxu0 %v6666
        %6736 = vmatprep.subr.bf16.mxu0 0
        %6737 = vmatpush2.bf16.msra.mxu0 %v6665
        %6738 = vmatprep.subr.bf16.mxu0 0
        %6739 = vmatpush2.bf16.msra.mxu0 %v6664
        %6740 = vmatprep.subr.bf16.mxu0 0
        %6741 = vmatpush2.bf16.msra.mxu0 %v6663
        %6742 = vmatprep.subr.bf16.mxu0 0
        %6743 = vmatpush2.bf16.msra.mxu0 %v6662
        %6744 = vmatprep.subr.bf16.mxu0 0
        %6745 = vmatpush2.bf16.msra.mxu0 %v6661
        %6746 = vmatprep.subr.bf16.mxu0 0
        %6747 = vmatpush2.bf16.msra.mxu0 %v6660
        %6748 = vmatprep.mubr.bf16.mxu0 %v6449
        %6749 = vmatmul.mubr.bf16.gmra.mxu0 %v6448
        %v6750 = vpop.f32.mrf.mxu0
        %v6751 = vadd.f32 0.0, %v6750
        %v6752 = vpop.f32.mrf.mxu0
        %v6753 = vpop.f32.mrf.mxu0
        %v6754 = vadd.f32 0.0, %v6753
        %v6755 = vpop.f32.mrf.mxu0
        %6756 = vmatprep.mubr.bf16.mxu0 %v6453
        %6757 = vmatmul.mubr.bf16.gmra.mxu0 %v6452
        %v6758 = vpop.f32.mrf.mxu0
        %v6759 = vadd.f32 0.0, %v6758
        %v6760 = vpop.f32.mrf.mxu0
        %v6761 = vpop.f32.mrf.mxu0
        %v6762 = vadd.f32 0.0, %v6761
        %v6763 = vpop.f32.mrf.mxu0
        %6764 = vmatprep.mubr.bf16.mxu0 %v6457
        %6765 = vmatmul.mubr.bf16.gmra.mxu0 %v6456
        %v6766 = vpop.f32.mrf.mxu0
        %v6767 = vadd.f32 0.0, %v6766
        %v6768 = vpop.f32.mrf.mxu0
        %v6769 = vpop.f32.mrf.mxu0
        %v6770 = vpop.f32.mrf.mxu0
        %6771 = vdwg.mxu0
        %6772 = vmatprep.subr.bf16.mxu0 0
        %6773 = vmatpush1.bf16.msra.mxu0 %v6675
        %6774 = vmatprep.subr.bf16.mxu0 0
        %6775 = vmatpush1.bf16.msra.mxu0 %v6674
        %6776 = vmatprep.subr.bf16.mxu0 0
        %6777 = vmatpush1.bf16.msra.mxu0 %v6673
        %6778 = vmatprep.subr.bf16.mxu0 0
        %6779 = vmatpush1.bf16.msra.mxu0 %v6672
        %6780 = vmatprep.subr.bf16.mxu0 0
        %6781 = vmatpush1.bf16.msra.mxu0 %v6671
        %6782 = vmatprep.subr.bf16.mxu0 0
        %6783 = vmatpush1.bf16.msra.mxu0 %v6670
        %6784 = vmatprep.subr.bf16.mxu0 0
        %6785 = vmatpush1.bf16.msra.mxu0 %v6669
        %6786 = vmatprep.subr.bf16.mxu0 0
        %6787 = vmatpush1.bf16.msra.mxu0 %v6668
        %6788 = vmatprep.subr.bf16.mxu0 0
        %6789 = vmatpush2.bf16.msra.mxu0 %v6683
        %6790 = vmatprep.subr.bf16.mxu0 0
        %6791 = vmatpush2.bf16.msra.mxu0 %v6682
        %6792 = vmatprep.subr.bf16.mxu0 0
        %6793 = vmatpush2.bf16.msra.mxu0 %v6681
        %6794 = vmatprep.subr.bf16.mxu0 0
        %6795 = vmatpush2.bf16.msra.mxu0 %v6680
        %6796 = vmatprep.subr.bf16.mxu0 0
        %6797 = vmatpush2.bf16.msra.mxu0 %v6679
        %6798 = vmatprep.subr.bf16.mxu0 0
        %6799 = vmatpush2.bf16.msra.mxu0 %v6678
        %6800 = vmatprep.subr.bf16.mxu0 0
        %6801 = vmatpush2.bf16.msra.mxu0 %v6677
        %6802 = vmatprep.subr.bf16.mxu0 0
        %6803 = vmatpush2.bf16.msra.mxu0 %v6676
        %6804 = vmatprep.mubr.bf16.mxu0 %v6451
        %6805 = vmatmul.mubr.bf16.gmra.mxu0 %v6450
        %v6806 = vpop.f32.mrf.mxu0
        %v6807 = vadd.f32 %v6751, %v6806
        %v6808 = vpop.f32.mrf.mxu0
        %v6809 = vpop.f32.mrf.mxu0
        %v6810 = vadd.f32 %v6754, %v6809
        %v6811 = vpop.f32.mrf.mxu0
        %6812 = vmatprep.mubr.bf16.mxu0 %v6455
        %6813 = vmatmul.mubr.bf16.gmra.mxu0 %v6454
        %v6814 = vpop.f32.mrf.mxu0
        %v6815 = vadd.f32 %v6759, %v6814
        %v6816 = vpop.f32.mrf.mxu0
        %v6817 = vpop.f32.mrf.mxu0
        %v6818 = vadd.f32 %v6762, %v6817
        %v6819 = vpop.f32.mrf.mxu0
        %6820 = vmatprep.mubr.bf16.mxu0 %v6459
        %6821 = vmatmul.mubr.bf16.gmra.mxu0 %v6458
        %v6822 = vpop.f32.mrf.mxu0
        %v6823 = vadd.f32 %v6767, %v6822
        %v6824 = vpop.f32.mrf.mxu0
        %v6825 = vpop.f32.mrf.mxu0
        %v6826 = vpop.f32.mrf.mxu0
        %6827 = vdwg.mxu0
        %vm6828 = vcmask 257024
        %6829 = vst.msk [vmem:[#allocation4] sm:$0xf] %vm6828, 0
        %6830 = vst.msk [vmem:[#allocation4 + $0x4] sm:$0xf] %vm6828, 0
        %6831 = vst.msk [vmem:[#allocation4 + $0x8] sm:$0xf] %vm6828, 0
        %6832 = vst.msk [vmem:[#allocation4 + $0xc] sm:$0xf] %vm6828, 0
        %6833 = vst.msk [vmem:[#allocation4 + $0x10] sm:$0xf] %vm6828, 0
        %6834 = vst.msk [vmem:[#allocation4 + $0x14] sm:$0xf] %vm6828, 0
        %vm6835 = vcmask 253952
        %6836 = vst.msk [vmem:[#allocation4 + $0x18] sm:$0x1] %vm6835, 0
        %v6837 = vpack.c.bf16 %v6810, %v6807
        %v6838 = vpack.c.bf16 %v6818, %v6815
        %v6839 = vpack.c.bf16 %v6823, %v6823
        %v6843 = vunpack.c.l.b16 %v6837
        %v6844 = vunpack.c.h.b16 %v6837
        %v6845 = vunpack.c.l.b16 %v6838
        %v6846 = vunpack.c.h.b16 %v6838
        %v6847 = vunpack.c.l.b16 %v6839
        %v6848 = vpack.c.b16 %v6843, %v6843
        %v6849 = vpack.c.b16 %v6844, %v6844
        %v6850 = vpack.c.b16 %v6845, %v6845
        %v6851 = vpack.c.b16 %v6846, %v6846
        %v6852 = vpack.c.b16 %v6847, %v6847
        %v6854 = vshll.u32 %v6848, 16
        %v6856 = vrot.slane %v6854, 5
        %v6857 = vshrl.u32 %v6848, 16
        %v6859 = vrot.slane %v6857, 4
        %v6860 = vor.u32 %v6859, %v6856
        %v6861 = vrot.slane %v6860, 4
        %v6863 = vshll.u32 %v6849, 16
        %v6865 = vrot.slane %v6863, 5
        %v6866 = vsel %vm2711, %v6861, %v6865
        %v6867 = vshrl.u32 %v6849, 16
        %v6869 = vrot.slane %v6867, 4
        %v6870 = vor.u32 %v6869, %v6865
        %v6871 = vrot.slane %v6870, 4
        %v6873 = vshll.u32 %v6850, 16
        %v6875 = vrot.slane %v6873, 5
        %v6876 = vsel %vm2711, %v6871, %v6875
        %v6877 = vshrl.u32 %v6850, 16
        %v6879 = vrot.slane %v6877, 4
        %v6880 = vor.u32 %v6879, %v6875
        %v6881 = vrot.slane %v6880, 4
        %v6883 = vshll.u32 %v6851, 16
        %v6885 = vrot.slane %v6883, 5
        %v6886 = vsel %vm2711, %v6881, %v6885
        %v6887 = vshrl.u32 %v6851, 16
        %v6889 = vrot.slane %v6887, 4
        %v6890 = vor.u32 %v6889, %v6885
        %v6891 = vrot.slane %v6890, 4
        %v6893 = vshll.u32 %v6852, 16
        %v6895 = vrot.slane %v6893, 5
        %v6896 = vsel %vm2711, %v6891, %v6895
        %v6897 = vshrl.u32 %v6852, 16
        %v6899 = vrot.slane %v6897, 4
        %v6900 = vor.u32 %v6899, %v6895
        %v6901 = vrot.slane %v6900, 4
        %vm6908 = vcmask 257027
        %vm6909 = vmand %vm6908, %vm2768
        %v6910 = vld [vmem:[#allocation4] sm:$0x8]
        %v6911 = vsel %vm6909, %v6856, %v6910
        %6912 = vst [vmem:[#allocation4] sm:$0x8] %v6911
        %6913 = vst.msk [vmem:[#allocation4 + $0x4] sm:$0xf] %vm6828, %v6866
        %6914 = vst.msk [vmem:[#allocation4 + $0x8] sm:$0xf] %vm6828, %v6876
        %6915 = vst.msk [vmem:[#allocation4 + $0xc] sm:$0xf] %vm6828, %v6886
        %6916 = vst.msk [vmem:[#allocation4 + $0x10] sm:$0xf] %vm6828, %v6896
        %vm6917 = vcmask 254976
        %vm6918 = vmand %vm6917, %vm2778
        %v6919 = vld [vmem:[#allocation4 + $0x14] sm:$0x3]
        %v6920 = vsel %vm6918, %v6901, %v6919
        %6921 = vst [vmem:[#allocation4 + $0x14] sm:$0x3] %v6920
        %v6922 = vld [vmem:[#allocation4] sm:$0xf]
        %v6923 = vld [vmem:[#allocation4 + $0x4] sm:$0xf]
        %v6924 = vld [vmem:[#allocation4 + $0x8] sm:$0xf]
        %v6925 = vld [vmem:[#allocation4 + $0xc] sm:$0xf]
        %v6926 = vld [vmem:[#allocation4 + $0x10] sm:$0x3]
        %v6927 = vld [vmem:[%s16] sm:$0xf]
        %v6928 = vld [vmem:[%s16 + $0x4] sm:$0xf]
        %v6929 = vld [vmem:[%s16 + $0x8] sm:$0xf]
        %v6930 = vld [vmem:[%s16 + $0xc] sm:$0xf]
        %v6931 = vld [vmem:[#allocation4 + $0x10] sm:$0x7]
        %s6932 = scalar_lea.vmem %s16, 16
        %v6933 = vld [vmem:[%s6932] sm:$0xf]
        %v6934 = vld [vmem:[%s6932 + $0x4] sm:$0xf]
        %v6935 = vld [vmem:[%s6932 + $0x8] sm:$0xf]
        %v6936 = vld [vmem:[%s6932 + $0xc] sm:$0xf]
        %v6942 = vunpack.c.l.b16 %v6922
        %v6943 = vunpack.c.l.b16 %v6923
        %v6944 = vunpack.c.l.b16 %v6924
        %v6945 = vunpack.c.l.b16 %v6925
        %v6946 = vunpack.c.l.b16 %v6931
        %v6947 = vpack.c.b16 %v6943, %v6942
        %v6948 = vpack.c.b16 %v6945, %v6944
        %v6949 = vpack.c.b16 %v6946, %v6946
        %v6951 = vshrl.u32 %v6947, 16
        %v6953 = vshll.u32 %v6947, 16
        %v6955 = vrot.slane %v6953, 1
        %v6956 = vor.u32 %v6951, %v6955
        %v6958 = vshll.u32 %v6948, 16
        %v6960 = vrot.slane %v6958, 1
        %v6961 = vsel %vm873, %v6956, %v6960
        %v6962 = vshrl.u32 %v6948, 16
        %v6964 = vor.u32 %v6962, %v6960
        %v6966 = vshll.u32 %v6949, 16
        %v6968 = vrot.slane %v6966, 1
        %v6969 = vsel %vm873, %v6964, %v6968
        %v6970 = vshrl.u32 %v6949, 16
        %v6972 = vor.u32 %v6970, %v6968
        %v6977 = vunpack.c.l.b16 %v6933
        %v6978 = vunpack.c.l.b16 %v6934
        %v6979 = vunpack.c.l.b16 %v6935
        %v6980 = vunpack.c.l.b16 %v6936
        %v6981 = vpack.c.b16 %v6978, %v6977
        %v6982 = vpack.c.b16 %v6980, %v6979
        %v6986 = vsel %vm5400, %v6961, 0
        %v6989 = vsel %vm5400, %v6969, 0
        %v6992 = vsel %vm5400, %v6972, 0
        %6994 = vmatprep.subr.bf16.mxu0 0
        %6995 = vmatpush1.bf16.msra.mxu0 0
        %6996 = vmatprep.subr.bf16.mxu0 0
        %6997 = vmatpush1.bf16.msra.mxu0 0
        %6998 = vmatprep.subr.bf16.mxu0 0
        %6999 = vmatpush1.bf16.msra.mxu0 0
        %7000 = vmatprep.subr.bf16.mxu0 0
        %7001 = vmatpush1.bf16.msra.mxu0 0
        %7002 = vmatprep.subr.bf16.mxu0 0
        %7003 = vmatpush1.bf16.msra.mxu0 0
        %7004 = vmatprep.subr.bf16.mxu0 0
        %7005 = vmatpush1.bf16.msra.mxu0 0
        %7006 = vmatprep.subr.bf16.mxu0 0
        %7007 = vmatpush1.bf16.msra.mxu0 %v6982
        %7008 = vmatprep.subr.bf16.mxu0 0
        %7009 = vmatpush1.bf16.msra.mxu0 %v6981
        %7010 = vmatprep.subr.bf16.mxu0 0
        %7011 = vmatpush2.bf16.msra.mxu0 0
        %7012 = vmatprep.subr.bf16.mxu0 0
        %7013 = vmatpush2.bf16.msra.mxu0 0
        %7014 = vmatprep.subr.bf16.mxu0 0
        %7015 = vmatpush2.bf16.msra.mxu0 0
        %7016 = vmatprep.subr.bf16.mxu0 0
        %7017 = vmatpush2.bf16.msra.mxu0 0
        %7018 = vmatprep.subr.bf16.mxu0 0
        %7019 = vmatpush2.bf16.msra.mxu0 0
        %7020 = vmatprep.subr.bf16.mxu0 0
        %7021 = vmatpush2.bf16.msra.mxu0 0
        %7022 = vmatprep.subr.bf16.mxu0 0
        %7023 = vmatpush2.bf16.msra.mxu0 0
        %7024 = vmatprep.subr.bf16.mxu0 0
        %7025 = vmatpush2.bf16.msra.mxu0 0
        %7026 = vmatprep.mubr.bf16.mxu0 0
        %7027 = vmatmul.mubr.bf16.gmra.mxu0 %v6986
        %v7028 = vpop.f32.mrf.mxu0
        %v7029 = vadd.f32 0.0, %v7028
        %v7030 = vpop.f32.mrf.mxu0
        %v7031 = vpop.f32.mrf.mxu0
        %v7032 = vadd.f32 0.0, %v7031
        %v7033 = vpop.f32.mrf.mxu0
        %7034 = vmatprep.mubr.bf16.mxu0 0
        %7035 = vmatmul.mubr.bf16.gmra.mxu0 %v6989
        %v7036 = vpop.f32.mrf.mxu0
        %v7037 = vadd.f32 0.0, %v7036
        %v7038 = vpop.f32.mrf.mxu0
        %v7039 = vpop.f32.mrf.mxu0
        %v7040 = vadd.f32 0.0, %v7039
        %v7041 = vpop.f32.mrf.mxu0
        %7042 = vmatprep.mubr.bf16.mxu0 0
        %7043 = vmatmul.mubr.bf16.gmra.mxu0 %v6992
        %v7044 = vpop.f32.mrf.mxu0
        %v7045 = vadd.f32 0.0, %v7044
        %v7046 = vpop.f32.mrf.mxu0
        %v7047 = vpop.f32.mrf.mxu0
        %v7048 = vpop.f32.mrf.mxu0
        %7049 = vdwg.mxu0
        %v7051 = vunpack.c.l.b16 %v6926
        %v7052 = vpack.c.b16 %v7051, %v7051
        %v7057 = vunpack.c.l.b16 %v6927
        %v7058 = vunpack.c.l.b16 %v6928
        %v7059 = vunpack.c.l.b16 %v6929
        %v7060 = vunpack.c.l.b16 %v6930
        %v7061 = vpack.c.b16 %v7058, %v7057
        %v7062 = vpack.c.b16 %v7060, %v7059
        %v7065 = vsel %vm5400, %v6947, 0
        %v7067 = vsel %vm5400, %v6948, 0
        %v7070 = vsel %vm5400, %v7052, 0
        %7072 = vmatprep.subr.bf16.mxu0 0
        %7073 = vmatpush1.bf16.msra.mxu0 0
        %7074 = vmatprep.subr.bf16.mxu0 0
        %7075 = vmatpush1.bf16.msra.mxu0 0
        %7076 = vmatprep.subr.bf16.mxu0 0
        %7077 = vmatpush1.bf16.msra.mxu0 0
        %7078 = vmatprep.subr.bf16.mxu0 0
        %7079 = vmatpush1.bf16.msra.mxu0 0
        %7080 = vmatprep.subr.bf16.mxu0 0
        %7081 = vmatpush1.bf16.msra.mxu0 0
        %7082 = vmatprep.subr.bf16.mxu0 0
        %7083 = vmatpush1.bf16.msra.mxu0 0
        %7084 = vmatprep.subr.bf16.mxu0 0
        %7085 = vmatpush1.bf16.msra.mxu0 %v7062
        %7086 = vmatprep.subr.bf16.mxu0 0
        %7087 = vmatpush1.bf16.msra.mxu0 %v7061
        %7088 = vmatprep.subr.bf16.mxu0 0
        %7089 = vmatpush2.bf16.msra.mxu0 0
        %7090 = vmatprep.subr.bf16.mxu0 0
        %7091 = vmatpush2.bf16.msra.mxu0 0
        %7092 = vmatprep.subr.bf16.mxu0 0
        %7093 = vmatpush2.bf16.msra.mxu0 0
        %7094 = vmatprep.subr.bf16.mxu0 0
        %7095 = vmatpush2.bf16.msra.mxu0 0
        %7096 = vmatprep.subr.bf16.mxu0 0
        %7097 = vmatpush2.bf16.msra.mxu0 0
        %7098 = vmatprep.subr.bf16.mxu0 0
        %7099 = vmatpush2.bf16.msra.mxu0 0
        %7100 = vmatprep.subr.bf16.mxu0 0
        %7101 = vmatpush2.bf16.msra.mxu0 0
        %7102 = vmatprep.subr.bf16.mxu0 0
        %7103 = vmatpush2.bf16.msra.mxu0 0
        %7104 = vmatprep.mubr.bf16.mxu0 0
        %7105 = vmatmul.mubr.bf16.gmra.mxu0 %v7065
        %v7106 = vpop.f32.mrf.mxu0
        %v7107 = vadd.f32 %v7029, %v7106
        %v7108 = vpop.f32.mrf.mxu0
        %v7109 = vpop.f32.mrf.mxu0
        %v7110 = vadd.f32 %v7032, %v7109
        %v7111 = vpop.f32.mrf.mxu0
        %7112 = vmatprep.mubr.bf16.mxu0 0
        %7113 = vmatmul.mubr.bf16.gmra.mxu0 %v7067
        %v7114 = vpop.f32.mrf.mxu0
        %v7115 = vadd.f32 %v7037, %v7114
        %v7116 = vpop.f32.mrf.mxu0
        %v7117 = vpop.f32.mrf.mxu0
        %v7118 = vadd.f32 %v7040, %v7117
        %v7119 = vpop.f32.mrf.mxu0
        %7120 = vmatprep.mubr.bf16.mxu0 0
        %7121 = vmatmul.mubr.bf16.gmra.mxu0 %v7070
        %v7122 = vpop.f32.mrf.mxu0
        %v7123 = vadd.f32 %v7045, %v7122
        %v7124 = vpop.f32.mrf.mxu0
        %v7125 = vpop.f32.mrf.mxu0
        %v7126 = vpop.f32.mrf.mxu0
        %7127 = vdwg.mxu0
        %v7128 = vld [vmem:[#allocation4] sm:$0xe]
        %s7129 = scalar_lea.vmem %s16, 32
        %v7130 = vld [vmem:[%s7129] sm:$0xf]
        %v7131 = vld [vmem:[%s7129 + $0x4] sm:$0xf]
        %v7132 = vld [vmem:[%s7129 + $0x8] sm:$0xf]
        %v7133 = vld [vmem:[%s7129 + $0xc] sm:$0xf]
        %v7135 = vunpack.c.l.b16 %v7128
        %v7136 = vpack.c.b16 %v6943, %v7135
        %v7137 = vrot.slane %v7136, 1
        %v7138 = vrot.slane %v6948, 1
        %v7139 = vsel %vm1235, %v7137, %v7138
        %v7140 = vrot.slane %v6949, 1
        %v7141 = vsel %vm1235, %v7138, %v7140
        %v7146 = vunpack.c.l.b16 %v7130
        %v7147 = vunpack.c.l.b16 %v7131
        %v7148 = vunpack.c.l.b16 %v7132
        %v7149 = vunpack.c.l.b16 %v7133
        %v7150 = vpack.c.b16 %v7147, %v7146
        %v7151 = vpack.c.b16 %v7149, %v7148
        %v7155 = vsel %vm5400, %v7139, 0
        %v7158 = vsel %vm5400, %v7141, 0
        %v7161 = vsel %vm5400, %v7140, 0
        %7163 = vmatprep.subr.bf16.mxu0 0
        %7164 = vmatpush1.bf16.msra.mxu0 0
        %7165 = vmatprep.subr.bf16.mxu0 0
        %7166 = vmatpush1.bf16.msra.mxu0 0
        %7167 = vmatprep.subr.bf16.mxu0 0
        %7168 = vmatpush1.bf16.msra.mxu0 0
        %7169 = vmatprep.subr.bf16.mxu0 0
        %7170 = vmatpush1.bf16.msra.mxu0 0
        %7171 = vmatprep.subr.bf16.mxu0 0
        %7172 = vmatpush1.bf16.msra.mxu0 0
        %7173 = vmatprep.subr.bf16.mxu0 0
        %7174 = vmatpush1.bf16.msra.mxu0 0
        %7175 = vmatprep.subr.bf16.mxu0 0
        %7176 = vmatpush1.bf16.msra.mxu0 %v7151
        %7177 = vmatprep.subr.bf16.mxu0 0
        %7178 = vmatpush1.bf16.msra.mxu0 %v7150
        %7179 = vmatprep.subr.bf16.mxu0 0
        %7180 = vmatpush2.bf16.msra.mxu0 0
        %7181 = vmatprep.subr.bf16.mxu0 0
        %7182 = vmatpush2.bf16.msra.mxu0 0
        %7183 = vmatprep.subr.bf16.mxu0 0
        %7184 = vmatpush2.bf16.msra.mxu0 0
        %7185 = vmatprep.subr.bf16.mxu0 0
        %7186 = vmatpush2.bf16.msra.mxu0 0
        %7187 = vmatprep.subr.bf16.mxu0 0
        %7188 = vmatpush2.bf16.msra.mxu0 0
        %7189 = vmatprep.subr.bf16.mxu0 0
        %7190 = vmatpush2.bf16.msra.mxu0 0
        %7191 = vmatprep.subr.bf16.mxu0 0
        %7192 = vmatpush2.bf16.msra.mxu0 0
        %7193 = vmatprep.subr.bf16.mxu0 0
        %7194 = vmatpush2.bf16.msra.mxu0 0
        %7195 = vmatprep.mubr.bf16.mxu0 0
        %7196 = vmatmul.mubr.bf16.gmra.mxu0 %v7155
        %v7197 = vpop.f32.mrf.mxu0
        %v7198 = vadd.f32 0.0, %v7197
        %v7199 = vpop.f32.mrf.mxu0
        %v7200 = vpop.f32.mrf.mxu0
        %v7201 = vadd.f32 0.0, %v7200
        %v7202 = vpop.f32.mrf.mxu0
        %7203 = vmatprep.mubr.bf16.mxu0 0
        %7204 = vmatmul.mubr.bf16.gmra.mxu0 %v7158
        %v7205 = vpop.f32.mrf.mxu0
        %v7206 = vadd.f32 0.0, %v7205
        %v7207 = vpop.f32.mrf.mxu0
        %v7208 = vpop.f32.mrf.mxu0
        %v7209 = vadd.f32 0.0, %v7208
        %v7210 = vpop.f32.mrf.mxu0
        %7211 = vmatprep.mubr.bf16.mxu0 0
        %7212 = vmatmul.mubr.bf16.gmra.mxu0 %v7161
        %v7213 = vpop.f32.mrf.mxu0
        %v7214 = vadd.f32 0.0, %v7213
        %v7215 = vpop.f32.mrf.mxu0
        %v7216 = vpop.f32.mrf.mxu0
        %v7217 = vpop.f32.mrf.mxu0
        %7218 = vdwg.mxu0
        %v7219 = vadd.f32 %v7107, %v7198
        %v7220 = vadd.f32 %v7110, %v7201
        %v7221 = vadd.f32 %v7115, %v7206
        %v7222 = vadd.f32 %v7118, %v7209
        %v7223 = vadd.f32 %v7123, %v7214
        %v7224 = vld [vmem:[#allocation4] sm:$0x8]
        %v7225 = vld [vmem:[#allocation4 + $0x4] sm:$0xf]
        %v7226 = vld [vmem:[#allocation4 + $0x8] sm:$0xf]
        %v7227 = vld [vmem:[#allocation4 + $0xc] sm:$0xf]
        %v7228 = vld [vmem:[#allocation4 + $0x10] sm:$0xf]
        %v7229 = vld [vmem:[#allocation4 + $0x14] sm:$0x1]
        %s7230 = scalar_lea.vmem %s16, 48
        %v7231 = vld [vmem:[%s7230] sm:$0xf]
        %v7232 = vld [vmem:[%s7230 + $0x4] sm:$0xf]
        %v7233 = vld [vmem:[%s7230 + $0x8] sm:$0xf]
        %v7234 = vld [vmem:[%s7230 + $0xc] sm:$0xf]
        %v7241 = vunpack.c.l.b16 %v7224
        %v7242 = vunpack.c.l.b16 %v7225
        %v7243 = vunpack.c.l.b16 %v7226
        %v7244 = vunpack.c.l.b16 %v7227
        %v7245 = vunpack.c.l.b16 %v7228
        %v7246 = vunpack.c.l.b16 %v7229
        %v7247 = vpack.c.b16 %v7242, %v7241
        %v7248 = vpack.c.b16 %v7244, %v7243
        %v7249 = vpack.c.b16 %v7246, %v7245
        %v7250 = vrot.slane %v7247, 3
        %v7251 = vrot.slane %v7248, 3
        %v7252 = vsel %vm1446, %v7250, %v7251
        %v7253 = vrot.slane %v7249, 3
        %v7254 = vsel %vm1446, %v7251, %v7253
        %v7259 = vunpack.c.l.b16 %v7231
        %v7260 = vunpack.c.l.b16 %v7232
        %v7261 = vunpack.c.l.b16 %v7233
        %v7262 = vunpack.c.l.b16 %v7234
        %v7263 = vpack.c.b16 %v7260, %v7259
        %v7264 = vpack.c.b16 %v7262, %v7261
        %v7268 = vsel %vm5400, %v7252, 0
        %v7271 = vsel %vm5400, %v7254, 0
        %v7274 = vsel %vm5400, %v7253, 0
        %7276 = vmatprep.subr.bf16.mxu0 0
        %7277 = vmatpush1.bf16.msra.mxu0 0
        %7278 = vmatprep.subr.bf16.mxu0 0
        %7279 = vmatpush1.bf16.msra.mxu0 0
        %7280 = vmatprep.subr.bf16.mxu0 0
        %7281 = vmatpush1.bf16.msra.mxu0 0
        %7282 = vmatprep.subr.bf16.mxu0 0
        %7283 = vmatpush1.bf16.msra.mxu0 0
        %7284 = vmatprep.subr.bf16.mxu0 0
        %7285 = vmatpush1.bf16.msra.mxu0 0
        %7286 = vmatprep.subr.bf16.mxu0 0
        %7287 = vmatpush1.bf16.msra.mxu0 0
        %7288 = vmatprep.subr.bf16.mxu0 0
        %7289 = vmatpush1.bf16.msra.mxu0 %v7264
        %7290 = vmatprep.subr.bf16.mxu0 0
        %7291 = vmatpush1.bf16.msra.mxu0 %v7263
        %7292 = vmatprep.subr.bf16.mxu0 0
        %7293 = vmatpush2.bf16.msra.mxu0 0
        %7294 = vmatprep.subr.bf16.mxu0 0
        %7295 = vmatpush2.bf16.msra.mxu0 0
        %7296 = vmatprep.subr.bf16.mxu0 0
        %7297 = vmatpush2.bf16.msra.mxu0 0
        %7298 = vmatprep.subr.bf16.mxu0 0
        %7299 = vmatpush2.bf16.msra.mxu0 0
        %7300 = vmatprep.subr.bf16.mxu0 0
        %7301 = vmatpush2.bf16.msra.mxu0 0
        %7302 = vmatprep.subr.bf16.mxu0 0
        %7303 = vmatpush2.bf16.msra.mxu0 0
        %7304 = vmatprep.subr.bf16.mxu0 0
        %7305 = vmatpush2.bf16.msra.mxu0 0
        %7306 = vmatprep.subr.bf16.mxu0 0
        %7307 = vmatpush2.bf16.msra.mxu0 0
        %7308 = vmatprep.mubr.bf16.mxu0 0
        %7309 = vmatmul.mubr.bf16.gmra.mxu0 %v7268
        %v7310 = vpop.f32.mrf.mxu0
        %v7311 = vadd.f32 0.0, %v7310
        %v7312 = vpop.f32.mrf.mxu0
        %v7313 = vpop.f32.mrf.mxu0
        %v7314 = vadd.f32 0.0, %v7313
        %v7315 = vpop.f32.mrf.mxu0
        %7316 = vmatprep.mubr.bf16.mxu0 0
        %7317 = vmatmul.mubr.bf16.gmra.mxu0 %v7271
        %v7318 = vpop.f32.mrf.mxu0
        %v7319 = vadd.f32 0.0, %v7318
        %v7320 = vpop.f32.mrf.mxu0
        %v7321 = vpop.f32.mrf.mxu0
        %v7322 = vadd.f32 0.0, %v7321
        %v7323 = vpop.f32.mrf.mxu0
        %7324 = vmatprep.mubr.bf16.mxu0 0
        %7325 = vmatmul.mubr.bf16.gmra.mxu0 %v7274
        %v7326 = vpop.f32.mrf.mxu0
        %v7327 = vadd.f32 0.0, %v7326
        %v7328 = vpop.f32.mrf.mxu0
        %v7329 = vpop.f32.mrf.mxu0
        %v7330 = vpop.f32.mrf.mxu0
        %7331 = vdwg.mxu0
        %v7332 = vadd.f32 %v7219, %v7311
        %v7333 = vadd.f32 %v7220, %v7314
        %v7334 = vadd.f32 %v7221, %v7319
        %v7335 = vadd.f32 %v7222, %v7322
        %v7336 = vadd.f32 %v7223, %v7327
        %v7337 = vld [vmem:[#allocation4 + $0x14] sm:$0x3]
        %s7338 = scalar_lea.vmem %s16, 64
        %v7339 = vld [vmem:[%s7338] sm:$0xf]
        %v7340 = vld [vmem:[%s7338 + $0x4] sm:$0xf]
        %v7341 = vld [vmem:[%s7338 + $0x8] sm:$0xf]
        %v7342 = vld [vmem:[%s7338 + $0xc] sm:$0xf]
        %v7344 = vunpack.c.l.b16 %v7337
        %v7345 = vpack.c.b16 %v7344, %v7245
        %v7347 = vshrl.u32 %v7247, 16
        %v7349 = vrot.slane %v7347, 3
        %v7350 = vshll.u32 %v7247, 16
        %v7352 = vrot.slane %v7350, 4
        %v7353 = vor.u32 %v7349, %v7352
        %v7355 = vshrl.u32 %v7248, 16
        %v7357 = vrot.slane %v7355, 3
        %v7358 = vshll.u32 %v7248, 16
        %v7360 = vrot.slane %v7358, 4
        %v7361 = vor.u32 %v7357, %v7360
        %v7362 = vsel %vm1633, %v7353, %v7361
        %v7364 = vshrl.u32 %v7345, 16
        %v7366 = vrot.slane %v7364, 3
        %v7367 = vshll.u32 %v7345, 16
        %v7369 = vrot.slane %v7367, 4
        %v7370 = vor.u32 %v7366, %v7369
        %v7371 = vsel %vm1633, %v7361, %v7370
        %v7376 = vunpack.c.l.b16 %v7339
        %v7377 = vunpack.c.l.b16 %v7340
        %v7378 = vunpack.c.l.b16 %v7341
        %v7379 = vunpack.c.l.b16 %v7342
        %v7380 = vpack.c.b16 %v7377, %v7376
        %v7381 = vpack.c.b16 %v7379, %v7378
        %v7385 = vsel %vm5400, %v7362, 0
        %v7388 = vsel %vm5400, %v7371, 0
        %v7391 = vsel %vm5400, %v7370, 0
        %7393 = vmatprep.subr.bf16.mxu0 0
        %7394 = vmatpush1.bf16.msra.mxu0 0
        %7395 = vmatprep.subr.bf16.mxu0 0
        %7396 = vmatpush1.bf16.msra.mxu0 0
        %7397 = vmatprep.subr.bf16.mxu0 0
        %7398 = vmatpush1.bf16.msra.mxu0 0
        %7399 = vmatprep.subr.bf16.mxu0 0
        %7400 = vmatpush1.bf16.msra.mxu0 0
        %7401 = vmatprep.subr.bf16.mxu0 0
        %7402 = vmatpush1.bf16.msra.mxu0 0
        %7403 = vmatprep.subr.bf16.mxu0 0
        %7404 = vmatpush1.bf16.msra.mxu0 0
        %7405 = vmatprep.subr.bf16.mxu0 0
        %7406 = vmatpush1.bf16.msra.mxu0 %v7381
        %7407 = vmatprep.subr.bf16.mxu0 0
        %7408 = vmatpush1.bf16.msra.mxu0 %v7380
        %7409 = vmatprep.subr.bf16.mxu0 0
        %7410 = vmatpush2.bf16.msra.mxu0 0
        %7411 = vmatprep.subr.bf16.mxu0 0
        %7412 = vmatpush2.bf16.msra.mxu0 0
        %7413 = vmatprep.subr.bf16.mxu0 0
        %7414 = vmatpush2.bf16.msra.mxu0 0
        %7415 = vmatprep.subr.bf16.mxu0 0
        %7416 = vmatpush2.bf16.msra.mxu0 0
        %7417 = vmatprep.subr.bf16.mxu0 0
        %7418 = vmatpush2.bf16.msra.mxu0 0
        %7419 = vmatprep.subr.bf16.mxu0 0
        %7420 = vmatpush2.bf16.msra.mxu0 0
        %7421 = vmatprep.subr.bf16.mxu0 0
        %7422 = vmatpush2.bf16.msra.mxu0 0
        %7423 = vmatprep.subr.bf16.mxu0 0
        %7424 = vmatpush2.bf16.msra.mxu0 0
        %7425 = vmatprep.mubr.bf16.mxu0 0
        %7426 = vmatmul.mubr.bf16.gmra.mxu0 %v7385
        %v7427 = vpop.f32.mrf.mxu0
        %v7428 = vadd.f32 0.0, %v7427
        %v7429 = vpop.f32.mrf.mxu0
        %v7430 = vpop.f32.mrf.mxu0
        %v7431 = vadd.f32 0.0, %v7430
        %v7432 = vpop.f32.mrf.mxu0
        %7433 = vmatprep.mubr.bf16.mxu0 0
        %7434 = vmatmul.mubr.bf16.gmra.mxu0 %v7388
        %v7435 = vpop.f32.mrf.mxu0
        %v7436 = vadd.f32 0.0, %v7435
        %v7437 = vpop.f32.mrf.mxu0
        %v7438 = vpop.f32.mrf.mxu0
        %v7439 = vadd.f32 0.0, %v7438
        %v7440 = vpop.f32.mrf.mxu0
        %7441 = vmatprep.mubr.bf16.mxu0 0
        %7442 = vmatmul.mubr.bf16.gmra.mxu0 %v7391
        %v7443 = vpop.f32.mrf.mxu0
        %v7444 = vadd.f32 0.0, %v7443
        %v7445 = vpop.f32.mrf.mxu0
        %v7446 = vpop.f32.mrf.mxu0
        %v7447 = vpop.f32.mrf.mxu0
        %7448 = vdwg.mxu0
        %v7449 = vadd.f32 %v7332, %v7428
        %v7450 = vadd.f32 %v7333, %v7431
        %v7451 = vadd.f32 %v7334, %v7436
        %v7452 = vadd.f32 %v7335, %v7439
        %v7453 = vadd.f32 %v7336, %v7444
        %s7454 = scalar_lea.vmem %s16, 80
        %v7455 = vld [vmem:[%s7454] sm:$0xf]
        %v7456 = vld [vmem:[%s7454 + $0x4] sm:$0xf]
        %v7457 = vld [vmem:[%s7454 + $0x8] sm:$0xf]
        %v7458 = vld [vmem:[%s7454 + $0xc] sm:$0xf]
        %v7459 = vpack.c.b16 %v7243, %v7242
        %v7460 = vpack.c.b16 %v7245, %v7244
        %v7461 = vpack.c.b16 %v7344, %v7344
        %v7466 = vunpack.c.l.b16 %v7455
        %v7467 = vunpack.c.l.b16 %v7456
        %v7468 = vunpack.c.l.b16 %v7457
        %v7469 = vunpack.c.l.b16 %v7458
        %v7470 = vpack.c.b16 %v7467, %v7466
        %v7471 = vpack.c.b16 %v7469, %v7468
        %v7475 = vsel %vm5400, %v7459, 0
        %v7478 = vsel %vm5400, %v7460, 0
        %v7481 = vsel %vm5400, %v7461, 0
        %7483 = vmatprep.subr.bf16.mxu0 0
        %7484 = vmatpush1.bf16.msra.mxu0 0
        %7485 = vmatprep.subr.bf16.mxu0 0
        %7486 = vmatpush1.bf16.msra.mxu0 0
        %7487 = vmatprep.subr.bf16.mxu0 0
        %7488 = vmatpush1.bf16.msra.mxu0 0
        %7489 = vmatprep.subr.bf16.mxu0 0
        %7490 = vmatpush1.bf16.msra.mxu0 0
        %7491 = vmatprep.subr.bf16.mxu0 0
        %7492 = vmatpush1.bf16.msra.mxu0 0
        %7493 = vmatprep.subr.bf16.mxu0 0
        %7494 = vmatpush1.bf16.msra.mxu0 0
        %7495 = vmatprep.subr.bf16.mxu0 0
        %7496 = vmatpush1.bf16.msra.mxu0 %v7471
        %7497 = vmatprep.subr.bf16.mxu0 0
        %7498 = vmatpush1.bf16.msra.mxu0 %v7470
        %7499 = vmatprep.subr.bf16.mxu0 0
        %7500 = vmatpush2.bf16.msra.mxu0 0
        %7501 = vmatprep.subr.bf16.mxu0 0
        %7502 = vmatpush2.bf16.msra.mxu0 0
        %7503 = vmatprep.subr.bf16.mxu0 0
        %7504 = vmatpush2.bf16.msra.mxu0 0
        %7505 = vmatprep.subr.bf16.mxu0 0
        %7506 = vmatpush2.bf16.msra.mxu0 0
        %7507 = vmatprep.subr.bf16.mxu0 0
        %7508 = vmatpush2.bf16.msra.mxu0 0
        %7509 = vmatprep.subr.bf16.mxu0 0
        %7510 = vmatpush2.bf16.msra.mxu0 0
        %7511 = vmatprep.subr.bf16.mxu0 0
        %7512 = vmatpush2.bf16.msra.mxu0 0
        %7513 = vmatprep.subr.bf16.mxu0 0
        %7514 = vmatpush2.bf16.msra.mxu0 0
        %7515 = vmatprep.mubr.bf16.mxu0 0
        %7516 = vmatmul.mubr.bf16.gmra.mxu0 %v7475
        %v7517 = vpop.f32.mrf.mxu0
        %v7518 = vadd.f32 0.0, %v7517
        %v7519 = vpop.f32.mrf.mxu0
        %v7520 = vpop.f32.mrf.mxu0
        %v7521 = vadd.f32 0.0, %v7520
        %v7522 = vpop.f32.mrf.mxu0
        %7523 = vmatprep.mubr.bf16.mxu0 0
        %7524 = vmatmul.mubr.bf16.gmra.mxu0 %v7478
        %v7525 = vpop.f32.mrf.mxu0
        %v7526 = vadd.f32 0.0, %v7525
        %v7527 = vpop.f32.mrf.mxu0
        %v7528 = vpop.f32.mrf.mxu0
        %v7529 = vadd.f32 0.0, %v7528
        %v7530 = vpop.f32.mrf.mxu0
        %7531 = vmatprep.mubr.bf16.mxu0 0
        %7532 = vmatmul.mubr.bf16.gmra.mxu0 %v7481
        %v7533 = vpop.f32.mrf.mxu0
        %v7534 = vadd.f32 0.0, %v7533
        %v7535 = vpop.f32.mrf.mxu0
        %v7536 = vpop.f32.mrf.mxu0
        %v7537 = vpop.f32.mrf.mxu0
        %7538 = vdwg.mxu0
        %v7539 = vadd.f32 %v7449, %v7518
        %v7540 = vadd.f32 %v7450, %v7521
        %v7541 = vadd.f32 %v7451, %v7526
        %v7542 = vadd.f32 %v7452, %v7529
        %v7543 = vadd.f32 %v7453, %v7534
        %v7544 = vld [vmem:[#allocation4 + $0x4] sm:$0xc]
        %v7545 = vld [vmem:[#allocation4 + $0x14] sm:$0xf]
        %s7546 = scalar_lea.vmem %s16, 96
        %v7547 = vld [vmem:[%s7546] sm:$0xf]
        %v7548 = vld [vmem:[%s7546 + $0x4] sm:$0xf]
        %v7549 = vld [vmem:[%s7546 + $0x8] sm:$0xf]
        %v7550 = vld [vmem:[%s7546 + $0xc] sm:$0xf]
        %v7553 = vunpack.c.l.b16 %v7544
        %v7554 = vunpack.c.l.b16 %v7545
        %v7555 = vpack.c.b16 %v7243, %v7553
        %v7556 = vpack.c.b16 %v7554, %v7554
        %v7557 = vrot.slane %v7555, 2
        %v7558 = vrot.slane %v7460, 2
        %v7559 = vsel %vm2044, %v7557, %v7558
        %v7560 = vrot.slane %v7556, 2
        %v7561 = vsel %vm2044, %v7558, %v7560
        %v7566 = vunpack.c.l.b16 %v7547
        %v7567 = vunpack.c.l.b16 %v7548
        %v7568 = vunpack.c.l.b16 %v7549
        %v7569 = vunpack.c.l.b16 %v7550
        %v7570 = vpack.c.b16 %v7567, %v7566
        %v7571 = vpack.c.b16 %v7569, %v7568
        %v7575 = vsel %vm5400, %v7559, 0
        %v7578 = vsel %vm5400, %v7561, 0
        %v7581 = vsel %vm5400, %v7560, 0
        %7583 = vmatprep.subr.bf16.mxu0 0
        %7584 = vmatpush1.bf16.msra.mxu0 0
        %7585 = vmatprep.subr.bf16.mxu0 0
        %7586 = vmatpush1.bf16.msra.mxu0 0
        %7587 = vmatprep.subr.bf16.mxu0 0
        %7588 = vmatpush1.bf16.msra.mxu0 0
        %7589 = vmatprep.subr.bf16.mxu0 0
        %7590 = vmatpush1.bf16.msra.mxu0 0
        %7591 = vmatprep.subr.bf16.mxu0 0
        %7592 = vmatpush1.bf16.msra.mxu0 0
        %7593 = vmatprep.subr.bf16.mxu0 0
        %7594 = vmatpush1.bf16.msra.mxu0 0
        %7595 = vmatprep.subr.bf16.mxu0 0
        %7596 = vmatpush1.bf16.msra.mxu0 %v7571
        %7597 = vmatprep.subr.bf16.mxu0 0
        %7598 = vmatpush1.bf16.msra.mxu0 %v7570
        %7599 = vmatprep.subr.bf16.mxu0 0
        %7600 = vmatpush2.bf16.msra.mxu0 0
        %7601 = vmatprep.subr.bf16.mxu0 0
        %7602 = vmatpush2.bf16.msra.mxu0 0
        %7603 = vmatprep.subr.bf16.mxu0 0
        %7604 = vmatpush2.bf16.msra.mxu0 0
        %7605 = vmatprep.subr.bf16.mxu0 0
        %7606 = vmatpush2.bf16.msra.mxu0 0
        %7607 = vmatprep.subr.bf16.mxu0 0
        %7608 = vmatpush2.bf16.msra.mxu0 0
        %7609 = vmatprep.subr.bf16.mxu0 0
        %7610 = vmatpush2.bf16.msra.mxu0 0
        %7611 = vmatprep.subr.bf16.mxu0 0
        %7612 = vmatpush2.bf16.msra.mxu0 0
        %7613 = vmatprep.subr.bf16.mxu0 0
        %7614 = vmatpush2.bf16.msra.mxu0 0
        %7615 = vmatprep.mubr.bf16.mxu0 0
        %7616 = vmatmul.mubr.bf16.gmra.mxu0 %v7575
        %v7617 = vpop.f32.mrf.mxu0
        %v7618 = vadd.f32 0.0, %v7617
        %v7619 = vpop.f32.mrf.mxu0
        %v7620 = vpop.f32.mrf.mxu0
        %v7621 = vadd.f32 0.0, %v7620
        %v7622 = vpop.f32.mrf.mxu0
        %7623 = vmatprep.mubr.bf16.mxu0 0
        %7624 = vmatmul.mubr.bf16.gmra.mxu0 %v7578
        %v7625 = vpop.f32.mrf.mxu0
        %v7626 = vadd.f32 0.0, %v7625
        %v7627 = vpop.f32.mrf.mxu0
        %v7628 = vpop.f32.mrf.mxu0
        %v7629 = vadd.f32 0.0, %v7628
        %v7630 = vpop.f32.mrf.mxu0
        %7631 = vmatprep.mubr.bf16.mxu0 0
        %7632 = vmatmul.mubr.bf16.gmra.mxu0 %v7581
        %v7633 = vpop.f32.mrf.mxu0
        %v7634 = vadd.f32 0.0, %v7633
        %v7635 = vpop.f32.mrf.mxu0
        %v7636 = vpop.f32.mrf.mxu0
        %v7637 = vpop.f32.mrf.mxu0
        %7638 = vdwg.mxu0
        %v7639 = vadd.f32 %v7539, %v7618
        %v7640 = vadd.f32 %v7540, %v7621
        %v7641 = vadd.f32 %v7541, %v7626
        %v7642 = vadd.f32 %v7542, %v7629
        %v7643 = vadd.f32 %v7543, %v7634
        %v7644 = vld [vmem:[#allocation4 + $0x4] sm:$0xc]
        %v7645 = vld [vmem:[#allocation4 + $0x8] sm:$0xf]
        %v7646 = vld [vmem:[#allocation4 + $0xc] sm:$0xf]
        %v7647 = vld [vmem:[#allocation4 + $0x10] sm:$0xf]
        %v7648 = vld [vmem:[#allocation4 + $0x14] sm:$0xf]
        %v7649 = vld [vmem:[#allocation4 + $0x18] sm:$0x1]
        %s7650 = scalar_lea.vmem %s16, 112
        %v7651 = vld [vmem:[%s7650] sm:$0xf]
        %v7652 = vld [vmem:[%s7650 + $0x4] sm:$0xf]
        %v7653 = vld [vmem:[%s7650 + $0x8] sm:$0xf]
        %v7654 = vld [vmem:[%s7650 + $0xc] sm:$0xf]
        %v7661 = vunpack.c.l.b16 %v7644
        %v7662 = vunpack.c.l.b16 %v7645
        %v7663 = vunpack.c.l.b16 %v7646
        %v7664 = vunpack.c.l.b16 %v7647
        %v7665 = vunpack.c.l.b16 %v7648
        %v7666 = vunpack.c.l.b16 %v7649
        %v7667 = vpack.c.b16 %v7662, %v7661
        %v7668 = vpack.c.b16 %v7664, %v7663
        %v7669 = vpack.c.b16 %v7666, %v7665
        %v7671 = vshrl.u32 %v7667, 16
        %v7673 = vrot.slane %v7671, 2
        %v7674 = vshll.u32 %v7667, 16
        %v7676 = vrot.slane %v7674, 3
        %v7677 = vor.u32 %v7673, %v7676
        %v7679 = vshrl.u32 %v7668, 16
        %v7681 = vrot.slane %v7679, 2
        %v7682 = vshll.u32 %v7668, 16
        %v7684 = vrot.slane %v7682, 3
        %v7685 = vor.u32 %v7681, %v7684
        %v7686 = vsel %vm2255, %v7677, %v7685
        %v7688 = vshrl.u32 %v7669, 16
        %v7690 = vrot.slane %v7688, 2
        %v7691 = vshll.u32 %v7669, 16
        %v7693 = vrot.slane %v7691, 3
        %v7694 = vor.u32 %v7690, %v7693
        %v7695 = vsel %vm2255, %v7685, %v7694
        %v7700 = vunpack.c.l.b16 %v7651
        %v7701 = vunpack.c.l.b16 %v7652
        %v7702 = vunpack.c.l.b16 %v7653
        %v7703 = vunpack.c.l.b16 %v7654
        %v7704 = vpack.c.b16 %v7701, %v7700
        %v7705 = vpack.c.b16 %v7703, %v7702
        %v7709 = vsel %vm5400, %v7686, 0
        %v7712 = vsel %vm5400, %v7695, 0
        %v7715 = vsel %vm5400, %v7694, 0
        %7717 = vmatprep.subr.bf16.mxu0 0
        %7718 = vmatpush1.bf16.msra.mxu0 0
        %7719 = vmatprep.subr.bf16.mxu0 0
        %7720 = vmatpush1.bf16.msra.mxu0 0
        %7721 = vmatprep.subr.bf16.mxu0 0
        %7722 = vmatpush1.bf16.msra.mxu0 0
        %7723 = vmatprep.subr.bf16.mxu0 0
        %7724 = vmatpush1.bf16.msra.mxu0 0
        %7725 = vmatprep.subr.bf16.mxu0 0
        %7726 = vmatpush1.bf16.msra.mxu0 0
        %7727 = vmatprep.subr.bf16.mxu0 0
        %7728 = vmatpush1.bf16.msra.mxu0 0
        %7729 = vmatprep.subr.bf16.mxu0 0
        %7730 = vmatpush1.bf16.msra.mxu0 %v7705
        %7731 = vmatprep.subr.bf16.mxu0 0
        %7732 = vmatpush1.bf16.msra.mxu0 %v7704
        %7733 = vmatprep.subr.bf16.mxu0 0
        %7734 = vmatpush2.bf16.msra.mxu0 0
        %7735 = vmatprep.subr.bf16.mxu0 0
        %7736 = vmatpush2.bf16.msra.mxu0 0
        %7737 = vmatprep.subr.bf16.mxu0 0
        %7738 = vmatpush2.bf16.msra.mxu0 0
        %7739 = vmatprep.subr.bf16.mxu0 0
        %7740 = vmatpush2.bf16.msra.mxu0 0
        %7741 = vmatprep.subr.bf16.mxu0 0
        %7742 = vmatpush2.bf16.msra.mxu0 0
        %7743 = vmatprep.subr.bf16.mxu0 0
        %7744 = vmatpush2.bf16.msra.mxu0 0
        %7745 = vmatprep.subr.bf16.mxu0 0
        %7746 = vmatpush2.bf16.msra.mxu0 0
        %7747 = vmatprep.subr.bf16.mxu0 0
        %7748 = vmatpush2.bf16.msra.mxu0 0
        %7749 = vmatprep.mubr.bf16.mxu0 0
        %7750 = vmatmul.mubr.bf16.gmra.mxu0 %v7709
        %v7751 = vpop.f32.mrf.mxu0
        %v7752 = vadd.f32 0.0, %v7751
        %v7753 = vpop.f32.mrf.mxu0
        %v7754 = vpop.f32.mrf.mxu0
        %v7755 = vadd.f32 0.0, %v7754
        %v7756 = vpop.f32.mrf.mxu0
        %7757 = vmatprep.mubr.bf16.mxu0 0
        %7758 = vmatmul.mubr.bf16.gmra.mxu0 %v7712
        %v7759 = vpop.f32.mrf.mxu0
        %v7760 = vadd.f32 0.0, %v7759
        %v7761 = vpop.f32.mrf.mxu0
        %v7762 = vpop.f32.mrf.mxu0
        %v7763 = vadd.f32 0.0, %v7762
        %v7764 = vpop.f32.mrf.mxu0
        %7765 = vmatprep.mubr.bf16.mxu0 0
        %7766 = vmatmul.mubr.bf16.gmra.mxu0 %v7715
        %v7767 = vpop.f32.mrf.mxu0
        %v7768 = vadd.f32 0.0, %v7767
        %v7769 = vpop.f32.mrf.mxu0
        %v7770 = vpop.f32.mrf.mxu0
        %v7771 = vpop.f32.mrf.mxu0
        %7772 = vdwg.mxu0
        %v7773 = vadd.f32 %v7639, %v7752
        %v7774 = vadd.f32 %v7640, %v7755
        %v7775 = vadd.f32 %v7641, %v7760
        %v7776 = vadd.f32 %v7642, %v7763
        %v7777 = vadd.f32 %v7643, %v7768
        %v7778 = vld [vmem:[#allocation4 + $0x4] sm:$0x8]
        %s7779 = scalar_lea.vmem %s16, 128
        %v7780 = vld [vmem:[%s7779] sm:$0xf]
        %v7781 = vld [vmem:[%s7779 + $0x4] sm:$0xf]
        %v7782 = vld [vmem:[%s7779 + $0x8] sm:$0xf]
        %v7783 = vld [vmem:[%s7779 + $0xc] sm:$0xf]
        %v7785 = vunpack.c.l.b16 %v7778
        %v7786 = vpack.c.b16 %v7662, %v7785
        %v7787 = vrot.slane %v7786, 3
        %v7788 = vrot.slane %v7668, 3
        %v7789 = vsel %vm1446, %v7787, %v7788
        %v7790 = vrot.slane %v7669, 3
        %v7791 = vsel %vm1446, %v7788, %v7790
        %v7796 = vunpack.c.l.b16 %v7780
        %v7797 = vunpack.c.l.b16 %v7781
        %v7798 = vunpack.c.l.b16 %v7782
        %v7799 = vunpack.c.l.b16 %v7783
        %v7800 = vpack.c.b16 %v7797, %v7796
        %v7801 = vpack.c.b16 %v7799, %v7798
        %v7805 = vsel %vm5400, %v7789, 0
        %v7808 = vsel %vm5400, %v7791, 0
        %v7811 = vsel %vm5400, %v7790, 0
        %7813 = vmatprep.subr.bf16.mxu0 0
        %7814 = vmatpush1.bf16.msra.mxu0 0
        %7815 = vmatprep.subr.bf16.mxu0 0
        %7816 = vmatpush1.bf16.msra.mxu0 0
        %7817 = vmatprep.subr.bf16.mxu0 0
        %7818 = vmatpush1.bf16.msra.mxu0 0
        %7819 = vmatprep.subr.bf16.mxu0 0
        %7820 = vmatpush1.bf16.msra.mxu0 0
        %7821 = vmatprep.subr.bf16.mxu0 0
        %7822 = vmatpush1.bf16.msra.mxu0 0
        %7823 = vmatprep.subr.bf16.mxu0 0
        %7824 = vmatpush1.bf16.msra.mxu0 0
        %7825 = vmatprep.subr.bf16.mxu0 0
        %7826 = vmatpush1.bf16.msra.mxu0 %v7801
        %7827 = vmatprep.subr.bf16.mxu0 0
        %7828 = vmatpush1.bf16.msra.mxu0 %v7800
        %7829 = vmatprep.subr.bf16.mxu0 0
        %7830 = vmatpush2.bf16.msra.mxu0 0
        %7831 = vmatprep.subr.bf16.mxu0 0
        %7832 = vmatpush2.bf16.msra.mxu0 0
        %7833 = vmatprep.subr.bf16.mxu0 0
        %7834 = vmatpush2.bf16.msra.mxu0 0
        %7835 = vmatprep.subr.bf16.mxu0 0
        %7836 = vmatpush2.bf16.msra.mxu0 0
        %7837 = vmatprep.subr.bf16.mxu0 0
        %7838 = vmatpush2.bf16.msra.mxu0 0
        %7839 = vmatprep.subr.bf16.mxu0 0
        %7840 = vmatpush2.bf16.msra.mxu0 0
        %7841 = vmatprep.subr.bf16.mxu0 0
        %7842 = vmatpush2.bf16.msra.mxu0 0
        %7843 = vmatprep.subr.bf16.mxu0 0
        %7844 = vmatpush2.bf16.msra.mxu0 0
        %7845 = vmatprep.mubr.bf16.mxu0 0
        %7846 = vmatmul.mubr.bf16.gmra.mxu0 %v7805
        %v7847 = vpop.f32.mrf.mxu0
        %v7848 = vadd.f32 0.0, %v7847
        %v7849 = vpop.f32.mrf.mxu0
        %v7850 = vpop.f32.mrf.mxu0
        %v7851 = vadd.f32 0.0, %v7850
        %v7852 = vpop.f32.mrf.mxu0
        %7853 = vmatprep.mubr.bf16.mxu0 0
        %7854 = vmatmul.mubr.bf16.gmra.mxu0 %v7808
        %v7855 = vpop.f32.mrf.mxu0
        %v7856 = vadd.f32 0.0, %v7855
        %v7857 = vpop.f32.mrf.mxu0
        %v7858 = vpop.f32.mrf.mxu0
        %v7859 = vadd.f32 0.0, %v7858
        %v7860 = vpop.f32.mrf.mxu0
        %7861 = vmatprep.mubr.bf16.mxu0 0
        %7862 = vmatmul.mubr.bf16.gmra.mxu0 %v7811
        %v7863 = vpop.f32.mrf.mxu0
        %v7864 = vadd.f32 0.0, %v7863
        %v7865 = vpop.f32.mrf.mxu0
        %v7866 = vpop.f32.mrf.mxu0
        %v7867 = vpop.f32.mrf.mxu0
        %7868 = vdwg.mxu0
        %v7869 = vadd.f32 %v7773, %v7848
        %v7870 = vadd.f32 %v7774, %v7851
        %v7871 = vadd.f32 %v7775, %v7856
        %v7872 = vadd.f32 %v7776, %v7859
        %v7873 = vadd.f32 %v7777, %v7864
        %v7874 = vld [vmem:[%s17] sm:$0x1]
        %v7876 = vlaneseq
        %v7877 = vshrl.u32 %v7876, 7
        %v7878 = vsub.s32 0, %v7877
        %v7879 = vrot.slane %v7874, %v7878
        %v7881 = vadd.f32 %v7869, %v7879
        %v7882 = vadd.f32 %v7870, %v7879
        %v7883 = vadd.f32 %v7871, %v7879
        %v7884 = vadd.f32 %v7872, %v7879
        %v7885 = vadd.f32 %v7873, %v7879
        %v7886 = vmax.f32 %v7881, 0.0
        %v7887 = vmax.f32 %v7882, 0.0
        %v7888 = vmax.f32 %v7883, 0.0
        %v7889 = vmax.f32 %v7884, 0.0
        %v7890 = vmax.f32 %v7885, 0.0
        %v7891 = vmul.f32 %v7886, %v2659
        %v7892 = vmul.f32 %v7887, %v2664
        %v7893 = vmul.f32 %v7888, %v2669
        %v7894 = vmul.f32 %v7889, %v2674
        %v7895 = vmul.f32 %v7890, %v2679
        %7896 = vst.msk [vmem:[#allocation5] sm:$0xf] %vm4137, 0
        %7897 = vst.msk [vmem:[#allocation5 + $0x4] sm:$0xf] %vm4137, 0
        %7898 = vst.msk [vmem:[#allocation5 + $0x8] sm:$0xf] %vm4137, 0
        %7899 = vst.msk [vmem:[#allocation5 + $0xc] sm:$0xf] %vm4137, 0
        %7900 = vst.msk [vmem:[#allocation5 + $0x10] sm:$0xf] %vm4137, 0
        %7901 = vst.msk [vmem:[#allocation5 + $0x14] sm:$0xf] %vm4137, 0
        %7902 = vst.msk [vmem:[#allocation5 + $0x18] sm:$0x1] %vm4144, 0
        %v7903 = vpack.c.bf16 %v7892, %v7891
        %v7904 = vpack.c.bf16 %v7894, %v7893
        %v7905 = vpack.c.bf16 %v7895, %v7895
        %v7909 = vunpack.c.l.b16 %v7903
        %v7910 = vunpack.c.h.b16 %v7903
        %v7911 = vunpack.c.l.b16 %v7904
        %v7912 = vunpack.c.h.b16 %v7904
        %v7913 = vunpack.c.l.b16 %v7905
        %v7914 = vpack.c.b16 %v7909, %v7909
        %v7915 = vpack.c.b16 %v7910, %v7910
        %v7916 = vpack.c.b16 %v7911, %v7911
        %v7917 = vpack.c.b16 %v7912, %v7912
        %v7918 = vpack.c.b16 %v7913, %v7913
        %v7920 = vshll.u32 %v7914, 16
        %v7922 = vrot.slane %v7920, 5
        %v7923 = vshrl.u32 %v7914, 16
        %v7925 = vrot.slane %v7923, 4
        %v7926 = vor.u32 %v7925, %v7922
        %v7927 = vrot.slane %v7926, 4
        %v7929 = vshll.u32 %v7915, 16
        %v7931 = vrot.slane %v7929, 5
        %v7932 = vsel %vm2711, %v7927, %v7931
        %v7933 = vshrl.u32 %v7915, 16
        %v7935 = vrot.slane %v7933, 4
        %v7936 = vor.u32 %v7935, %v7931
        %v7937 = vrot.slane %v7936, 4
        %v7939 = vshll.u32 %v7916, 16
        %v7941 = vrot.slane %v7939, 5
        %v7942 = vsel %vm2711, %v7937, %v7941
        %v7943 = vshrl.u32 %v7916, 16
        %v7945 = vrot.slane %v7943, 4
        %v7946 = vor.u32 %v7945, %v7941
        %v7947 = vrot.slane %v7946, 4
        %v7949 = vshll.u32 %v7917, 16
        %v7951 = vrot.slane %v7949, 5
        %v7952 = vsel %vm2711, %v7947, %v7951
        %v7953 = vshrl.u32 %v7917, 16
        %v7955 = vrot.slane %v7953, 4
        %v7956 = vor.u32 %v7955, %v7951
        %v7957 = vrot.slane %v7956, 4
        %v7959 = vshll.u32 %v7918, 16
        %v7961 = vrot.slane %v7959, 5
        %v7962 = vsel %vm2711, %v7957, %v7961
        %v7963 = vshrl.u32 %v7918, 16
        %v7965 = vrot.slane %v7963, 4
        %v7966 = vor.u32 %v7965, %v7961
        %v7967 = vrot.slane %v7966, 4
        %v7974 = vld [vmem:[#allocation5] sm:$0x8]
        %v7975 = vsel %vm4218, %v7922, %v7974
        %7976 = vst [vmem:[#allocation5] sm:$0x8] %v7975
        %7977 = vst.msk [vmem:[#allocation5 + $0x4] sm:$0xf] %vm4137, %v7932
        %7978 = vst.msk [vmem:[#allocation5 + $0x8] sm:$0xf] %vm4137, %v7942
        %7979 = vst.msk [vmem:[#allocation5 + $0xc] sm:$0xf] %vm4137, %v7952
        %7980 = vst.msk [vmem:[#allocation5 + $0x10] sm:$0xf] %vm4137, %v7962
        %v7981 = vld [vmem:[#allocation5 + $0x14] sm:$0x3]
        %v7982 = vsel %vm4227, %v7967, %v7981
        %7983 = vst [vmem:[#allocation5 + $0x14] sm:$0x3] %v7982
        %v7984 = vld [vmem:[#allocation5] sm:$0xf]
        %v7985 = vld [vmem:[#allocation5 + $0x4] sm:$0xf]
        %v7986 = vld [vmem:[#allocation5 + $0x8] sm:$0xf]
        %v7987 = vld [vmem:[#allocation5 + $0xc] sm:$0xf]
        %v7988 = vld [vmem:[#allocation5 + $0x10] sm:$0x3]
        %v7989 = vld [vmem:[%s18] sm:$0xf]
        %v7990 = vld [vmem:[%s18 + $0x4] sm:$0xf]
        %v7991 = vld [vmem:[%s18 + $0x8] sm:$0xf]
        %v7992 = vld [vmem:[%s18 + $0xc] sm:$0xf]
        %v7993 = vld [vmem:[%s18 + $0x10] sm:$0xf]
        %v7994 = vld [vmem:[%s18 + $0x14] sm:$0xf]
        %v7995 = vld [vmem:[%s18 + $0x18] sm:$0xf]
        %v7996 = vld [vmem:[%s18 + $0x1c] sm:$0xf]
        %v7997 = vld [vmem:[#allocation5 + $0x10] sm:$0x7]
        %s7998 = scalar_lea.vmem %s18, 32
        %v7999 = vld [vmem:[%s7998] sm:$0xf]
        %v8000 = vld [vmem:[%s7998 + $0x4] sm:$0xf]
        %v8001 = vld [vmem:[%s7998 + $0x8] sm:$0xf]
        %v8002 = vld [vmem:[%s7998 + $0xc] sm:$0xf]
        %v8003 = vld [vmem:[%s7998 + $0x10] sm:$0xf]
        %v8004 = vld [vmem:[%s7998 + $0x14] sm:$0xf]
        %v8005 = vld [vmem:[%s7998 + $0x18] sm:$0xf]
        %v8006 = vld [vmem:[%s7998 + $0x1c] sm:$0xf]
        %v8012 = vunpack.c.l.b16 %v7984
        %v8013 = vunpack.c.l.b16 %v7985
        %v8014 = vunpack.c.l.b16 %v7986
        %v8015 = vunpack.c.l.b16 %v7987
        %v8016 = vunpack.c.l.b16 %v7997
        %v8017 = vpack.c.b16 %v8013, %v8012
        %v8018 = vpack.c.b16 %v8015, %v8014
        %v8019 = vpack.c.b16 %v8016, %v8016
        %v8021 = vshrl.u32 %v8017, 16
        %v8023 = vshll.u32 %v8017, 16
        %v8025 = vrot.slane %v8023, 1
        %v8026 = vor.u32 %v8021, %v8025
        %v8028 = vshll.u32 %v8018, 16
        %v8030 = vrot.slane %v8028, 1
        %v8031 = vsel %vm873, %v8026, %v8030
        %v8032 = vshrl.u32 %v8018, 16
        %v8034 = vor.u32 %v8032, %v8030
        %v8036 = vshll.u32 %v8019, 16
        %v8038 = vrot.slane %v8036, 1
        %v8039 = vsel %vm873, %v8034, %v8038
        %v8040 = vshrl.u32 %v8019, 16
        %v8042 = vor.u32 %v8040, %v8038
        %v8051 = vunpack.c.l.b16 %v7999
        %v8052 = vunpack.c.l.b16 %v8000
        %v8053 = vunpack.c.l.b16 %v8001
        %v8054 = vunpack.c.l.b16 %v8002
        %v8055 = vunpack.c.l.b16 %v8003
        %v8056 = vunpack.c.l.b16 %v8004
        %v8057 = vunpack.c.l.b16 %v8005
        %v8058 = vunpack.c.l.b16 %v8006
        %v8059 = vpack.c.b16 %v8052, %v8051
        %v8060 = vpack.c.b16 %v8054, %v8053
        %v8061 = vpack.c.b16 %v8056, %v8055
        %v8062 = vpack.c.b16 %v8058, %v8057
        %v8068 = vsel %vm995, %v8031, 0
        %v8071 = vsel %vm995, %v8039, 0
        %v8074 = vsel %vm995, %v8042, 0
        %8076 = vmatprep.subr.bf16.mxu0 0
        %8077 = vmatpush1.bf16.msra.mxu0 0
        %8078 = vmatprep.subr.bf16.mxu0 0
        %8079 = vmatpush1.bf16.msra.mxu0 0
        %8080 = vmatprep.subr.bf16.mxu0 0
        %8081 = vmatpush1.bf16.msra.mxu0 0
        %8082 = vmatprep.subr.bf16.mxu0 0
        %8083 = vmatpush1.bf16.msra.mxu0 0
        %8084 = vmatprep.subr.bf16.mxu0 0
        %8085 = vmatpush1.bf16.msra.mxu0 %v8062
        %8086 = vmatprep.subr.bf16.mxu0 0
        %8087 = vmatpush1.bf16.msra.mxu0 %v8061
        %8088 = vmatprep.subr.bf16.mxu0 0
        %8089 = vmatpush1.bf16.msra.mxu0 %v8060
        %8090 = vmatprep.subr.bf16.mxu0 0
        %8091 = vmatpush1.bf16.msra.mxu0 %v8059
        %8092 = vmatprep.subr.bf16.mxu0 0
        %8093 = vmatpush2.bf16.msra.mxu0 0
        %8094 = vmatprep.subr.bf16.mxu0 0
        %8095 = vmatpush2.bf16.msra.mxu0 0
        %8096 = vmatprep.subr.bf16.mxu0 0
        %8097 = vmatpush2.bf16.msra.mxu0 0
        %8098 = vmatprep.subr.bf16.mxu0 0
        %8099 = vmatpush2.bf16.msra.mxu0 0
        %8100 = vmatprep.subr.bf16.mxu0 0
        %8101 = vmatpush2.bf16.msra.mxu0 0
        %8102 = vmatprep.subr.bf16.mxu0 0
        %8103 = vmatpush2.bf16.msra.mxu0 0
        %8104 = vmatprep.subr.bf16.mxu0 0
        %8105 = vmatpush2.bf16.msra.mxu0 0
        %8106 = vmatprep.subr.bf16.mxu0 0
        %8107 = vmatpush2.bf16.msra.mxu0 0
        %8108 = vmatprep.mubr.bf16.mxu0 0
        %8109 = vmatmul.mubr.bf16.gmra.mxu0 %v8068
        %v8110 = vpop.f32.mrf.mxu0
        %v8111 = vadd.f32 0.0, %v8110
        %v8112 = vpop.f32.mrf.mxu0
        %v8113 = vpop.f32.mrf.mxu0
        %v8114 = vadd.f32 0.0, %v8113
        %v8115 = vpop.f32.mrf.mxu0
        %8116 = vmatprep.mubr.bf16.mxu0 0
        %8117 = vmatmul.mubr.bf16.gmra.mxu0 %v8071
        %v8118 = vpop.f32.mrf.mxu0
        %v8119 = vadd.f32 0.0, %v8118
        %v8120 = vpop.f32.mrf.mxu0
        %v8121 = vpop.f32.mrf.mxu0
        %v8122 = vadd.f32 0.0, %v8121
        %v8123 = vpop.f32.mrf.mxu0
        %8124 = vmatprep.mubr.bf16.mxu0 0
        %8125 = vmatmul.mubr.bf16.gmra.mxu0 %v8074
        %v8126 = vpop.f32.mrf.mxu0
        %v8127 = vadd.f32 0.0, %v8126
        %v8128 = vpop.f32.mrf.mxu0
        %v8129 = vpop.f32.mrf.mxu0
        %v8130 = vpop.f32.mrf.mxu0
        %8131 = vdwg.mxu0
        %v8133 = vunpack.c.l.b16 %v7988
        %v8134 = vpack.c.b16 %v8133, %v8133
        %v8143 = vunpack.c.l.b16 %v7989
        %v8144 = vunpack.c.l.b16 %v7990
        %v8145 = vunpack.c.l.b16 %v7991
        %v8146 = vunpack.c.l.b16 %v7992
        %v8147 = vunpack.c.l.b16 %v7993
        %v8148 = vunpack.c.l.b16 %v7994
        %v8149 = vunpack.c.l.b16 %v7995
        %v8150 = vunpack.c.l.b16 %v7996
        %v8151 = vpack.c.b16 %v8144, %v8143
        %v8152 = vpack.c.b16 %v8146, %v8145
        %v8153 = vpack.c.b16 %v8148, %v8147
        %v8154 = vpack.c.b16 %v8150, %v8149
        %v8159 = vsel %vm995, %v8017, 0
        %v8161 = vsel %vm995, %v8018, 0
        %v8164 = vsel %vm995, %v8134, 0
        %8166 = vmatprep.subr.bf16.mxu0 0
        %8167 = vmatpush1.bf16.msra.mxu0 0
        %8168 = vmatprep.subr.bf16.mxu0 0
        %8169 = vmatpush1.bf16.msra.mxu0 0
        %8170 = vmatprep.subr.bf16.mxu0 0
        %8171 = vmatpush1.bf16.msra.mxu0 0
        %8172 = vmatprep.subr.bf16.mxu0 0
        %8173 = vmatpush1.bf16.msra.mxu0 0
        %8174 = vmatprep.subr.bf16.mxu0 0
        %8175 = vmatpush1.bf16.msra.mxu0 %v8154
        %8176 = vmatprep.subr.bf16.mxu0 0
        %8177 = vmatpush1.bf16.msra.mxu0 %v8153
        %8178 = vmatprep.subr.bf16.mxu0 0
        %8179 = vmatpush1.bf16.msra.mxu0 %v8152
        %8180 = vmatprep.subr.bf16.mxu0 0
        %8181 = vmatpush1.bf16.msra.mxu0 %v8151
        %8182 = vmatprep.subr.bf16.mxu0 0
        %8183 = vmatpush2.bf16.msra.mxu0 0
        %8184 = vmatprep.subr.bf16.mxu0 0
        %8185 = vmatpush2.bf16.msra.mxu0 0
        %8186 = vmatprep.subr.bf16.mxu0 0
        %8187 = vmatpush2.bf16.msra.mxu0 0
        %8188 = vmatprep.subr.bf16.mxu0 0
        %8189 = vmatpush2.bf16.msra.mxu0 0
        %8190 = vmatprep.subr.bf16.mxu0 0
        %8191 = vmatpush2.bf16.msra.mxu0 0
        %8192 = vmatprep.subr.bf16.mxu0 0
        %8193 = vmatpush2.bf16.msra.mxu0 0
        %8194 = vmatprep.subr.bf16.mxu0 0
        %8195 = vmatpush2.bf16.msra.mxu0 0
        %8196 = vmatprep.subr.bf16.mxu0 0
        %8197 = vmatpush2.bf16.msra.mxu0 0
        %8198 = vmatprep.mubr.bf16.mxu0 0
        %8199 = vmatmul.mubr.bf16.gmra.mxu0 %v8159
        %v8200 = vpop.f32.mrf.mxu0
        %v8201 = vadd.f32 %v8111, %v8200
        %v8202 = vpop.f32.mrf.mxu0
        %v8203 = vpop.f32.mrf.mxu0
        %v8204 = vadd.f32 %v8114, %v8203
        %v8205 = vpop.f32.mrf.mxu0
        %8206 = vmatprep.mubr.bf16.mxu0 0
        %8207 = vmatmul.mubr.bf16.gmra.mxu0 %v8161
        %v8208 = vpop.f32.mrf.mxu0
        %v8209 = vadd.f32 %v8119, %v8208
        %v8210 = vpop.f32.mrf.mxu0
        %v8211 = vpop.f32.mrf.mxu0
        %v8212 = vadd.f32 %v8122, %v8211
        %v8213 = vpop.f32.mrf.mxu0
        %8214 = vmatprep.mubr.bf16.mxu0 0
        %8215 = vmatmul.mubr.bf16.gmra.mxu0 %v8164
        %v8216 = vpop.f32.mrf.mxu0
        %v8217 = vadd.f32 %v8127, %v8216
        %v8218 = vpop.f32.mrf.mxu0
        %v8219 = vpop.f32.mrf.mxu0
        %v8220 = vpop.f32.mrf.mxu0
        %8221 = vdwg.mxu0
        %v8222 = vld [vmem:[#allocation5] sm:$0xe]
        %s8223 = scalar_lea.vmem %s18, 64
        %v8224 = vld [vmem:[%s8223] sm:$0xf]
        %v8225 = vld [vmem:[%s8223 + $0x4] sm:$0xf]
        %v8226 = vld [vmem:[%s8223 + $0x8] sm:$0xf]
        %v8227 = vld [vmem:[%s8223 + $0xc] sm:$0xf]
        %v8228 = vld [vmem:[%s8223 + $0x10] sm:$0xf]
        %v8229 = vld [vmem:[%s8223 + $0x14] sm:$0xf]
        %v8230 = vld [vmem:[%s8223 + $0x18] sm:$0xf]
        %v8231 = vld [vmem:[%s8223 + $0x1c] sm:$0xf]
        %v8233 = vunpack.c.l.b16 %v8222
        %v8234 = vpack.c.b16 %v8013, %v8233
        %v8235 = vrot.slane %v8234, 1
        %v8236 = vrot.slane %v8018, 1
        %v8237 = vsel %vm1235, %v8235, %v8236
        %v8238 = vrot.slane %v8019, 1
        %v8239 = vsel %vm1235, %v8236, %v8238
        %v8248 = vunpack.c.l.b16 %v8224
        %v8249 = vunpack.c.l.b16 %v8225
        %v8250 = vunpack.c.l.b16 %v8226
        %v8251 = vunpack.c.l.b16 %v8227
        %v8252 = vunpack.c.l.b16 %v8228
        %v8253 = vunpack.c.l.b16 %v8229
        %v8254 = vunpack.c.l.b16 %v8230
        %v8255 = vunpack.c.l.b16 %v8231
        %v8256 = vpack.c.b16 %v8249, %v8248
        %v8257 = vpack.c.b16 %v8251, %v8250
        %v8258 = vpack.c.b16 %v8253, %v8252
        %v8259 = vpack.c.b16 %v8255, %v8254
        %v8265 = vsel %vm995, %v8237, 0
        %v8268 = vsel %vm995, %v8239, 0
        %v8271 = vsel %vm995, %v8238, 0
        %8273 = vmatprep.subr.bf16.mxu0 0
        %8274 = vmatpush1.bf16.msra.mxu0 0
        %8275 = vmatprep.subr.bf16.mxu0 0
        %8276 = vmatpush1.bf16.msra.mxu0 0
        %8277 = vmatprep.subr.bf16.mxu0 0
        %8278 = vmatpush1.bf16.msra.mxu0 0
        %8279 = vmatprep.subr.bf16.mxu0 0
        %8280 = vmatpush1.bf16.msra.mxu0 0
        %8281 = vmatprep.subr.bf16.mxu0 0
        %8282 = vmatpush1.bf16.msra.mxu0 %v8259
        %8283 = vmatprep.subr.bf16.mxu0 0
        %8284 = vmatpush1.bf16.msra.mxu0 %v8258
        %8285 = vmatprep.subr.bf16.mxu0 0
        %8286 = vmatpush1.bf16.msra.mxu0 %v8257
        %8287 = vmatprep.subr.bf16.mxu0 0
        %8288 = vmatpush1.bf16.msra.mxu0 %v8256
        %8289 = vmatprep.subr.bf16.mxu0 0
        %8290 = vmatpush2.bf16.msra.mxu0 0
        %8291 = vmatprep.subr.bf16.mxu0 0
        %8292 = vmatpush2.bf16.msra.mxu0 0
        %8293 = vmatprep.subr.bf16.mxu0 0
        %8294 = vmatpush2.bf16.msra.mxu0 0
        %8295 = vmatprep.subr.bf16.mxu0 0
        %8296 = vmatpush2.bf16.msra.mxu0 0
        %8297 = vmatprep.subr.bf16.mxu0 0
        %8298 = vmatpush2.bf16.msra.mxu0 0
        %8299 = vmatprep.subr.bf16.mxu0 0
        %8300 = vmatpush2.bf16.msra.mxu0 0
        %8301 = vmatprep.subr.bf16.mxu0 0
        %8302 = vmatpush2.bf16.msra.mxu0 0
        %8303 = vmatprep.subr.bf16.mxu0 0
        %8304 = vmatpush2.bf16.msra.mxu0 0
        %8305 = vmatprep.mubr.bf16.mxu0 0
        %8306 = vmatmul.mubr.bf16.gmra.mxu0 %v8265
        %v8307 = vpop.f32.mrf.mxu0
        %v8308 = vadd.f32 0.0, %v8307
        %v8309 = vpop.f32.mrf.mxu0
        %v8310 = vpop.f32.mrf.mxu0
        %v8311 = vadd.f32 0.0, %v8310
        %v8312 = vpop.f32.mrf.mxu0
        %8313 = vmatprep.mubr.bf16.mxu0 0
        %8314 = vmatmul.mubr.bf16.gmra.mxu0 %v8268
        %v8315 = vpop.f32.mrf.mxu0
        %v8316 = vadd.f32 0.0, %v8315
        %v8317 = vpop.f32.mrf.mxu0
        %v8318 = vpop.f32.mrf.mxu0
        %v8319 = vadd.f32 0.0, %v8318
        %v8320 = vpop.f32.mrf.mxu0
        %8321 = vmatprep.mubr.bf16.mxu0 0
        %8322 = vmatmul.mubr.bf16.gmra.mxu0 %v8271
        %v8323 = vpop.f32.mrf.mxu0
        %v8324 = vadd.f32 0.0, %v8323
        %v8325 = vpop.f32.mrf.mxu0
        %v8326 = vpop.f32.mrf.mxu0
        %v8327 = vpop.f32.mrf.mxu0
        %8328 = vdwg.mxu0
        %v8329 = vadd.f32 %v8201, %v8308
        %v8330 = vadd.f32 %v8204, %v8311
        %v8331 = vadd.f32 %v8209, %v8316
        %v8332 = vadd.f32 %v8212, %v8319
        %v8333 = vadd.f32 %v8217, %v8324
        %v8334 = vld [vmem:[#allocation5] sm:$0x8]
        %v8335 = vld [vmem:[#allocation5 + $0x4] sm:$0xf]
        %v8336 = vld [vmem:[#allocation5 + $0x8] sm:$0xf]
        %v8337 = vld [vmem:[#allocation5 + $0xc] sm:$0xf]
        %v8338 = vld [vmem:[#allocation5 + $0x10] sm:$0xf]
        %v8339 = vld [vmem:[#allocation5 + $0x14] sm:$0x1]
        %s8340 = scalar_lea.vmem %s18, 96
        %v8341 = vld [vmem:[%s8340] sm:$0xf]
        %v8342 = vld [vmem:[%s8340 + $0x4] sm:$0xf]
        %v8343 = vld [vmem:[%s8340 + $0x8] sm:$0xf]
        %v8344 = vld [vmem:[%s8340 + $0xc] sm:$0xf]
        %v8345 = vld [vmem:[%s8340 + $0x10] sm:$0xf]
        %v8346 = vld [vmem:[%s8340 + $0x14] sm:$0xf]
        %v8347 = vld [vmem:[%s8340 + $0x18] sm:$0xf]
        %v8348 = vld [vmem:[%s8340 + $0x1c] sm:$0xf]
        %v8355 = vunpack.c.l.b16 %v8334
        %v8356 = vunpack.c.l.b16 %v8335
        %v8357 = vunpack.c.l.b16 %v8336
        %v8358 = vunpack.c.l.b16 %v8337
        %v8359 = vunpack.c.l.b16 %v8338
        %v8360 = vunpack.c.l.b16 %v8339
        %v8361 = vpack.c.b16 %v8356, %v8355
        %v8362 = vpack.c.b16 %v8358, %v8357
        %v8363 = vpack.c.b16 %v8360, %v8359
        %v8364 = vrot.slane %v8361, 3
        %v8365 = vrot.slane %v8362, 3
        %v8366 = vsel %vm1446, %v8364, %v8365
        %v8367 = vrot.slane %v8363, 3
        %v8368 = vsel %vm1446, %v8365, %v8367
        %v8377 = vunpack.c.l.b16 %v8341
        %v8378 = vunpack.c.l.b16 %v8342
        %v8379 = vunpack.c.l.b16 %v8343
        %v8380 = vunpack.c.l.b16 %v8344
        %v8381 = vunpack.c.l.b16 %v8345
        %v8382 = vunpack.c.l.b16 %v8346
        %v8383 = vunpack.c.l.b16 %v8347
        %v8384 = vunpack.c.l.b16 %v8348
        %v8385 = vpack.c.b16 %v8378, %v8377
        %v8386 = vpack.c.b16 %v8380, %v8379
        %v8387 = vpack.c.b16 %v8382, %v8381
        %v8388 = vpack.c.b16 %v8384, %v8383
        %v8394 = vsel %vm995, %v8366, 0
        %v8397 = vsel %vm995, %v8368, 0
        %v8400 = vsel %vm995, %v8367, 0
        %8402 = vmatprep.subr.bf16.mxu0 0
        %8403 = vmatpush1.bf16.msra.mxu0 0
        %8404 = vmatprep.subr.bf16.mxu0 0
        %8405 = vmatpush1.bf16.msra.mxu0 0
        %8406 = vmatprep.subr.bf16.mxu0 0
        %8407 = vmatpush1.bf16.msra.mxu0 0
        %8408 = vmatprep.subr.bf16.mxu0 0
        %8409 = vmatpush1.bf16.msra.mxu0 0
        %8410 = vmatprep.subr.bf16.mxu0 0
        %8411 = vmatpush1.bf16.msra.mxu0 %v8388
        %8412 = vmatprep.subr.bf16.mxu0 0
        %8413 = vmatpush1.bf16.msra.mxu0 %v8387
        %8414 = vmatprep.subr.bf16.mxu0 0
        %8415 = vmatpush1.bf16.msra.mxu0 %v8386
        %8416 = vmatprep.subr.bf16.mxu0 0
        %8417 = vmatpush1.bf16.msra.mxu0 %v8385
        %8418 = vmatprep.subr.bf16.mxu0 0
        %8419 = vmatpush2.bf16.msra.mxu0 0
        %8420 = vmatprep.subr.bf16.mxu0 0
        %8421 = vmatpush2.bf16.msra.mxu0 0
        %8422 = vmatprep.subr.bf16.mxu0 0
        %8423 = vmatpush2.bf16.msra.mxu0 0
        %8424 = vmatprep.subr.bf16.mxu0 0
        %8425 = vmatpush2.bf16.msra.mxu0 0
        %8426 = vmatprep.subr.bf16.mxu0 0
        %8427 = vmatpush2.bf16.msra.mxu0 0
        %8428 = vmatprep.subr.bf16.mxu0 0
        %8429 = vmatpush2.bf16.msra.mxu0 0
        %8430 = vmatprep.subr.bf16.mxu0 0
        %8431 = vmatpush2.bf16.msra.mxu0 0
        %8432 = vmatprep.subr.bf16.mxu0 0
        %8433 = vmatpush2.bf16.msra.mxu0 0
        %8434 = vmatprep.mubr.bf16.mxu0 0
        %8435 = vmatmul.mubr.bf16.gmra.mxu0 %v8394
        %v8436 = vpop.f32.mrf.mxu0
        %v8437 = vadd.f32 0.0, %v8436
        %v8438 = vpop.f32.mrf.mxu0
        %v8439 = vpop.f32.mrf.mxu0
        %v8440 = vadd.f32 0.0, %v8439
        %v8441 = vpop.f32.mrf.mxu0
        %8442 = vmatprep.mubr.bf16.mxu0 0
        %8443 = vmatmul.mubr.bf16.gmra.mxu0 %v8397
        %v8444 = vpop.f32.mrf.mxu0
        %v8445 = vadd.f32 0.0, %v8444
        %v8446 = vpop.f32.mrf.mxu0
        %v8447 = vpop.f32.mrf.mxu0
        %v8448 = vadd.f32 0.0, %v8447
        %v8449 = vpop.f32.mrf.mxu0
        %8450 = vmatprep.mubr.bf16.mxu0 0
        %8451 = vmatmul.mubr.bf16.gmra.mxu0 %v8400
        %v8452 = vpop.f32.mrf.mxu0
        %v8453 = vadd.f32 0.0, %v8452
        %v8454 = vpop.f32.mrf.mxu0
        %v8455 = vpop.f32.mrf.mxu0
        %v8456 = vpop.f32.mrf.mxu0
        %8457 = vdwg.mxu0
        %v8458 = vadd.f32 %v8329, %v8437
        %v8459 = vadd.f32 %v8330, %v8440
        %v8460 = vadd.f32 %v8331, %v8445
        %v8461 = vadd.f32 %v8332, %v8448
        %v8462 = vadd.f32 %v8333, %v8453
        %v8463 = vld [vmem:[#allocation5 + $0x14] sm:$0x3]
        %s8464 = scalar_lea.vmem %s18, 128
        %v8465 = vld [vmem:[%s8464] sm:$0xf]
        %v8466 = vld [vmem:[%s8464 + $0x4] sm:$0xf]
        %v8467 = vld [vmem:[%s8464 + $0x8] sm:$0xf]
        %v8468 = vld [vmem:[%s8464 + $0xc] sm:$0xf]
        %v8469 = vld [vmem:[%s8464 + $0x10] sm:$0xf]
        %v8470 = vld [vmem:[%s8464 + $0x14] sm:$0xf]
        %v8471 = vld [vmem:[%s8464 + $0x18] sm:$0xf]
        %v8472 = vld [vmem:[%s8464 + $0x1c] sm:$0xf]
        %v8474 = vunpack.c.l.b16 %v8463
        %v8475 = vpack.c.b16 %v8474, %v8359
        %v8477 = vshrl.u32 %v8361, 16
        %v8479 = vrot.slane %v8477, 3
        %v8480 = vshll.u32 %v8361, 16
        %v8482 = vrot.slane %v8480, 4
        %v8483 = vor.u32 %v8479, %v8482
        %v8485 = vshrl.u32 %v8362, 16
        %v8487 = vrot.slane %v8485, 3
        %v8488 = vshll.u32 %v8362, 16
        %v8490 = vrot.slane %v8488, 4
        %v8491 = vor.u32 %v8487, %v8490
        %v8492 = vsel %vm1633, %v8483, %v8491
        %v8494 = vshrl.u32 %v8475, 16
        %v8496 = vrot.slane %v8494, 3
        %v8497 = vshll.u32 %v8475, 16
        %v8499 = vrot.slane %v8497, 4
        %v8500 = vor.u32 %v8496, %v8499
        %v8501 = vsel %vm1633, %v8491, %v8500
        %v8510 = vunpack.c.l.b16 %v8465
        %v8511 = vunpack.c.l.b16 %v8466
        %v8512 = vunpack.c.l.b16 %v8467
        %v8513 = vunpack.c.l.b16 %v8468
        %v8514 = vunpack.c.l.b16 %v8469
        %v8515 = vunpack.c.l.b16 %v8470
        %v8516 = vunpack.c.l.b16 %v8471
        %v8517 = vunpack.c.l.b16 %v8472
        %v8518 = vpack.c.b16 %v8511, %v8510
        %v8519 = vpack.c.b16 %v8513, %v8512
        %v8520 = vpack.c.b16 %v8515, %v8514
        %v8521 = vpack.c.b16 %v8517, %v8516
        %v8527 = vsel %vm995, %v8492, 0
        %v8530 = vsel %vm995, %v8501, 0
        %v8533 = vsel %vm995, %v8500, 0
        %8535 = vmatprep.subr.bf16.mxu0 0
        %8536 = vmatpush1.bf16.msra.mxu0 0
        %8537 = vmatprep.subr.bf16.mxu0 0
        %8538 = vmatpush1.bf16.msra.mxu0 0
        %8539 = vmatprep.subr.bf16.mxu0 0
        %8540 = vmatpush1.bf16.msra.mxu0 0
        %8541 = vmatprep.subr.bf16.mxu0 0
        %8542 = vmatpush1.bf16.msra.mxu0 0
        %8543 = vmatprep.subr.bf16.mxu0 0
        %8544 = vmatpush1.bf16.msra.mxu0 %v8521
        %8545 = vmatprep.subr.bf16.mxu0 0
        %8546 = vmatpush1.bf16.msra.mxu0 %v8520
        %8547 = vmatprep.subr.bf16.mxu0 0
        %8548 = vmatpush1.bf16.msra.mxu0 %v8519
        %8549 = vmatprep.subr.bf16.mxu0 0
        %8550 = vmatpush1.bf16.msra.mxu0 %v8518
        %8551 = vmatprep.subr.bf16.mxu0 0
        %8552 = vmatpush2.bf16.msra.mxu0 0
        %8553 = vmatprep.subr.bf16.mxu0 0
        %8554 = vmatpush2.bf16.msra.mxu0 0
        %8555 = vmatprep.subr.bf16.mxu0 0
        %8556 = vmatpush2.bf16.msra.mxu0 0
        %8557 = vmatprep.subr.bf16.mxu0 0
        %8558 = vmatpush2.bf16.msra.mxu0 0
        %8559 = vmatprep.subr.bf16.mxu0 0
        %8560 = vmatpush2.bf16.msra.mxu0 0
        %8561 = vmatprep.subr.bf16.mxu0 0
        %8562 = vmatpush2.bf16.msra.mxu0 0
        %8563 = vmatprep.subr.bf16.mxu0 0
        %8564 = vmatpush2.bf16.msra.mxu0 0
        %8565 = vmatprep.subr.bf16.mxu0 0
        %8566 = vmatpush2.bf16.msra.mxu0 0
        %8567 = vmatprep.mubr.bf16.mxu0 0
        %8568 = vmatmul.mubr.bf16.gmra.mxu0 %v8527
        %v8569 = vpop.f32.mrf.mxu0
        %v8570 = vadd.f32 0.0, %v8569
        %v8571 = vpop.f32.mrf.mxu0
        %v8572 = vpop.f32.mrf.mxu0
        %v8573 = vadd.f32 0.0, %v8572
        %v8574 = vpop.f32.mrf.mxu0
        %8575 = vmatprep.mubr.bf16.mxu0 0
        %8576 = vmatmul.mubr.bf16.gmra.mxu0 %v8530
        %v8577 = vpop.f32.mrf.mxu0
        %v8578 = vadd.f32 0.0, %v8577
        %v8579 = vpop.f32.mrf.mxu0
        %v8580 = vpop.f32.mrf.mxu0
        %v8581 = vadd.f32 0.0, %v8580
        %v8582 = vpop.f32.mrf.mxu0
        %8583 = vmatprep.mubr.bf16.mxu0 0
        %8584 = vmatmul.mubr.bf16.gmra.mxu0 %v8533
        %v8585 = vpop.f32.mrf.mxu0
        %v8586 = vadd.f32 0.0, %v8585
        %v8587 = vpop.f32.mrf.mxu0
        %v8588 = vpop.f32.mrf.mxu0
        %v8589 = vpop.f32.mrf.mxu0
        %8590 = vdwg.mxu0
        %v8591 = vadd.f32 %v8458, %v8570
        %v8592 = vadd.f32 %v8459, %v8573
        %v8593 = vadd.f32 %v8460, %v8578
        %v8594 = vadd.f32 %v8461, %v8581
        %v8595 = vadd.f32 %v8462, %v8586
        %s8596 = scalar_lea.vmem %s18, 160
        %v8597 = vld [vmem:[%s8596] sm:$0xf]
        %v8598 = vld [vmem:[%s8596 + $0x4] sm:$0xf]
        %v8599 = vld [vmem:[%s8596 + $0x8] sm:$0xf]
        %v8600 = vld [vmem:[%s8596 + $0xc] sm:$0xf]
        %v8601 = vld [vmem:[%s8596 + $0x10] sm:$0xf]
        %v8602 = vld [vmem:[%s8596 + $0x14] sm:$0xf]
        %v8603 = vld [vmem:[%s8596 + $0x18] sm:$0xf]
        %v8604 = vld [vmem:[%s8596 + $0x1c] sm:$0xf]
        %v8605 = vpack.c.b16 %v8357, %v8356
        %v8606 = vpack.c.b16 %v8359, %v8358
        %v8607 = vpack.c.b16 %v8474, %v8474
        %v8616 = vunpack.c.l.b16 %v8597
        %v8617 = vunpack.c.l.b16 %v8598
        %v8618 = vunpack.c.l.b16 %v8599
        %v8619 = vunpack.c.l.b16 %v8600
        %v8620 = vunpack.c.l.b16 %v8601
        %v8621 = vunpack.c.l.b16 %v8602
        %v8622 = vunpack.c.l.b16 %v8603
        %v8623 = vunpack.c.l.b16 %v8604
        %v8624 = vpack.c.b16 %v8617, %v8616
        %v8625 = vpack.c.b16 %v8619, %v8618
        %v8626 = vpack.c.b16 %v8621, %v8620
        %v8627 = vpack.c.b16 %v8623, %v8622
        %v8633 = vsel %vm995, %v8605, 0
        %v8636 = vsel %vm995, %v8606, 0
        %v8639 = vsel %vm995, %v8607, 0
        %8641 = vmatprep.subr.bf16.mxu0 0
        %8642 = vmatpush1.bf16.msra.mxu0 0
        %8643 = vmatprep.subr.bf16.mxu0 0
        %8644 = vmatpush1.bf16.msra.mxu0 0
        %8645 = vmatprep.subr.bf16.mxu0 0
        %8646 = vmatpush1.bf16.msra.mxu0 0
        %8647 = vmatprep.subr.bf16.mxu0 0
        %8648 = vmatpush1.bf16.msra.mxu0 0
        %8649 = vmatprep.subr.bf16.mxu0 0
        %8650 = vmatpush1.bf16.msra.mxu0 %v8627
        %8651 = vmatprep.subr.bf16.mxu0 0
        %8652 = vmatpush1.bf16.msra.mxu0 %v8626
        %8653 = vmatprep.subr.bf16.mxu0 0
        %8654 = vmatpush1.bf16.msra.mxu0 %v8625
        %8655 = vmatprep.subr.bf16.mxu0 0
        %8656 = vmatpush1.bf16.msra.mxu0 %v8624
        %8657 = vmatprep.subr.bf16.mxu0 0
        %8658 = vmatpush2.bf16.msra.mxu0 0
        %8659 = vmatprep.subr.bf16.mxu0 0
        %8660 = vmatpush2.bf16.msra.mxu0 0
        %8661 = vmatprep.subr.bf16.mxu0 0
        %8662 = vmatpush2.bf16.msra.mxu0 0
        %8663 = vmatprep.subr.bf16.mxu0 0
        %8664 = vmatpush2.bf16.msra.mxu0 0
        %8665 = vmatprep.subr.bf16.mxu0 0
        %8666 = vmatpush2.bf16.msra.mxu0 0
        %8667 = vmatprep.subr.bf16.mxu0 0
        %8668 = vmatpush2.bf16.msra.mxu0 0
        %8669 = vmatprep.subr.bf16.mxu0 0
        %8670 = vmatpush2.bf16.msra.mxu0 0
        %8671 = vmatprep.subr.bf16.mxu0 0
        %8672 = vmatpush2.bf16.msra.mxu0 0
        %8673 = vmatprep.mubr.bf16.mxu0 0
        %8674 = vmatmul.mubr.bf16.gmra.mxu0 %v8633
        %v8675 = vpop.f32.mrf.mxu0
        %v8676 = vadd.f32 0.0, %v8675
        %v8677 = vpop.f32.mrf.mxu0
        %v8678 = vpop.f32.mrf.mxu0
        %v8679 = vadd.f32 0.0, %v8678
        %v8680 = vpop.f32.mrf.mxu0
        %8681 = vmatprep.mubr.bf16.mxu0 0
        %8682 = vmatmul.mubr.bf16.gmra.mxu0 %v8636
        %v8683 = vpop.f32.mrf.mxu0
        %v8684 = vadd.f32 0.0, %v8683
        %v8685 = vpop.f32.mrf.mxu0
        %v8686 = vpop.f32.mrf.mxu0
        %v8687 = vadd.f32 0.0, %v8686
        %v8688 = vpop.f32.mrf.mxu0
        %8689 = vmatprep.mubr.bf16.mxu0 0
        %8690 = vmatmul.mubr.bf16.gmra.mxu0 %v8639
        %v8691 = vpop.f32.mrf.mxu0
        %v8692 = vadd.f32 0.0, %v8691
        %v8693 = vpop.f32.mrf.mxu0
        %v8694 = vpop.f32.mrf.mxu0
        %v8695 = vpop.f32.mrf.mxu0
        %8696 = vdwg.mxu0
        %v8697 = vadd.f32 %v8591, %v8676
        %v8698 = vadd.f32 %v8592, %v8679
        %v8699 = vadd.f32 %v8593, %v8684
        %v8700 = vadd.f32 %v8594, %v8687
        %v8701 = vadd.f32 %v8595, %v8692
        %v8702 = vld [vmem:[#allocation5 + $0x4] sm:$0xc]
        %v8703 = vld [vmem:[#allocation5 + $0x14] sm:$0xf]
        %s8704 = scalar_lea.vmem %s18, 192
        %v8705 = vld [vmem:[%s8704] sm:$0xf]
        %v8706 = vld [vmem:[%s8704 + $0x4] sm:$0xf]
        %v8707 = vld [vmem:[%s8704 + $0x8] sm:$0xf]
        %v8708 = vld [vmem:[%s8704 + $0xc] sm:$0xf]
        %v8709 = vld [vmem:[%s8704 + $0x10] sm:$0xf]
        %v8710 = vld [vmem:[%s8704 + $0x14] sm:$0xf]
        %v8711 = vld [vmem:[%s8704 + $0x18] sm:$0xf]
        %v8712 = vld [vmem:[%s8704 + $0x1c] sm:$0xf]
        %v8715 = vunpack.c.l.b16 %v8702
        %v8716 = vunpack.c.l.b16 %v8703
        %v8717 = vpack.c.b16 %v8357, %v8715
        %v8718 = vpack.c.b16 %v8716, %v8716
        %v8719 = vrot.slane %v8717, 2
        %v8720 = vrot.slane %v8606, 2
        %v8721 = vsel %vm2044, %v8719, %v8720
        %v8722 = vrot.slane %v8718, 2
        %v8723 = vsel %vm2044, %v8720, %v8722
        %v8732 = vunpack.c.l.b16 %v8705
        %v8733 = vunpack.c.l.b16 %v8706
        %v8734 = vunpack.c.l.b16 %v8707
        %v8735 = vunpack.c.l.b16 %v8708
        %v8736 = vunpack.c.l.b16 %v8709
        %v8737 = vunpack.c.l.b16 %v8710
        %v8738 = vunpack.c.l.b16 %v8711
        %v8739 = vunpack.c.l.b16 %v8712
        %v8740 = vpack.c.b16 %v8733, %v8732
        %v8741 = vpack.c.b16 %v8735, %v8734
        %v8742 = vpack.c.b16 %v8737, %v8736
        %v8743 = vpack.c.b16 %v8739, %v8738
        %v8749 = vsel %vm995, %v8721, 0
        %v8752 = vsel %vm995, %v8723, 0
        %v8755 = vsel %vm995, %v8722, 0
        %8757 = vmatprep.subr.bf16.mxu0 0
        %8758 = vmatpush1.bf16.msra.mxu0 0
        %8759 = vmatprep.subr.bf16.mxu0 0
        %8760 = vmatpush1.bf16.msra.mxu0 0
        %8761 = vmatprep.subr.bf16.mxu0 0
        %8762 = vmatpush1.bf16.msra.mxu0 0
        %8763 = vmatprep.subr.bf16.mxu0 0
        %8764 = vmatpush1.bf16.msra.mxu0 0
        %8765 = vmatprep.subr.bf16.mxu0 0
        %8766 = vmatpush1.bf16.msra.mxu0 %v8743
        %8767 = vmatprep.subr.bf16.mxu0 0
        %8768 = vmatpush1.bf16.msra.mxu0 %v8742
        %8769 = vmatprep.subr.bf16.mxu0 0
        %8770 = vmatpush1.bf16.msra.mxu0 %v8741
        %8771 = vmatprep.subr.bf16.mxu0 0
        %8772 = vmatpush1.bf16.msra.mxu0 %v8740
        %8773 = vmatprep.subr.bf16.mxu0 0
        %8774 = vmatpush2.bf16.msra.mxu0 0
        %8775 = vmatprep.subr.bf16.mxu0 0
        %8776 = vmatpush2.bf16.msra.mxu0 0
        %8777 = vmatprep.subr.bf16.mxu0 0
        %8778 = vmatpush2.bf16.msra.mxu0 0
        %8779 = vmatprep.subr.bf16.mxu0 0
        %8780 = vmatpush2.bf16.msra.mxu0 0
        %8781 = vmatprep.subr.bf16.mxu0 0
        %8782 = vmatpush2.bf16.msra.mxu0 0
        %8783 = vmatprep.subr.bf16.mxu0 0
        %8784 = vmatpush2.bf16.msra.mxu0 0
        %8785 = vmatprep.subr.bf16.mxu0 0
        %8786 = vmatpush2.bf16.msra.mxu0 0
        %8787 = vmatprep.subr.bf16.mxu0 0
        %8788 = vmatpush2.bf16.msra.mxu0 0
        %8789 = vmatprep.mubr.bf16.mxu0 0
        %8790 = vmatmul.mubr.bf16.gmra.mxu0 %v8749
        %v8791 = vpop.f32.mrf.mxu0
        %v8792 = vadd.f32 0.0, %v8791
        %v8793 = vpop.f32.mrf.mxu0
        %v8794 = vpop.f32.mrf.mxu0
        %v8795 = vadd.f32 0.0, %v8794
        %v8796 = vpop.f32.mrf.mxu0
        %8797 = vmatprep.mubr.bf16.mxu0 0
        %8798 = vmatmul.mubr.bf16.gmra.mxu0 %v8752
        %v8799 = vpop.f32.mrf.mxu0
        %v8800 = vadd.f32 0.0, %v8799
        %v8801 = vpop.f32.mrf.mxu0
        %v8802 = vpop.f32.mrf.mxu0
        %v8803 = vadd.f32 0.0, %v8802
        %v8804 = vpop.f32.mrf.mxu0
        %8805 = vmatprep.mubr.bf16.mxu0 0
        %8806 = vmatmul.mubr.bf16.gmra.mxu0 %v8755
        %v8807 = vpop.f32.mrf.mxu0
        %v8808 = vadd.f32 0.0, %v8807
        %v8809 = vpop.f32.mrf.mxu0
        %v8810 = vpop.f32.mrf.mxu0
        %v8811 = vpop.f32.mrf.mxu0
        %8812 = vdwg.mxu0
        %v8813 = vadd.f32 %v8697, %v8792
        %v8814 = vadd.f32 %v8698, %v8795
        %v8815 = vadd.f32 %v8699, %v8800
        %v8816 = vadd.f32 %v8700, %v8803
        %v8817 = vadd.f32 %v8701, %v8808
        %v8818 = vld [vmem:[#allocation5 + $0x4] sm:$0xc]
        %v8819 = vld [vmem:[#allocation5 + $0x8] sm:$0xf]
        %v8820 = vld [vmem:[#allocation5 + $0xc] sm:$0xf]
        %v8821 = vld [vmem:[#allocation5 + $0x10] sm:$0xf]
        %v8822 = vld [vmem:[#allocation5 + $0x14] sm:$0xf]
        %v8823 = vld [vmem:[#allocation5 + $0x18] sm:$0x1]
        %s8824 = scalar_lea.vmem %s18, 224
        %v8825 = vld [vmem:[%s8824] sm:$0xf]
        %v8826 = vld [vmem:[%s8824 + $0x4] sm:$0xf]
        %v8827 = vld [vmem:[%s8824 + $0x8] sm:$0xf]
        %v8828 = vld [vmem:[%s8824 + $0xc] sm:$0xf]
        %v8829 = vld [vmem:[%s8824 + $0x10] sm:$0xf]
        %v8830 = vld [vmem:[%s8824 + $0x14] sm:$0xf]
        %v8831 = vld [vmem:[%s8824 + $0x18] sm:$0xf]
        %v8832 = vld [vmem:[%s8824 + $0x1c] sm:$0xf]
        %v8839 = vunpack.c.l.b16 %v8818
        %v8840 = vunpack.c.l.b16 %v8819
        %v8841 = vunpack.c.l.b16 %v8820
        %v8842 = vunpack.c.l.b16 %v8821
        %v8843 = vunpack.c.l.b16 %v8822
        %v8844 = vunpack.c.l.b16 %v8823
        %v8845 = vpack.c.b16 %v8840, %v8839
        %v8846 = vpack.c.b16 %v8842, %v8841
        %v8847 = vpack.c.b16 %v8844, %v8843
        %v8849 = vshrl.u32 %v8845, 16
        %v8851 = vrot.slane %v8849, 2
        %v8852 = vshll.u32 %v8845, 16
        %v8854 = vrot.slane %v8852, 3
        %v8855 = vor.u32 %v8851, %v8854
        %v8857 = vshrl.u32 %v8846, 16
        %v8859 = vrot.slane %v8857, 2
        %v8860 = vshll.u32 %v8846, 16
        %v8862 = vrot.slane %v8860, 3
        %v8863 = vor.u32 %v8859, %v8862
        %v8864 = vsel %vm2255, %v8855, %v8863
        %v8866 = vshrl.u32 %v8847, 16
        %v8868 = vrot.slane %v8866, 2
        %v8869 = vshll.u32 %v8847, 16
        %v8871 = vrot.slane %v8869, 3
        %v8872 = vor.u32 %v8868, %v8871
        %v8873 = vsel %vm2255, %v8863, %v8872
        %v8882 = vunpack.c.l.b16 %v8825
        %v8883 = vunpack.c.l.b16 %v8826
        %v8884 = vunpack.c.l.b16 %v8827
        %v8885 = vunpack.c.l.b16 %v8828
        %v8886 = vunpack.c.l.b16 %v8829
        %v8887 = vunpack.c.l.b16 %v8830
        %v8888 = vunpack.c.l.b16 %v8831
        %v8889 = vunpack.c.l.b16 %v8832
        %v8890 = vpack.c.b16 %v8883, %v8882
        %v8891 = vpack.c.b16 %v8885, %v8884
        %v8892 = vpack.c.b16 %v8887, %v8886
        %v8893 = vpack.c.b16 %v8889, %v8888
        %v8899 = vsel %vm995, %v8864, 0
        %v8902 = vsel %vm995, %v8873, 0
        %v8905 = vsel %vm995, %v8872, 0
        %8907 = vmatprep.subr.bf16.mxu0 0
        %8908 = vmatpush1.bf16.msra.mxu0 0
        %8909 = vmatprep.subr.bf16.mxu0 0
        %8910 = vmatpush1.bf16.msra.mxu0 0
        %8911 = vmatprep.subr.bf16.mxu0 0
        %8912 = vmatpush1.bf16.msra.mxu0 0
        %8913 = vmatprep.subr.bf16.mxu0 0
        %8914 = vmatpush1.bf16.msra.mxu0 0
        %8915 = vmatprep.subr.bf16.mxu0 0
        %8916 = vmatpush1.bf16.msra.mxu0 %v8893
        %8917 = vmatprep.subr.bf16.mxu0 0
        %8918 = vmatpush1.bf16.msra.mxu0 %v8892
        %8919 = vmatprep.subr.bf16.mxu0 0
        %8920 = vmatpush1.bf16.msra.mxu0 %v8891
        %8921 = vmatprep.subr.bf16.mxu0 0
        %8922 = vmatpush1.bf16.msra.mxu0 %v8890
        %8923 = vmatprep.subr.bf16.mxu0 0
        %8924 = vmatpush2.bf16.msra.mxu0 0
        %8925 = vmatprep.subr.bf16.mxu0 0
        %8926 = vmatpush2.bf16.msra.mxu0 0
        %8927 = vmatprep.subr.bf16.mxu0 0
        %8928 = vmatpush2.bf16.msra.mxu0 0
        %8929 = vmatprep.subr.bf16.mxu0 0
        %8930 = vmatpush2.bf16.msra.mxu0 0
        %8931 = vmatprep.subr.bf16.mxu0 0
        %8932 = vmatpush2.bf16.msra.mxu0 0
        %8933 = vmatprep.subr.bf16.mxu0 0
        %8934 = vmatpush2.bf16.msra.mxu0 0
        %8935 = vmatprep.subr.bf16.mxu0 0
        %8936 = vmatpush2.bf16.msra.mxu0 0
        %8937 = vmatprep.subr.bf16.mxu0 0
        %8938 = vmatpush2.bf16.msra.mxu0 0
        %8939 = vmatprep.mubr.bf16.mxu0 0
        %8940 = vmatmul.mubr.bf16.gmra.mxu0 %v8899
        %v8941 = vpop.f32.mrf.mxu0
        %v8942 = vadd.f32 0.0, %v8941
        %v8943 = vpop.f32.mrf.mxu0
        %v8944 = vpop.f32.mrf.mxu0
        %v8945 = vadd.f32 0.0, %v8944
        %v8946 = vpop.f32.mrf.mxu0
        %8947 = vmatprep.mubr.bf16.mxu0 0
        %8948 = vmatmul.mubr.bf16.gmra.mxu0 %v8902
        %v8949 = vpop.f32.mrf.mxu0
        %v8950 = vadd.f32 0.0, %v8949
        %v8951 = vpop.f32.mrf.mxu0
        %v8952 = vpop.f32.mrf.mxu0
        %v8953 = vadd.f32 0.0, %v8952
        %v8954 = vpop.f32.mrf.mxu0
        %8955 = vmatprep.mubr.bf16.mxu0 0
        %8956 = vmatmul.mubr.bf16.gmra.mxu0 %v8905
        %v8957 = vpop.f32.mrf.mxu0
        %v8958 = vadd.f32 0.0, %v8957
        %v8959 = vpop.f32.mrf.mxu0
        %v8960 = vpop.f32.mrf.mxu0
        %v8961 = vpop.f32.mrf.mxu0
        %8962 = vdwg.mxu0
        %v8963 = vadd.f32 %v8813, %v8942
        %v8964 = vadd.f32 %v8814, %v8945
        %v8965 = vadd.f32 %v8815, %v8950
        %v8966 = vadd.f32 %v8816, %v8953
        %v8967 = vadd.f32 %v8817, %v8958
        %v8968 = vld [vmem:[#allocation5 + $0x4] sm:$0x8]
        %s8969 = scalar_lea.vmem %s18, 256
        %v8970 = vld [vmem:[%s8969] sm:$0xf]
        %v8971 = vld [vmem:[%s8969 + $0x4] sm:$0xf]
        %v8972 = vld [vmem:[%s8969 + $0x8] sm:$0xf]
        %v8973 = vld [vmem:[%s8969 + $0xc] sm:$0xf]
        %v8974 = vld [vmem:[%s8969 + $0x10] sm:$0xf]
        %v8975 = vld [vmem:[%s8969 + $0x14] sm:$0xf]
        %v8976 = vld [vmem:[%s8969 + $0x18] sm:$0xf]
        %v8977 = vld [vmem:[%s8969 + $0x1c] sm:$0xf]
        %v8979 = vunpack.c.l.b16 %v8968
        %v8980 = vpack.c.b16 %v8840, %v8979
        %v8981 = vrot.slane %v8980, 3
        %v8982 = vrot.slane %v8846, 3
        %v8983 = vsel %vm1446, %v8981, %v8982
        %v8984 = vrot.slane %v8847, 3
        %v8985 = vsel %vm1446, %v8982, %v8984
        %v8994 = vunpack.c.l.b16 %v8970
        %v8995 = vunpack.c.l.b16 %v8971
        %v8996 = vunpack.c.l.b16 %v8972
        %v8997 = vunpack.c.l.b16 %v8973
        %v8998 = vunpack.c.l.b16 %v8974
        %v8999 = vunpack.c.l.b16 %v8975
        %v9000 = vunpack.c.l.b16 %v8976
        %v9001 = vunpack.c.l.b16 %v8977
        %v9002 = vpack.c.b16 %v8995, %v8994
        %v9003 = vpack.c.b16 %v8997, %v8996
        %v9004 = vpack.c.b16 %v8999, %v8998
        %v9005 = vpack.c.b16 %v9001, %v9000
        %v9011 = vsel %vm995, %v8983, 0
        %v9014 = vsel %vm995, %v8985, 0
        %v9017 = vsel %vm995, %v8984, 0
        %9019 = vmatprep.subr.bf16.mxu0 0
        %9020 = vmatpush1.bf16.msra.mxu0 0
        %9021 = vmatprep.subr.bf16.mxu0 0
        %9022 = vmatpush1.bf16.msra.mxu0 0
        %9023 = vmatprep.subr.bf16.mxu0 0
        %9024 = vmatpush1.bf16.msra.mxu0 0
        %9025 = vmatprep.subr.bf16.mxu0 0
        %9026 = vmatpush1.bf16.msra.mxu0 0
        %9027 = vmatprep.subr.bf16.mxu0 0
        %9028 = vmatpush1.bf16.msra.mxu0 %v9005
        %9029 = vmatprep.subr.bf16.mxu0 0
        %9030 = vmatpush1.bf16.msra.mxu0 %v9004
        %9031 = vmatprep.subr.bf16.mxu0 0
        %9032 = vmatpush1.bf16.msra.mxu0 %v9003
        %9033 = vmatprep.subr.bf16.mxu0 0
        %9034 = vmatpush1.bf16.msra.mxu0 %v9002
        %9035 = vmatprep.subr.bf16.mxu0 0
        %9036 = vmatpush2.bf16.msra.mxu0 0
        %9037 = vmatprep.subr.bf16.mxu0 0
        %9038 = vmatpush2.bf16.msra.mxu0 0
        %9039 = vmatprep.subr.bf16.mxu0 0
        %9040 = vmatpush2.bf16.msra.mxu0 0
        %9041 = vmatprep.subr.bf16.mxu0 0
        %9042 = vmatpush2.bf16.msra.mxu0 0
        %9043 = vmatprep.subr.bf16.mxu0 0
        %9044 = vmatpush2.bf16.msra.mxu0 0
        %9045 = vmatprep.subr.bf16.mxu0 0
        %9046 = vmatpush2.bf16.msra.mxu0 0
        %9047 = vmatprep.subr.bf16.mxu0 0
        %9048 = vmatpush2.bf16.msra.mxu0 0
        %9049 = vmatprep.subr.bf16.mxu0 0
        %9050 = vmatpush2.bf16.msra.mxu0 0
        %9051 = vmatprep.mubr.bf16.mxu0 0
        %9052 = vmatmul.mubr.bf16.gmra.mxu0 %v9011
        %v9053 = vpop.f32.mrf.mxu0
        %v9054 = vadd.f32 0.0, %v9053
        %v9055 = vpop.f32.mrf.mxu0
        %v9056 = vpop.f32.mrf.mxu0
        %v9057 = vadd.f32 0.0, %v9056
        %v9058 = vpop.f32.mrf.mxu0
        %9059 = vmatprep.mubr.bf16.mxu0 0
        %9060 = vmatmul.mubr.bf16.gmra.mxu0 %v9014
        %v9061 = vpop.f32.mrf.mxu0
        %v9062 = vadd.f32 0.0, %v9061
        %v9063 = vpop.f32.mrf.mxu0
        %v9064 = vpop.f32.mrf.mxu0
        %v9065 = vadd.f32 0.0, %v9064
        %v9066 = vpop.f32.mrf.mxu0
        %9067 = vmatprep.mubr.bf16.mxu0 0
        %9068 = vmatmul.mubr.bf16.gmra.mxu0 %v9017
        %v9069 = vpop.f32.mrf.mxu0
        %v9070 = vadd.f32 0.0, %v9069
        %v9071 = vpop.f32.mrf.mxu0
        %v9072 = vpop.f32.mrf.mxu0
        %v9073 = vpop.f32.mrf.mxu0
        %9074 = vdwg.mxu0
        %v9075 = vadd.f32 %v8963, %v9054
        %v9076 = vadd.f32 %v8964, %v9057
        %v9077 = vadd.f32 %v8965, %v9062
        %v9078 = vadd.f32 %v8966, %v9065
        %v9079 = vadd.f32 %v8967, %v9070
        %v9080 = vld [vmem:[%s19] sm:$0x1]
        %v9082 = vlaneseq
        %v9083 = vshrl.u32 %v9082, 7
        %v9084 = vsub.s32 0, %v9083
        %v9085 = vrot.slane %v9080, %v9084
        %v9087 = vadd.f32 %v9075, %v9085
        %v9088 = vadd.f32 %v9076, %v9085
        %v9089 = vadd.f32 %v9077, %v9085
        %v9090 = vadd.f32 %v9078, %v9085
        %v9091 = vadd.f32 %v9079, %v9085
        %v9092 = vmax.f32 %v9087, 0.0
        %v9093 = vmax.f32 %v9088, 0.0
        %v9094 = vmax.f32 %v9089, 0.0
        %v9095 = vmax.f32 %v9090, 0.0
        %v9096 = vmax.f32 %v9091, 0.0
        %v9097 = vmul.f32 %v9092, %v2659
        %v9098 = vmul.f32 %v9093, %v2664
        %v9099 = vmul.f32 %v9094, %v2669
        %v9100 = vmul.f32 %v9095, %v2674
        %v9101 = vmul.f32 %v9096, %v2679
        %9102 = vst [vmem:[#allocation6] sm:$0xf] 0
        %9103 = vst [vmem:[#allocation6 + $0x4] sm:$0xf] 0
        %9104 = vst [vmem:[#allocation6 + $0x8] sm:$0xf] 0
        %9105 = vst [vmem:[#allocation6 + $0xc] sm:$0xf] 0
        %9106 = vst [vmem:[#allocation6 + $0x10] sm:$0xf] 0
        %9107 = vst [vmem:[#allocation6 + $0x14] sm:$0xf] 0
        %9108 = vst [vmem:[#allocation6 + $0x18] sm:$0x1] 0
        %v9109 = vpack.c.bf16 %v9098, %v9097
        %v9110 = vpack.c.bf16 %v9100, %v9099
        %v9111 = vpack.c.bf16 %v9101, %v9101
        %v9115 = vunpack.c.l.b16 %v9109
        %v9116 = vunpack.c.h.b16 %v9109
        %v9117 = vunpack.c.l.b16 %v9110
        %v9118 = vunpack.c.h.b16 %v9110
        %v9119 = vunpack.c.l.b16 %v9111
        %v9120 = vpack.c.b16 %v9115, %v9115
        %v9121 = vpack.c.b16 %v9116, %v9116
        %v9122 = vpack.c.b16 %v9117, %v9117
        %v9123 = vpack.c.b16 %v9118, %v9118
        %v9124 = vpack.c.b16 %v9119, %v9119
        %v9126 = vshll.u32 %v9120, 16
        %v9128 = vrot.slane %v9126, 5
        %v9129 = vshrl.u32 %v9120, 16
        %v9131 = vrot.slane %v9129, 4
        %v9132 = vor.u32 %v9131, %v9128
        %v9133 = vrot.slane %v9132, 4
        %v9135 = vshll.u32 %v9121, 16
        %v9137 = vrot.slane %v9135, 5
        %v9138 = vsel %vm2711, %v9133, %v9137
        %v9139 = vshrl.u32 %v9121, 16
        %v9141 = vrot.slane %v9139, 4
        %v9142 = vor.u32 %v9141, %v9137
        %v9143 = vrot.slane %v9142, 4
        %v9145 = vshll.u32 %v9122, 16
        %v9147 = vrot.slane %v9145, 5
        %v9148 = vsel %vm2711, %v9143, %v9147
        %v9149 = vshrl.u32 %v9122, 16
        %v9151 = vrot.slane %v9149, 4
        %v9152 = vor.u32 %v9151, %v9147
        %v9153 = vrot.slane %v9152, 4
        %v9155 = vshll.u32 %v9123, 16
        %v9157 = vrot.slane %v9155, 5
        %v9158 = vsel %vm2711, %v9153, %v9157
        %v9159 = vshrl.u32 %v9123, 16
        %v9161 = vrot.slane %v9159, 4
        %v9162 = vor.u32 %v9161, %v9157
        %v9163 = vrot.slane %v9162, 4
        %v9165 = vshll.u32 %v9124, 16
        %v9167 = vrot.slane %v9165, 5
        %v9168 = vsel %vm2711, %v9163, %v9167
        %v9169 = vshrl.u32 %v9124, 16
        %v9171 = vrot.slane %v9169, 4
        %v9172 = vor.u32 %v9171, %v9167
        %v9173 = vrot.slane %v9172, 4
        %v9180 = vld [vmem:[#allocation6] sm:$0x8]
        %v9181 = vsel %vm2769, %v9128, %v9180
        %9182 = vst [vmem:[#allocation6] sm:$0x8] %v9181
        %9183 = vst [vmem:[#allocation6 + $0x4] sm:$0xf] %v9138
        %9184 = vst [vmem:[#allocation6 + $0x8] sm:$0xf] %v9148
        %9185 = vst [vmem:[#allocation6 + $0xc] sm:$0xf] %v9158
        %9186 = vst [vmem:[#allocation6 + $0x10] sm:$0xf] %v9168
        %v9187 = vld [vmem:[#allocation6 + $0x14] sm:$0x3]
        %v9188 = vsel %vm2779, %v9173, %v9187
        %9189 = vst [vmem:[#allocation6 + $0x14] sm:$0x3] %v9188
        %v9190 = vld [vmem:[#allocation6] sm:$0xf]
        %v9191 = vld [vmem:[#allocation6 + $0x4] sm:$0xf]
        %v9192 = vld [vmem:[#allocation6 + $0x8] sm:$0xf]
        %v9193 = vld [vmem:[#allocation6 + $0xc] sm:$0xf]
        %v9194 = vld [vmem:[#allocation6 + $0x10] sm:$0x3]
        %v9195 = vld [vmem:[%s20] sm:$0xff]
        %v9196 = vld [vmem:[%s20 + $0x8] sm:$0xff]
        %v9197 = vld [vmem:[%s20 + $0x10] sm:$0xff]
        %v9198 = vld [vmem:[%s20 + $0x18] sm:$0xff]
        %v9199 = vld [vmem:[%s20 + $0x20] sm:$0xff]
        %v9200 = vld [vmem:[%s20 + $0x28] sm:$0xff]
        %v9201 = vld [vmem:[%s20 + $0x30] sm:$0xff]
        %v9202 = vld [vmem:[%s20 + $0x38] sm:$0xff]
        %v9203 = vld [vmem:[%s20 + $0x40] sm:$0xff]
        %v9204 = vld [vmem:[%s20 + $0x48] sm:$0xff]
        %v9205 = vld [vmem:[%s20 + $0x50] sm:$0xff]
        %v9206 = vld [vmem:[%s20 + $0x58] sm:$0xff]
        %v9207 = vld [vmem:[%s20 + $0x60] sm:$0xff]
        %v9208 = vld [vmem:[%s20 + $0x68] sm:$0xff]
        %v9209 = vld [vmem:[%s20 + $0x70] sm:$0xff]
        %v9210 = vld [vmem:[%s20 + $0x78] sm:$0xff]
        %v9211 = vld [vmem:[#allocation6 + $0x10] sm:$0x7]
        %s9212 = scalar_lea.vmem %s20, 128
        %v9213 = vld [vmem:[%s9212] sm:$0xff]
        %v9214 = vld [vmem:[%s9212 + $0x8] sm:$0xff]
        %v9215 = vld [vmem:[%s9212 + $0x10] sm:$0xff]
        %v9216 = vld [vmem:[%s9212 + $0x18] sm:$0xff]
        %v9217 = vld [vmem:[%s9212 + $0x20] sm:$0xff]
        %v9218 = vld [vmem:[%s9212 + $0x28] sm:$0xff]
        %v9219 = vld [vmem:[%s9212 + $0x30] sm:$0xff]
        %v9220 = vld [vmem:[%s9212 + $0x38] sm:$0xff]
        %v9221 = vld [vmem:[%s9212 + $0x40] sm:$0xff]
        %v9222 = vld [vmem:[%s9212 + $0x48] sm:$0xff]
        %v9223 = vld [vmem:[%s9212 + $0x50] sm:$0xff]
        %v9224 = vld [vmem:[%s9212 + $0x58] sm:$0xff]
        %v9225 = vld [vmem:[%s9212 + $0x60] sm:$0xff]
        %v9226 = vld [vmem:[%s9212 + $0x68] sm:$0xff]
        %v9227 = vld [vmem:[%s9212 + $0x70] sm:$0xff]
        %v9228 = vld [vmem:[%s9212 + $0x78] sm:$0xff]
        %v9234 = vunpack.c.l.b16 %v9190
        %v9235 = vunpack.c.l.b16 %v9191
        %v9236 = vunpack.c.l.b16 %v9192
        %v9237 = vunpack.c.l.b16 %v9193
        %v9238 = vunpack.c.l.b16 %v9211
        %v9239 = vpack.c.b16 %v9235, %v9234
        %v9240 = vpack.c.b16 %v9237, %v9236
        %v9241 = vpack.c.b16 %v9238, %v9238
        %v9243 = vshrl.u32 %v9239, 16
        %v9245 = vshll.u32 %v9239, 16
        %v9247 = vrot.slane %v9245, 1
        %v9248 = vor.u32 %v9243, %v9247
        %v9250 = vshll.u32 %v9240, 16
        %v9252 = vrot.slane %v9250, 1
        %v9253 = vsel %vm873, %v9248, %v9252
        %v9254 = vshrl.u32 %v9240, 16
        %v9256 = vor.u32 %v9254, %v9252
        %v9258 = vshll.u32 %v9241, 16
        %v9260 = vrot.slane %v9258, 1
        %v9261 = vsel %vm873, %v9256, %v9260
        %v9262 = vshrl.u32 %v9241, 16
        %v9264 = vor.u32 %v9262, %v9260
        %v9284 = vunpack.c.l.b16 %v9213
        %v9285 = vunpack.c.h.b16 %v9213
        %v9286 = vunpack.c.l.b16 %v9214
        %v9287 = vunpack.c.h.b16 %v9214
        %v9288 = vunpack.c.l.b16 %v9215
        %v9289 = vunpack.c.h.b16 %v9215
        %v9290 = vunpack.c.l.b16 %v9216
        %v9291 = vunpack.c.h.b16 %v9216
        %v9292 = vunpack.c.l.b16 %v9217
        %v9293 = vunpack.c.h.b16 %v9217
        %v9294 = vunpack.c.l.b16 %v9218
        %v9295 = vunpack.c.h.b16 %v9218
        %v9296 = vunpack.c.l.b16 %v9219
        %v9297 = vunpack.c.h.b16 %v9219
        %v9298 = vunpack.c.l.b16 %v9220
        %v9299 = vunpack.c.h.b16 %v9220
        %v9300 = vunpack.c.l.b16 %v9221
        %v9301 = vunpack.c.h.b16 %v9221
        %v9302 = vunpack.c.l.b16 %v9222
        %v9303 = vunpack.c.h.b16 %v9222
        %v9304 = vunpack.c.l.b16 %v9223
        %v9305 = vunpack.c.h.b16 %v9223
        %v9306 = vunpack.c.l.b16 %v9224
        %v9307 = vunpack.c.h.b16 %v9224
        %v9308 = vunpack.c.l.b16 %v9225
        %v9309 = vunpack.c.h.b16 %v9225
        %v9310 = vunpack.c.l.b16 %v9226
        %v9311 = vunpack.c.h.b16 %v9226
        %v9312 = vunpack.c.l.b16 %v9227
        %v9313 = vunpack.c.h.b16 %v9227
        %v9314 = vunpack.c.l.b16 %v9228
        %v9315 = vunpack.c.h.b16 %v9228
        %v9316 = vpack.c.b16 %v9286, %v9284
        %v9317 = vpack.c.b16 %v9287, %v9285
        %v9318 = vpack.c.b16 %v9290, %v9288
        %v9319 = vpack.c.b16 %v9291, %v9289
        %v9320 = vpack.c.b16 %v9294, %v9292
        %v9321 = vpack.c.b16 %v9295, %v9293
        %v9322 = vpack.c.b16 %v9298, %v9296
        %v9323 = vpack.c.b16 %v9299, %v9297
        %v9324 = vpack.c.b16 %v9302, %v9300
        %v9325 = vpack.c.b16 %v9303, %v9301
        %v9326 = vpack.c.b16 %v9306, %v9304
        %v9327 = vpack.c.b16 %v9307, %v9305
        %v9328 = vpack.c.b16 %v9310, %v9308
        %v9329 = vpack.c.b16 %v9311, %v9309
        %v9330 = vpack.c.b16 %v9314, %v9312
        %v9331 = vpack.c.b16 %v9315, %v9313
        %9348 = vmatprep.subr.bf16.mxu0 %v9331
        %9349 = vmatpush1.bf16.msra.mxu0 %v9330
        %9350 = vmatprep.subr.bf16.mxu0 %v9329
        %9351 = vmatpush1.bf16.msra.mxu0 %v9328
        %9352 = vmatprep.subr.bf16.mxu0 %v9327
        %9353 = vmatpush1.bf16.msra.mxu0 %v9326
        %9354 = vmatprep.subr.bf16.mxu0 %v9325
        %9355 = vmatpush1.bf16.msra.mxu0 %v9324
        %9356 = vmatprep.subr.bf16.mxu0 %v9323
        %9357 = vmatpush1.bf16.msra.mxu0 %v9322
        %9358 = vmatprep.subr.bf16.mxu0 %v9321
        %9359 = vmatpush1.bf16.msra.mxu0 %v9320
        %9360 = vmatprep.subr.bf16.mxu0 %v9319
        %9361 = vmatpush1.bf16.msra.mxu0 %v9318
        %9362 = vmatprep.subr.bf16.mxu0 %v9317
        %9363 = vmatpush1.bf16.msra.mxu0 %v9316
        %9364 = vmatprep.subr.bf16.mxu0 0
        %9365 = vmatpush2.bf16.msra.mxu0 0
        %9366 = vmatprep.subr.bf16.mxu0 0
        %9367 = vmatpush2.bf16.msra.mxu0 0
        %9368 = vmatprep.subr.bf16.mxu0 0
        %9369 = vmatpush2.bf16.msra.mxu0 0
        %9370 = vmatprep.subr.bf16.mxu0 0
        %9371 = vmatpush2.bf16.msra.mxu0 0
        %9372 = vmatprep.subr.bf16.mxu0 0
        %9373 = vmatpush2.bf16.msra.mxu0 0
        %9374 = vmatprep.subr.bf16.mxu0 0
        %9375 = vmatpush2.bf16.msra.mxu0 0
        %9376 = vmatprep.subr.bf16.mxu0 0
        %9377 = vmatpush2.bf16.msra.mxu0 0
        %9378 = vmatprep.subr.bf16.mxu0 0
        %9379 = vmatpush2.bf16.msra.mxu0 0
        %9380 = vmatprep.mubr.bf16.mxu0 0
        %9381 = vmatmul.mubr.bf16.gmra.mxu0 %v9253
        %v9382 = vpop.f32.mrf.mxu0
        %v9383 = vadd.f32 0.0, %v9382
        %v9384 = vpop.f32.mrf.mxu0
        %v9385 = vadd.f32 0.0, %v9384
        %v9386 = vpop.f32.mrf.mxu0
        %v9387 = vadd.f32 0.0, %v9386
        %v9388 = vpop.f32.mrf.mxu0
        %v9389 = vadd.f32 0.0, %v9388
        %9390 = vmatprep.mubr.bf16.mxu0 0
        %9391 = vmatmul.mubr.bf16.gmra.mxu0 %v9261
        %v9392 = vpop.f32.mrf.mxu0
        %v9393 = vadd.f32 0.0, %v9392
        %v9394 = vpop.f32.mrf.mxu0
        %v9395 = vadd.f32 0.0, %v9394
        %v9396 = vpop.f32.mrf.mxu0
        %v9397 = vadd.f32 0.0, %v9396
        %v9398 = vpop.f32.mrf.mxu0
        %v9399 = vadd.f32 0.0, %v9398
        %9400 = vmatprep.mubr.bf16.mxu0 0
        %9401 = vmatmul.mubr.bf16.gmra.mxu0 %v9264
        %v9402 = vpop.f32.mrf.mxu0
        %v9403 = vadd.f32 0.0, %v9402
        %v9404 = vpop.f32.mrf.mxu0
        %v9405 = vadd.f32 0.0, %v9404
        %v9406 = vpop.f32.mrf.mxu0
        %v9407 = vpop.f32.mrf.mxu0
        %9408 = vdwg.mxu0
        %v9410 = vunpack.c.l.b16 %v9194
        %v9411 = vpack.c.b16 %v9410, %v9410
        %v9431 = vunpack.c.l.b16 %v9195
        %v9432 = vunpack.c.h.b16 %v9195
        %v9433 = vunpack.c.l.b16 %v9196
        %v9434 = vunpack.c.h.b16 %v9196
        %v9435 = vunpack.c.l.b16 %v9197
        %v9436 = vunpack.c.h.b16 %v9197
        %v9437 = vunpack.c.l.b16 %v9198
        %v9438 = vunpack.c.h.b16 %v9198
        %v9439 = vunpack.c.l.b16 %v9199
        %v9440 = vunpack.c.h.b16 %v9199
        %v9441 = vunpack.c.l.b16 %v9200
        %v9442 = vunpack.c.h.b16 %v9200
        %v9443 = vunpack.c.l.b16 %v9201
        %v9444 = vunpack.c.h.b16 %v9201
        %v9445 = vunpack.c.l.b16 %v9202
        %v9446 = vunpack.c.h.b16 %v9202
        %v9447 = vunpack.c.l.b16 %v9203
        %v9448 = vunpack.c.h.b16 %v9203
        %v9449 = vunpack.c.l.b16 %v9204
        %v9450 = vunpack.c.h.b16 %v9204
        %v9451 = vunpack.c.l.b16 %v9205
        %v9452 = vunpack.c.h.b16 %v9205
        %v9453 = vunpack.c.l.b16 %v9206
        %v9454 = vunpack.c.h.b16 %v9206
        %v9455 = vunpack.c.l.b16 %v9207
        %v9456 = vunpack.c.h.b16 %v9207
        %v9457 = vunpack.c.l.b16 %v9208
        %v9458 = vunpack.c.h.b16 %v9208
        %v9459 = vunpack.c.l.b16 %v9209
        %v9460 = vunpack.c.h.b16 %v9209
        %v9461 = vunpack.c.l.b16 %v9210
        %v9462 = vunpack.c.h.b16 %v9210
        %v9463 = vpack.c.b16 %v9433, %v9431
        %v9464 = vpack.c.b16 %v9434, %v9432
        %v9465 = vpack.c.b16 %v9437, %v9435
        %v9466 = vpack.c.b16 %v9438, %v9436
        %v9467 = vpack.c.b16 %v9441, %v9439
        %v9468 = vpack.c.b16 %v9442, %v9440
        %v9469 = vpack.c.b16 %v9445, %v9443
        %v9470 = vpack.c.b16 %v9446, %v9444
        %v9471 = vpack.c.b16 %v9449, %v9447
        %v9472 = vpack.c.b16 %v9450, %v9448
        %v9473 = vpack.c.b16 %v9453, %v9451
        %v9474 = vpack.c.b16 %v9454, %v9452
        %v9475 = vpack.c.b16 %v9457, %v9455
        %v9476 = vpack.c.b16 %v9458, %v9456
        %v9477 = vpack.c.b16 %v9461, %v9459
        %v9478 = vpack.c.b16 %v9462, %v9460
        %9495 = vmatprep.subr.bf16.mxu0 %v9478
        %9496 = vmatpush1.bf16.msra.mxu0 %v9477
        %9497 = vmatprep.subr.bf16.mxu0 %v9476
        %9498 = vmatpush1.bf16.msra.mxu0 %v9475
        %9499 = vmatprep.subr.bf16.mxu0 %v9474
        %9500 = vmatpush1.bf16.msra.mxu0 %v9473
        %9501 = vmatprep.subr.bf16.mxu0 %v9472
        %9502 = vmatpush1.bf16.msra.mxu0 %v9471
        %9503 = vmatprep.subr.bf16.mxu0 %v9470
        %9504 = vmatpush1.bf16.msra.mxu0 %v9469
        %9505 = vmatprep.subr.bf16.mxu0 %v9468
        %9506 = vmatpush1.bf16.msra.mxu0 %v9467
        %9507 = vmatprep.subr.bf16.mxu0 %v9466
        %9508 = vmatpush1.bf16.msra.mxu0 %v9465
        %9509 = vmatprep.subr.bf16.mxu0 %v9464
        %9510 = vmatpush1.bf16.msra.mxu0 %v9463
        %9511 = vmatprep.subr.bf16.mxu0 0
        %9512 = vmatpush2.bf16.msra.mxu0 0
        %9513 = vmatprep.subr.bf16.mxu0 0
        %9514 = vmatpush2.bf16.msra.mxu0 0
        %9515 = vmatprep.subr.bf16.mxu0 0
        %9516 = vmatpush2.bf16.msra.mxu0 0
        %9517 = vmatprep.subr.bf16.mxu0 0
        %9518 = vmatpush2.bf16.msra.mxu0 0
        %9519 = vmatprep.subr.bf16.mxu0 0
        %9520 = vmatpush2.bf16.msra.mxu0 0
        %9521 = vmatprep.subr.bf16.mxu0 0
        %9522 = vmatpush2.bf16.msra.mxu0 0
        %9523 = vmatprep.subr.bf16.mxu0 0
        %9524 = vmatpush2.bf16.msra.mxu0 0
        %9525 = vmatprep.subr.bf16.mxu0 0
        %9526 = vmatpush2.bf16.msra.mxu0 0
        %9527 = vmatprep.mubr.bf16.mxu0 0
        %9528 = vmatmul.mubr.bf16.gmra.mxu0 %v9239
        %v9529 = vpop.f32.mrf.mxu0
        %v9530 = vadd.f32 %v9383, %v9529
        %v9531 = vpop.f32.mrf.mxu0
        %v9532 = vadd.f32 %v9385, %v9531
        %v9533 = vpop.f32.mrf.mxu0
        %v9534 = vadd.f32 %v9387, %v9533
        %v9535 = vpop.f32.mrf.mxu0
        %v9536 = vadd.f32 %v9389, %v9535
        %9537 = vmatprep.mubr.bf16.mxu0 0
        %9538 = vmatmul.mubr.bf16.gmra.mxu0 %v9240
        %v9539 = vpop.f32.mrf.mxu0
        %v9540 = vadd.f32 %v9393, %v9539
        %v9541 = vpop.f32.mrf.mxu0
        %v9542 = vadd.f32 %v9395, %v9541
        %v9543 = vpop.f32.mrf.mxu0
        %v9544 = vadd.f32 %v9397, %v9543
        %v9545 = vpop.f32.mrf.mxu0
        %v9546 = vadd.f32 %v9399, %v9545
        %9547 = vmatprep.mubr.bf16.mxu0 0
        %9548 = vmatmul.mubr.bf16.gmra.mxu0 %v9411
        %v9549 = vpop.f32.mrf.mxu0
        %v9550 = vadd.f32 %v9403, %v9549
        %v9551 = vpop.f32.mrf.mxu0
        %v9552 = vadd.f32 %v9405, %v9551
        %v9553 = vpop.f32.mrf.mxu0
        %v9554 = vpop.f32.mrf.mxu0
        %9555 = vdwg.mxu0
        %v9556 = vld [vmem:[#allocation6] sm:$0xe]
        %s9557 = scalar_lea.vmem %s20, 256
        %v9558 = vld [vmem:[%s9557] sm:$0xff]
        %v9559 = vld [vmem:[%s9557 + $0x8] sm:$0xff]
        %v9560 = vld [vmem:[%s9557 + $0x10] sm:$0xff]
        %v9561 = vld [vmem:[%s9557 + $0x18] sm:$0xff]
        %v9562 = vld [vmem:[%s9557 + $0x20] sm:$0xff]
        %v9563 = vld [vmem:[%s9557 + $0x28] sm:$0xff]
        %v9564 = vld [vmem:[%s9557 + $0x30] sm:$0xff]
        %v9565 = vld [vmem:[%s9557 + $0x38] sm:$0xff]
        %v9566 = vld [vmem:[%s9557 + $0x40] sm:$0xff]
        %v9567 = vld [vmem:[%s9557 + $0x48] sm:$0xff]
        %v9568 = vld [vmem:[%s9557 + $0x50] sm:$0xff]
        %v9569 = vld [vmem:[%s9557 + $0x58] sm:$0xff]
        %v9570 = vld [vmem:[%s9557 + $0x60] sm:$0xff]
        %v9571 = vld [vmem:[%s9557 + $0x68] sm:$0xff]
        %v9572 = vld [vmem:[%s9557 + $0x70] sm:$0xff]
        %v9573 = vld [vmem:[%s9557 + $0x78] sm:$0xff]
        %v9575 = vunpack.c.l.b16 %v9556
        %v9576 = vpack.c.b16 %v9235, %v9575
        %v9577 = vrot.slane %v9576, 1
        %v9578 = vrot.slane %v9240, 1
        %v9579 = vsel %vm1235, %v9577, %v9578
        %v9580 = vrot.slane %v9241, 1
        %v9581 = vsel %vm1235, %v9578, %v9580
        %v9601 = vunpack.c.l.b16 %v9558
        %v9602 = vunpack.c.h.b16 %v9558
        %v9603 = vunpack.c.l.b16 %v9559
        %v9604 = vunpack.c.h.b16 %v9559
        %v9605 = vunpack.c.l.b16 %v9560
        %v9606 = vunpack.c.h.b16 %v9560
        %v9607 = vunpack.c.l.b16 %v9561
        %v9608 = vunpack.c.h.b16 %v9561
        %v9609 = vunpack.c.l.b16 %v9562
        %v9610 = vunpack.c.h.b16 %v9562
        %v9611 = vunpack.c.l.b16 %v9563
        %v9612 = vunpack.c.h.b16 %v9563
        %v9613 = vunpack.c.l.b16 %v9564
        %v9614 = vunpack.c.h.b16 %v9564
        %v9615 = vunpack.c.l.b16 %v9565
        %v9616 = vunpack.c.h.b16 %v9565
        %v9617 = vunpack.c.l.b16 %v9566
        %v9618 = vunpack.c.h.b16 %v9566
        %v9619 = vunpack.c.l.b16 %v9567
        %v9620 = vunpack.c.h.b16 %v9567
        %v9621 = vunpack.c.l.b16 %v9568
        %v9622 = vunpack.c.h.b16 %v9568
        %v9623 = vunpack.c.l.b16 %v9569
        %v9624 = vunpack.c.h.b16 %v9569
        %v9625 = vunpack.c.l.b16 %v9570
        %v9626 = vunpack.c.h.b16 %v9570
        %v9627 = vunpack.c.l.b16 %v9571
        %v9628 = vunpack.c.h.b16 %v9571
        %v9629 = vunpack.c.l.b16 %v9572
        %v9630 = vunpack.c.h.b16 %v9572
        %v9631 = vunpack.c.l.b16 %v9573
        %v9632 = vunpack.c.h.b16 %v9573
        %v9633 = vpack.c.b16 %v9603, %v9601
        %v9634 = vpack.c.b16 %v9604, %v9602
        %v9635 = vpack.c.b16 %v9607, %v9605
        %v9636 = vpack.c.b16 %v9608, %v9606
        %v9637 = vpack.c.b16 %v9611, %v9609
        %v9638 = vpack.c.b16 %v9612, %v9610
        %v9639 = vpack.c.b16 %v9615, %v9613
        %v9640 = vpack.c.b16 %v9616, %v9614
        %v9641 = vpack.c.b16 %v9619, %v9617
        %v9642 = vpack.c.b16 %v9620, %v9618
        %v9643 = vpack.c.b16 %v9623, %v9621
        %v9644 = vpack.c.b16 %v9624, %v9622
        %v9645 = vpack.c.b16 %v9627, %v9625
        %v9646 = vpack.c.b16 %v9628, %v9626
        %v9647 = vpack.c.b16 %v9631, %v9629
        %v9648 = vpack.c.b16 %v9632, %v9630
        %9665 = vmatprep.subr.bf16.mxu0 %v9648
        %9666 = vmatpush1.bf16.msra.mxu0 %v9647
        %9667 = vmatprep.subr.bf16.mxu0 %v9646
        %9668 = vmatpush1.bf16.msra.mxu0 %v9645
        %9669 = vmatprep.subr.bf16.mxu0 %v9644
        %9670 = vmatpush1.bf16.msra.mxu0 %v9643
        %9671 = vmatprep.subr.bf16.mxu0 %v9642
        %9672 = vmatpush1.bf16.msra.mxu0 %v9641
        %9673 = vmatprep.subr.bf16.mxu0 %v9640
        %9674 = vmatpush1.bf16.msra.mxu0 %v9639
        %9675 = vmatprep.subr.bf16.mxu0 %v9638
        %9676 = vmatpush1.bf16.msra.mxu0 %v9637
        %9677 = vmatprep.subr.bf16.mxu0 %v9636
        %9678 = vmatpush1.bf16.msra.mxu0 %v9635
        %9679 = vmatprep.subr.bf16.mxu0 %v9634
        %9680 = vmatpush1.bf16.msra.mxu0 %v9633
        %9681 = vmatprep.subr.bf16.mxu0 0
        %9682 = vmatpush2.bf16.msra.mxu0 0
        %9683 = vmatprep.subr.bf16.mxu0 0
        %9684 = vmatpush2.bf16.msra.mxu0 0
        %9685 = vmatprep.subr.bf16.mxu0 0
        %9686 = vmatpush2.bf16.msra.mxu0 0
        %9687 = vmatprep.subr.bf16.mxu0 0
        %9688 = vmatpush2.bf16.msra.mxu0 0
        %9689 = vmatprep.subr.bf16.mxu0 0
        %9690 = vmatpush2.bf16.msra.mxu0 0
        %9691 = vmatprep.subr.bf16.mxu0 0
        %9692 = vmatpush2.bf16.msra.mxu0 0
        %9693 = vmatprep.subr.bf16.mxu0 0
        %9694 = vmatpush2.bf16.msra.mxu0 0
        %9695 = vmatprep.subr.bf16.mxu0 0
        %9696 = vmatpush2.bf16.msra.mxu0 0
        %9697 = vmatprep.mubr.bf16.mxu0 0
        %9698 = vmatmul.mubr.bf16.gmra.mxu0 %v9579
        %v9699 = vpop.f32.mrf.mxu0
        %v9700 = vadd.f32 0.0, %v9699
        %v9701 = vpop.f32.mrf.mxu0
        %v9702 = vadd.f32 0.0, %v9701
        %v9703 = vpop.f32.mrf.mxu0
        %v9704 = vadd.f32 0.0, %v9703
        %v9705 = vpop.f32.mrf.mxu0
        %v9706 = vadd.f32 0.0, %v9705
        %9707 = vmatprep.mubr.bf16.mxu0 0
        %9708 = vmatmul.mubr.bf16.gmra.mxu0 %v9581
        %v9709 = vpop.f32.mrf.mxu0
        %v9710 = vadd.f32 0.0, %v9709
        %v9711 = vpop.f32.mrf.mxu0
        %v9712 = vadd.f32 0.0, %v9711
        %v9713 = vpop.f32.mrf.mxu0
        %v9714 = vadd.f32 0.0, %v9713
        %v9715 = vpop.f32.mrf.mxu0
        %v9716 = vadd.f32 0.0, %v9715
        %9717 = vmatprep.mubr.bf16.mxu0 0
        %9718 = vmatmul.mubr.bf16.gmra.mxu0 %v9580
        %v9719 = vpop.f32.mrf.mxu0
        %v9720 = vadd.f32 0.0, %v9719
        %v9721 = vpop.f32.mrf.mxu0
        %v9722 = vadd.f32 0.0, %v9721
        %v9723 = vpop.f32.mrf.mxu0
        %v9724 = vpop.f32.mrf.mxu0
        %9725 = vdwg.mxu0
        %v9726 = vadd.f32 %v9530, %v9700
        %v9727 = vadd.f32 %v9532, %v9702
        %v9728 = vadd.f32 %v9534, %v9704
        %v9729 = vadd.f32 %v9536, %v9706
        %v9730 = vadd.f32 %v9540, %v9710
        %v9731 = vadd.f32 %v9542, %v9712
        %v9732 = vadd.f32 %v9544, %v9714
        %v9733 = vadd.f32 %v9546, %v9716
        %v9734 = vadd.f32 %v9550, %v9720
        %v9735 = vadd.f32 %v9552, %v9722
        %v9736 = vld [vmem:[#allocation6] sm:$0x8]
        %v9737 = vld [vmem:[#allocation6 + $0x4] sm:$0xf]
        %v9738 = vld [vmem:[#allocation6 + $0x8] sm:$0xf]
        %v9739 = vld [vmem:[#allocation6 + $0xc] sm:$0xf]
        %v9740 = vld [vmem:[#allocation6 + $0x10] sm:$0xf]
        %v9741 = vld [vmem:[#allocation6 + $0x14] sm:$0x1]
        %s9742 = scalar_lea.vmem %s20, 384
        %v9743 = vld [vmem:[%s9742] sm:$0xff]
        %v9744 = vld [vmem:[%s9742 + $0x8] sm:$0xff]
        %v9745 = vld [vmem:[%s9742 + $0x10] sm:$0xff]
        %v9746 = vld [vmem:[%s9742 + $0x18] sm:$0xff]
        %v9747 = vld [vmem:[%s9742 + $0x20] sm:$0xff]
        %v9748 = vld [vmem:[%s9742 + $0x28] sm:$0xff]
        %v9749 = vld [vmem:[%s9742 + $0x30] sm:$0xff]
        %v9750 = vld [vmem:[%s9742 + $0x38] sm:$0xff]
        %v9751 = vld [vmem:[%s9742 + $0x40] sm:$0xff]
        %v9752 = vld [vmem:[%s9742 + $0x48] sm:$0xff]
        %v9753 = vld [vmem:[%s9742 + $0x50] sm:$0xff]
        %v9754 = vld [vmem:[%s9742 + $0x58] sm:$0xff]
        %v9755 = vld [vmem:[%s9742 + $0x60] sm:$0xff]
        %v9756 = vld [vmem:[%s9742 + $0x68] sm:$0xff]
        %v9757 = vld [vmem:[%s9742 + $0x70] sm:$0xff]
        %v9758 = vld [vmem:[%s9742 + $0x78] sm:$0xff]
        %v9765 = vunpack.c.l.b16 %v9736
        %v9766 = vunpack.c.l.b16 %v9737
        %v9767 = vunpack.c.l.b16 %v9738
        %v9768 = vunpack.c.l.b16 %v9739
        %v9769 = vunpack.c.l.b16 %v9740
        %v9770 = vunpack.c.l.b16 %v9741
        %v9771 = vpack.c.b16 %v9766, %v9765
        %v9772 = vpack.c.b16 %v9768, %v9767
        %v9773 = vpack.c.b16 %v9770, %v9769
        %v9774 = vrot.slane %v9771, 3
        %v9775 = vrot.slane %v9772, 3
        %v9776 = vsel %vm1446, %v9774, %v9775
        %v9777 = vrot.slane %v9773, 3
        %v9778 = vsel %vm1446, %v9775, %v9777
        %v9798 = vunpack.c.l.b16 %v9743
        %v9799 = vunpack.c.h.b16 %v9743
        %v9800 = vunpack.c.l.b16 %v9744
        %v9801 = vunpack.c.h.b16 %v9744
        %v9802 = vunpack.c.l.b16 %v9745
        %v9803 = vunpack.c.h.b16 %v9745
        %v9804 = vunpack.c.l.b16 %v9746
        %v9805 = vunpack.c.h.b16 %v9746
        %v9806 = vunpack.c.l.b16 %v9747
        %v9807 = vunpack.c.h.b16 %v9747
        %v9808 = vunpack.c.l.b16 %v9748
        %v9809 = vunpack.c.h.b16 %v9748
        %v9810 = vunpack.c.l.b16 %v9749
        %v9811 = vunpack.c.h.b16 %v9749
        %v9812 = vunpack.c.l.b16 %v9750
        %v9813 = vunpack.c.h.b16 %v9750
        %v9814 = vunpack.c.l.b16 %v9751
        %v9815 = vunpack.c.h.b16 %v9751
        %v9816 = vunpack.c.l.b16 %v9752
        %v9817 = vunpack.c.h.b16 %v9752
        %v9818 = vunpack.c.l.b16 %v9753
        %v9819 = vunpack.c.h.b16 %v9753
        %v9820 = vunpack.c.l.b16 %v9754
        %v9821 = vunpack.c.h.b16 %v9754
        %v9822 = vunpack.c.l.b16 %v9755
        %v9823 = vunpack.c.h.b16 %v9755
        %v9824 = vunpack.c.l.b16 %v9756
        %v9825 = vunpack.c.h.b16 %v9756
        %v9826 = vunpack.c.l.b16 %v9757
        %v9827 = vunpack.c.h.b16 %v9757
        %v9828 = vunpack.c.l.b16 %v9758
        %v9829 = vunpack.c.h.b16 %v9758
        %v9830 = vpack.c.b16 %v9800, %v9798
        %v9831 = vpack.c.b16 %v9801, %v9799
        %v9832 = vpack.c.b16 %v9804, %v9802
        %v9833 = vpack.c.b16 %v9805, %v9803
        %v9834 = vpack.c.b16 %v9808, %v9806
        %v9835 = vpack.c.b16 %v9809, %v9807
        %v9836 = vpack.c.b16 %v9812, %v9810
        %v9837 = vpack.c.b16 %v9813, %v9811
        %v9838 = vpack.c.b16 %v9816, %v9814
        %v9839 = vpack.c.b16 %v9817, %v9815
        %v9840 = vpack.c.b16 %v9820, %v9818
        %v9841 = vpack.c.b16 %v9821, %v9819
        %v9842 = vpack.c.b16 %v9824, %v9822
        %v9843 = vpack.c.b16 %v9825, %v9823
        %v9844 = vpack.c.b16 %v9828, %v9826
        %v9845 = vpack.c.b16 %v9829, %v9827
        %9862 = vmatprep.subr.bf16.mxu0 %v9845
        %9863 = vmatpush1.bf16.msra.mxu0 %v9844
        %9864 = vmatprep.subr.bf16.mxu0 %v9843
        %9865 = vmatpush1.bf16.msra.mxu0 %v9842
        %9866 = vmatprep.subr.bf16.mxu0 %v9841
        %9867 = vmatpush1.bf16.msra.mxu0 %v9840
        %9868 = vmatprep.subr.bf16.mxu0 %v9839
        %9869 = vmatpush1.bf16.msra.mxu0 %v9838
        %9870 = vmatprep.subr.bf16.mxu0 %v9837
        %9871 = vmatpush1.bf16.msra.mxu0 %v9836
        %9872 = vmatprep.subr.bf16.mxu0 %v9835
        %9873 = vmatpush1.bf16.msra.mxu0 %v9834
        %9874 = vmatprep.subr.bf16.mxu0 %v9833
        %9875 = vmatpush1.bf16.msra.mxu0 %v9832
        %9876 = vmatprep.subr.bf16.mxu0 %v9831
        %9877 = vmatpush1.bf16.msra.mxu0 %v9830
        %9878 = vmatprep.subr.bf16.mxu0 0
        %9879 = vmatpush2.bf16.msra.mxu0 0
        %9880 = vmatprep.subr.bf16.mxu0 0
        %9881 = vmatpush2.bf16.msra.mxu0 0
        %9882 = vmatprep.subr.bf16.mxu0 0
        %9883 = vmatpush2.bf16.msra.mxu0 0
        %9884 = vmatprep.subr.bf16.mxu0 0
        %9885 = vmatpush2.bf16.msra.mxu0 0
        %9886 = vmatprep.subr.bf16.mxu0 0
        %9887 = vmatpush2.bf16.msra.mxu0 0
        %9888 = vmatprep.subr.bf16.mxu0 0
        %9889 = vmatpush2.bf16.msra.mxu0 0
        %9890 = vmatprep.subr.bf16.mxu0 0
        %9891 = vmatpush2.bf16.msra.mxu0 0
        %9892 = vmatprep.subr.bf16.mxu0 0
        %9893 = vmatpush2.bf16.msra.mxu0 0
        %9894 = vmatprep.mubr.bf16.mxu0 0
        %9895 = vmatmul.mubr.bf16.gmra.mxu0 %v9776
        %v9896 = vpop.f32.mrf.mxu0
        %v9897 = vadd.f32 0.0, %v9896
        %v9898 = vpop.f32.mrf.mxu0
        %v9899 = vadd.f32 0.0, %v9898
        %v9900 = vpop.f32.mrf.mxu0
        %v9901 = vadd.f32 0.0, %v9900
        %v9902 = vpop.f32.mrf.mxu0
        %v9903 = vadd.f32 0.0, %v9902
        %9904 = vmatprep.mubr.bf16.mxu0 0
        %9905 = vmatmul.mubr.bf16.gmra.mxu0 %v9778
        %v9906 = vpop.f32.mrf.mxu0
        %v9907 = vadd.f32 0.0, %v9906
        %v9908 = vpop.f32.mrf.mxu0
        %v9909 = vadd.f32 0.0, %v9908
        %v9910 = vpop.f32.mrf.mxu0
        %v9911 = vadd.f32 0.0, %v9910
        %v9912 = vpop.f32.mrf.mxu0
        %v9913 = vadd.f32 0.0, %v9912
        %9914 = vmatprep.mubr.bf16.mxu0 0
        %9915 = vmatmul.mubr.bf16.gmra.mxu0 %v9777
        %v9916 = vpop.f32.mrf.mxu0
        %v9917 = vadd.f32 0.0, %v9916
        %v9918 = vpop.f32.mrf.mxu0
        %v9919 = vadd.f32 0.0, %v9918
        %v9920 = vpop.f32.mrf.mxu0
        %v9921 = vpop.f32.mrf.mxu0
        %9922 = vdwg.mxu0
        %v9923 = vadd.f32 %v9726, %v9897
        %v9924 = vadd.f32 %v9727, %v9899
        %v9925 = vadd.f32 %v9728, %v9901
        %v9926 = vadd.f32 %v9729, %v9903
        %v9927 = vadd.f32 %v9730, %v9907
        %v9928 = vadd.f32 %v9731, %v9909
        %v9929 = vadd.f32 %v9732, %v9911
        %v9930 = vadd.f32 %v9733, %v9913
        %v9931 = vadd.f32 %v9734, %v9917
        %v9932 = vadd.f32 %v9735, %v9919
        %v9933 = vld [vmem:[#allocation6 + $0x14] sm:$0x3]
        %s9934 = scalar_lea.vmem %s20, 512
        %v9935 = vld [vmem:[%s9934] sm:$0xff]
        %v9936 = vld [vmem:[%s9934 + $0x8] sm:$0xff]
        %v9937 = vld [vmem:[%s9934 + $0x10] sm:$0xff]
        %v9938 = vld [vmem:[%s9934 + $0x18] sm:$0xff]
        %v9939 = vld [vmem:[%s9934 + $0x20] sm:$0xff]
        %v9940 = vld [vmem:[%s9934 + $0x28] sm:$0xff]
        %v9941 = vld [vmem:[%s9934 + $0x30] sm:$0xff]
        %v9942 = vld [vmem:[%s9934 + $0x38] sm:$0xff]
        %v9943 = vld [vmem:[%s9934 + $0x40] sm:$0xff]
        %v9944 = vld [vmem:[%s9934 + $0x48] sm:$0xff]
        %v9945 = vld [vmem:[%s9934 + $0x50] sm:$0xff]
        %v9946 = vld [vmem:[%s9934 + $0x58] sm:$0xff]
        %v9947 = vld [vmem:[%s9934 + $0x60] sm:$0xff]
        %v9948 = vld [vmem:[%s9934 + $0x68] sm:$0xff]
        %v9949 = vld [vmem:[%s9934 + $0x70] sm:$0xff]
        %v9950 = vld [vmem:[%s9934 + $0x78] sm:$0xff]
        %v9952 = vunpack.c.l.b16 %v9933
        %v9953 = vpack.c.b16 %v9952, %v9769
        %v9955 = vshrl.u32 %v9771, 16
        %v9957 = vrot.slane %v9955, 3
        %v9958 = vshll.u32 %v9771, 16
        %v9960 = vrot.slane %v9958, 4
        %v9961 = vor.u32 %v9957, %v9960
        %v9963 = vshrl.u32 %v9772, 16
        %v9965 = vrot.slane %v9963, 3
        %v9966 = vshll.u32 %v9772, 16
        %v9968 = vrot.slane %v9966, 4
        %v9969 = vor.u32 %v9965, %v9968
        %v9970 = vsel %vm1633, %v9961, %v9969
        %v9972 = vshrl.u32 %v9953, 16
        %v9974 = vrot.slane %v9972, 3
        %v9975 = vshll.u32 %v9953, 16
        %v9977 = vrot.slane %v9975, 4
        %v9978 = vor.u32 %v9974, %v9977
        %v9979 = vsel %vm1633, %v9969, %v9978
        %v9999 = vunpack.c.l.b16 %v9935
        %v10000 = vunpack.c.h.b16 %v9935
        %v10001 = vunpack.c.l.b16 %v9936
        %v10002 = vunpack.c.h.b16 %v9936
        %v10003 = vunpack.c.l.b16 %v9937
        %v10004 = vunpack.c.h.b16 %v9937
        %v10005 = vunpack.c.l.b16 %v9938
        %v10006 = vunpack.c.h.b16 %v9938
        %v10007 = vunpack.c.l.b16 %v9939
        %v10008 = vunpack.c.h.b16 %v9939
        %v10009 = vunpack.c.l.b16 %v9940
        %v10010 = vunpack.c.h.b16 %v9940
        %v10011 = vunpack.c.l.b16 %v9941
        %v10012 = vunpack.c.h.b16 %v9941
        %v10013 = vunpack.c.l.b16 %v9942
        %v10014 = vunpack.c.h.b16 %v9942
        %v10015 = vunpack.c.l.b16 %v9943
        %v10016 = vunpack.c.h.b16 %v9943
        %v10017 = vunpack.c.l.b16 %v9944
        %v10018 = vunpack.c.h.b16 %v9944
        %v10019 = vunpack.c.l.b16 %v9945
        %v10020 = vunpack.c.h.b16 %v9945
        %v10021 = vunpack.c.l.b16 %v9946
        %v10022 = vunpack.c.h.b16 %v9946
        %v10023 = vunpack.c.l.b16 %v9947
        %v10024 = vunpack.c.h.b16 %v9947
        %v10025 = vunpack.c.l.b16 %v9948
        %v10026 = vunpack.c.h.b16 %v9948
        %v10027 = vunpack.c.l.b16 %v9949
        %v10028 = vunpack.c.h.b16 %v9949
        %v10029 = vunpack.c.l.b16 %v9950
        %v10030 = vunpack.c.h.b16 %v9950
        %v10031 = vpack.c.b16 %v10001, %v9999
        %v10032 = vpack.c.b16 %v10002, %v10000
        %v10033 = vpack.c.b16 %v10005, %v10003
        %v10034 = vpack.c.b16 %v10006, %v10004
        %v10035 = vpack.c.b16 %v10009, %v10007
        %v10036 = vpack.c.b16 %v10010, %v10008
        %v10037 = vpack.c.b16 %v10013, %v10011
        %v10038 = vpack.c.b16 %v10014, %v10012
        %v10039 = vpack.c.b16 %v10017, %v10015
        %v10040 = vpack.c.b16 %v10018, %v10016
        %v10041 = vpack.c.b16 %v10021, %v10019
        %v10042 = vpack.c.b16 %v10022, %v10020
        %v10043 = vpack.c.b16 %v10025, %v10023
        %v10044 = vpack.c.b16 %v10026, %v10024
        %v10045 = vpack.c.b16 %v10029, %v10027
        %v10046 = vpack.c.b16 %v10030, %v10028
        %10063 = vmatprep.subr.bf16.mxu0 %v10046
        %10064 = vmatpush1.bf16.msra.mxu0 %v10045
        %10065 = vmatprep.subr.bf16.mxu0 %v10044
        %10066 = vmatpush1.bf16.msra.mxu0 %v10043
        %10067 = vmatprep.subr.bf16.mxu0 %v10042
        %10068 = vmatpush1.bf16.msra.mxu0 %v10041
        %10069 = vmatprep.subr.bf16.mxu0 %v10040
        %10070 = vmatpush1.bf16.msra.mxu0 %v10039
        %10071 = vmatprep.subr.bf16.mxu0 %v10038
        %10072 = vmatpush1.bf16.msra.mxu0 %v10037
        %10073 = vmatprep.subr.bf16.mxu0 %v10036
        %10074 = vmatpush1.bf16.msra.mxu0 %v10035
        %10075 = vmatprep.subr.bf16.mxu0 %v10034
        %10076 = vmatpush1.bf16.msra.mxu0 %v10033
        %10077 = vmatprep.subr.bf16.mxu0 %v10032
        %10078 = vmatpush1.bf16.msra.mxu0 %v10031
        %10079 = vmatprep.subr.bf16.mxu0 0
        %10080 = vmatpush2.bf16.msra.mxu0 0
        %10081 = vmatprep.subr.bf16.mxu0 0
        %10082 = vmatpush2.bf16.msra.mxu0 0
        %10083 = vmatprep.subr.bf16.mxu0 0
        %10084 = vmatpush2.bf16.msra.mxu0 0
        %10085 = vmatprep.subr.bf16.mxu0 0
        %10086 = vmatpush2.bf16.msra.mxu0 0
        %10087 = vmatprep.subr.bf16.mxu0 0
        %10088 = vmatpush2.bf16.msra.mxu0 0
        %10089 = vmatprep.subr.bf16.mxu0 0
        %10090 = vmatpush2.bf16.msra.mxu0 0
        %10091 = vmatprep.subr.bf16.mxu0 0
        %10092 = vmatpush2.bf16.msra.mxu0 0
        %10093 = vmatprep.subr.bf16.mxu0 0
        %10094 = vmatpush2.bf16.msra.mxu0 0
        %10095 = vmatprep.mubr.bf16.mxu0 0
        %10096 = vmatmul.mubr.bf16.gmra.mxu0 %v9970
        %v10097 = vpop.f32.mrf.mxu0
        %v10098 = vadd.f32 0.0, %v10097
        %v10099 = vpop.f32.mrf.mxu0
        %v10100 = vadd.f32 0.0, %v10099
        %v10101 = vpop.f32.mrf.mxu0
        %v10102 = vadd.f32 0.0, %v10101
        %v10103 = vpop.f32.mrf.mxu0
        %v10104 = vadd.f32 0.0, %v10103
        %10105 = vmatprep.mubr.bf16.mxu0 0
        %10106 = vmatmul.mubr.bf16.gmra.mxu0 %v9979
        %v10107 = vpop.f32.mrf.mxu0
        %v10108 = vadd.f32 0.0, %v10107
        %v10109 = vpop.f32.mrf.mxu0
        %v10110 = vadd.f32 0.0, %v10109
        %v10111 = vpop.f32.mrf.mxu0
        %v10112 = vadd.f32 0.0, %v10111
        %v10113 = vpop.f32.mrf.mxu0
        %v10114 = vadd.f32 0.0, %v10113
        %10115 = vmatprep.mubr.bf16.mxu0 0
        %10116 = vmatmul.mubr.bf16.gmra.mxu0 %v9978
        %v10117 = vpop.f32.mrf.mxu0
        %v10118 = vadd.f32 0.0, %v10117
        %v10119 = vpop.f32.mrf.mxu0
        %v10120 = vadd.f32 0.0, %v10119
        %v10121 = vpop.f32.mrf.mxu0
        %v10122 = vpop.f32.mrf.mxu0
        %10123 = vdwg.mxu0
        %v10124 = vadd.f32 %v9923, %v10098
        %v10125 = vadd.f32 %v9924, %v10100
        %v10126 = vadd.f32 %v9925, %v10102
        %v10127 = vadd.f32 %v9926, %v10104
        %v10128 = vadd.f32 %v9927, %v10108
        %v10129 = vadd.f32 %v9928, %v10110
        %v10130 = vadd.f32 %v9929, %v10112
        %v10131 = vadd.f32 %v9930, %v10114
        %v10132 = vadd.f32 %v9931, %v10118
        %v10133 = vadd.f32 %v9932, %v10120
        %s10134 = scalar_lea.vmem %s20, 640
        %v10135 = vld [vmem:[%s10134] sm:$0xff]
        %v10136 = vld [vmem:[%s10134 + $0x8] sm:$0xff]
        %v10137 = vld [vmem:[%s10134 + $0x10] sm:$0xff]
        %v10138 = vld [vmem:[%s10134 + $0x18] sm:$0xff]
        %v10139 = vld [vmem:[%s10134 + $0x20] sm:$0xff]
        %v10140 = vld [vmem:[%s10134 + $0x28] sm:$0xff]
        %v10141 = vld [vmem:[%s10134 + $0x30] sm:$0xff]
        %v10142 = vld [vmem:[%s10134 + $0x38] sm:$0xff]
        %v10143 = vld [vmem:[%s10134 + $0x40] sm:$0xff]
        %v10144 = vld [vmem:[%s10134 + $0x48] sm:$0xff]
        %v10145 = vld [vmem:[%s10134 + $0x50] sm:$0xff]
        %v10146 = vld [vmem:[%s10134 + $0x58] sm:$0xff]
        %v10147 = vld [vmem:[%s10134 + $0x60] sm:$0xff]
        %v10148 = vld [vmem:[%s10134 + $0x68] sm:$0xff]
        %v10149 = vld [vmem:[%s10134 + $0x70] sm:$0xff]
        %v10150 = vld [vmem:[%s10134 + $0x78] sm:$0xff]
        %v10151 = vpack.c.b16 %v9767, %v9766
        %v10152 = vpack.c.b16 %v9769, %v9768
        %v10153 = vpack.c.b16 %v9952, %v9952
        %v10173 = vunpack.c.l.b16 %v10135
        %v10174 = vunpack.c.h.b16 %v10135
        %v10175 = vunpack.c.l.b16 %v10136
        %v10176 = vunpack.c.h.b16 %v10136
        %v10177 = vunpack.c.l.b16 %v10137
        %v10178 = vunpack.c.h.b16 %v10137
        %v10179 = vunpack.c.l.b16 %v10138
        %v10180 = vunpack.c.h.b16 %v10138
        %v10181 = vunpack.c.l.b16 %v10139
        %v10182 = vunpack.c.h.b16 %v10139
        %v10183 = vunpack.c.l.b16 %v10140
        %v10184 = vunpack.c.h.b16 %v10140
        %v10185 = vunpack.c.l.b16 %v10141
        %v10186 = vunpack.c.h.b16 %v10141
        %v10187 = vunpack.c.l.b16 %v10142
        %v10188 = vunpack.c.h.b16 %v10142
        %v10189 = vunpack.c.l.b16 %v10143
        %v10190 = vunpack.c.h.b16 %v10143
        %v10191 = vunpack.c.l.b16 %v10144
        %v10192 = vunpack.c.h.b16 %v10144
        %v10193 = vunpack.c.l.b16 %v10145
        %v10194 = vunpack.c.h.b16 %v10145
        %v10195 = vunpack.c.l.b16 %v10146
        %v10196 = vunpack.c.h.b16 %v10146
        %v10197 = vunpack.c.l.b16 %v10147
        %v10198 = vunpack.c.h.b16 %v10147
        %v10199 = vunpack.c.l.b16 %v10148
        %v10200 = vunpack.c.h.b16 %v10148
        %v10201 = vunpack.c.l.b16 %v10149
        %v10202 = vunpack.c.h.b16 %v10149
        %v10203 = vunpack.c.l.b16 %v10150
        %v10204 = vunpack.c.h.b16 %v10150
        %v10205 = vpack.c.b16 %v10175, %v10173
        %v10206 = vpack.c.b16 %v10176, %v10174
        %v10207 = vpack.c.b16 %v10179, %v10177
        %v10208 = vpack.c.b16 %v10180, %v10178
        %v10209 = vpack.c.b16 %v10183, %v10181
        %v10210 = vpack.c.b16 %v10184, %v10182
        %v10211 = vpack.c.b16 %v10187, %v10185
        %v10212 = vpack.c.b16 %v10188, %v10186
        %v10213 = vpack.c.b16 %v10191, %v10189
        %v10214 = vpack.c.b16 %v10192, %v10190
        %v10215 = vpack.c.b16 %v10195, %v10193
        %v10216 = vpack.c.b16 %v10196, %v10194
        %v10217 = vpack.c.b16 %v10199, %v10197
        %v10218 = vpack.c.b16 %v10200, %v10198
        %v10219 = vpack.c.b16 %v10203, %v10201
        %v10220 = vpack.c.b16 %v10204, %v10202
        %10237 = vmatprep.subr.bf16.mxu0 %v10220
        %10238 = vmatpush1.bf16.msra.mxu0 %v10219
        %10239 = vmatprep.subr.bf16.mxu0 %v10218
        %10240 = vmatpush1.bf16.msra.mxu0 %v10217
        %10241 = vmatprep.subr.bf16.mxu0 %v10216
        %10242 = vmatpush1.bf16.msra.mxu0 %v10215
        %10243 = vmatprep.subr.bf16.mxu0 %v10214
        %10244 = vmatpush1.bf16.msra.mxu0 %v10213
        %10245 = vmatprep.subr.bf16.mxu0 %v10212
        %10246 = vmatpush1.bf16.msra.mxu0 %v10211
        %10247 = vmatprep.subr.bf16.mxu0 %v10210
        %10248 = vmatpush1.bf16.msra.mxu0 %v10209
        %10249 = vmatprep.subr.bf16.mxu0 %v10208
        %10250 = vmatpush1.bf16.msra.mxu0 %v10207
        %10251 = vmatprep.subr.bf16.mxu0 %v10206
        %10252 = vmatpush1.bf16.msra.mxu0 %v10205
        %10253 = vmatprep.subr.bf16.mxu0 0
        %10254 = vmatpush2.bf16.msra.mxu0 0
        %10255 = vmatprep.subr.bf16.mxu0 0
        %10256 = vmatpush2.bf16.msra.mxu0 0
        %10257 = vmatprep.subr.bf16.mxu0 0
        %10258 = vmatpush2.bf16.msra.mxu0 0
        %10259 = vmatprep.subr.bf16.mxu0 0
        %10260 = vmatpush2.bf16.msra.mxu0 0
        %10261 = vmatprep.subr.bf16.mxu0 0
        %10262 = vmatpush2.bf16.msra.mxu0 0
        %10263 = vmatprep.subr.bf16.mxu0 0
        %10264 = vmatpush2.bf16.msra.mxu0 0
        %10265 = vmatprep.subr.bf16.mxu0 0
        %10266 = vmatpush2.bf16.msra.mxu0 0
        %10267 = vmatprep.subr.bf16.mxu0 0
        %10268 = vmatpush2.bf16.msra.mxu0 0
        %10269 = vmatprep.mubr.bf16.mxu0 0
        %10270 = vmatmul.mubr.bf16.gmra.mxu0 %v10151
        %v10271 = vpop.f32.mrf.mxu0
        %v10272 = vadd.f32 0.0, %v10271
        %v10273 = vpop.f32.mrf.mxu0
        %v10274 = vadd.f32 0.0, %v10273
        %v10275 = vpop.f32.mrf.mxu0
        %v10276 = vadd.f32 0.0, %v10275
        %v10277 = vpop.f32.mrf.mxu0
        %v10278 = vadd.f32 0.0, %v10277
        %10279 = vmatprep.mubr.bf16.mxu0 0
        %10280 = vmatmul.mubr.bf16.gmra.mxu0 %v10152
        %v10281 = vpop.f32.mrf.mxu0
        %v10282 = vadd.f32 0.0, %v10281
        %v10283 = vpop.f32.mrf.mxu0
        %v10284 = vadd.f32 0.0, %v10283
        %v10285 = vpop.f32.mrf.mxu0
        %v10286 = vadd.f32 0.0, %v10285
        %v10287 = vpop.f32.mrf.mxu0
        %v10288 = vadd.f32 0.0, %v10287
        %10289 = vmatprep.mubr.bf16.mxu0 0
        %10290 = vmatmul.mubr.bf16.gmra.mxu0 %v10153
        %v10291 = vpop.f32.mrf.mxu0
        %v10292 = vadd.f32 0.0, %v10291
        %v10293 = vpop.f32.mrf.mxu0
        %v10294 = vadd.f32 0.0, %v10293
        %v10295 = vpop.f32.mrf.mxu0
        %v10296 = vpop.f32.mrf.mxu0
        %10297 = vdwg.mxu0
        %v10298 = vadd.f32 %v10124, %v10272
        %v10299 = vadd.f32 %v10125, %v10274
        %v10300 = vadd.f32 %v10126, %v10276
        %v10301 = vadd.f32 %v10127, %v10278
        %v10302 = vadd.f32 %v10128, %v10282
        %v10303 = vadd.f32 %v10129, %v10284
        %v10304 = vadd.f32 %v10130, %v10286
        %v10305 = vadd.f32 %v10131, %v10288
        %v10306 = vadd.f32 %v10132, %v10292
        %v10307 = vadd.f32 %v10133, %v10294
        %v10308 = vld [vmem:[#allocation6 + $0x4] sm:$0xc]
        %v10309 = vld [vmem:[#allocation6 + $0x14] sm:$0xf]
        %s10310 = scalar_lea.vmem %s20, 768
        %v10311 = vld [vmem:[%s10310] sm:$0xff]
        %v10312 = vld [vmem:[%s10310 + $0x8] sm:$0xff]
        %v10313 = vld [vmem:[%s10310 + $0x10] sm:$0xff]
        %v10314 = vld [vmem:[%s10310 + $0x18] sm:$0xff]
        %v10315 = vld [vmem:[%s10310 + $0x20] sm:$0xff]
        %v10316 = vld [vmem:[%s10310 + $0x28] sm:$0xff]
        %v10317 = vld [vmem:[%s10310 + $0x30] sm:$0xff]
        %v10318 = vld [vmem:[%s10310 + $0x38] sm:$0xff]
        %v10319 = vld [vmem:[%s10310 + $0x40] sm:$0xff]
        %v10320 = vld [vmem:[%s10310 + $0x48] sm:$0xff]
        %v10321 = vld [vmem:[%s10310 + $0x50] sm:$0xff]
        %v10322 = vld [vmem:[%s10310 + $0x58] sm:$0xff]
        %v10323 = vld [vmem:[%s10310 + $0x60] sm:$0xff]
        %v10324 = vld [vmem:[%s10310 + $0x68] sm:$0xff]
        %v10325 = vld [vmem:[%s10310 + $0x70] sm:$0xff]
        %v10326 = vld [vmem:[%s10310 + $0x78] sm:$0xff]
        %v10329 = vunpack.c.l.b16 %v10308
        %v10330 = vunpack.c.l.b16 %v10309
        %v10331 = vpack.c.b16 %v9767, %v10329
        %v10332 = vpack.c.b16 %v10330, %v10330
        %v10333 = vrot.slane %v10331, 2
        %v10334 = vrot.slane %v10152, 2
        %v10335 = vsel %vm2044, %v10333, %v10334
        %v10336 = vrot.slane %v10332, 2
        %v10337 = vsel %vm2044, %v10334, %v10336
        %v10357 = vunpack.c.l.b16 %v10311
        %v10358 = vunpack.c.h.b16 %v10311
        %v10359 = vunpack.c.l.b16 %v10312
        %v10360 = vunpack.c.h.b16 %v10312
        %v10361 = vunpack.c.l.b16 %v10313
        %v10362 = vunpack.c.h.b16 %v10313
        %v10363 = vunpack.c.l.b16 %v10314
        %v10364 = vunpack.c.h.b16 %v10314
        %v10365 = vunpack.c.l.b16 %v10315
        %v10366 = vunpack.c.h.b16 %v10315
        %v10367 = vunpack.c.l.b16 %v10316
        %v10368 = vunpack.c.h.b16 %v10316
        %v10369 = vunpack.c.l.b16 %v10317
        %v10370 = vunpack.c.h.b16 %v10317
        %v10371 = vunpack.c.l.b16 %v10318
        %v10372 = vunpack.c.h.b16 %v10318
        %v10373 = vunpack.c.l.b16 %v10319
        %v10374 = vunpack.c.h.b16 %v10319
        %v10375 = vunpack.c.l.b16 %v10320
        %v10376 = vunpack.c.h.b16 %v10320
        %v10377 = vunpack.c.l.b16 %v10321
        %v10378 = vunpack.c.h.b16 %v10321
        %v10379 = vunpack.c.l.b16 %v10322
        %v10380 = vunpack.c.h.b16 %v10322
        %v10381 = vunpack.c.l.b16 %v10323
        %v10382 = vunpack.c.h.b16 %v10323
        %v10383 = vunpack.c.l.b16 %v10324
        %v10384 = vunpack.c.h.b16 %v10324
        %v10385 = vunpack.c.l.b16 %v10325
        %v10386 = vunpack.c.h.b16 %v10325
        %v10387 = vunpack.c.l.b16 %v10326
        %v10388 = vunpack.c.h.b16 %v10326
        %v10389 = vpack.c.b16 %v10359, %v10357
        %v10390 = vpack.c.b16 %v10360, %v10358
        %v10391 = vpack.c.b16 %v10363, %v10361
        %v10392 = vpack.c.b16 %v10364, %v10362
        %v10393 = vpack.c.b16 %v10367, %v10365
        %v10394 = vpack.c.b16 %v10368, %v10366
        %v10395 = vpack.c.b16 %v10371, %v10369
        %v10396 = vpack.c.b16 %v10372, %v10370
        %v10397 = vpack.c.b16 %v10375, %v10373
        %v10398 = vpack.c.b16 %v10376, %v10374
        %v10399 = vpack.c.b16 %v10379, %v10377
        %v10400 = vpack.c.b16 %v10380, %v10378
        %v10401 = vpack.c.b16 %v10383, %v10381
        %v10402 = vpack.c.b16 %v10384, %v10382
        %v10403 = vpack.c.b16 %v10387, %v10385
        %v10404 = vpack.c.b16 %v10388, %v10386
        %10421 = vmatprep.subr.bf16.mxu0 %v10404
        %10422 = vmatpush1.bf16.msra.mxu0 %v10403
        %10423 = vmatprep.subr.bf16.mxu0 %v10402
        %10424 = vmatpush1.bf16.msra.mxu0 %v10401
        %10425 = vmatprep.subr.bf16.mxu0 %v10400
        %10426 = vmatpush1.bf16.msra.mxu0 %v10399
        %10427 = vmatprep.subr.bf16.mxu0 %v10398
        %10428 = vmatpush1.bf16.msra.mxu0 %v10397
        %10429 = vmatprep.subr.bf16.mxu0 %v10396
        %10430 = vmatpush1.bf16.msra.mxu0 %v10395
        %10431 = vmatprep.subr.bf16.mxu0 %v10394
        %10432 = vmatpush1.bf16.msra.mxu0 %v10393
        %10433 = vmatprep.subr.bf16.mxu0 %v10392
        %10434 = vmatpush1.bf16.msra.mxu0 %v10391
        %10435 = vmatprep.subr.bf16.mxu0 %v10390
        %10436 = vmatpush1.bf16.msra.mxu0 %v10389
        %10437 = vmatprep.subr.bf16.mxu0 0
        %10438 = vmatpush2.bf16.msra.mxu0 0
        %10439 = vmatprep.subr.bf16.mxu0 0
        %10440 = vmatpush2.bf16.msra.mxu0 0
        %10441 = vmatprep.subr.bf16.mxu0 0
        %10442 = vmatpush2.bf16.msra.mxu0 0
        %10443 = vmatprep.subr.bf16.mxu0 0
        %10444 = vmatpush2.bf16.msra.mxu0 0
        %10445 = vmatprep.subr.bf16.mxu0 0
        %10446 = vmatpush2.bf16.msra.mxu0 0
        %10447 = vmatprep.subr.bf16.mxu0 0
        %10448 = vmatpush2.bf16.msra.mxu0 0
        %10449 = vmatprep.subr.bf16.mxu0 0
        %10450 = vmatpush2.bf16.msra.mxu0 0
        %10451 = vmatprep.subr.bf16.mxu0 0
        %10452 = vmatpush2.bf16.msra.mxu0 0
        %10453 = vmatprep.mubr.bf16.mxu0 0
        %10454 = vmatmul.mubr.bf16.gmra.mxu0 %v10335
        %v10455 = vpop.f32.mrf.mxu0
        %v10456 = vadd.f32 0.0, %v10455
        %v10457 = vpop.f32.mrf.mxu0
        %v10458 = vadd.f32 0.0, %v10457
        %v10459 = vpop.f32.mrf.mxu0
        %v10460 = vadd.f32 0.0, %v10459
        %v10461 = vpop.f32.mrf.mxu0
        %v10462 = vadd.f32 0.0, %v10461
        %10463 = vmatprep.mubr.bf16.mxu0 0
        %10464 = vmatmul.mubr.bf16.gmra.mxu0 %v10337
        %v10465 = vpop.f32.mrf.mxu0
        %v10466 = vadd.f32 0.0, %v10465
        %v10467 = vpop.f32.mrf.mxu0
        %v10468 = vadd.f32 0.0, %v10467
        %v10469 = vpop.f32.mrf.mxu0
        %v10470 = vadd.f32 0.0, %v10469
        %v10471 = vpop.f32.mrf.mxu0
        %v10472 = vadd.f32 0.0, %v10471
        %10473 = vmatprep.mubr.bf16.mxu0 0
        %10474 = vmatmul.mubr.bf16.gmra.mxu0 %v10336
        %v10475 = vpop.f32.mrf.mxu0
        %v10476 = vadd.f32 0.0, %v10475
        %v10477 = vpop.f32.mrf.mxu0
        %v10478 = vadd.f32 0.0, %v10477
        %v10479 = vpop.f32.mrf.mxu0
        %v10480 = vpop.f32.mrf.mxu0
        %10481 = vdwg.mxu0
        %v10482 = vadd.f32 %v10298, %v10456
        %v10483 = vadd.f32 %v10299, %v10458
        %v10484 = vadd.f32 %v10300, %v10460
        %v10485 = vadd.f32 %v10301, %v10462
        %v10486 = vadd.f32 %v10302, %v10466
        %v10487 = vadd.f32 %v10303, %v10468
        %v10488 = vadd.f32 %v10304, %v10470
        %v10489 = vadd.f32 %v10305, %v10472
        %v10490 = vadd.f32 %v10306, %v10476
        %v10491 = vadd.f32 %v10307, %v10478
        %v10492 = vld [vmem:[#allocation6 + $0x4] sm:$0xc]
        %v10493 = vld [vmem:[#allocation6 + $0x8] sm:$0xf]
        %v10494 = vld [vmem:[#allocation6 + $0xc] sm:$0xf]
        %v10495 = vld [vmem:[#allocation6 + $0x10] sm:$0xf]
        %v10496 = vld [vmem:[#allocation6 + $0x14] sm:$0xf]
        %v10497 = vld [vmem:[#allocation6 + $0x18] sm:$0x1]
        %s10498 = scalar_lea.vmem %s20, 896
        %v10499 = vld [vmem:[%s10498] sm:$0xff]
        %v10500 = vld [vmem:[%s10498 + $0x8] sm:$0xff]
        %v10501 = vld [vmem:[%s10498 + $0x10] sm:$0xff]
        %v10502 = vld [vmem:[%s10498 + $0x18] sm:$0xff]
        %v10503 = vld [vmem:[%s10498 + $0x20] sm:$0xff]
        %v10504 = vld [vmem:[%s10498 + $0x28] sm:$0xff]
        %v10505 = vld [vmem:[%s10498 + $0x30] sm:$0xff]
        %v10506 = vld [vmem:[%s10498 + $0x38] sm:$0xff]
        %v10507 = vld [vmem:[%s10498 + $0x40] sm:$0xff]
        %v10508 = vld [vmem:[%s10498 + $0x48] sm:$0xff]
        %v10509 = vld [vmem:[%s10498 + $0x50] sm:$0xff]
        %v10510 = vld [vmem:[%s10498 + $0x58] sm:$0xff]
        %v10511 = vld [vmem:[%s10498 + $0x60] sm:$0xff]
        %v10512 = vld [vmem:[%s10498 + $0x68] sm:$0xff]
        %v10513 = vld [vmem:[%s10498 + $0x70] sm:$0xff]
        %v10514 = vld [vmem:[%s10498 + $0x78] sm:$0xff]
        %v10521 = vunpack.c.l.b16 %v10492
        %v10522 = vunpack.c.l.b16 %v10493
        %v10523 = vunpack.c.l.b16 %v10494
        %v10524 = vunpack.c.l.b16 %v10495
        %v10525 = vunpack.c.l.b16 %v10496
        %v10526 = vunpack.c.l.b16 %v10497
        %v10527 = vpack.c.b16 %v10522, %v10521
        %v10528 = vpack.c.b16 %v10524, %v10523
        %v10529 = vpack.c.b16 %v10526, %v10525
        %v10531 = vshrl.u32 %v10527, 16
        %v10533 = vrot.slane %v10531, 2
        %v10534 = vshll.u32 %v10527, 16
        %v10536 = vrot.slane %v10534, 3
        %v10537 = vor.u32 %v10533, %v10536
        %v10539 = vshrl.u32 %v10528, 16
        %v10541 = vrot.slane %v10539, 2
        %v10542 = vshll.u32 %v10528, 16
        %v10544 = vrot.slane %v10542, 3
        %v10545 = vor.u32 %v10541, %v10544
        %v10546 = vsel %vm2255, %v10537, %v10545
        %v10548 = vshrl.u32 %v10529, 16
        %v10550 = vrot.slane %v10548, 2
        %v10551 = vshll.u32 %v10529, 16
        %v10553 = vrot.slane %v10551, 3
        %v10554 = vor.u32 %v10550, %v10553
        %v10555 = vsel %vm2255, %v10545, %v10554
        %v10575 = vunpack.c.l.b16 %v10499
        %v10576 = vunpack.c.h.b16 %v10499
        %v10577 = vunpack.c.l.b16 %v10500
        %v10578 = vunpack.c.h.b16 %v10500
        %v10579 = vunpack.c.l.b16 %v10501
        %v10580 = vunpack.c.h.b16 %v10501
        %v10581 = vunpack.c.l.b16 %v10502
        %v10582 = vunpack.c.h.b16 %v10502
        %v10583 = vunpack.c.l.b16 %v10503
        %v10584 = vunpack.c.h.b16 %v10503
        %v10585 = vunpack.c.l.b16 %v10504
        %v10586 = vunpack.c.h.b16 %v10504
        %v10587 = vunpack.c.l.b16 %v10505
        %v10588 = vunpack.c.h.b16 %v10505
        %v10589 = vunpack.c.l.b16 %v10506
        %v10590 = vunpack.c.h.b16 %v10506
        %v10591 = vunpack.c.l.b16 %v10507
        %v10592 = vunpack.c.h.b16 %v10507
        %v10593 = vunpack.c.l.b16 %v10508
        %v10594 = vunpack.c.h.b16 %v10508
        %v10595 = vunpack.c.l.b16 %v10509
        %v10596 = vunpack.c.h.b16 %v10509
        %v10597 = vunpack.c.l.b16 %v10510
        %v10598 = vunpack.c.h.b16 %v10510
        %v10599 = vunpack.c.l.b16 %v10511
        %v10600 = vunpack.c.h.b16 %v10511
        %v10601 = vunpack.c.l.b16 %v10512
        %v10602 = vunpack.c.h.b16 %v10512
        %v10603 = vunpack.c.l.b16 %v10513
        %v10604 = vunpack.c.h.b16 %v10513
        %v10605 = vunpack.c.l.b16 %v10514
        %v10606 = vunpack.c.h.b16 %v10514
        %v10607 = vpack.c.b16 %v10577, %v10575
        %v10608 = vpack.c.b16 %v10578, %v10576
        %v10609 = vpack.c.b16 %v10581, %v10579
        %v10610 = vpack.c.b16 %v10582, %v10580
        %v10611 = vpack.c.b16 %v10585, %v10583
        %v10612 = vpack.c.b16 %v10586, %v10584
        %v10613 = vpack.c.b16 %v10589, %v10587
        %v10614 = vpack.c.b16 %v10590, %v10588
        %v10615 = vpack.c.b16 %v10593, %v10591
        %v10616 = vpack.c.b16 %v10594, %v10592
        %v10617 = vpack.c.b16 %v10597, %v10595
        %v10618 = vpack.c.b16 %v10598, %v10596
        %v10619 = vpack.c.b16 %v10601, %v10599
        %v10620 = vpack.c.b16 %v10602, %v10600
        %v10621 = vpack.c.b16 %v10605, %v10603
        %v10622 = vpack.c.b16 %v10606, %v10604
        %10639 = vmatprep.subr.bf16.mxu0 %v10622
        %10640 = vmatpush1.bf16.msra.mxu0 %v10621
        %10641 = vmatprep.subr.bf16.mxu0 %v10620
        %10642 = vmatpush1.bf16.msra.mxu0 %v10619
        %10643 = vmatprep.subr.bf16.mxu0 %v10618
        %10644 = vmatpush1.bf16.msra.mxu0 %v10617
        %10645 = vmatprep.subr.bf16.mxu0 %v10616
        %10646 = vmatpush1.bf16.msra.mxu0 %v10615
        %10647 = vmatprep.subr.bf16.mxu0 %v10614
        %10648 = vmatpush1.bf16.msra.mxu0 %v10613
        %10649 = vmatprep.subr.bf16.mxu0 %v10612
        %10650 = vmatpush1.bf16.msra.mxu0 %v10611
        %10651 = vmatprep.subr.bf16.mxu0 %v10610
        %10652 = vmatpush1.bf16.msra.mxu0 %v10609
        %10653 = vmatprep.subr.bf16.mxu0 %v10608
        %10654 = vmatpush1.bf16.msra.mxu0 %v10607
        %10655 = vmatprep.subr.bf16.mxu0 0
        %10656 = vmatpush2.bf16.msra.mxu0 0
        %10657 = vmatprep.subr.bf16.mxu0 0
        %10658 = vmatpush2.bf16.msra.mxu0 0
        %10659 = vmatprep.subr.bf16.mxu0 0
        %10660 = vmatpush2.bf16.msra.mxu0 0
        %10661 = vmatprep.subr.bf16.mxu0 0
        %10662 = vmatpush2.bf16.msra.mxu0 0
        %10663 = vmatprep.subr.bf16.mxu0 0
        %10664 = vmatpush2.bf16.msra.mxu0 0
        %10665 = vmatprep.subr.bf16.mxu0 0
        %10666 = vmatpush2.bf16.msra.mxu0 0
        %10667 = vmatprep.subr.bf16.mxu0 0
        %10668 = vmatpush2.bf16.msra.mxu0 0
        %10669 = vmatprep.subr.bf16.mxu0 0
        %10670 = vmatpush2.bf16.msra.mxu0 0
        %10671 = vmatprep.mubr.bf16.mxu0 0
        %10672 = vmatmul.mubr.bf16.gmra.mxu0 %v10546
        %v10673 = vpop.f32.mrf.mxu0
        %v10674 = vadd.f32 0.0, %v10673
        %v10675 = vpop.f32.mrf.mxu0
        %v10676 = vadd.f32 0.0, %v10675
        %v10677 = vpop.f32.mrf.mxu0
        %v10678 = vadd.f32 0.0, %v10677
        %v10679 = vpop.f32.mrf.mxu0
        %v10680 = vadd.f32 0.0, %v10679
        %10681 = vmatprep.mubr.bf16.mxu0 0
        %10682 = vmatmul.mubr.bf16.gmra.mxu0 %v10555
        %v10683 = vpop.f32.mrf.mxu0
        %v10684 = vadd.f32 0.0, %v10683
        %v10685 = vpop.f32.mrf.mxu0
        %v10686 = vadd.f32 0.0, %v10685
        %v10687 = vpop.f32.mrf.mxu0
        %v10688 = vadd.f32 0.0, %v10687
        %v10689 = vpop.f32.mrf.mxu0
        %v10690 = vadd.f32 0.0, %v10689
        %10691 = vmatprep.mubr.bf16.mxu0 0
        %10692 = vmatmul.mubr.bf16.gmra.mxu0 %v10554
        %v10693 = vpop.f32.mrf.mxu0
        %v10694 = vadd.f32 0.0, %v10693
        %v10695 = vpop.f32.mrf.mxu0
        %v10696 = vadd.f32 0.0, %v10695
        %v10697 = vpop.f32.mrf.mxu0
        %v10698 = vpop.f32.mrf.mxu0
        %10699 = vdwg.mxu0
        %v10700 = vadd.f32 %v10482, %v10674
        %v10701 = vadd.f32 %v10483, %v10676
        %v10702 = vadd.f32 %v10484, %v10678
        %v10703 = vadd.f32 %v10485, %v10680
        %v10704 = vadd.f32 %v10486, %v10684
        %v10705 = vadd.f32 %v10487, %v10686
        %v10706 = vadd.f32 %v10488, %v10688
        %v10707 = vadd.f32 %v10489, %v10690
        %v10708 = vadd.f32 %v10490, %v10694
        %v10709 = vadd.f32 %v10491, %v10696
        %v10710 = vld [vmem:[#allocation6 + $0x4] sm:$0x8]
        %s10711 = scalar_lea.vmem %s20, 1024
        %v10712 = vld [vmem:[%s10711] sm:$0xff]
        %v10713 = vld [vmem:[%s10711 + $0x8] sm:$0xff]
        %v10714 = vld [vmem:[%s10711 + $0x10] sm:$0xff]
        %v10715 = vld [vmem:[%s10711 + $0x18] sm:$0xff]
        %v10716 = vld [vmem:[%s10711 + $0x20] sm:$0xff]
        %v10717 = vld [vmem:[%s10711 + $0x28] sm:$0xff]
        %v10718 = vld [vmem:[%s10711 + $0x30] sm:$0xff]
        %v10719 = vld [vmem:[%s10711 + $0x38] sm:$0xff]
        %v10720 = vld [vmem:[%s10711 + $0x40] sm:$0xff]
        %v10721 = vld [vmem:[%s10711 + $0x48] sm:$0xff]
        %v10722 = vld [vmem:[%s10711 + $0x50] sm:$0xff]
        %v10723 = vld [vmem:[%s10711 + $0x58] sm:$0xff]
        %v10724 = vld [vmem:[%s10711 + $0x60] sm:$0xff]
        %v10725 = vld [vmem:[%s10711 + $0x68] sm:$0xff]
        %v10726 = vld [vmem:[%s10711 + $0x70] sm:$0xff]
        %v10727 = vld [vmem:[%s10711 + $0x78] sm:$0xff]
        %v10729 = vunpack.c.l.b16 %v10710
        %v10730 = vpack.c.b16 %v10522, %v10729
        %v10731 = vrot.slane %v10730, 3
        %v10732 = vrot.slane %v10528, 3
        %v10733 = vsel %vm1446, %v10731, %v10732
        %v10734 = vrot.slane %v10529, 3
        %v10735 = vsel %vm1446, %v10732, %v10734
        %v10755 = vunpack.c.l.b16 %v10712
        %v10756 = vunpack.c.h.b16 %v10712
        %v10757 = vunpack.c.l.b16 %v10713
        %v10758 = vunpack.c.h.b16 %v10713
        %v10759 = vunpack.c.l.b16 %v10714
        %v10760 = vunpack.c.h.b16 %v10714
        %v10761 = vunpack.c.l.b16 %v10715
        %v10762 = vunpack.c.h.b16 %v10715
        %v10763 = vunpack.c.l.b16 %v10716
        %v10764 = vunpack.c.h.b16 %v10716
        %v10765 = vunpack.c.l.b16 %v10717
        %v10766 = vunpack.c.h.b16 %v10717
        %v10767 = vunpack.c.l.b16 %v10718
        %v10768 = vunpack.c.h.b16 %v10718
        %v10769 = vunpack.c.l.b16 %v10719
        %v10770 = vunpack.c.h.b16 %v10719
        %v10771 = vunpack.c.l.b16 %v10720
        %v10772 = vunpack.c.h.b16 %v10720
        %v10773 = vunpack.c.l.b16 %v10721
        %v10774 = vunpack.c.h.b16 %v10721
        %v10775 = vunpack.c.l.b16 %v10722
        %v10776 = vunpack.c.h.b16 %v10722
        %v10777 = vunpack.c.l.b16 %v10723
        %v10778 = vunpack.c.h.b16 %v10723
        %v10779 = vunpack.c.l.b16 %v10724
        %v10780 = vunpack.c.h.b16 %v10724
        %v10781 = vunpack.c.l.b16 %v10725
        %v10782 = vunpack.c.h.b16 %v10725
        %v10783 = vunpack.c.l.b16 %v10726
        %v10784 = vunpack.c.h.b16 %v10726
        %v10785 = vunpack.c.l.b16 %v10727
        %v10786 = vunpack.c.h.b16 %v10727
        %v10787 = vpack.c.b16 %v10757, %v10755
        %v10788 = vpack.c.b16 %v10758, %v10756
        %v10789 = vpack.c.b16 %v10761, %v10759
        %v10790 = vpack.c.b16 %v10762, %v10760
        %v10791 = vpack.c.b16 %v10765, %v10763
        %v10792 = vpack.c.b16 %v10766, %v10764
        %v10793 = vpack.c.b16 %v10769, %v10767
        %v10794 = vpack.c.b16 %v10770, %v10768
        %v10795 = vpack.c.b16 %v10773, %v10771
        %v10796 = vpack.c.b16 %v10774, %v10772
        %v10797 = vpack.c.b16 %v10777, %v10775
        %v10798 = vpack.c.b16 %v10778, %v10776
        %v10799 = vpack.c.b16 %v10781, %v10779
        %v10800 = vpack.c.b16 %v10782, %v10780
        %v10801 = vpack.c.b16 %v10785, %v10783
        %v10802 = vpack.c.b16 %v10786, %v10784
        %10819 = vmatprep.subr.bf16.mxu0 %v10802
        %10820 = vmatpush1.bf16.msra.mxu0 %v10801
        %10821 = vmatprep.subr.bf16.mxu0 %v10800
        %10822 = vmatpush1.bf16.msra.mxu0 %v10799
        %10823 = vmatprep.subr.bf16.mxu0 %v10798
        %10824 = vmatpush1.bf16.msra.mxu0 %v10797
        %10825 = vmatprep.subr.bf16.mxu0 %v10796
        %10826 = vmatpush1.bf16.msra.mxu0 %v10795
        %10827 = vmatprep.subr.bf16.mxu0 %v10794
        %10828 = vmatpush1.bf16.msra.mxu0 %v10793
        %10829 = vmatprep.subr.bf16.mxu0 %v10792
        %10830 = vmatpush1.bf16.msra.mxu0 %v10791
        %10831 = vmatprep.subr.bf16.mxu0 %v10790
        %10832 = vmatpush1.bf16.msra.mxu0 %v10789
        %10833 = vmatprep.subr.bf16.mxu0 %v10788
        %10834 = vmatpush1.bf16.msra.mxu0 %v10787
        %10835 = vmatprep.subr.bf16.mxu0 0
        %10836 = vmatpush2.bf16.msra.mxu0 0
        %10837 = vmatprep.subr.bf16.mxu0 0
        %10838 = vmatpush2.bf16.msra.mxu0 0
        %10839 = vmatprep.subr.bf16.mxu0 0
        %10840 = vmatpush2.bf16.msra.mxu0 0
        %10841 = vmatprep.subr.bf16.mxu0 0
        %10842 = vmatpush2.bf16.msra.mxu0 0
        %10843 = vmatprep.subr.bf16.mxu0 0
        %10844 = vmatpush2.bf16.msra.mxu0 0
        %10845 = vmatprep.subr.bf16.mxu0 0
        %10846 = vmatpush2.bf16.msra.mxu0 0
        %10847 = vmatprep.subr.bf16.mxu0 0
        %10848 = vmatpush2.bf16.msra.mxu0 0
        %10849 = vmatprep.subr.bf16.mxu0 0
        %10850 = vmatpush2.bf16.msra.mxu0 0
        %10851 = vmatprep.mubr.bf16.mxu0 0
        %10852 = vmatmul.mubr.bf16.gmra.mxu0 %v10733
        %v10853 = vpop.f32.mrf.mxu0
        %v10854 = vadd.f32 0.0, %v10853
        %v10855 = vpop.f32.mrf.mxu0
        %v10856 = vadd.f32 0.0, %v10855
        %v10857 = vpop.f32.mrf.mxu0
        %v10858 = vadd.f32 0.0, %v10857
        %v10859 = vpop.f32.mrf.mxu0
        %v10860 = vadd.f32 0.0, %v10859
        %10861 = vmatprep.mubr.bf16.mxu0 0
        %10862 = vmatmul.mubr.bf16.gmra.mxu0 %v10735
        %v10863 = vpop.f32.mrf.mxu0
        %v10864 = vadd.f32 0.0, %v10863
        %v10865 = vpop.f32.mrf.mxu0
        %v10866 = vadd.f32 0.0, %v10865
        %v10867 = vpop.f32.mrf.mxu0
        %v10868 = vadd.f32 0.0, %v10867
        %v10869 = vpop.f32.mrf.mxu0
        %v10870 = vadd.f32 0.0, %v10869
        %10871 = vmatprep.mubr.bf16.mxu0 0
        %10872 = vmatmul.mubr.bf16.gmra.mxu0 %v10734
        %v10873 = vpop.f32.mrf.mxu0
        %v10874 = vadd.f32 0.0, %v10873
        %v10875 = vpop.f32.mrf.mxu0
        %v10876 = vadd.f32 0.0, %v10875
        %v10877 = vpop.f32.mrf.mxu0
        %v10878 = vpop.f32.mrf.mxu0
        %10879 = vdwg.mxu0
        %v10880 = vadd.f32 %v10700, %v10854
        %v10881 = vadd.f32 %v10701, %v10856
        %v10882 = vadd.f32 %v10702, %v10858
        %v10883 = vadd.f32 %v10703, %v10860
        %v10884 = vadd.f32 %v10704, %v10864
        %v10885 = vadd.f32 %v10705, %v10866
        %v10886 = vadd.f32 %v10706, %v10868
        %v10887 = vadd.f32 %v10707, %v10870
        %v10888 = vadd.f32 %v10708, %v10874
        %v10889 = vadd.f32 %v10709, %v10876
        %v10890 = vld [vmem:[%s21] sm:$0x3]
        %v10892 = vlaneseq
        %v10893 = vshrl.u32 %v10892, 7
        %v10894 = vsub.s32 0, %v10893
        %v10895 = vrot.slane %v10890, %v10894
        %v10896 = vlaneseq
        %v10897 = vshrl.u32 %v10896, 7
        %v10898 = vsub.s32 1, %v10897
        %v10899 = vrot.slane %v10890, %v10898
        %v10902 = vadd.f32 %v10880, %v10895
        %v10903 = vadd.f32 %v10881, %v10899
        %v10904 = vadd.f32 %v10882, %v10895
        %v10905 = vadd.f32 %v10883, %v10899
        %v10906 = vadd.f32 %v10884, %v10895
        %v10907 = vadd.f32 %v10885, %v10899
        %v10908 = vadd.f32 %v10886, %v10895
        %v10909 = vadd.f32 %v10887, %v10899
        %v10910 = vadd.f32 %v10888, %v10895
        %v10911 = vadd.f32 %v10889, %v10899
        %v10912 = vxor.u32 %v10902, 2147483648
        %v10913 = vxor.u32 %v10903, 2147483648
        %v10914 = vxor.u32 %v10904, 2147483648
        %v10915 = vxor.u32 %v10905, 2147483648
        %v10916 = vxor.u32 %v10906, 2147483648
        %v10917 = vxor.u32 %v10907, 2147483648
        %v10918 = vxor.u32 %v10908, 2147483648
        %v10919 = vxor.u32 %v10909, 2147483648
        %v10920 = vxor.u32 %v10910, 2147483648
        %v10921 = vxor.u32 %v10911, 2147483648
        %v10922 = vmul.f32 %v10912, 1.442695
        %v10923 = vpow.pop %v10922
        %v10924 = vmul.f32 %v10913, 1.442695
        %v10925 = vpow.pop %v10924
        %v10926 = vmul.f32 %v10914, 1.442695
        %v10927 = vpow.pop %v10926
        %v10928 = vmul.f32 %v10915, 1.442695
        %v10929 = vpow.pop %v10928
        %v10930 = vmul.f32 %v10916, 1.442695
        %v10931 = vpow.pop %v10930
        %v10932 = vmul.f32 %v10917, 1.442695
        %v10933 = vpow.pop %v10932
        %v10934 = vmul.f32 %v10918, 1.442695
        %v10935 = vpow.pop %v10934
        %v10936 = vmul.f32 %v10919, 1.442695
        %v10937 = vpow.pop %v10936
        %v10938 = vmul.f32 %v10920, 1.442695
        %v10939 = vpow.pop %v10938
        %v10940 = vmul.f32 %v10921, 1.442695
        %v10941 = vpow.pop %v10940
        %v10942 = vadd.f32 %v10923, 1.0
        %v10943 = vadd.f32 %v10925, 1.0
        %v10944 = vadd.f32 %v10927, 1.0
        %v10945 = vadd.f32 %v10929, 1.0
        %v10946 = vadd.f32 %v10931, 1.0
        %v10947 = vadd.f32 %v10933, 1.0
        %v10948 = vadd.f32 %v10935, 1.0
        %v10949 = vadd.f32 %v10937, 1.0
        %v10950 = vadd.f32 %v10939, 1.0
        %v10951 = vadd.f32 %v10941, 1.0
        %v10952 = vrcp.pop %v10942
        %v10953 = vmul.f32 1.0, %v10952
        %v10954 = vrcp.pop %v10943
        %v10955 = vmul.f32 1.0, %v10954
        %v10956 = vrcp.pop %v10944
        %v10957 = vmul.f32 1.0, %v10956
        %v10958 = vrcp.pop %v10945
        %v10959 = vmul.f32 1.0, %v10958
        %v10960 = vrcp.pop %v10946
        %v10961 = vmul.f32 1.0, %v10960
        %v10962 = vrcp.pop %v10947
        %v10963 = vmul.f32 1.0, %v10962
        %v10964 = vrcp.pop %v10948
        %v10965 = vmul.f32 1.0, %v10964
        %v10966 = vrcp.pop %v10949
        %v10967 = vmul.f32 1.0, %v10966
        %v10968 = vrcp.pop %v10950
        %v10969 = vmul.f32 1.0, %v10968
        %v10970 = vrcp.pop %v10951
        %v10971 = vmul.f32 1.0, %v10970
        %v10972 = vmul.f32 %v10953, %v2659
        %v10973 = vmul.f32 %v10955, %v2659
        %v10974 = vmul.f32 %v10957, %v2664
        %v10975 = vmul.f32 %v10959, %v2664
        %v10976 = vmul.f32 %v10961, %v2669
        %v10977 = vmul.f32 %v10963, %v2669
        %v10978 = vmul.f32 %v10965, %v2674
        %v10979 = vmul.f32 %v10967, %v2674
        %v10980 = vmul.f32 %v10969, %v2679
        %v10981 = vmul.f32 %v10971, %v2679
        %10982 = vst [vmem:[%s770] sm:$0xff] %v10972
        %10983 = vst.msk [vmem:[%s770 + $0x8] sm:$0xff] %vm995, %v10973
        %10984 = vst [vmem:[%s770 + $0x10] sm:$0xff] %v10974
        %10985 = vst.msk [vmem:[%s770 + $0x18] sm:$0xff] %vm995, %v10975
        %10986 = vst [vmem:[%s770 + $0x20] sm:$0xff] %v10976
        %10987 = vst.msk [vmem:[%s770 + $0x28] sm:$0xff] %vm995, %v10977
        %10988 = vst [vmem:[%s770 + $0x30] sm:$0xff] %v10978
        %10989 = vst.msk [vmem:[%s770 + $0x38] sm:$0xff] %vm995, %v10979
        %10990 = vst [vmem:[%s770 + $0x40] sm:$0xf] %v10980
        %10991 = vst.msk [vmem:[%s770 + $0x48] sm:$0xf] %vm4137, %v10981
        %s10992 = sand.u32 %s522, 1
        %s10993 = scalar_lea.sflag [#allocation8], %s10992
        %s10994 = sand.u32 %s522, 1
        %s10995 = scalar_lea.vmem [#allocation7], %s10994
        %s10996 = sand.u32 %s548, 1
        %s10997 = scalar_lea.sflag [#allocation10], %s10996
        %s10998 = sand.u32 %s548, 1
        %s10999 = scalar_lea.vmem [#allocation9], %s10998
        %p11000 = scmp.lt.s32.totalorder %s42, 1
        %s11001 = scalar_select %p11000, %s42, 1
        %s11002 = smul.addr %s11001, 10
        %s11003 = smul.addr %s11002, 8
        %s11004 = scalar_lea.vmem %s24, %s11003
        // Predicated region
        $region109: #{forward.1} parent=107 // pred_check
          %p11005 = pneg %p532
        $region110: #{forward.1} parent=107 // pred_check_branch
          %11007 = sbr.rel (%p11005) target = $region112
        $region111: #{forward.1} parent=107 // pred_region
          %s11009 = ssub.s32 16, 16
          %11010 = vsyncadd %s10993, %s11009
          %s11011 = smul.addr %s42, 16
          %s11012 = scalar_lea.hbm %s22, %s11011
          %s11014 = sshll.u32 %s10995, 4
          %s11015 = int_to_ptr.vmem [resolvable:$true] %s11014
          %11017 = dma.vmem_to_hbm [thread:$0]  %s11015, 16, %s11012, %s10993
        $region112: #{forward.1} parent=107 // pred_fallthru
          _
        // Predicated region
        $region113: #{forward.1} parent=107 // pred_check
          %p11018 = pneg %p558
        $region114: #{forward.1} parent=107 // pred_check_branch
          %11020 = sbr.rel (%p11018) target = $region116
        $region115: #{forward.1} parent=107 // pred_region
          %s11022 = ssub.s32 16, 16
          %11023 = vsyncadd %s10997, %s11022
          %s11024 = smul.addr %s42, 16
          %s11025 = scalar_lea.hbm %s23, %s11024
          %s11027 = sshll.u32 %s10999, 4
          %s11028 = int_to_ptr.vmem [resolvable:$true] %s11027
          %11030 = dma.vmem_to_hbm [thread:$0]  %s11028, 16, %s11025, %s10997
        $region116: #{forward.1} parent=107 // pred_fallthru
          _
        // Predicated region
        $region117: #{forward.1} parent=107 // pred_check
          %p11031 = pneg %p584
        $region118: #{forward.1} parent=107 // pred_check_branch
          %11033 = sbr.rel (%p11031) target = $region120
        $region119: #{forward.1} parent=107 // pred_region
          _
        $region120: #{forward.1} parent=107 // pred_fallthru
          _
      $region108: #{forward.1} parent=5 // pred_fallthru
        _
      %p11034 = scmp.le.s32.totalorder 2, %s37
      // Predicated region
      $region121: #{forward.1} parent=5 // pred_check
        %p11035 = pneg %p11034
      $region122: #{forward.1} parent=5 // pred_check_branch
        %11037 = sbr.rel (%p11035) target = $region124
      $region123: #{forward.1} parent=5 // pred_region
        %s11038 = ssub.s32 %s37, 2
        // Predicated region
        $region125: #{forward.1} parent=123 // pred_check
          %p11039 = pneg %p538
        $region126: #{forward.1} parent=123 // pred_check_branch
          %11041 = sbr.rel (%p11039) target = $region128
        $region127: #{forward.1} parent=123 // pred_region
          %s11042 = sand.u32 %s523, 1
          %s11043 = scalar_lea.sflag [#allocation8], %s11042
          %s11044 = sand.u32 %s523, 1
          %s11045 = scalar_lea.vmem [#allocation7], %s11044
          %11046 = dma.done %s11043, 16
        $region128: #{forward.1} parent=123 // pred_fallthru
          _
        // Predicated region
        $region129: #{forward.1} parent=123 // pred_check
          %p11047 = pneg %p564
        $region130: #{forward.1} parent=123 // pred_check_branch
          %11049 = sbr.rel (%p11047) target = $region132
        $region131: #{forward.1} parent=123 // pred_region
          %s11050 = sand.u32 %s549, 1
          %s11051 = scalar_lea.sflag [#allocation10], %s11050
          %s11052 = sand.u32 %s549, 1
          %s11053 = scalar_lea.vmem [#allocation9], %s11052
          %11054 = dma.done %s11051, 16
        $region132: #{forward.1} parent=123 // pred_fallthru
          _
        // Predicated region
        $region133: #{forward.1} parent=123 // pred_check
          %p11055 = pneg %p590
        $region134: #{forward.1} parent=123 // pred_check_branch
          %11057 = sbr.rel (%p11055) target = $region136
        $region135: #{forward.1} parent=123 // pred_region
          %p11058 = scmp.lt.s32.totalorder %s43, 1
          %s11059 = scalar_select %p11058, %s43, 1
          %s11060 = smul.addr %s11059, 10
          %s11061 = smul.addr %s11060, 8
          %s11062 = scalar_lea.vmem %s24, %s11061
        $region136: #{forward.1} parent=123 // pred_fallthru
          _
      $region124: #{forward.1} parent=5 // pred_fallthru
        _
    $region6: #{forward.1} parent=1 // loop_footer
      %s41 = sadd.s32 1, %s37
    $region7: #{forward.1} parent=1 // loop_footer_branch
      %36 = sbr.rel target = $region3
    $region8: #{forward.1} parent=1 // loop_exit
      _
    %11063 = vsyncpa [#allocation8], 1
    %s11064 = scalar_lea.sflag [#allocation8], 1
    %11065 = vsyncpa %s11064, 1
    %11066 = vsyncpa [#allocation10], 1
    %s11067 = scalar_lea.sflag [#allocation10], 1
    %11068 = vsyncpa %s11067, 1

</llo_original>
